<compile_context>
chip_gen: v5e
topology: v5e:2x2
jax: 0.10.0
libtpu: 0.0.40
codegen_flags: <defaults>
</compile_context>

<pallas_src>
import functools

import jax
import jax.numpy as jnp
from jax.experimental import pallas as pl
from jax.experimental.pallas import tpu as pltpu

LEAKY_SLOPE = 0.01      # nn.LeakyReLU default
BN_EPS = 1e-5           # nn.BatchNorm2d default


def _leaky(v):
    return jnp.where(v >= 0, v, LEAKY_SLOPE * v)


def resblock_kernel(x_ref, w1_ref, w2_ref, w3_ref, w4_ref, w5_ref, cvec_ref,
                    pmat_ref, outA_ref, outB_ref,
                    xpad_ref, a1pad_ref, a2pad_ref):
    """One batch element per grid step.  All intermediates stay in VMEM.

    cvec rows: 0..4 = conv1..conv5 bias, 5/6 = bn1 scale/shift, 7/8 = bn2,
               9/10 = bn3, 11/12 = bn4 (BN folded to inference affine).
    """
    H = x_ref.shape[1]
    W = x_ref.shape[2]
    Cin = x_ref.shape[3]
    Cout = outA_ref.shape[1]
    N = H * W

    def cv(i):                                  # (1, Cout) per-channel row
        return cvec_ref[pl.ds(i, 1), :]

    x = x_ref[0]                                # (H, W, Cin)
    xm = x.reshape(N, Cin)

    # ---- conv1 (1x1) + LeakyReLU -> shortcut --------------------------------
    shortcut = _leaky(
        jnp.dot(xm, w1_ref[...], preferred_element_type=jnp.float32) + cv(0))

    # ---- conv2 (3x3, pad 1) + LeakyReLU + bn1 -> resA1 ----------------------
    xpad_ref[...] = jnp.zeros_like(xpad_ref)
    xpad_ref[pl.ds(1, H), pl.ds(1, W), :] = x
    acc = jnp.zeros((N, Cout), jnp.float32) + cv(1)
    for kh in range(3):
        for kw in range(3):
            tap = xpad_ref[pl.ds(kh, H), pl.ds(kw, W), :].reshape(N, Cin)
            acc = acc + jnp.dot(tap, w2_ref[kh * 3 + kw],
                                preferred_element_type=jnp.float32)
    resA1 = _leaky(acc) * cv(5) + cv(6)

    # ---- conv3 (3x3, dilation 2, pad 2) + LeakyReLU + bn2 -> resA2 ----------
    a1pad_ref[...] = jnp.zeros_like(a1pad_ref)
    a1pad_ref[pl.ds(2, H), pl.ds(2, W), :] = resA1.reshape(H, W, Cout)
    acc = jnp.zeros((N, Cout), jnp.float32) + cv(2)
    for kh in range(3):
        for kw in range(3):
            tap = a1pad_ref[pl.ds(2 * kh, H), pl.ds(2 * kw, W), :].reshape(N, Cout)
            acc = acc + jnp.dot(tap, w3_ref[kh * 3 + kw],
                                preferred_element_type=jnp.float32)
    resA2 = _leaky(acc) * cv(7) + cv(8)

    # ---- conv4 (2x2, dilation 2, pad 1) + LeakyReLU + bn3 -> resA3 ----------
    a2pad_ref[...] = jnp.zeros_like(a2pad_ref)
    a2pad_ref[pl.ds(1, H), pl.ds(1, W), :] = resA2.reshape(H, W, Cout)
    acc = jnp.zeros((N, Cout), jnp.float32) + cv(3)
    for kh in range(2):
        for kw in range(2):
            tap = a2pad_ref[pl.ds(2 * kh, H), pl.ds(2 * kw, W), :].reshape(N, Cout)
            acc = acc + jnp.dot(tap, w4_ref[kh * 2 + kw],
                                preferred_element_type=jnp.float32)
    resA3 = _leaky(acc) * cv(9) + cv(10)

    # ---- conv5 (1x1 on concat(resA1, resA2, resA3)) + LeakyReLU + bn4 -------
    # concat is expressed as a K-split: three (N, Cout) @ (Cout, Cout) dots.
    acc = (jnp.zeros((N, Cout), jnp.float32) + cv(4)
           + jnp.dot(resA1, w5_ref[0], preferred_element_type=jnp.float32)
           + jnp.dot(resA2, w5_ref[1], preferred_element_type=jnp.float32)
           + jnp.dot(resA3, w5_ref[2], preferred_element_type=jnp.float32))
    resA = _leaky(acc) * cv(11) + cv(12) + shortcut        # residual add

    # ---- lane-dense store: (Cout, N) with the pixel axis on lanes -----------
    resA_t = resA.T                                        # (Cout, N)
    outA_ref[0] = resA_t

    # Dropout2d is identity at inference; AvgPool(k x k) is one matmul with a
    # precomputed (N, Np) pooling matrix (0.25 at member pixels for k=2).
    # TODO(synk): training-mode Dropout2d masking and BatchNorm batch statistics
    # are not implemented; inference (eval) semantics are used.
    outB_ref[0] = jnp.dot(resA_t, pmat_ref[...],
                          preferred_element_type=jnp.float32)


@functools.partial(jax.jit, static_argnames=("pool_k",))
def resblock_forward(x, p, pool_k=2):
    """x: (B, Cin, H, W) f32 NCHW; p: dict of PyTorch-layout params.
    Returns (resB, resA) exactly like ResBlock.forward with pooling=True."""
    B, Cin, H, W = x.shape
    Cout = p['w1'].shape[0]
    N = H * W
    Hp, Wp = H // pool_k, W // pool_k
    Np = Hp * Wp

    x_nhwc = jnp.transpose(x, (0, 2, 3, 1))                        # (B,H,W,Cin)

    # ---- weight layout glue (channels-last matmul weights) ------------------
    w1_k = p['w1'][:, :, 0, 0].T                                   # (Cin, Cout)
    w2_k = jnp.transpose(p['w2'], (2, 3, 1, 0)).reshape(9, Cin, Cout)
    w3_k = jnp.transpose(p['w3'], (2, 3, 1, 0)).reshape(9, Cout, Cout)
    w4_k = jnp.transpose(p['w4'], (2, 3, 1, 0)).reshape(4, Cout, Cout)
    w5_k = p['w5'][:, :, 0, 0].T.reshape(3, Cout, Cout)            # split over concat groups

    def bn_fold(gamma, beta, mean, var):
        s = gamma * jax.lax.rsqrt(var + BN_EPS)
        return s, beta - mean * s

    s1, t1 = bn_fold(*p['bn1'])
    s2, t2 = bn_fold(*p['bn2'])
    s3, t3 = bn_fold(*p['bn3'])
    s4, t4 = bn_fold(*p['bn4'])
    cvec = jnp.stack([p['b1'], p['b2'], p['b3'], p['b4'], p['b5'],
                      s1, t1, s2, t2, s3, t3, s4, t4], axis=0)     # (13, Cout)

    # ---- AvgPool(k, stride=k, floor) as a (N, Np) matrix ---------------------
    hh = jnp.arange(H)[:, None]
    ww = jnp.arange(W)[None, :]
    valid = (hh < Hp * pool_k) & (ww < Wp * pool_k)
    cell = (hh // pool_k) * Wp + (ww // pool_k)
    cell = jnp.where(valid, cell, -1).reshape(N)
    pmat = (cell[:, None] == jnp.arange(Np)[None, :]).astype(jnp.float32)
    pmat = pmat / float(pool_k * pool_k)                           # (N, Np)

    flops = int(2 * B * N * Cout * (Cin + 9 * Cin + 9 * Cout + 4 * Cout
                                    + 3 * Cout + Np))
    bytes_acc = int(4 * (x.size + w1_k.size + w2_k.size + w3_k.size + w4_k.size
                         + w5_k.size + cvec.size + pmat.size
                         + B * Cout * N + B * Cout * Np))

    outA, outB = pl.pallas_call(
        resblock_kernel,
        out_shape=(jax.ShapeDtypeStruct((B, Cout, N), jnp.float32),
                   jax.ShapeDtypeStruct((B, Cout, Np), jnp.float32)),
        grid=(B,),
        in_specs=[
            pl.BlockSpec((1, H, W, Cin), lambda b: (b, 0, 0, 0)),
            pl.BlockSpec((Cin, Cout), lambda b: (0, 0)),
            pl.BlockSpec((9, Cin, Cout), lambda b: (0, 0, 0)),
            pl.BlockSpec((9, Cout, Cout), lambda b: (0, 0, 0)),
            pl.BlockSpec((4, Cout, Cout), lambda b: (0, 0, 0)),
            pl.BlockSpec((3, Cout, Cout), lambda b: (0, 0, 0)),
            pl.BlockSpec((13, Cout), lambda b: (0, 0)),
            pl.BlockSpec((N, Np), lambda b: (0, 0)),
        ],
        out_specs=[
            pl.BlockSpec((1, Cout, N), lambda b: (b, 0, 0)),
            pl.BlockSpec((1, Cout, Np), lambda b: (b, 0, 0)),
        ],
        scratch_shapes=[
            pltpu.VMEM((H + 2, W + 2, Cin), jnp.float32),   # conv2 halo (pad 1)
            pltpu.VMEM((H + 4, W + 4, Cout), jnp.float32),  # conv3 halo (pad 2)
            pltpu.VMEM((H + 2, W + 2, Cout), jnp.float32),  # conv4 halo (pad 1)
        ],
        compiler_params=pltpu.CompilerParams(
            dimension_semantics=("parallel",),
            vmem_limit_bytes=32 * 1024 * 1024),
        cost_estimate=pl.CostEstimate(flops=flops, transcendentals=0,
                                      bytes_accessed=bytes_acc),
    )(x_nhwc, w1_k, w2_k, w3_k, w4_k, w5_k, cvec, pmat)

    resA = outA.reshape(B, Cout, H, W)        # free reshape: already channel-major
    resB = outB.reshape(B, Cout, Hp, Wp)
    return resB, resA


# ----------------------------- pure-JAX reference -----------------------------
def reference_forward(x, p, pool_k=2):
    def conv(h, w, b, padding=0, dilation=1):
        out = jax.lax.conv_general_dilated(
            h, w, window_strides=(1, 1),
            padding=((padding, padding), (padding, padding)),
            rhs_dilation=(dilation, dilation),
            dimension_numbers=('NCHW', 'OIHW', 'NCHW'),
            precision=jax.lax.Precision.HIGHEST)
        return out + b.reshape(1, -1, 1, 1)

    def bn(v, gamma, beta, mean, var):
        s = gamma / jnp.sqrt(var + BN_EPS)
        return ((v - mean.reshape(1, -1, 1, 1)) * s.reshape(1, -1, 1, 1)
                + beta.reshape(1, -1, 1, 1))

    shortcut = _leaky(conv(x, p['w1'], p['b1']))
    resA = _leaky(conv(x, p['w2'], p['b2'], padding=1))
    resA1 = bn(resA, *p['bn1'])
    resA = _leaky(conv(resA1, p['w3'], p['b3'], padding=2, dilation=2))
    resA2 = bn(resA, *p['bn2'])
    resA = _leaky(conv(resA2, p['w4'], p['b4'], padding=1, dilation=2))
    resA3 = bn(resA, *p['bn3'])
    concat = jnp.concatenate([resA1, resA2, resA3], axis=1)
    resA = bn(_leaky(conv(concat, p['w5'], p['b5'])), *p['bn4'])
    resA = shortcut + resA
    B, C, H, W = resA.shape
    Hp, Wp = H // pool_k, W // pool_k
    resB = resA[:, :, :Hp * pool_k, :Wp * pool_k]
    resB = resB.reshape(B, C, Hp, pool_k, Wp, pool_k).mean(axis=(3, 5))
    return resB, resA


if __name__ == "__main__":
    # ResBlock(in_filters=4, out_filters=32, dropout_rate=0.2, kernel_size=(2,2),
    #          pooling=True, drop_out=True) at inference.
    B, Cin, Cout, H, W = 2, 4, 32, 16, 16
    POOL_K = 2

    key = jax.random.PRNGKey(0)
    ks = jax.random.split(key, 16)

    def uconv(k, shape):
        fan_in = shape[1] * shape[2] * shape[3]
        bound = float(fan_in) ** -0.5
        return jax.random.uniform(k, shape, jnp.float32, -bound, bound)

    def ubias(k, cout, fan_in):
        bound = float(fan_in) ** -0.5
        return jax.random.uniform(k, (cout,), jnp.float32, -bound, bound)

    def bn_params(k, c):
        k1, k2, k3, k4 = jax.random.split(k, 4)
        gamma = 1.0 + 0.1 * jax.random.normal(k1, (c,), jnp.float32)
        beta = 0.1 * jax.random.normal(k2, (c,), jnp.float32)
        mean = 0.1 * jax.random.normal(k3, (c,), jnp.float32)
        var = jax.random.uniform(k4, (c,), jnp.float32, 0.5, 1.5)
        return (gamma, beta, mean, var)

    params = {
        'w1': uconv(ks[0], (Cout, Cin, 1, 1)),   'b1': ubias(ks[1], Cout, Cin),
        'w2': uconv(ks[2], (Cout, Cin, 3, 3)),   'b2': ubias(ks[3], Cout, Cin * 9),
        'w3': uconv(ks[4], (Cout, Cout, 3, 3)),  'b3': ubias(ks[5], Cout, Cout * 9),
        'w4': uconv(ks[6], (Cout, Cout, 2, 2)),  'b4': ubias(ks[7], Cout, Cout * 4),
        'w5': uconv(ks[8], (Cout, 3 * Cout, 1, 1)), 'b5': ubias(ks[9], Cout, 3 * Cout),
        'bn1': bn_params(ks[10], Cout), 'bn2': bn_params(ks[11], Cout),
        'bn3': bn_params(ks[12], Cout), 'bn4': bn_params(ks[13], Cout),
    }
    x = jax.random.normal(ks[14], (B, Cin, H, W), jnp.float32)

    resB, resA = resblock_forward(x, params, pool_k=POOL_K)
    resB = jax.block_until_ready(resB)
    resA = jax.block_until_ready(resA)
    assert resA.shape == (B, Cout, H, W)
    assert resB.shape == (B, Cout, H // POOL_K, W // POOL_K)

    refB, refA = reference_forward(x, params, pool_k=POOL_K)
    errA = float(jnp.max(jnp.abs(resA - refA)))
    errB = float(jnp.max(jnp.abs(resB - refB)))
    if max(errA, errB) < 5e-3:
        print("KERNEL_OK")
    else:
        print("max abs err (resA, resB):", errA, errB)
</pallas_src>

<mosaic_0001>
module attributes {stable_mosaic.version = 11 : i64} {
  func.func @resblock_kernel(%arg0: i32, %arg1: memref<1x16x16x4xf32, #tpu.memory_space<vmem>>, %arg2: memref<4x32xf32, #tpu.memory_space<vmem>>, %arg3: memref<9x4x32xf32, #tpu.memory_space<vmem>>, %arg4: memref<9x32x32xf32, #tpu.memory_space<vmem>>, %arg5: memref<4x32x32xf32, #tpu.memory_space<vmem>>, %arg6: memref<3x32x32xf32, #tpu.memory_space<vmem>>, %arg7: memref<13x32xf32, #tpu.memory_space<vmem>>, %arg8: memref<256x64xf32, #tpu.memory_space<vmem>>, %arg9: memref<1x32x256xf32, #tpu.memory_space<vmem>>, %arg10: memref<1x32x64xf32, #tpu.memory_space<vmem>>, %arg11: memref<18x18x4xf32, #tpu.memory_space<vmem>>, %arg12: memref<20x20x32xf32, #tpu.memory_space<vmem>>, %arg13: memref<18x18x32xf32, #tpu.memory_space<vmem>>) attributes {dimension_semantics = [#tpu.dimension_semantics<parallel>], iteration_bounds = array<i64: 2>, scalar_prefetch = 0 : i64, scratch_operands = 3 : i64, tpu.core_type = #tpu.core_type<tc>, window_params = [{transform_indices = @transform_0, window_bounds = array<i64: 1, 16, 16, 4>}, {pipeline_mode = #tpu.pipeline_mode<synchronous>, transform_indices = @transform_1, window_bounds = array<i64: 4, 32>}, {pipeline_mode = #tpu.pipeline_mode<synchronous>, transform_indices = @transform_2, window_bounds = array<i64: 9, 4, 32>}, {pipeline_mode = #tpu.pipeline_mode<synchronous>, transform_indices = @transform_3, window_bounds = array<i64: 9, 32, 32>}, {pipeline_mode = #tpu.pipeline_mode<synchronous>, transform_indices = @transform_4, window_bounds = array<i64: 4, 32, 32>}, {pipeline_mode = #tpu.pipeline_mode<synchronous>, transform_indices = @transform_5, window_bounds = array<i64: 3, 32, 32>}, {pipeline_mode = #tpu.pipeline_mode<synchronous>, transform_indices = @transform_6, window_bounds = array<i64: 13, 32>}, {pipeline_mode = #tpu.pipeline_mode<synchronous>, transform_indices = @transform_7, window_bounds = array<i64: 256, 64>}, {transform_indices = @transform_8, window_bounds = array<i64: 1, 32, 256>}, {transform_indices = @transform_9, window_bounds = array<i64: 1, 32, 64>}]} {
    %c0 = arith.constant 0 : index
    %c0_0 = arith.constant 0 : index
    %c0_1 = arith.constant 0 : index
    %c0_2 = arith.constant 0 : index
    %0 = vector.load %arg1[%c0, %c0_0, %c0_1, %c0_2] : memref<1x16x16x4xf32, #tpu.memory_space<vmem>>, vector<1x16x16x4xf32>
    %1 = vector.shape_cast %0 : vector<1x16x16x4xf32> to vector<16x16x4xf32>
    %2 = vector.shape_cast %1 : vector<16x16x4xf32> to vector<256x4xf32>
    %c0_3 = arith.constant 0 : index
    %c0_4 = arith.constant 0 : index
    %3 = vector.load %arg2[%c0_3, %c0_4] : memref<4x32xf32, #tpu.memory_space<vmem>>, vector<4x32xf32>
    %cst = arith.constant dense<0.000000e+00> : vector<256x32xf32>
    %4 = tpu.matmul %2, %3, %cst {dimension_numbers = #tpu.dot_dimension_numbers<[1], [0], [0], [1], [0, 0, 1, 1], [], []>} : vector<256x4xf32>, vector<4x32xf32>, vector<256x32xf32> -> vector<256x32xf32>
    %c0_5 = arith.constant 0 : index
    %c0_6 = arith.constant 0 : index
    %5 = vector.load %arg7[%c0_5, %c0_6] : memref<13x32xf32, #tpu.memory_space<vmem>>, vector<1x32xf32>
    %6 = vector.broadcast %5 : vector<1x32xf32> to vector<256x32xf32>
    %7 = arith.addf %4, %6 : vector<256x32xf32>
    %cst_7 = arith.constant 0.000000e+00 : f32
    %8 = vector.broadcast %cst_7 : f32 to vector<256x32xf32>
    %9 = arith.cmpf oge, %7, %8 : vector<256x32xf32>
    %cst_8 = arith.constant 0.00999999977 : f32
    %10 = vector.broadcast %cst_8 : f32 to vector<256x32xf32>
    %11 = arith.mulf %10, %7 : vector<256x32xf32>
    %12 = arith.select %9, %7, %11 : vector<256x32xi1>, vector<256x32xf32>
    %cst_9 = arith.constant 0.000000e+00 : f32
    %13 = vector.broadcast %cst_9 : f32 to vector<18x18x4xf32>
    %c0_10 = arith.constant 0 : index
    %c0_11 = arith.constant 0 : index
    %c0_12 = arith.constant 0 : index
    %14 = vector.load %arg11[%c0_10, %c0_11, %c0_12] : memref<18x18x4xf32, #tpu.memory_space<vmem>>, vector<18x18x4xf32>
    tpu.vector_store %arg11[%c0_10, %c0_11, %c0_12], %13 {strides = array<i32>} : memref<18x18x4xf32, #tpu.memory_space<vmem>>, vector<18x18x4xf32>,
    %c1 = arith.constant 1 : index
    %c1_13 = arith.constant 1 : index
    %c0_14 = arith.constant 0 : index
    %15 = vector.load %arg11[%c1, %c1_13, %c0_14] : memref<18x18x4xf32, #tpu.memory_space<vmem>>, vector<16x16x4xf32>
    tpu.vector_store %arg11[%c1, %c1_13, %c0_14], %1 {strides = array<i32>} : memref<18x18x4xf32, #tpu.memory_space<vmem>>, vector<16x16x4xf32>,
    %cst_15 = arith.constant 0.000000e+00 : f32
    %16 = vector.broadcast %cst_15 : f32 to vector<256x32xf32>
    %c1_16 = arith.constant 1 : index
    %c0_17 = arith.constant 0 : index
    %17 = vector.load %arg7[%c1_16, %c0_17] : memref<13x32xf32, #tpu.memory_space<vmem>>, vector<1x32xf32>
    %18 = vector.broadcast %17 : vector<1x32xf32> to vector<256x32xf32>
    %19 = arith.addf %16, %18 : vector<256x32xf32>
    %c0_18 = arith.constant 0 : index
    %c0_19 = arith.constant 0 : index
    %c0_20 = arith.constant 0 : index
    %20 = vector.load %arg11[%c0_18, %c0_19, %c0_20] : memref<18x18x4xf32, #tpu.memory_space<vmem>>, vector<16x16x4xf32>
    %21 = vector.shape_cast %20 : vector<16x16x4xf32> to vector<256x4xf32>
    %c0_21 = arith.constant 0 : index
    %c0_22 = arith.constant 0 : index
    %c0_23 = arith.constant 0 : index
    %22 = vector.load %arg3[%c0_21, %c0_22, %c0_23] : memref<9x4x32xf32, #tpu.memory_space<vmem>>, vector<1x4x32xf32>
    %23 = vector.shape_cast %22 : vector<1x4x32xf32> to vector<4x32xf32>
    %cst_24 = arith.constant dense<0.000000e+00> : vector<256x32xf32>
    %24 = tpu.matmul %21, %23, %cst_24 {dimension_numbers = #tpu.dot_dimension_numbers<[1], [0], [0], [1], [0, 0, 1, 1], [], []>} : vector<256x4xf32>, vector<4x32xf32>, vector<256x32xf32> -> vector<256x32xf32>
    %25 = arith.addf %19, %24 : vector<256x32xf32>
    %c0_25 = arith.constant 0 : index
    %c1_26 = arith.constant 1 : index
    %c0_27 = arith.constant 0 : index
    %26 = vector.load %arg11[%c0_25, %c1_26, %c0_27] : memref<18x18x4xf32, #tpu.memory_space<vmem>>, vector<16x16x4xf32>
    %27 = vector.shape_cast %26 : vector<16x16x4xf32> to vector<256x4xf32>
    %c1_28 = arith.constant 1 : index
    %c0_29 = arith.constant 0 : index
    %c0_30 = arith.constant 0 : index
    %28 = vector.load %arg3[%c1_28, %c0_29, %c0_30] : memref<9x4x32xf32, #tpu.memory_space<vmem>>, vector<1x4x32xf32>
    %29 = vector.shape_cast %28 : vector<1x4x32xf32> to vector<4x32xf32>
    %cst_31 = arith.constant dense<0.000000e+00> : vector<256x32xf32>
    %30 = tpu.matmul %27, %29, %cst_31 {dimension_numbers = #tpu.dot_dimension_numbers<[1], [0], [0], [1], [0, 0, 1, 1], [], []>} : vector<256x4xf32>, vector<4x32xf32>, vector<256x32xf32> -> vector<256x32xf32>
    %31 = arith.addf %25, %30 : vector<256x32xf32>
    %c0_32 = arith.constant 0 : index
    %c2 = arith.constant 2 : index
    %c0_33 = arith.constant 0 : index
    %32 = vector.load %arg11[%c0_32, %c2, %c0_33] : memref<18x18x4xf32, #tpu.memory_space<vmem>>, vector<16x16x4xf32>
    %33 = vector.shape_cast %32 : vector<16x16x4xf32> to vector<256x4xf32>
    %c2_34 = arith.constant 2 : index
    %c0_35 = arith.constant 0 : index
    %c0_36 = arith.constant 0 : index
    %34 = vector.load %arg3[%c2_34, %c0_35, %c0_36] : memref<9x4x32xf32, #tpu.memory_space<vmem>>, vector<1x4x32xf32>
    %35 = vector.shape_cast %34 : vector<1x4x32xf32> to vector<4x32xf32>
    %cst_37 = arith.constant dense<0.000000e+00> : vector<256x32xf32>
    %36 = tpu.matmul %33, %35, %cst_37 {dimension_numbers = #tpu.dot_dimension_numbers<[1], [0], [0], [1], [0, 0, 1, 1], [], []>} : vector<256x4xf32>, vector<4x32xf32>, vector<256x32xf32> -> vector<256x32xf32>
    %37 = arith.addf %31, %36 : vector<256x32xf32>
    %c1_38 = arith.constant 1 : index
    %c0_39 = arith.constant 0 : index
    %c0_40 = arith.constant 0 : index
    %38 = vector.load %arg11[%c1_38, %c0_39, %c0_40] : memref<18x18x4xf32, #tpu.memory_space<vmem>>, vector<16x16x4xf32>
    %39 = vector.shape_cast %38 : vector<16x16x4xf32> to vector<256x4xf32>
    %c3 = arith.constant 3 : index
    %c0_41 = arith.constant 0 : index
    %c0_42 = arith.constant 0 : index
    %40 = vector.load %arg3[%c3, %c0_41, %c0_42] : memref<9x4x32xf32, #tpu.memory_space<vmem>>, vector<1x4x32xf32>
    %41 = vector.shape_cast %40 : vector<1x4x32xf32> to vector<4x32xf32>
    %cst_43 = arith.constant dense<0.000000e+00> : vector<256x32xf32>
    %42 = tpu.matmul %39, %41, %cst_43 {dimension_numbers = #tpu.dot_dimension_numbers<[1], [0], [0], [1], [0, 0, 1, 1], [], []>} : vector<256x4xf32>, vector<4x32xf32>, vector<256x32xf32> -> vector<256x32xf32>
    %43 = arith.addf %37, %42 : vector<256x32xf32>
    %c1_44 = arith.constant 1 : index
    %c1_45 = arith.constant 1 : index
    %c0_46 = arith.constant 0 : index
    %44 = vector.load %arg11[%c1_44, %c1_45, %c0_46] : memref<18x18x4xf32, #tpu.memory_space<vmem>>, vector<16x16x4xf32>
    %45 = vector.shape_cast %44 : vector<16x16x4xf32> to vector<256x4xf32>
    %c4 = arith.constant 4 : index
    %c0_47 = arith.constant 0 : index
    %c0_48 = arith.constant 0 : index
    %46 = vector.load %arg3[%c4, %c0_47, %c0_48] : memref<9x4x32xf32, #tpu.memory_space<vmem>>, vector<1x4x32xf32>
    %47 = vector.shape_cast %46 : vector<1x4x32xf32> to vector<4x32xf32>
    %cst_49 = arith.constant dense<0.000000e+00> : vector<256x32xf32>
    %48 = tpu.matmul %45, %47, %cst_49 {dimension_numbers = #tpu.dot_dimension_numbers<[1], [0], [0], [1], [0, 0, 1, 1], [], []>} : vector<256x4xf32>, vector<4x32xf32>, vector<256x32xf32> -> vector<256x32xf32>
    %49 = arith.addf %43, %48 : vector<256x32xf32>
    %c1_50 = arith.constant 1 : index
    %c2_51 = arith.constant 2 : index
    %c0_52 = arith.constant 0 : index
    %50 = vector.load %arg11[%c1_50, %c2_51, %c0_52] : memref<18x18x4xf32, #tpu.memory_space<vmem>>, vector<16x16x4xf32>
    %51 = vector.shape_cast %50 : vector<16x16x4xf32> to vector<256x4xf32>
    %c5 = arith.constant 5 : index
    %c0_53 = arith.constant 0 : index
    %c0_54 = arith.constant 0 : index
    %52 = vector.load %arg3[%c5, %c0_53, %c0_54] : memref<9x4x32xf32, #tpu.memory_space<vmem>>, vector<1x4x32xf32>
    %53 = vector.shape_cast %52 : vector<1x4x32xf32> to vector<4x32xf32>
    %cst_55 = arith.constant dense<0.000000e+00> : vector<256x32xf32>
    %54 = tpu.matmul %51, %53, %cst_55 {dimension_numbers = #tpu.dot_dimension_numbers<[1], [0], [0], [1], [0, 0, 1, 1], [], []>} : vector<256x4xf32>, vector<4x32xf32>, vector<256x32xf32> -> vector<256x32xf32>
    %55 = arith.addf %49, %54 : vector<256x32xf32>
    %c2_56 = arith.constant 2 : index
    %c0_57 = arith.constant 0 : index
    %c0_58 = arith.constant 0 : index
    %56 = vector.load %arg11[%c2_56, %c0_57, %c0_58] : memref<18x18x4xf32, #tpu.memory_space<vmem>>, vector<16x16x4xf32>
    %57 = vector.shape_cast %56 : vector<16x16x4xf32> to vector<256x4xf32>
    %c6 = arith.constant 6 : index
    %c0_59 = arith.constant 0 : index
    %c0_60 = arith.constant 0 : index
    %58 = vector.load %arg3[%c6, %c0_59, %c0_60] : memref<9x4x32xf32, #tpu.memory_space<vmem>>, vector<1x4x32xf32>
    %59 = vector.shape_cast %58 : vector<1x4x32xf32> to vector<4x32xf32>
    %cst_61 = arith.constant dense<0.000000e+00> : vector<256x32xf32>
    %60 = tpu.matmul %57, %59, %cst_61 {dimension_numbers = #tpu.dot_dimension_numbers<[1], [0], [0], [1], [0, 0, 1, 1], [], []>} : vector<256x4xf32>, vector<4x32xf32>, vector<256x32xf32> -> vector<256x32xf32>
    %61 = arith.addf %55, %60 : vector<256x32xf32>
    %c2_62 = arith.constant 2 : index
    %c1_63 = arith.constant 1 : index
    %c0_64 = arith.constant 0 : index
    %62 = vector.load %arg11[%c2_62, %c1_63, %c0_64] : memref<18x18x4xf32, #tpu.memory_space<vmem>>, vector<16x16x4xf32>
    %63 = vector.shape_cast %62 : vector<16x16x4xf32> to vector<256x4xf32>
    %c7 = arith.constant 7 : index
    %c0_65 = arith.constant 0 : index
    %c0_66 = arith.constant 0 : index
    %64 = vector.load %arg3[%c7, %c0_65, %c0_66] : memref<9x4x32xf32, #tpu.memory_space<vmem>>, vector<1x4x32xf32>
    %65 = vector.shape_cast %64 : vector<1x4x32xf32> to vector<4x32xf32>
    %cst_67 = arith.constant dense<0.000000e+00> : vector<256x32xf32>
    %66 = tpu.matmul %63, %65, %cst_67 {dimension_numbers = #tpu.dot_dimension_numbers<[1], [0], [0], [1], [0, 0, 1, 1], [], []>} : vector<256x4xf32>, vector<4x32xf32>, vector<256x32xf32> -> vector<256x32xf32>
    %67 = arith.addf %61, %66 : vector<256x32xf32>
    %c2_68 = arith.constant 2 : index
    %c2_69 = arith.constant 2 : index
    %c0_70 = arith.constant 0 : index
    %68 = vector.load %arg11[%c2_68, %c2_69, %c0_70] : memref<18x18x4xf32, #tpu.memory_space<vmem>>, vector<16x16x4xf32>
    %69 = vector.shape_cast %68 : vector<16x16x4xf32> to vector<256x4xf32>
    %c8 = arith.constant 8 : index
    %c0_71 = arith.constant 0 : index
    %c0_72 = arith.constant 0 : index
    %70 = vector.load %arg3[%c8, %c0_71, %c0_72] : memref<9x4x32xf32, #tpu.memory_space<vmem>>, vector<1x4x32xf32>
    %71 = vector.shape_cast %70 : vector<1x4x32xf32> to vector<4x32xf32>
    %cst_73 = arith.constant dense<0.000000e+00> : vector<256x32xf32>
    %72 = tpu.matmul %69, %71, %cst_73 {dimension_numbers = #tpu.dot_dimension_numbers<[1], [0], [0], [1], [0, 0, 1, 1], [], []>} : vector<256x4xf32>, vector<4x32xf32>, vector<256x32xf32> -> vector<256x32xf32>
    %73 = arith.addf %67, %72 : vector<256x32xf32>
    %cst_74 = arith.constant 0.000000e+00 : f32
    %74 = vector.broadcast %cst_74 : f32 to vector<256x32xf32>
    %75 = arith.cmpf oge, %73, %74 : vector<256x32xf32>
    %cst_75 = arith.constant 0.00999999977 : f32
    %76 = vector.broadcast %cst_75 : f32 to vector<256x32xf32>
    %77 = arith.mulf %76, %73 : vector<256x32xf32>
    %78 = arith.select %75, %73, %77 : vector<256x32xi1>, vector<256x32xf32>
    %c5_76 = arith.constant 5 : index
    %c0_77 = arith.constant 0 : index
    %79 = vector.load %arg7[%c5_76, %c0_77] : memref<13x32xf32, #tpu.memory_space<vmem>>, vector<1x32xf32>
    %80 = vector.broadcast %79 : vector<1x32xf32> to vector<256x32xf32>
    %81 = arith.mulf %78, %80 : vector<256x32xf32>
    %c6_78 = arith.constant 6 : index
    %c0_79 = arith.constant 0 : index
    %82 = vector.load %arg7[%c6_78, %c0_79] : memref<13x32xf32, #tpu.memory_space<vmem>>, vector<1x32xf32>
    %83 = vector.broadcast %82 : vector<1x32xf32> to vector<256x32xf32>
    %84 = arith.addf %81, %83 : vector<256x32xf32>
    %cst_80 = arith.constant 0.000000e+00 : f32
    %85 = vector.broadcast %cst_80 : f32 to vector<20x20x32xf32>
    %c0_81 = arith.constant 0 : index
    %c0_82 = arith.constant 0 : index
    %c0_83 = arith.constant 0 : index
    %86 = vector.load %arg12[%c0_81, %c0_82, %c0_83] : memref<20x20x32xf32, #tpu.memory_space<vmem>>, vector<20x20x32xf32>
    tpu.vector_store %arg12[%c0_81, %c0_82, %c0_83], %85 {strides = array<i32>} : memref<20x20x32xf32, #tpu.memory_space<vmem>>, vector<20x20x32xf32>,
    %87 = vector.shape_cast %84 : vector<256x32xf32> to vector<16x16x32xf32>
    %c2_84 = arith.constant 2 : index
    %c2_85 = arith.constant 2 : index
    %c0_86 = arith.constant 0 : index
    %88 = vector.load %arg12[%c2_84, %c2_85, %c0_86] : memref<20x20x32xf32, #tpu.memory_space<vmem>>, vector<16x16x32xf32>
    tpu.vector_store %arg12[%c2_84, %c2_85, %c0_86], %87 {strides = array<i32>} : memref<20x20x32xf32, #tpu.memory_space<vmem>>, vector<16x16x32xf32>,
    %cst_87 = arith.constant 0.000000e+00 : f32
    %89 = vector.broadcast %cst_87 : f32 to vector<256x32xf32>
    %c2_88 = arith.constant 2 : index
    %c0_89 = arith.constant 0 : index
    %90 = vector.load %arg7[%c2_88, %c0_89] : memref<13x32xf32, #tpu.memory_space<vmem>>, vector<1x32xf32>
    %91 = vector.broadcast %90 : vector<1x32xf32> to vector<256x32xf32>
    %92 = arith.addf %89, %91 : vector<256x32xf32>
    %c0_90 = arith.constant 0 : index
    %c0_91 = arith.constant 0 : index
    %c0_92 = arith.constant 0 : index
    %93 = vector.load %arg12[%c0_90, %c0_91, %c0_92] : memref<20x20x32xf32, #tpu.memory_space<vmem>>, vector<16x16x32xf32>
    %94 = vector.shape_cast %93 : vector<16x16x32xf32> to vector<256x32xf32>
    %c0_93 = arith.constant 0 : index
    %c0_94 = arith.constant 0 : index
    %c0_95 = arith.constant 0 : index
    %95 = vector.load %arg4[%c0_93, %c0_94, %c0_95] : memref<9x32x32xf32, #tpu.memory_space<vmem>>, vector<1x32x32xf32>
    %96 = vector.shape_cast %95 : vector<1x32x32xf32> to vector<32x32xf32>
    %cst_96 = arith.constant dense<0.000000e+00> : vector<256x32xf32>
    %97 = tpu.matmul %94, %96, %cst_96 {dimension_numbers = #tpu.dot_dimension_numbers<[1], [0], [0], [1], [0, 0, 1, 1], [], []>} : vector<256x32xf32>, vector<32x32xf32>, vector<256x32xf32> -> vector<256x32xf32>
    %98 = arith.addf %92, %97 : vector<256x32xf32>
    %c0_97 = arith.constant 0 : index
    %c2_98 = arith.constant 2 : index
    %c0_99 = arith.constant 0 : index
    %99 = vector.load %arg12[%c0_97, %c2_98, %c0_99] : memref<20x20x32xf32, #tpu.memory_space<vmem>>, vector<16x16x32xf32>
    %100 = vector.shape_cast %99 : vector<16x16x32xf32> to vector<256x32xf32>
    %c1_100 = arith.constant 1 : index
    %c0_101 = arith.constant 0 : index
    %c0_102 = arith.constant 0 : index
    %101 = vector.load %arg4[%c1_100, %c0_101, %c0_102] : memref<9x32x32xf32, #tpu.memory_space<vmem>>, vector<1x32x32xf32>
    %102 = vector.shape_cast %101 : vector<1x32x32xf32> to vector<32x32xf32>
    %cst_103 = arith.constant dense<0.000000e+00> : vector<256x32xf32>
    %103 = tpu.matmul %100, %102, %cst_103 {dimension_numbers = #tpu.dot_dimension_numbers<[1], [0], [0], [1], [0, 0, 1, 1], [], []>} : vector<256x32xf32>, vector<32x32xf32>, vector<256x32xf32> -> vector<256x32xf32>
    %104 = arith.addf %98, %103 : vector<256x32xf32>
    %c0_104 = arith.constant 0 : index
    %c4_105 = arith.constant 4 : index
    %c0_106 = arith.constant 0 : index
    %105 = vector.load %arg12[%c0_104, %c4_105, %c0_106] : memref<20x20x32xf32, #tpu.memory_space<vmem>>, vector<16x16x32xf32>
    %106 = vector.shape_cast %105 : vector<16x16x32xf32> to vector<256x32xf32>
    %c2_107 = arith.constant 2 : index
    %c0_108 = arith.constant 0 : index
    %c0_109 = arith.constant 0 : index
    %107 = vector.load %arg4[%c2_107, %c0_108, %c0_109] : memref<9x32x32xf32, #tpu.memory_space<vmem>>, vector<1x32x32xf32>
    %108 = vector.shape_cast %107 : vector<1x32x32xf32> to vector<32x32xf32>
    %cst_110 = arith.constant dense<0.000000e+00> : vector<256x32xf32>
    %109 = tpu.matmul %106, %108, %cst_110 {dimension_numbers = #tpu.dot_dimension_numbers<[1], [0], [0], [1], [0, 0, 1, 1], [], []>} : vector<256x32xf32>, vector<32x32xf32>, vector<256x32xf32> -> vector<256x32xf32>
    %110 = arith.addf %104, %109 : vector<256x32xf32>
    %c2_111 = arith.constant 2 : index
    %c0_112 = arith.constant 0 : index
    %c0_113 = arith.constant 0 : index
    %111 = vector.load %arg12[%c2_111, %c0_112, %c0_113] : memref<20x20x32xf32, #tpu.memory_space<vmem>>, vector<16x16x32xf32>
    %112 = vector.shape_cast %111 : vector<16x16x32xf32> to vector<256x32xf32>
    %c3_114 = arith.constant 3 : index
    %c0_115 = arith.constant 0 : index
    %c0_116 = arith.constant 0 : index
    %113 = vector.load %arg4[%c3_114, %c0_115, %c0_116] : memref<9x32x32xf32, #tpu.memory_space<vmem>>, vector<1x32x32xf32>
    %114 = vector.shape_cast %113 : vector<1x32x32xf32> to vector<32x32xf32>
    %cst_117 = arith.constant dense<0.000000e+00> : vector<256x32xf32>
    %115 = tpu.matmul %112, %114, %cst_117 {dimension_numbers = #tpu.dot_dimension_numbers<[1], [0], [0], [1], [0, 0, 1, 1], [], []>} : vector<256x32xf32>, vector<32x32xf32>, vector<256x32xf32> -> vector<256x32xf32>
    %116 = arith.addf %110, %115 : vector<256x32xf32>
    %c2_118 = arith.constant 2 : index
    %c2_119 = arith.constant 2 : index
    %c0_120 = arith.constant 0 : index
    %117 = vector.load %arg12[%c2_118, %c2_119, %c0_120] : memref<20x20x32xf32, #tpu.memory_space<vmem>>, vector<16x16x32xf32>
    %118 = vector.shape_cast %117 : vector<16x16x32xf32> to vector<256x32xf32>
    %c4_121 = arith.constant 4 : index
    %c0_122 = arith.constant 0 : index
    %c0_123 = arith.constant 0 : index
    %119 = vector.load %arg4[%c4_121, %c0_122, %c0_123] : memref<9x32x32xf32, #tpu.memory_space<vmem>>, vector<1x32x32xf32>
    %120 = vector.shape_cast %119 : vector<1x32x32xf32> to vector<32x32xf32>
    %cst_124 = arith.constant dense<0.000000e+00> : vector<256x32xf32>
    %121 = tpu.matmul %118, %120, %cst_124 {dimension_numbers = #tpu.dot_dimension_numbers<[1], [0], [0], [1], [0, 0, 1, 1], [], []>} : vector<256x32xf32>, vector<32x32xf32>, vector<256x32xf32> -> vector<256x32xf32>
    %122 = arith.addf %116, %121 : vector<256x32xf32>
    %c2_125 = arith.constant 2 : index
    %c4_126 = arith.constant 4 : index
    %c0_127 = arith.constant 0 : index
    %123 = vector.load %arg12[%c2_125, %c4_126, %c0_127] : memref<20x20x32xf32, #tpu.memory_space<vmem>>, vector<16x16x32xf32>
    %124 = vector.shape_cast %123 : vector<16x16x32xf32> to vector<256x32xf32>
    %c5_128 = arith.constant 5 : index
    %c0_129 = arith.constant 0 : index
    %c0_130 = arith.constant 0 : index
    %125 = vector.load %arg4[%c5_128, %c0_129, %c0_130] : memref<9x32x32xf32, #tpu.memory_space<vmem>>, vector<1x32x32xf32>
    %126 = vector.shape_cast %125 : vector<1x32x32xf32> to vector<32x32xf32>
    %cst_131 = arith.constant dense<0.000000e+00> : vector<256x32xf32>
    %127 = tpu.matmul %124, %126, %cst_131 {dimension_numbers = #tpu.dot_dimension_numbers<[1], [0], [0], [1], [0, 0, 1, 1], [], []>} : vector<256x32xf32>, vector<32x32xf32>, vector<256x32xf32> -> vector<256x32xf32>
    %128 = arith.addf %122, %127 : vector<256x32xf32>
    %c4_132 = arith.constant 4 : index
    %c0_133 = arith.constant 0 : index
    %c0_134 = arith.constant 0 : index
    %129 = vector.load %arg12[%c4_132, %c0_133, %c0_134] : memref<20x20x32xf32, #tpu.memory_space<vmem>>, vector<16x16x32xf32>
    %130 = vector.shape_cast %129 : vector<16x16x32xf32> to vector<256x32xf32>
    %c6_135 = arith.constant 6 : index
    %c0_136 = arith.constant 0 : index
    %c0_137 = arith.constant 0 : index
    %131 = vector.load %arg4[%c6_135, %c0_136, %c0_137] : memref<9x32x32xf32, #tpu.memory_space<vmem>>, vector<1x32x32xf32>
    %132 = vector.shape_cast %131 : vector<1x32x32xf32> to vector<32x32xf32>
    %cst_138 = arith.constant dense<0.000000e+00> : vector<256x32xf32>
    %133 = tpu.matmul %130, %132, %cst_138 {dimension_numbers = #tpu.dot_dimension_numbers<[1], [0], [0], [1], [0, 0, 1, 1], [], []>} : vector<256x32xf32>, vector<32x32xf32>, vector<256x32xf32> -> vector<256x32xf32>
    %134 = arith.addf %128, %133 : vector<256x32xf32>
    %c4_139 = arith.constant 4 : index
    %c2_140 = arith.constant 2 : index
    %c0_141 = arith.constant 0 : index
    %135 = vector.load %arg12[%c4_139, %c2_140, %c0_141] : memref<20x20x32xf32, #tpu.memory_space<vmem>>, vector<16x16x32xf32>
    %136 = vector.shape_cast %135 : vector<16x16x32xf32> to vector<256x32xf32>
    %c7_142 = arith.constant 7 : index
    %c0_143 = arith.constant 0 : index
    %c0_144 = arith.constant 0 : index
    %137 = vector.load %arg4[%c7_142, %c0_143, %c0_144] : memref<9x32x32xf32, #tpu.memory_space<vmem>>, vector<1x32x32xf32>
    %138 = vector.shape_cast %137 : vector<1x32x32xf32> to vector<32x32xf32>
    %cst_145 = arith.constant dense<0.000000e+00> : vector<256x32xf32>
    %139 = tpu.matmul %136, %138, %cst_145 {dimension_numbers = #tpu.dot_dimension_numbers<[1], [0], [0], [1], [0, 0, 1, 1], [], []>} : vector<256x32xf32>, vector<32x32xf32>, vector<256x32xf32> -> vector<256x32xf32>
    %140 = arith.addf %134, %139 : vector<256x32xf32>
    %c4_146 = arith.constant 4 : index
    %c4_147 = arith.constant 4 : index
    %c0_148 = arith.constant 0 : index
    %141 = vector.load %arg12[%c4_146, %c4_147, %c0_148] : memref<20x20x32xf32, #tpu.memory_space<vmem>>, vector<16x16x32xf32>
    %142 = vector.shape_cast %141 : vector<16x16x32xf32> to vector<256x32xf32>
    %c8_149 = arith.constant 8 : index
    %c0_150 = arith.constant 0 : index
    %c0_151 = arith.constant 0 : index
    %143 = vector.load %arg4[%c8_149, %c0_150, %c0_151] : memref<9x32x32xf32, #tpu.memory_space<vmem>>, vector<1x32x32xf32>
    %144 = vector.shape_cast %143 : vector<1x32x32xf32> to vector<32x32xf32>
    %cst_152 = arith.constant dense<0.000000e+00> : vector<256x32xf32>
    %145 = tpu.matmul %142, %144, %cst_152 {dimension_numbers = #tpu.dot_dimension_numbers<[1], [0], [0], [1], [0, 0, 1, 1], [], []>} : vector<256x32xf32>, vector<32x32xf32>, vector<256x32xf32> -> vector<256x32xf32>
    %146 = arith.addf %140, %145 : vector<256x32xf32>
    %cst_153 = arith.constant 0.000000e+00 : f32
    %147 = vector.broadcast %cst_153 : f32 to vector<256x32xf32>
    %148 = arith.cmpf oge, %146, %147 : vector<256x32xf32>
    %cst_154 = arith.constant 0.00999999977 : f32
    %149 = vector.broadcast %cst_154 : f32 to vector<256x32xf32>
    %150 = arith.mulf %149, %146 : vector<256x32xf32>
    %151 = arith.select %148, %146, %150 : vector<256x32xi1>, vector<256x32xf32>
    %c7_155 = arith.constant 7 : index
    %c0_156 = arith.constant 0 : index
    %152 = vector.load %arg7[%c7_155, %c0_156] : memref<13x32xf32, #tpu.memory_space<vmem>>, vector<1x32xf32>
    %153 = vector.broadcast %152 : vector<1x32xf32> to vector<256x32xf32>
    %154 = arith.mulf %151, %153 : vector<256x32xf32>
    %c8_157 = arith.constant 8 : index
    %c0_158 = arith.constant 0 : index
    %155 = vector.load %arg7[%c8_157, %c0_158] : memref<13x32xf32, #tpu.memory_space<vmem>>, vector<1x32xf32>
    %156 = vector.broadcast %155 : vector<1x32xf32> to vector<256x32xf32>
    %157 = arith.addf %154, %156 : vector<256x32xf32>
    %cst_159 = arith.constant 0.000000e+00 : f32
    %158 = vector.broadcast %cst_159 : f32 to vector<18x18x32xf32>
    %c0_160 = arith.constant 0 : index
    %c0_161 = arith.constant 0 : index
    %c0_162 = arith.constant 0 : index
    %159 = vector.load %arg13[%c0_160, %c0_161, %c0_162] : memref<18x18x32xf32, #tpu.memory_space<vmem>>, vector<18x18x32xf32>
    tpu.vector_store %arg13[%c0_160, %c0_161, %c0_162], %158 {strides = array<i32>} : memref<18x18x32xf32, #tpu.memory_space<vmem>>, vector<18x18x32xf32>,
    %160 = vector.shape_cast %157 : vector<256x32xf32> to vector<16x16x32xf32>
    %c1_163 = arith.constant 1 : index
    %c1_164 = arith.constant 1 : index
    %c0_165 = arith.constant 0 : index
    %161 = vector.load %arg13[%c1_163, %c1_164, %c0_165] : memref<18x18x32xf32, #tpu.memory_space<vmem>>, vector<16x16x32xf32>
    tpu.vector_store %arg13[%c1_163, %c1_164, %c0_165], %160 {strides = array<i32>} : memref<18x18x32xf32, #tpu.memory_space<vmem>>, vector<16x16x32xf32>,
    %cst_166 = arith.constant 0.000000e+00 : f32
    %162 = vector.broadcast %cst_166 : f32 to vector<256x32xf32>
    %c3_167 = arith.constant 3 : index
    %c0_168 = arith.constant 0 : index
    %163 = vector.load %arg7[%c3_167, %c0_168] : memref<13x32xf32, #tpu.memory_space<vmem>>, vector<1x32xf32>
    %164 = vector.broadcast %163 : vector<1x32xf32> to vector<256x32xf32>
    %165 = arith.addf %162, %164 : vector<256x32xf32>
    %c0_169 = arith.constant 0 : index
    %c0_170 = arith.constant 0 : index
    %c0_171 = arith.constant 0 : index
    %166 = vector.load %arg13[%c0_169, %c0_170, %c0_171] : memref<18x18x32xf32, #tpu.memory_space<vmem>>, vector<16x16x32xf32>
    %167 = vector.shape_cast %166 : vector<16x16x32xf32> to vector<256x32xf32>
    %c0_172 = arith.constant 0 : index
    %c0_173 = arith.constant 0 : index
    %c0_174 = arith.constant 0 : index
    %168 = vector.load %arg5[%c0_172, %c0_173, %c0_174] : memref<4x32x32xf32, #tpu.memory_space<vmem>>, vector<1x32x32xf32>
    %169 = vector.shape_cast %168 : vector<1x32x32xf32> to vector<32x32xf32>
    %cst_175 = arith.constant dense<0.000000e+00> : vector<256x32xf32>
    %170 = tpu.matmul %167, %169, %cst_175 {dimension_numbers = #tpu.dot_dimension_numbers<[1], [0], [0], [1], [0, 0, 1, 1], [], []>} : vector<256x32xf32>, vector<32x32xf32>, vector<256x32xf32> -> vector<256x32xf32>
    %171 = arith.addf %165, %170 : vector<256x32xf32>
    %c0_176 = arith.constant 0 : index
    %c2_177 = arith.constant 2 : index
    %c0_178 = arith.constant 0 : index
    %172 = vector.load %arg13[%c0_176, %c2_177, %c0_178] : memref<18x18x32xf32, #tpu.memory_space<vmem>>, vector<16x16x32xf32>
    %173 = vector.shape_cast %172 : vector<16x16x32xf32> to vector<256x32xf32>
    %c1_179 = arith.constant 1 : index
    %c0_180 = arith.constant 0 : index
    %c0_181 = arith.constant 0 : index
    %174 = vector.load %arg5[%c1_179, %c0_180, %c0_181] : memref<4x32x32xf32, #tpu.memory_space<vmem>>, vector<1x32x32xf32>
    %175 = vector.shape_cast %174 : vector<1x32x32xf32> to vector<32x32xf32>
    %cst_182 = arith.constant dense<0.000000e+00> : vector<256x32xf32>
    %176 = tpu.matmul %173, %175, %cst_182 {dimension_numbers = #tpu.dot_dimension_numbers<[1], [0], [0], [1], [0, 0, 1, 1], [], []>} : vector<256x32xf32>, vector<32x32xf32>, vector<256x32xf32> -> vector<256x32xf32>
    %177 = arith.addf %171, %176 : vector<256x32xf32>
    %c2_183 = arith.constant 2 : index
    %c0_184 = arith.constant 0 : index
    %c0_185 = arith.constant 0 : index
    %178 = vector.load %arg13[%c2_183, %c0_184, %c0_185] : memref<18x18x32xf32, #tpu.memory_space<vmem>>, vector<16x16x32xf32>
    %179 = vector.shape_cast %178 : vector<16x16x32xf32> to vector<256x32xf32>
    %c2_186 = arith.constant 2 : index
    %c0_187 = arith.constant 0 : index
    %c0_188 = arith.constant 0 : index
    %180 = vector.load %arg5[%c2_186, %c0_187, %c0_188] : memref<4x32x32xf32, #tpu.memory_space<vmem>>, vector<1x32x32xf32>
    %181 = vector.shape_cast %180 : vector<1x32x32xf32> to vector<32x32xf32>
    %cst_189 = arith.constant dense<0.000000e+00> : vector<256x32xf32>
    %182 = tpu.matmul %179, %181, %cst_189 {dimension_numbers = #tpu.dot_dimension_numbers<[1], [0], [0], [1], [0, 0, 1, 1], [], []>} : vector<256x32xf32>, vector<32x32xf32>, vector<256x32xf32> -> vector<256x32xf32>
    %183 = arith.addf %177, %182 : vector<256x32xf32>
    %c2_190 = arith.constant 2 : index
    %c2_191 = arith.constant 2 : index
    %c0_192 = arith.constant 0 : index
    %184 = vector.load %arg13[%c2_190, %c2_191, %c0_192] : memref<18x18x32xf32, #tpu.memory_space<vmem>>, vector<16x16x32xf32>
    %185 = vector.shape_cast %184 : vector<16x16x32xf32> to vector<256x32xf32>
    %c3_193 = arith.constant 3 : index
    %c0_194 = arith.constant 0 : index
    %c0_195 = arith.constant 0 : index
    %186 = vector.load %arg5[%c3_193, %c0_194, %c0_195] : memref<4x32x32xf32, #tpu.memory_space<vmem>>, vector<1x32x32xf32>
    %187 = vector.shape_cast %186 : vector<1x32x32xf32> to vector<32x32xf32>
    %cst_196 = arith.constant dense<0.000000e+00> : vector<256x32xf32>
    %188 = tpu.matmul %185, %187, %cst_196 {dimension_numbers = #tpu.dot_dimension_numbers<[1], [0], [0], [1], [0, 0, 1, 1], [], []>} : vector<256x32xf32>, vector<32x32xf32>, vector<256x32xf32> -> vector<256x32xf32>
    %189 = arith.addf %183, %188 : vector<256x32xf32>
    %cst_197 = arith.constant 0.000000e+00 : f32
    %190 = vector.broadcast %cst_197 : f32 to vector<256x32xf32>
    %191 = arith.cmpf oge, %189, %190 : vector<256x32xf32>
    %cst_198 = arith.constant 0.00999999977 : f32
    %192 = vector.broadcast %cst_198 : f32 to vector<256x32xf32>
    %193 = arith.mulf %192, %189 : vector<256x32xf32>
    %194 = arith.select %191, %189, %193 : vector<256x32xi1>, vector<256x32xf32>
    %c9 = arith.constant 9 : index
    %c0_199 = arith.constant 0 : index
    %195 = vector.load %arg7[%c9, %c0_199] : memref<13x32xf32, #tpu.memory_space<vmem>>, vector<1x32xf32>
    %196 = vector.broadcast %195 : vector<1x32xf32> to vector<256x32xf32>
    %197 = arith.mulf %194, %196 : vector<256x32xf32>
    %c10 = arith.constant 10 : index
    %c0_200 = arith.constant 0 : index
    %198 = vector.load %arg7[%c10, %c0_200] : memref<13x32xf32, #tpu.memory_space<vmem>>, vector<1x32xf32>
    %199 = vector.broadcast %198 : vector<1x32xf32> to vector<256x32xf32>
    %200 = arith.addf %197, %199 : vector<256x32xf32>
    %cst_201 = arith.constant 0.000000e+00 : f32
    %201 = vector.broadcast %cst_201 : f32 to vector<256x32xf32>
    %c4_202 = arith.constant 4 : index
    %c0_203 = arith.constant 0 : index
    %202 = vector.load %arg7[%c4_202, %c0_203] : memref<13x32xf32, #tpu.memory_space<vmem>>, vector<1x32xf32>
    %203 = vector.broadcast %202 : vector<1x32xf32> to vector<256x32xf32>
    %204 = arith.addf %201, %203 : vector<256x32xf32>
    %c0_204 = arith.constant 0 : index
    %c0_205 = arith.constant 0 : index
    %c0_206 = arith.constant 0 : index
    %205 = vector.load %arg6[%c0_204, %c0_205, %c0_206] : memref<3x32x32xf32, #tpu.memory_space<vmem>>, vector<1x32x32xf32>
    %206 = vector.shape_cast %205 : vector<1x32x32xf32> to vector<32x32xf32>
    %cst_207 = arith.constant dense<0.000000e+00> : vector<256x32xf32>
    %207 = tpu.matmul %84, %206, %cst_207 {dimension_numbers = #tpu.dot_dimension_numbers<[1], [0], [0], [1], [0, 0, 1, 1], [], []>} : vector<256x32xf32>, vector<32x32xf32>, vector<256x32xf32> -> vector<256x32xf32>
    %208 = arith.addf %204, %207 : vector<256x32xf32>
    %c1_208 = arith.constant 1 : index
    %c0_209 = arith.constant 0 : index
    %c0_210 = arith.constant 0 : index
    %209 = vector.load %arg6[%c1_208, %c0_209, %c0_210] : memref<3x32x32xf32, #tpu.memory_space<vmem>>, vector<1x32x32xf32>
    %210 = vector.shape_cast %209 : vector<1x32x32xf32> to vector<32x32xf32>
    %cst_211 = arith.constant dense<0.000000e+00> : vector<256x32xf32>
    %211 = tpu.matmul %157, %210, %cst_211 {dimension_numbers = #tpu.dot_dimension_numbers<[1], [0], [0], [1], [0, 0, 1, 1], [], []>} : vector<256x32xf32>, vector<32x32xf32>, vector<256x32xf32> -> vector<256x32xf32>
    %212 = arith.addf %208, %211 : vector<256x32xf32>
    %c2_212 = arith.constant 2 : index
    %c0_213 = arith.constant 0 : index
    %c0_214 = arith.constant 0 : index
    %213 = vector.load %arg6[%c2_212, %c0_213, %c0_214] : memref<3x32x32xf32, #tpu.memory_space<vmem>>, vector<1x32x32xf32>
    %214 = vector.shape_cast %213 : vector<1x32x32xf32> to vector<32x32xf32>
    %cst_215 = arith.constant dense<0.000000e+00> : vector<256x32xf32>
    %215 = tpu.matmul %200, %214, %cst_215 {dimension_numbers = #tpu.dot_dimension_numbers<[1], [0], [0], [1], [0, 0, 1, 1], [], []>} : vector<256x32xf32>, vector<32x32xf32>, vector<256x32xf32> -> vector<256x32xf32>
    %216 = arith.addf %212, %215 : vector<256x32xf32>
    %cst_216 = arith.constant 0.000000e+00 : f32
    %217 = vector.broadcast %cst_216 : f32 to vector<256x32xf32>
    %218 = arith.cmpf oge, %216, %217 : vector<256x32xf32>
    %cst_217 = arith.constant 0.00999999977 : f32
    %219 = vector.broadcast %cst_217 : f32 to vector<256x32xf32>
    %220 = arith.mulf %219, %216 : vector<256x32xf32>
    %221 = arith.select %218, %216, %220 : vector<256x32xi1>, vector<256x32xf32>
    %c11 = arith.constant 11 : index
    %c0_218 = arith.constant 0 : index
    %222 = vector.load %arg7[%c11, %c0_218] : memref<13x32xf32, #tpu.memory_space<vmem>>, vector<1x32xf32>
    %223 = vector.broadcast %222 : vector<1x32xf32> to vector<256x32xf32>
    %224 = arith.mulf %221, %223 : vector<256x32xf32>
    %c12 = arith.constant 12 : index
    %c0_219 = arith.constant 0 : index
    %225 = vector.load %arg7[%c12, %c0_219] : memref<13x32xf32, #tpu.memory_space<vmem>>, vector<1x32xf32>
    %226 = vector.broadcast %225 : vector<1x32xf32> to vector<256x32xf32>
    %227 = arith.addf %224, %226 : vector<256x32xf32>
    %228 = arith.addf %227, %12 : vector<256x32xf32>
    %229 = tpu.transpose %228, [1, 0] : vector<256x32xf32> -> vector<32x256xf32>
    %c0_220 = arith.constant 0 : index
    %c0_221 = arith.constant 0 : index
    %c0_222 = arith.constant 0 : index
    %230 = vector.load %arg9[%c0_220, %c0_221, %c0_222] : memref<1x32x256xf32, #tpu.memory_space<vmem>>, vector<1x32x256xf32>
    %231 = vector.shape_cast %230 : vector<1x32x256xf32> to vector<32x256xf32>
    %232 = vector.shape_cast %229 : vector<32x256xf32> to vector<1x32x256xf32>
    tpu.vector_store %arg9[%c0_220, %c0_221, %c0_222], %232 {strides = array<i32>} : memref<1x32x256xf32, #tpu.memory_space<vmem>>, vector<1x32x256xf32>,
    %c0_223 = arith.constant 0 : index
    %c0_224 = arith.constant 0 : index
    %233 = vector.load %arg8[%c0_223, %c0_224] : memref<256x64xf32, #tpu.memory_space<vmem>>, vector<256x64xf32>
    %cst_225 = arith.constant dense<0.000000e+00> : vector<32x64xf32>
    %234 = tpu.matmul %229, %233, %cst_225 {dimension_numbers = #tpu.dot_dimension_numbers<[1], [0], [0], [1], [0, 0, 1, 1], [], []>} : vector<32x256xf32>, vector<256x64xf32>, vector<32x64xf32> -> vector<32x64xf32>
    %c0_226 = arith.constant 0 : index
    %c0_227 = arith.constant 0 : index
    %c0_228 = arith.constant 0 : index
    %235 = vector.load %arg10[%c0_226, %c0_227, %c0_228] : memref<1x32x64xf32, #tpu.memory_space<vmem>>, vector<1x32x64xf32>
    %236 = vector.shape_cast %235 : vector<1x32x64xf32> to vector<32x64xf32>
    %237 = vector.shape_cast %234 : vector<32x64xf32> to vector<1x32x64xf32>
    tpu.vector_store %arg10[%c0_226, %c0_227, %c0_228], %237 {strides = array<i32>} : memref<1x32x64xf32, #tpu.memory_space<vmem>>, vector<1x32x64xf32>,
    return
  }
  func.func @transform_0(%arg0: i32) -> (i32, i32, i32, i32) {
    %c0_i32 = arith.constant 0 : i32
    %c0_i32_0 = arith.constant 0 : i32
    %c0_i32_1 = arith.constant 0 : i32
    %c0_i32_2 = arith.constant 0 : i32
    return %arg0, %c0_i32, %c0_i32_0, %c0_i32_1 : i32, i32, i32, i32
  }
  func.func @transform_1(%arg0: i32) -> (i32, i32) {
    %c0_i32 = arith.constant 0 : i32
    %c0_i32_0 = arith.constant 0 : i32
    %c0_i32_1 = arith.constant 0 : i32
    return %c0_i32, %c0_i32_0 : i32, i32
  }
  func.func @transform_2(%arg0: i32) -> (i32, i32, i32) {
    %c0_i32 = arith.constant 0 : i32
    %c0_i32_0 = arith.constant 0 : i32
    %c0_i32_1 = arith.constant 0 : i32
    %c0_i32_2 = arith.constant 0 : i32
    return %c0_i32, %c0_i32_0, %c0_i32_1 : i32, i32, i32
  }
  func.func @transform_3(%arg0: i32) -> (i32, i32, i32) {
    %c0_i32 = arith.constant 0 : i32
    %c0_i32_0 = arith.constant 0 : i32
    %c0_i32_1 = arith.constant 0 : i32
    %c0_i32_2 = arith.constant 0 : i32
    return %c0_i32, %c0_i32_0, %c0_i32_1 : i32, i32, i32
  }
  func.func @transform_4(%arg0: i32) -> (i32, i32, i32) {
    %c0_i32 = arith.constant 0 : i32
    %c0_i32_0 = arith.constant 0 : i32
    %c0_i32_1 = arith.constant 0 : i32
    %c0_i32_2 = arith.constant 0 : i32
    return %c0_i32, %c0_i32_0, %c0_i32_1 : i32, i32, i32
  }
  func.func @transform_5(%arg0: i32) -> (i32, i32, i32) {
    %c0_i32 = arith.constant 0 : i32
    %c0_i32_0 = arith.constant 0 : i32
    %c0_i32_1 = arith.constant 0 : i32
    %c0_i32_2 = arith.constant 0 : i32
    return %c0_i32, %c0_i32_0, %c0_i32_1 : i32, i32, i32
  }
  func.func @transform_6(%arg0: i32) -> (i32, i32) {
    %c0_i32 = arith.constant 0 : i32
    %c0_i32_0 = arith.constant 0 : i32
    %c0_i32_1 = arith.constant 0 : i32
    return %c0_i32, %c0_i32_0 : i32, i32
  }
  func.func @transform_7(%arg0: i32) -> (i32, i32) {
    %c0_i32 = arith.constant 0 : i32
    %c0_i32_0 = arith.constant 0 : i32
    %c0_i32_1 = arith.constant 0 : i32
    return %c0_i32, %c0_i32_0 : i32, i32
  }
  func.func @transform_8(%arg0: i32) -> (i32, i32, i32) {
    %c0_i32 = arith.constant 0 : i32
    %c0_i32_0 = arith.constant 0 : i32
    %c0_i32_1 = arith.constant 0 : i32
    return %arg0, %c0_i32, %c0_i32_0 : i32, i32, i32
  }
  func.func @transform_9(%arg0: i32) -> (i32, i32, i32) {
    %c0_i32 = arith.constant 0 : i32
    %c0_i32_0 = arith.constant 0 : i32
    %c0_i32_1 = arith.constant 0 : i32
    return %arg0, %c0_i32, %c0_i32_0 : i32, i32, i32
  }
}

</mosaic_0001>

<llo_original>
// kernel: resblock_forward.1
$region0: #{resblock_forward.1}
  #allocation0 [shape = 'u32[]', space=smem, size = 0x4, offset = 0x4, fixed_abs, tag = 'smem constant byte address 0x4 - core index']
  #allocation1 [shape = 'u32[72,128]{1,0:T(1,128)}', space=vmem, size = 0x9000, scoped, tag = 'internal scratch']
  #allocation2 [shape = 'f32[18,18,4]{2,1,0:T(8,128)}', space=vmem, size = 0x36000, scoped, tag = 'scratch operand']
  #allocation3 [shape = 'f32[20,20,32]{2,1,0:T(8,128)}', space=vmem, size = 0x3c000, scoped, tag = 'scratch operand']
  #allocation4 [shape = 'f32[18,18,32]{2,1,0:T(8,128)}', space=vmem, size = 0x36000, scoped, tag = 'scratch operand']
  %s0 = inlined_call_operand.vmem [shape: f32[2,16,16,4], index: 0, kind: input, shape index: {}]
  %s1 = inlined_call_operand.vmem [shape: f32[4,32], index: 1, kind: input, shape index: {}]
  %s2 = inlined_call_operand.vmem [shape: f32[9,4,32], index: 2, kind: input, shape index: {}]
  %s3 = inlined_call_operand.vmem [shape: f32[9,32,32], index: 3, kind: input, shape index: {}]
  %s4 = inlined_call_operand.vmem [shape: f32[4,32,32], index: 4, kind: input, shape index: {}]
  %s5 = inlined_call_operand.vmem [shape: f32[3,32,32], index: 5, kind: input, shape index: {}]
  %s6 = inlined_call_operand.vmem [shape: f32[13,32], index: 6, kind: input, shape index: {}]
  %s7 = inlined_call_operand.vmem [shape: f32[256,64], index: 7, kind: input, shape index: {}]
  %s8 = inlined_call_operand.vmem [shape: f32[2,32,256], index: 8, kind: output, shape index: {0}]
  %s9 = inlined_call_operand.vmem [shape: f32[2,32,64], index: 9, kind: output, shape index: {1}]
  %10 = xla_tuple %s8, %s9
  %s11 = sld [smem:[#allocation0]]
  $region73: #{resblock_forward.1} parent=0
    _
  %s13 = ssub.s32 1, %s11
  %s14 = scalar_select 0, %s13, %s11
  loop: start=0, step=1, limit=4
  $region2: #{resblock_forward.1} parent=0 // loop_pre_header
    _
  $region3: #{resblock_forward.1} parent=0 // loop_header
    %s16 = sphi 0, %s20
    %p17 = scmp.ge.s32.totalorder %s16, 4
    %s26 = sphi 0, %s28
    %s29 = sphi 0, %s26
    %s30 = sphi 0, %s29
    %s46 = sphi 0, %s30
    %s50 = sphi 0, %s50
    %s52 = sphi 0, %s50
    %s53 = sphi 0, %s52
    %s67 = sphi 0, %s53
    %s71 = sphi 0, %s71
    %s73 = sphi 0, %s71
    %s74 = sphi 0, %s73
    %s88 = sphi 0, %s74
    %s92 = sphi 0, %s92
    %s94 = sphi 0, %s92
    %s95 = sphi 0, %s94
    %s109 = sphi 0, %s95
    %s113 = sphi 0, %s113
    %s115 = sphi 0, %s113
    %s116 = sphi 0, %s115
    %s130 = sphi 0, %s116
    %s134 = sphi 0, %s134
    %s136 = sphi 0, %s134
    %s137 = sphi 0, %s136
    %s151 = sphi 0, %s137
    %s155 = sphi 0, %s155
    %s157 = sphi 0, %s155
    %s158 = sphi 0, %s157
    %s172 = sphi 0, %s158
    %s176 = sphi 0, %s176
    %s178 = sphi 0, %s176
    %s179 = sphi 0, %s178
    %s193 = sphi 0, %s179
    %s199 = sphi 0, %s201
    %s202 = sphi 0, %s199
    %s203 = sphi 0, %s202
    %s219 = sphi 0, %s203
    %s225 = sphi 0, %s227
    %s228 = sphi 0, %s225
    %s229 = sphi 0, %s228
    %s245 = sphi 0, %s229
  $region4: #{resblock_forward.1} parent=0 // loop_header_branch
    %19 = sbr.rel (%p17) target = $region8
  $region5: #{resblock_forward.1} parent=0 // loop_body
    %s21 = ssub.s32 %s16, 1
    %s22 = ssub.s32 %s16, 2
    %s23 = sadd.s32 %s16, 1
    %s24 = ssub.s32 %s16, %s23
    %p25 = scmp.eq.s32.totalorder %s24, 0
    %s27 = sadd.s32 %s26, 1
    %s28 = scalar_select %p25, %s26, %s27
    %p31 = pneg %p25
    %p32 = scmp.eq.s32.totalorder %s16, 1
    %p33 = por %p31, %p32
    %p34 = scmp.ne.s32.totalorder %s26, %s29
    %p35 = scmp.eq.s32.totalorder %s16, 0
    %p36 = por %p34, %p35
    %p37 = scmp.ne.s32.totalorder %s26, %s29
    %p38 = scmp.eq.s32.totalorder %s21, 1
    %p39 = por %p37, %p38
    %p40 = scmp.ne.s32.totalorder %s29, %s30
    %p41 = scmp.eq.s32.totalorder %s21, 0
    %p42 = por %p40, %p41
    %p43 = scmp.ne.s32.totalorder %s29, %s30
    %p44 = scmp.eq.s32.totalorder %s22, 1
    %p45 = por %p43, %p44
    %p47 = scmp.ne.s32.totalorder %s30, %s46
    %p48 = scmp.eq.s32.totalorder %s22, 0
    %p49 = por %p47, %p48
    %s51 = sadd.s32 %s50, 1
    %p54 = scmp.eq.s32.totalorder %s16, 1
    %p55 = scmp.ne.s32.totalorder %s50, %s52
    %p56 = scmp.eq.s32.totalorder %s16, 0
    %p57 = por %p55, %p56
    %p58 = scmp.ne.s32.totalorder %s50, %s52
    %p59 = scmp.eq.s32.totalorder %s21, 1
    %p60 = por %p58, %p59
    %p61 = scmp.ne.s32.totalorder %s52, %s53
    %p62 = scmp.eq.s32.totalorder %s21, 0
    %p63 = por %p61, %p62
    %p64 = scmp.ne.s32.totalorder %s52, %s53
    %p65 = scmp.eq.s32.totalorder %s22, 1
    %p66 = por %p64, %p65
    %p68 = scmp.ne.s32.totalorder %s53, %s67
    %p69 = scmp.eq.s32.totalorder %s22, 0
    %p70 = por %p68, %p69
    %s72 = sadd.s32 %s71, 1
    %p75 = scmp.eq.s32.totalorder %s16, 1
    %p76 = scmp.ne.s32.totalorder %s71, %s73
    %p77 = scmp.eq.s32.totalorder %s16, 0
    %p78 = por %p76, %p77
    %p79 = scmp.ne.s32.totalorder %s71, %s73
    %p80 = scmp.eq.s32.totalorder %s21, 1
    %p81 = por %p79, %p80
    %p82 = scmp.ne.s32.totalorder %s73, %s74
    %p83 = scmp.eq.s32.totalorder %s21, 0
    %p84 = por %p82, %p83
    %p85 = scmp.ne.s32.totalorder %s73, %s74
    %p86 = scmp.eq.s32.totalorder %s22, 1
    %p87 = por %p85, %p86
    %p89 = scmp.ne.s32.totalorder %s74, %s88
    %p90 = scmp.eq.s32.totalorder %s22, 0
    %p91 = por %p89, %p90
    %s93 = sadd.s32 %s92, 1
    %p96 = scmp.eq.s32.totalorder %s16, 1
    %p97 = scmp.ne.s32.totalorder %s92, %s94
    %p98 = scmp.eq.s32.totalorder %s16, 0
    %p99 = por %p97, %p98
    %p100 = scmp.ne.s32.totalorder %s92, %s94
    %p101 = scmp.eq.s32.totalorder %s21, 1
    %p102 = por %p100, %p101
    %p103 = scmp.ne.s32.totalorder %s94, %s95
    %p104 = scmp.eq.s32.totalorder %s21, 0
    %p105 = por %p103, %p104
    %p106 = scmp.ne.s32.totalorder %s94, %s95
    %p107 = scmp.eq.s32.totalorder %s22, 1
    %p108 = por %p106, %p107
    %p110 = scmp.ne.s32.totalorder %s95, %s109
    %p111 = scmp.eq.s32.totalorder %s22, 0
    %p112 = por %p110, %p111
    %s114 = sadd.s32 %s113, 1
    %p117 = scmp.eq.s32.totalorder %s16, 1
    %p118 = scmp.ne.s32.totalorder %s113, %s115
    %p119 = scmp.eq.s32.totalorder %s16, 0
    %p120 = por %p118, %p119
    %p121 = scmp.ne.s32.totalorder %s113, %s115
    %p122 = scmp.eq.s32.totalorder %s21, 1
    %p123 = por %p121, %p122
    %p124 = scmp.ne.s32.totalorder %s115, %s116
    %p125 = scmp.eq.s32.totalorder %s21, 0
    %p126 = por %p124, %p125
    %p127 = scmp.ne.s32.totalorder %s115, %s116
    %p128 = scmp.eq.s32.totalorder %s22, 1
    %p129 = por %p127, %p128
    %p131 = scmp.ne.s32.totalorder %s116, %s130
    %p132 = scmp.eq.s32.totalorder %s22, 0
    %p133 = por %p131, %p132
    %s135 = sadd.s32 %s134, 1
    %p138 = scmp.eq.s32.totalorder %s16, 1
    %p139 = scmp.ne.s32.totalorder %s134, %s136
    %p140 = scmp.eq.s32.totalorder %s16, 0
    %p141 = por %p139, %p140
    %p142 = scmp.ne.s32.totalorder %s134, %s136
    %p143 = scmp.eq.s32.totalorder %s21, 1
    %p144 = por %p142, %p143
    %p145 = scmp.ne.s32.totalorder %s136, %s137
    %p146 = scmp.eq.s32.totalorder %s21, 0
    %p147 = por %p145, %p146
    %p148 = scmp.ne.s32.totalorder %s136, %s137
    %p149 = scmp.eq.s32.totalorder %s22, 1
    %p150 = por %p148, %p149
    %p152 = scmp.ne.s32.totalorder %s137, %s151
    %p153 = scmp.eq.s32.totalorder %s22, 0
    %p154 = por %p152, %p153
    %s156 = sadd.s32 %s155, 1
    %p159 = scmp.eq.s32.totalorder %s16, 1
    %p160 = scmp.ne.s32.totalorder %s155, %s157
    %p161 = scmp.eq.s32.totalorder %s16, 0
    %p162 = por %p160, %p161
    %p163 = scmp.ne.s32.totalorder %s155, %s157
    %p164 = scmp.eq.s32.totalorder %s21, 1
    %p165 = por %p163, %p164
    %p166 = scmp.ne.s32.totalorder %s157, %s158
    %p167 = scmp.eq.s32.totalorder %s21, 0
    %p168 = por %p166, %p167
    %p169 = scmp.ne.s32.totalorder %s157, %s158
    %p170 = scmp.eq.s32.totalorder %s22, 1
    %p171 = por %p169, %p170
    %p173 = scmp.ne.s32.totalorder %s158, %s172
    %p174 = scmp.eq.s32.totalorder %s22, 0
    %p175 = por %p173, %p174
    %s177 = sadd.s32 %s176, 1
    %p180 = scmp.eq.s32.totalorder %s16, 1
    %p181 = scmp.ne.s32.totalorder %s176, %s178
    %p182 = scmp.eq.s32.totalorder %s16, 0
    %p183 = por %p181, %p182
    %p184 = scmp.ne.s32.totalorder %s176, %s178
    %p185 = scmp.eq.s32.totalorder %s21, 1
    %p186 = por %p184, %p185
    %p187 = scmp.ne.s32.totalorder %s178, %s179
    %p188 = scmp.eq.s32.totalorder %s21, 0
    %p189 = por %p187, %p188
    %p190 = scmp.ne.s32.totalorder %s178, %s179
    %p191 = scmp.eq.s32.totalorder %s22, 1
    %p192 = por %p190, %p191
    %p194 = scmp.ne.s32.totalorder %s179, %s193
    %p195 = scmp.eq.s32.totalorder %s22, 0
    %p196 = por %p194, %p195
    %s197 = ssub.s32 %s16, %s23
    %p198 = scmp.eq.s32.totalorder %s197, 0
    %s200 = sadd.s32 %s199, 1
    %s201 = scalar_select %p198, %s199, %s200
    %p204 = pneg %p198
    %p205 = scmp.eq.s32.totalorder %s16, 1
    %p206 = por %p204, %p205
    %p207 = scmp.ne.s32.totalorder %s199, %s202
    %p208 = scmp.eq.s32.totalorder %s16, 0
    %p209 = por %p207, %p208
    %p210 = scmp.ne.s32.totalorder %s199, %s202
    %p211 = scmp.eq.s32.totalorder %s21, 1
    %p212 = por %p210, %p211
    %p213 = scmp.ne.s32.totalorder %s202, %s203
    %p214 = scmp.eq.s32.totalorder %s21, 0
    %p215 = por %p213, %p214
    %p216 = scmp.ne.s32.totalorder %s202, %s203
    %p217 = scmp.eq.s32.totalorder %s22, 1
    %p218 = por %p216, %p217
    %p220 = scmp.ne.s32.totalorder %s203, %s219
    %p221 = scmp.eq.s32.totalorder %s22, 0
    %p222 = por %p220, %p221
    %s223 = ssub.s32 %s16, %s23
    %p224 = scmp.eq.s32.totalorder %s223, 0
    %s226 = sadd.s32 %s225, 1
    %s227 = scalar_select %p224, %s225, %s226
    %p230 = pneg %p224
    %p231 = scmp.eq.s32.totalorder %s16, 1
    %p232 = por %p230, %p231
    %p233 = scmp.ne.s32.totalorder %s225, %s228
    %p234 = scmp.eq.s32.totalorder %s16, 0
    %p235 = por %p233, %p234
    %p236 = scmp.ne.s32.totalorder %s225, %s228
    %p237 = scmp.eq.s32.totalorder %s21, 1
    %p238 = por %p236, %p237
    %p239 = scmp.ne.s32.totalorder %s228, %s229
    %p240 = scmp.eq.s32.totalorder %s21, 0
    %p241 = por %p239, %p240
    %p242 = scmp.ne.s32.totalorder %s228, %s229
    %p243 = scmp.eq.s32.totalorder %s22, 1
    %p244 = por %p242, %p243
    %p246 = scmp.ne.s32.totalorder %s229, %s245
    %p247 = scmp.eq.s32.totalorder %s22, 0
    %p248 = por %p246, %p247
    %p249 = scmp.le.s32.totalorder 1, %s16
    %p250 = scmp.lt.s32.totalorder %s16, 3
    %p251 = pnand %p249, %p250
    %p252 = pneg %p251
    // Predicated region
    $region9: #{resblock_forward.1} parent=5 // pred_check
      _
    $region10: #{resblock_forward.1} parent=5 // pred_check_branch
      %254 = sbr.rel (%p251) target = $region12
    $region11: #{resblock_forward.1} parent=5 // pred_region
      %s255 = ssub.s32 %s16, 1
      // Predicated region
      $region13: #{resblock_forward.1} parent=11 // pred_check
        %p256 = pneg %p63
      $region14: #{resblock_forward.1} parent=11 // pred_check_branch
        %258 = sbr.rel (%p256) target = $region16
      $region15: #{resblock_forward.1} parent=11 // pred_region
        _
      $region16: #{resblock_forward.1} parent=11 // pred_fallthru
        _
      // Predicated region
      $region17: #{resblock_forward.1} parent=11 // pred_check
        %p259 = pneg %p84
      $region18: #{resblock_forward.1} parent=11 // pred_check_branch
        %261 = sbr.rel (%p259) target = $region20
      $region19: #{resblock_forward.1} parent=11 // pred_region
        _
      $region20: #{resblock_forward.1} parent=11 // pred_fallthru
        _
      // Predicated region
      $region21: #{resblock_forward.1} parent=11 // pred_check
        %p262 = pneg %p105
      $region22: #{resblock_forward.1} parent=11 // pred_check_branch
        %264 = sbr.rel (%p262) target = $region24
      $region23: #{resblock_forward.1} parent=11 // pred_region
        _
      $region24: #{resblock_forward.1} parent=11 // pred_fallthru
        _
      // Predicated region
      $region25: #{resblock_forward.1} parent=11 // pred_check
        %p265 = pneg %p126
      $region26: #{resblock_forward.1} parent=11 // pred_check_branch
        %267 = sbr.rel (%p265) target = $region28
      $region27: #{resblock_forward.1} parent=11 // pred_region
        _
      $region28: #{resblock_forward.1} parent=11 // pred_fallthru
        _
      // Predicated region
      $region29: #{resblock_forward.1} parent=11 // pred_check
        %p268 = pneg %p147
      $region30: #{resblock_forward.1} parent=11 // pred_check_branch
        %270 = sbr.rel (%p268) target = $region32
      $region31: #{resblock_forward.1} parent=11 // pred_region
        _
      $region32: #{resblock_forward.1} parent=11 // pred_fallthru
        _
      // Predicated region
      $region33: #{resblock_forward.1} parent=11 // pred_check
        %p271 = pneg %p168
      $region34: #{resblock_forward.1} parent=11 // pred_check_branch
        %273 = sbr.rel (%p271) target = $region36
      $region35: #{resblock_forward.1} parent=11 // pred_region
        _
      $region36: #{resblock_forward.1} parent=11 // pred_fallthru
        _
      // Predicated region
      $region37: #{resblock_forward.1} parent=11 // pred_check
        %p274 = pneg %p189
      $region38: #{resblock_forward.1} parent=11 // pred_check_branch
        %276 = sbr.rel (%p274) target = $region40
      $region39: #{resblock_forward.1} parent=11 // pred_region
        _
      $region40: #{resblock_forward.1} parent=11 // pred_fallthru
        _
    $region12: #{resblock_forward.1} parent=5 // pred_fallthru
      _
    %p277 = scmp.lt.s32.totalorder %s16, 2
    // Predicated region
    $region41: #{resblock_forward.1} parent=5 // pred_check
      %p278 = pneg %p277
    $region42: #{resblock_forward.1} parent=5 // pred_check_branch
      %280 = sbr.rel (%p278) target = $region44
    $region43: #{resblock_forward.1} parent=5 // pred_region
      // Predicated region
      $region45: #{resblock_forward.1} parent=43 // pred_check
        %p281 = pneg %p36
      $region46: #{resblock_forward.1} parent=43 // pred_check_branch
        %283 = sbr.rel (%p281) target = $region48
      $region47: #{resblock_forward.1} parent=43 // pred_region
        %p284 = scmp.lt.s32.totalorder %s16, 1
        %s285 = scalar_select %p284, %s16, 1
        %s286 = smul.addr %s285, 32
        %s287 = smul.addr %s286, 8
        %s288 = scalar_lea.vmem %s0, %s287
      $region48: #{resblock_forward.1} parent=43 // pred_fallthru
        _
    $region44: #{resblock_forward.1} parent=5 // pred_fallthru
      _
    %p289 = scmp.le.s32.totalorder 1, %s16
    %p290 = scmp.lt.s32.totalorder %s16, 3
    %p291 = pnand %p289, %p290
    %p292 = pneg %p291
    // Predicated region
    $region49: #{resblock_forward.1} parent=5 // pred_check
      _
    $region50: #{resblock_forward.1} parent=5 // pred_check_branch
      %294 = sbr.rel (%p291) target = $region52
    $region51: #{resblock_forward.1} parent=5 // pred_region
      %s295 = ssub.s32 %s16, 1
      %p296 = scmp.lt.s32.totalorder %s21, 1
      %s297 = scalar_select %p296, %s21, 1
      %s298 = smul.addr %s297, 32
      %s299 = smul.addr %s298, 8
      %s300 = scalar_lea.vmem %s0, %s299
      %p301 = pneg %p42
      %p302 = pneg %p39
      %p303 = pneg %p63
      %p304 = pneg %p60
      %p305 = pneg %p84
      %p306 = pneg %p81
      %p307 = pneg %p105
      %p308 = pneg %p102
      %p309 = pneg %p126
      %p310 = pneg %p123
      %p311 = pneg %p147
      %p312 = pneg %p144
      %p313 = pneg %p168
      %p314 = pneg %p165
      %p315 = pneg %p189
      %p316 = pneg %p186
      %p317 = pneg %p215
      %p318 = pneg %p212
      %p319 = scmp.lt.s32.totalorder %s21, 1
      %s320 = scalar_select %p319, %s21, 1
      %s321 = smul.addr %s320, 8
      %s322 = smul.addr %s321, 8
      %s323 = scalar_lea.vmem %s8, %s322
      %p324 = pneg %p241
      %p325 = pneg %p238
      %p326 = scmp.lt.s32.totalorder %s21, 1
      %s327 = scalar_select %p326, %s21, 1
      %s328 = smul.addr %s327, 4
      %s329 = smul.addr %s328, 8
      %s330 = scalar_lea.vmem %s9, %s329
      %p331 = scmp.lt.s32.totalorder %s21, 1
      %s332 = scalar_select %p331, %s21, 1
      %s333 = smul.addr %s332, 32
      %s334 = smul.addr %s333, 8
      %s335 = scalar_lea.vmem %s0, %s334
      %p336 = scmp.lt.s32.totalorder %s21, 1
      %s337 = scalar_select %p336, %s21, 1
      %s338 = smul.addr %s337, 8
      %s339 = smul.addr %s338, 8
      %s340 = scalar_lea.vmem %s8, %s339
      %p341 = scmp.lt.s32.totalorder %s21, 1
      %s342 = scalar_select %p341, %s21, 1
      %s343 = smul.addr %s342, 4
      %s344 = smul.addr %s343, 8
      %s345 = scalar_lea.vmem %s9, %s344
      %v346 = vld [vmem:[%s335] sm:$0xff]
      %v347 = vld [vmem:[%s335 + $0x8] sm:$0xff]
      %v348 = vld [vmem:[%s335 + $0x10] sm:$0xff]
      %v349 = vld [vmem:[%s335 + $0x18] sm:$0xff]
      %v350 = vld [vmem:[%s335 + $0x20] sm:$0xff]
      %v351 = vld [vmem:[%s335 + $0x28] sm:$0xff]
      %v352 = vld [vmem:[%s335 + $0x30] sm:$0xff]
      %v353 = vld [vmem:[%s335 + $0x38] sm:$0xff]
      %v354 = vld [vmem:[%s335 + $0x40] sm:$0xff]
      %v355 = vld [vmem:[%s335 + $0x48] sm:$0xff]
      %v356 = vld [vmem:[%s335 + $0x50] sm:$0xff]
      %v357 = vld [vmem:[%s335 + $0x58] sm:$0xff]
      %v358 = vld [vmem:[%s335 + $0x60] sm:$0xff]
      %v359 = vld [vmem:[%s335 + $0x68] sm:$0xff]
      %v360 = vld [vmem:[%s335 + $0x70] sm:$0xff]
      %v361 = vld [vmem:[%s335 + $0x78] sm:$0xff]
      %v362 = vld [vmem:[%s335 + $0x80] sm:$0xff]
      %v363 = vld [vmem:[%s335 + $0x88] sm:$0xff]
      %v364 = vld [vmem:[%s335 + $0x90] sm:$0xff]
      %v365 = vld [vmem:[%s335 + $0x98] sm:$0xff]
      %v366 = vld [vmem:[%s335 + $0xa0] sm:$0xff]
      %v367 = vld [vmem:[%s335 + $0xa8] sm:$0xff]
      %v368 = vld [vmem:[%s335 + $0xb0] sm:$0xff]
      %v369 = vld [vmem:[%s335 + $0xb8] sm:$0xff]
      %v370 = vld [vmem:[%s335 + $0xc0] sm:$0xff]
      %v371 = vld [vmem:[%s335 + $0xc8] sm:$0xff]
      %v372 = vld [vmem:[%s335 + $0xd0] sm:$0xff]
      %v373 = vld [vmem:[%s335 + $0xd8] sm:$0xff]
      %v374 = vld [vmem:[%s335 + $0xe0] sm:$0xff]
      %v375 = vld [vmem:[%s335 + $0xe8] sm:$0xff]
      %v376 = vld [vmem:[%s335 + $0xf0] sm:$0xff]
      %v377 = vld [vmem:[%s335 + $0xf8] sm:$0xff]
      %v378 = vld [vmem:[%s1] sm:$0xf]
      %v379 = vld [vmem:[%s6] sm:$0x1]
      %v380 = vperm.slane %v379, 0
      %vm381 = vcmask 31744
      %v383 = vsel %vm381, %v346, 0
      %v386 = vsel %vm381, %v347, 0
      %v389 = vsel %vm381, %v348, 0
      %v392 = vsel %vm381, %v349, 0
      %v395 = vsel %vm381, %v350, 0
      %v398 = vsel %vm381, %v351, 0
      %v401 = vsel %vm381, %v352, 0
      %v404 = vsel %vm381, %v353, 0
      %v407 = vsel %vm381, %v354, 0
      %v410 = vsel %vm381, %v355, 0
      %v413 = vsel %vm381, %v356, 0
      %v416 = vsel %vm381, %v357, 0
      %v419 = vsel %vm381, %v358, 0
      %v422 = vsel %vm381, %v359, 0
      %v425 = vsel %vm381, %v360, 0
      %v428 = vsel %vm381, %v361, 0
      %v431 = vsel %vm381, %v362, 0
      %v434 = vsel %vm381, %v363, 0
      %v437 = vsel %vm381, %v364, 0
      %v440 = vsel %vm381, %v365, 0
      %v443 = vsel %vm381, %v366, 0
      %v446 = vsel %vm381, %v367, 0
      %v449 = vsel %vm381, %v368, 0
      %v452 = vsel %vm381, %v369, 0
      %v455 = vsel %vm381, %v370, 0
      %v458 = vsel %vm381, %v371, 0
      %v461 = vsel %vm381, %v372, 0
      %v464 = vsel %vm381, %v373, 0
      %v467 = vsel %vm381, %v374, 0
      %v470 = vsel %vm381, %v375, 0
      %v473 = vsel %vm381, %v376, 0
      %v476 = vsel %vm381, %v377, 0
      %vm478 = vcmask 1043456
      %v480 = vsel %vm478, %v378, 0
      %482 = vmatpush.msra.mxu0 0.0
      %483 = vmatpush.msra.mxu0 0.0
      %484 = vmatpush.msra.mxu0 0.0
      %485 = vmatpush.msra.mxu0 0.0
      %486 = vmatpush.msra.mxu0 0.0
      %487 = vmatpush.msra.mxu0 0.0
      %488 = vmatpush.msra.mxu0 0.0
      %489 = vmatpush.msra.mxu0 0.0
      %490 = vmatpush.msra.mxu0 0.0
      %491 = vmatpush.msra.mxu0 0.0
      %492 = vmatpush.msra.mxu0 0.0
      %493 = vmatpush.msra.mxu0 0.0
      %494 = vmatpush.msra.mxu0 0.0
      %495 = vmatpush.msra.mxu0 0.0
      %496 = vmatpush.msra.mxu0 0.0
      %497 = vmatpush.msra.mxu0 %v480
      %498 = vmatmul.f32.gmra.mxu0 %v383
      %v499 = vpop.f32.mrf.mxu0
      %v500 = vadd.f32 %v380, %v499
      %501 = vmatmul.f32.gmra.mxu0 %v386
      %v502 = vpop.f32.mrf.mxu0
      %v503 = vadd.f32 %v380, %v502
      %504 = vmatmul.f32.gmra.mxu0 %v389
      %v505 = vpop.f32.mrf.mxu0
      %v506 = vadd.f32 %v380, %v505
      %507 = vmatmul.f32.gmra.mxu0 %v392
      %v508 = vpop.f32.mrf.mxu0
      %v509 = vadd.f32 %v380, %v508
      %510 = vmatmul.f32.gmra.mxu0 %v395
      %v511 = vpop.f32.mrf.mxu0
      %v512 = vadd.f32 %v380, %v511
      %513 = vmatmul.f32.gmra.mxu0 %v398
      %v514 = vpop.f32.mrf.mxu0
      %v515 = vadd.f32 %v380, %v514
      %516 = vmatmul.f32.gmra.mxu0 %v401
      %v517 = vpop.f32.mrf.mxu0
      %v518 = vadd.f32 %v380, %v517
      %519 = vmatmul.f32.gmra.mxu0 %v404
      %v520 = vpop.f32.mrf.mxu0
      %v521 = vadd.f32 %v380, %v520
      %522 = vmatmul.f32.gmra.mxu0 %v407
      %v523 = vpop.f32.mrf.mxu0
      %v524 = vadd.f32 %v380, %v523
      %525 = vmatmul.f32.gmra.mxu0 %v410
      %v526 = vpop.f32.mrf.mxu0
      %v527 = vadd.f32 %v380, %v526
      %528 = vmatmul.f32.gmra.mxu0 %v413
      %v529 = vpop.f32.mrf.mxu0
      %v530 = vadd.f32 %v380, %v529
      %531 = vmatmul.f32.gmra.mxu0 %v416
      %v532 = vpop.f32.mrf.mxu0
      %v533 = vadd.f32 %v380, %v532
      %534 = vmatmul.f32.gmra.mxu0 %v419
      %v535 = vpop.f32.mrf.mxu0
      %v536 = vadd.f32 %v380, %v535
      %537 = vmatmul.f32.gmra.mxu0 %v422
      %v538 = vpop.f32.mrf.mxu0
      %v539 = vadd.f32 %v380, %v538
      %540 = vmatmul.f32.gmra.mxu0 %v425
      %v541 = vpop.f32.mrf.mxu0
      %v542 = vadd.f32 %v380, %v541
      %543 = vmatmul.f32.gmra.mxu0 %v428
      %v544 = vpop.f32.mrf.mxu0
      %v545 = vadd.f32 %v380, %v544
      %546 = vmatmul.f32.gmra.mxu0 %v431
      %v547 = vpop.f32.mrf.mxu0
      %v548 = vadd.f32 %v380, %v547
      %549 = vmatmul.f32.gmra.mxu0 %v434
      %v550 = vpop.f32.mrf.mxu0
      %v551 = vadd.f32 %v380, %v550
      %552 = vmatmul.f32.gmra.mxu0 %v437
      %v553 = vpop.f32.mrf.mxu0
      %v554 = vadd.f32 %v380, %v553
      %555 = vmatmul.f32.gmra.mxu0 %v440
      %v556 = vpop.f32.mrf.mxu0
      %v557 = vadd.f32 %v380, %v556
      %558 = vmatmul.f32.gmra.mxu0 %v443
      %v559 = vpop.f32.mrf.mxu0
      %v560 = vadd.f32 %v380, %v559
      %561 = vmatmul.f32.gmra.mxu0 %v446
      %v562 = vpop.f32.mrf.mxu0
      %v563 = vadd.f32 %v380, %v562
      %564 = vmatmul.f32.gmra.mxu0 %v449
      %v565 = vpop.f32.mrf.mxu0
      %v566 = vadd.f32 %v380, %v565
      %567 = vmatmul.f32.gmra.mxu0 %v452
      %v568 = vpop.f32.mrf.mxu0
      %v569 = vadd.f32 %v380, %v568
      %570 = vmatmul.f32.gmra.mxu0 %v455
      %v571 = vpop.f32.mrf.mxu0
      %v572 = vadd.f32 %v380, %v571
      %573 = vmatmul.f32.gmra.mxu0 %v458
      %v574 = vpop.f32.mrf.mxu0
      %v575 = vadd.f32 %v380, %v574
      %576 = vmatmul.f32.gmra.mxu0 %v461
      %v577 = vpop.f32.mrf.mxu0
      %v578 = vadd.f32 %v380, %v577
      %579 = vmatmul.f32.gmra.mxu0 %v464
      %v580 = vpop.f32.mrf.mxu0
      %v581 = vadd.f32 %v380, %v580
      %582 = vmatmul.f32.gmra.mxu0 %v467
      %v583 = vpop.f32.mrf.mxu0
      %v584 = vadd.f32 %v380, %v583
      %585 = vmatmul.f32.gmra.mxu0 %v470
      %v586 = vpop.f32.mrf.mxu0
      %v587 = vadd.f32 %v380, %v586
      %588 = vmatmul.f32.gmra.mxu0 %v473
      %v589 = vpop.f32.mrf.mxu0
      %v590 = vadd.f32 %v380, %v589
      %591 = vmatmul.f32.gmra.mxu0 %v476
      %v592 = vpop.f32.mrf.mxu0
      %v593 = vadd.f32 %v380, %v592
      %594 = vdwg.mxu0
      %vm595 = vcmp.ge.f32.partialorder %v500, 0.0
      %vm596 = vcmp.ge.f32.partialorder %v503, 0.0
      %vm597 = vcmp.ge.f32.partialorder %v506, 0.0
      %vm598 = vcmp.ge.f32.partialorder %v509, 0.0
      %vm599 = vcmp.ge.f32.partialorder %v512, 0.0
      %vm600 = vcmp.ge.f32.partialorder %v515, 0.0
      %vm601 = vcmp.ge.f32.partialorder %v518, 0.0
      %vm602 = vcmp.ge.f32.partialorder %v521, 0.0
      %vm603 = vcmp.ge.f32.partialorder %v524, 0.0
      %vm604 = vcmp.ge.f32.partialorder %v527, 0.0
      %vm605 = vcmp.ge.f32.partialorder %v530, 0.0
      %vm606 = vcmp.ge.f32.partialorder %v533, 0.0
      %vm607 = vcmp.ge.f32.partialorder %v536, 0.0
      %vm608 = vcmp.ge.f32.partialorder %v539, 0.0
      %vm609 = vcmp.ge.f32.partialorder %v542, 0.0
      %vm610 = vcmp.ge.f32.partialorder %v545, 0.0
      %vm611 = vcmp.ge.f32.partialorder %v548, 0.0
      %vm612 = vcmp.ge.f32.partialorder %v551, 0.0
      %vm613 = vcmp.ge.f32.partialorder %v554, 0.0
      %vm614 = vcmp.ge.f32.partialorder %v557, 0.0
      %vm615 = vcmp.ge.f32.partialorder %v560, 0.0
      %vm616 = vcmp.ge.f32.partialorder %v563, 0.0
      %vm617 = vcmp.ge.f32.partialorder %v566, 0.0
      %vm618 = vcmp.ge.f32.partialorder %v569, 0.0
      %vm619 = vcmp.ge.f32.partialorder %v572, 0.0
      %vm620 = vcmp.ge.f32.partialorder %v575, 0.0
      %vm621 = vcmp.ge.f32.partialorder %v578, 0.0
      %vm622 = vcmp.ge.f32.partialorder %v581, 0.0
      %vm623 = vcmp.ge.f32.partialorder %v584, 0.0
      %vm624 = vcmp.ge.f32.partialorder %v587, 0.0
      %vm625 = vcmp.ge.f32.partialorder %v590, 0.0
      %vm626 = vcmp.ge.f32.partialorder %v593, 0.0
      %v627 = vmul.f32 %v500, 0.01
      %v628 = vmul.f32 %v503, 0.01
      %v629 = vmul.f32 %v506, 0.01
      %v630 = vmul.f32 %v509, 0.01
      %v631 = vmul.f32 %v512, 0.01
      %v632 = vmul.f32 %v515, 0.01
      %v633 = vmul.f32 %v518, 0.01
      %v634 = vmul.f32 %v521, 0.01
      %v635 = vmul.f32 %v524, 0.01
      %v636 = vmul.f32 %v527, 0.01
      %v637 = vmul.f32 %v530, 0.01
      %v638 = vmul.f32 %v533, 0.01
      %v639 = vmul.f32 %v536, 0.01
      %v640 = vmul.f32 %v539, 0.01
      %v641 = vmul.f32 %v542, 0.01
      %v642 = vmul.f32 %v545, 0.01
      %v643 = vmul.f32 %v548, 0.01
      %v644 = vmul.f32 %v551, 0.01
      %v645 = vmul.f32 %v554, 0.01
      %v646 = vmul.f32 %v557, 0.01
      %v647 = vmul.f32 %v560, 0.01
      %v648 = vmul.f32 %v563, 0.01
      %v649 = vmul.f32 %v566, 0.01
      %v650 = vmul.f32 %v569, 0.01
      %v651 = vmul.f32 %v572, 0.01
      %v652 = vmul.f32 %v575, 0.01
      %v653 = vmul.f32 %v578, 0.01
      %v654 = vmul.f32 %v581, 0.01
      %v655 = vmul.f32 %v584, 0.01
      %v656 = vmul.f32 %v587, 0.01
      %v657 = vmul.f32 %v590, 0.01
      %v658 = vmul.f32 %v593, 0.01
      %v659 = vsel %vm595, %v500, %v627
      %v660 = vsel %vm596, %v503, %v628
      %v661 = vsel %vm597, %v506, %v629
      %v662 = vsel %vm598, %v509, %v630
      %v663 = vsel %vm599, %v512, %v631
      %v664 = vsel %vm600, %v515, %v632
      %v665 = vsel %vm601, %v518, %v633
      %v666 = vsel %vm602, %v521, %v634
      %v667 = vsel %vm603, %v524, %v635
      %v668 = vsel %vm604, %v527, %v636
      %v669 = vsel %vm605, %v530, %v637
      %v670 = vsel %vm606, %v533, %v638
      %v671 = vsel %vm607, %v536, %v639
      %v672 = vsel %vm608, %v539, %v640
      %v673 = vsel %vm609, %v542, %v641
      %v674 = vsel %vm610, %v545, %v642
      %v675 = vsel %vm611, %v548, %v643
      %v676 = vsel %vm612, %v551, %v644
      %v677 = vsel %vm613, %v554, %v645
      %v678 = vsel %vm614, %v557, %v646
      %v679 = vsel %vm615, %v560, %v647
      %v680 = vsel %vm616, %v563, %v648
      %v681 = vsel %vm617, %v566, %v649
      %v682 = vsel %vm618, %v569, %v650
      %v683 = vsel %vm619, %v572, %v651
      %v684 = vsel %vm620, %v575, %v652
      %v685 = vsel %vm621, %v578, %v653
      %v686 = vsel %vm622, %v581, %v654
      %v687 = vsel %vm623, %v584, %v655
      %v688 = vsel %vm624, %v587, %v656
      %v689 = vsel %vm625, %v590, %v657
      %v690 = vsel %vm626, %v593, %v658
      %691 = vst.msk [vmem:[#allocation2] sm:$0xff] %vm381, 0.0
      %692 = vst.msk [vmem:[#allocation2 + $0x8] sm:$0xff] %vm381, 0.0
      %vm693 = vcmask 25600
      %694 = vst.msk [vmem:[#allocation2 + $0x10] sm:$0x3] %vm693, 0.0
      %695 = vst.msk [vmem:[#allocation2 + $0x18] sm:$0xff] %vm381, 0.0
      %696 = vst.msk [vmem:[#allocation2 + $0x20] sm:$0xff] %vm381, 0.0
      %697 = vst.msk [vmem:[#allocation2 + $0x28] sm:$0x3] %vm693, 0.0
      %698 = vst.msk [vmem:[#allocation2 + $0x30] sm:$0xff] %vm381, 0.0
      %699 = vst.msk [vmem:[#allocation2 + $0x38] sm:$0xff] %vm381, 0.0
      %700 = vst.msk [vmem:[#allocation2 + $0x40] sm:$0x3] %vm693, 0.0
      %701 = vst.msk [vmem:[#allocation2 + $0x48] sm:$0xff] %vm381, 0.0
      %702 = vst.msk [vmem:[#allocation2 + $0x50] sm:$0xff] %vm381, 0.0
      %703 = vst.msk [vmem:[#allocation2 + $0x58] sm:$0x3] %vm693, 0.0
      %704 = vst.msk [vmem:[#allocation2 + $0x60] sm:$0xff] %vm381, 0.0
      %705 = vst.msk [vmem:[#allocation2 + $0x68] sm:$0xff] %vm381, 0.0
      %706 = vst.msk [vmem:[#allocation2 + $0x70] sm:$0x3] %vm693, 0.0
      %707 = vst.msk [vmem:[#allocation2 + $0x78] sm:$0xff] %vm381, 0.0
      %708 = vst.msk [vmem:[#allocation2 + $0x80] sm:$0xff] %vm381, 0.0
      %709 = vst.msk [vmem:[#allocation2 + $0x88] sm:$0x3] %vm693, 0.0
      %710 = vst.msk [vmem:[#allocation2 + $0x90] sm:$0xff] %vm381, 0.0
      %711 = vst.msk [vmem:[#allocation2 + $0x98] sm:$0xff] %vm381, 0.0
      %712 = vst.msk [vmem:[#allocation2 + $0xa0] sm:$0x3] %vm693, 0.0
      %713 = vst.msk [vmem:[#allocation2 + $0xa8] sm:$0xff] %vm381, 0.0
      %714 = vst.msk [vmem:[#allocation2 + $0xb0] sm:$0xff] %vm381, 0.0
      %715 = vst.msk [vmem:[#allocation2 + $0xb8] sm:$0x3] %vm693, 0.0
      %716 = vst.msk [vmem:[#allocation2 + $0xc0] sm:$0xff] %vm381, 0.0
      %717 = vst.msk [vmem:[#allocation2 + $0xc8] sm:$0xff] %vm381, 0.0
      %718 = vst.msk [vmem:[#allocation2 + $0xd0] sm:$0x3] %vm693, 0.0
      %719 = vst.msk [vmem:[#allocation2 + $0xd8] sm:$0xff] %vm381, 0.0
      %720 = vst.msk [vmem:[#allocation2 + $0xe0] sm:$0xff] %vm381, 0.0
      %721 = vst.msk [vmem:[#allocation2 + $0xe8] sm:$0x3] %vm693, 0.0
      %722 = vst.msk [vmem:[#allocation2 + $0xf0] sm:$0xff] %vm381, 0.0
      %723 = vst.msk [vmem:[#allocation2 + $0xf8] sm:$0xff] %vm381, 0.0
      %724 = vst.msk [vmem:[#allocation2 + $0x100] sm:$0x3] %vm693, 0.0
      %725 = vst.msk [vmem:[#allocation2 + $0x108] sm:$0xff] %vm381, 0.0
      %726 = vst.msk [vmem:[#allocation2 + $0x110] sm:$0xff] %vm381, 0.0
      %727 = vst.msk [vmem:[#allocation2 + $0x118] sm:$0x3] %vm693, 0.0
      %728 = vst.msk [vmem:[#allocation2 + $0x120] sm:$0xff] %vm381, 0.0
      %729 = vst.msk [vmem:[#allocation2 + $0x128] sm:$0xff] %vm381, 0.0
      %730 = vst.msk [vmem:[#allocation2 + $0x130] sm:$0x3] %vm693, 0.0
      %731 = vst.msk [vmem:[#allocation2 + $0x138] sm:$0xff] %vm381, 0.0
      %732 = vst.msk [vmem:[#allocation2 + $0x140] sm:$0xff] %vm381, 0.0
      %733 = vst.msk [vmem:[#allocation2 + $0x148] sm:$0x3] %vm693, 0.0
      %734 = vst.msk [vmem:[#allocation2 + $0x150] sm:$0xff] %vm381, 0.0
      %735 = vst.msk [vmem:[#allocation2 + $0x158] sm:$0xff] %vm381, 0.0
      %736 = vst.msk [vmem:[#allocation2 + $0x160] sm:$0x3] %vm693, 0.0
      %737 = vst.msk [vmem:[#allocation2 + $0x168] sm:$0xff] %vm381, 0.0
      %738 = vst.msk [vmem:[#allocation2 + $0x170] sm:$0xff] %vm381, 0.0
      %739 = vst.msk [vmem:[#allocation2 + $0x178] sm:$0x3] %vm693, 0.0
      %740 = vst.msk [vmem:[#allocation2 + $0x180] sm:$0xff] %vm381, 0.0
      %741 = vst.msk [vmem:[#allocation2 + $0x188] sm:$0xff] %vm381, 0.0
      %742 = vst.msk [vmem:[#allocation2 + $0x190] sm:$0x3] %vm693, 0.0
      %743 = vst.msk [vmem:[#allocation2 + $0x198] sm:$0xff] %vm381, 0.0
      %744 = vst.msk [vmem:[#allocation2 + $0x1a0] sm:$0xff] %vm381, 0.0
      %745 = vst.msk [vmem:[#allocation2 + $0x1a8] sm:$0x3] %vm693, 0.0
      %s746 = scalar_lea.vmem [#allocation2], 24
      %747 = vst.msk [vmem:[%s746 + $0x1] sm:$0xff] %vm381, %v346
      %748 = vst.msk [vmem:[%s746 + $0x9] sm:$0xff] %vm381, %v347
      %749 = vst.msk [vmem:[%s746 + $0x19] sm:$0xff] %vm381, %v348
      %750 = vst.msk [vmem:[%s746 + $0x21] sm:$0xff] %vm381, %v349
      %751 = vst.msk [vmem:[%s746 + $0x31] sm:$0xff] %vm381, %v350
      %752 = vst.msk [vmem:[%s746 + $0x39] sm:$0xff] %vm381, %v351
      %753 = vst.msk [vmem:[%s746 + $0x49] sm:$0xff] %vm381, %v352
      %754 = vst.msk [vmem:[%s746 + $0x51] sm:$0xff] %vm381, %v353
      %755 = vst.msk [vmem:[%s746 + $0x61] sm:$0xff] %vm381, %v354
      %756 = vst.msk [vmem:[%s746 + $0x69] sm:$0xff] %vm381, %v355
      %757 = vst.msk [vmem:[%s746 + $0x79] sm:$0xff] %vm381, %v356
      %758 = vst.msk [vmem:[%s746 + $0x81] sm:$0xff] %vm381, %v357
      %759 = vst.msk [vmem:[%s746 + $0x91] sm:$0xff] %vm381, %v358
      %760 = vst.msk [vmem:[%s746 + $0x99] sm:$0xff] %vm381, %v359
      %761 = vst.msk [vmem:[%s746 + $0xa9] sm:$0xff] %vm381, %v360
      %762 = vst.msk [vmem:[%s746 + $0xb1] sm:$0xff] %vm381, %v361
      %763 = vst.msk [vmem:[%s746 + $0xc1] sm:$0xff] %vm381, %v362
      %764 = vst.msk [vmem:[%s746 + $0xc9] sm:$0xff] %vm381, %v363
      %765 = vst.msk [vmem:[%s746 + $0xd9] sm:$0xff] %vm381, %v364
      %766 = vst.msk [vmem:[%s746 + $0xe1] sm:$0xff] %vm381, %v365
      %767 = vst.msk [vmem:[%s746 + $0xf1] sm:$0xff] %vm381, %v366
      %768 = vst.msk [vmem:[%s746 + $0xf9] sm:$0xff] %vm381, %v367
      %769 = vst.msk [vmem:[%s746 + $0x109] sm:$0xff] %vm381, %v368
      %770 = vst.msk [vmem:[%s746 + $0x111] sm:$0xff] %vm381, %v369
      %771 = vst.msk [vmem:[%s746 + $0x121] sm:$0xff] %vm381, %v370
      %772 = vst.msk [vmem:[%s746 + $0x129] sm:$0xff] %vm381, %v371
      %773 = vst.msk [vmem:[%s746 + $0x139] sm:$0xff] %vm381, %v372
      %774 = vst.msk [vmem:[%s746 + $0x141] sm:$0xff] %vm381, %v373
      %775 = vst.msk [vmem:[%s746 + $0x151] sm:$0xff] %vm381, %v374
      %776 = vst.msk [vmem:[%s746 + $0x159] sm:$0xff] %vm381, %v375
      %777 = vst.msk [vmem:[%s746 + $0x169] sm:$0xff] %vm381, %v376
      %778 = vst.msk [vmem:[%s746 + $0x171] sm:$0xff] %vm381, %v377
      %v779 = vld [vmem:[%s6 + $0x1] sm:$0x1]
      %v780 = vperm.slane %v779, 0
      %v781 = vadd.f32 %v780, 0.0
      %v782 = vld [vmem:[#allocation2] sm:$0xff]
      %v783 = vld [vmem:[#allocation2 + $0x8] sm:$0xff]
      %v784 = vld [vmem:[#allocation2 + $0x18] sm:$0xff]
      %v785 = vld [vmem:[#allocation2 + $0x20] sm:$0xff]
      %v786 = vld [vmem:[#allocation2 + $0x30] sm:$0xff]
      %v787 = vld [vmem:[#allocation2 + $0x38] sm:$0xff]
      %v788 = vld [vmem:[#allocation2 + $0x48] sm:$0xff]
      %v789 = vld [vmem:[#allocation2 + $0x50] sm:$0xff]
      %v790 = vld [vmem:[#allocation2 + $0x60] sm:$0xff]
      %v791 = vld [vmem:[#allocation2 + $0x68] sm:$0xff]
      %v792 = vld [vmem:[#allocation2 + $0x78] sm:$0xff]
      %v793 = vld [vmem:[#allocation2 + $0x80] sm:$0xff]
      %v794 = vld [vmem:[#allocation2 + $0x90] sm:$0xff]
      %v795 = vld [vmem:[#allocation2 + $0x98] sm:$0xff]
      %v796 = vld [vmem:[#allocation2 + $0xa8] sm:$0xff]
      %v797 = vld [vmem:[#allocation2 + $0xb0] sm:$0xff]
      %v798 = vld [vmem:[#allocation2 + $0xc0] sm:$0xff]
      %v799 = vld [vmem:[#allocation2 + $0xc8] sm:$0xff]
      %v800 = vld [vmem:[#allocation2 + $0xd8] sm:$0xff]
      %v801 = vld [vmem:[#allocation2 + $0xe0] sm:$0xff]
      %v802 = vld [vmem:[#allocation2 + $0xf0] sm:$0xff]
      %v803 = vld [vmem:[#allocation2 + $0xf8] sm:$0xff]
      %v804 = vld [vmem:[#allocation2 + $0x108] sm:$0xff]
      %v805 = vld [vmem:[#allocation2 + $0x110] sm:$0xff]
      %v806 = vld [vmem:[#allocation2 + $0x120] sm:$0xff]
      %v807 = vld [vmem:[#allocation2 + $0x128] sm:$0xff]
      %v808 = vld [vmem:[#allocation2 + $0x138] sm:$0xff]
      %v809 = vld [vmem:[#allocation2 + $0x140] sm:$0xff]
      %v810 = vld [vmem:[#allocation2 + $0x150] sm:$0xff]
      %v811 = vld [vmem:[#allocation2 + $0x158] sm:$0xff]
      %v812 = vld [vmem:[#allocation2 + $0x168] sm:$0xff]
      %v813 = vld [vmem:[#allocation2 + $0x170] sm:$0xff]
      %v814 = vld [vmem:[%s2] sm:$0xf]
      %v816 = vsel %vm381, %v782, 0
      %v819 = vsel %vm381, %v783, 0
      %v822 = vsel %vm381, %v784, 0
      %v825 = vsel %vm381, %v785, 0
      %v828 = vsel %vm381, %v786, 0
      %v831 = vsel %vm381, %v787, 0
      %v834 = vsel %vm381, %v788, 0
      %v837 = vsel %vm381, %v789, 0
      %v840 = vsel %vm381, %v790, 0
      %v843 = vsel %vm381, %v791, 0
      %v846 = vsel %vm381, %v792, 0
      %v849 = vsel %vm381, %v793, 0
      %v852 = vsel %vm381, %v794, 0
      %v855 = vsel %vm381, %v795, 0
      %v858 = vsel %vm381, %v796, 0
      %v861 = vsel %vm381, %v797, 0
      %v864 = vsel %vm381, %v798, 0
      %v867 = vsel %vm381, %v799, 0
      %v870 = vsel %vm381, %v800, 0
      %v873 = vsel %vm381, %v801, 0
      %v876 = vsel %vm381, %v802, 0
      %v879 = vsel %vm381, %v803, 0
      %v882 = vsel %vm381, %v804, 0
      %v885 = vsel %vm381, %v805, 0
      %v888 = vsel %vm381, %v806, 0
      %v891 = vsel %vm381, %v807, 0
      %v894 = vsel %vm381, %v808, 0
      %v897 = vsel %vm381, %v809, 0
      %v900 = vsel %vm381, %v810, 0
      %v903 = vsel %vm381, %v811, 0
      %v906 = vsel %vm381, %v812, 0
      %v909 = vsel %vm381, %v813, 0
      %v912 = vsel %vm478, %v814, 0
      %914 = vmatpush.msra.mxu0 0.0
      %915 = vmatpush.msra.mxu0 0.0
      %916 = vmatpush.msra.mxu0 0.0
      %917 = vmatpush.msra.mxu0 0.0
      %918 = vmatpush.msra.mxu0 0.0
      %919 = vmatpush.msra.mxu0 0.0
      %920 = vmatpush.msra.mxu0 0.0
      %921 = vmatpush.msra.mxu0 0.0
      %922 = vmatpush.msra.mxu0 0.0
      %923 = vmatpush.msra.mxu0 0.0
      %924 = vmatpush.msra.mxu0 0.0
      %925 = vmatpush.msra.mxu0 0.0
      %926 = vmatpush.msra.mxu0 0.0
      %927 = vmatpush.msra.mxu0 0.0
      %928 = vmatpush.msra.mxu0 0.0
      %929 = vmatpush.msra.mxu0 %v912
      %930 = vmatmul.f32.gmra.mxu0 %v816
      %v931 = vpop.f32.mrf.mxu0
      %v932 = vadd.f32 0.0, %v931
      %933 = vmatmul.f32.gmra.mxu0 %v819
      %v934 = vpop.f32.mrf.mxu0
      %v935 = vadd.f32 0.0, %v934
      %936 = vmatmul.f32.gmra.mxu0 %v822
      %v937 = vpop.f32.mrf.mxu0
      %v938 = vadd.f32 0.0, %v937
      %939 = vmatmul.f32.gmra.mxu0 %v825
      %v940 = vpop.f32.mrf.mxu0
      %v941 = vadd.f32 0.0, %v940
      %942 = vmatmul.f32.gmra.mxu0 %v828
      %v943 = vpop.f32.mrf.mxu0
      %v944 = vadd.f32 0.0, %v943
      %945 = vmatmul.f32.gmra.mxu0 %v831
      %v946 = vpop.f32.mrf.mxu0
      %v947 = vadd.f32 0.0, %v946
      %948 = vmatmul.f32.gmra.mxu0 %v834
      %v949 = vpop.f32.mrf.mxu0
      %v950 = vadd.f32 0.0, %v949
      %951 = vmatmul.f32.gmra.mxu0 %v837
      %v952 = vpop.f32.mrf.mxu0
      %v953 = vadd.f32 0.0, %v952
      %954 = vmatmul.f32.gmra.mxu0 %v840
      %v955 = vpop.f32.mrf.mxu0
      %v956 = vadd.f32 0.0, %v955
      %957 = vmatmul.f32.gmra.mxu0 %v843
      %v958 = vpop.f32.mrf.mxu0
      %v959 = vadd.f32 0.0, %v958
      %960 = vmatmul.f32.gmra.mxu0 %v846
      %v961 = vpop.f32.mrf.mxu0
      %v962 = vadd.f32 0.0, %v961
      %963 = vmatmul.f32.gmra.mxu0 %v849
      %v964 = vpop.f32.mrf.mxu0
      %v965 = vadd.f32 0.0, %v964
      %966 = vmatmul.f32.gmra.mxu0 %v852
      %v967 = vpop.f32.mrf.mxu0
      %v968 = vadd.f32 0.0, %v967
      %969 = vmatmul.f32.gmra.mxu0 %v855
      %v970 = vpop.f32.mrf.mxu0
      %v971 = vadd.f32 0.0, %v970
      %972 = vmatmul.f32.gmra.mxu0 %v858
      %v973 = vpop.f32.mrf.mxu0
      %v974 = vadd.f32 0.0, %v973
      %975 = vmatmul.f32.gmra.mxu0 %v861
      %v976 = vpop.f32.mrf.mxu0
      %v977 = vadd.f32 0.0, %v976
      %978 = vmatmul.f32.gmra.mxu0 %v864
      %v979 = vpop.f32.mrf.mxu0
      %v980 = vadd.f32 0.0, %v979
      %981 = vmatmul.f32.gmra.mxu0 %v867
      %v982 = vpop.f32.mrf.mxu0
      %v983 = vadd.f32 0.0, %v982
      %984 = vmatmul.f32.gmra.mxu0 %v870
      %v985 = vpop.f32.mrf.mxu0
      %v986 = vadd.f32 0.0, %v985
      %987 = vmatmul.f32.gmra.mxu0 %v873
      %v988 = vpop.f32.mrf.mxu0
      %v989 = vadd.f32 0.0, %v988
      %990 = vmatmul.f32.gmra.mxu0 %v876
      %v991 = vpop.f32.mrf.mxu0
      %v992 = vadd.f32 0.0, %v991
      %993 = vmatmul.f32.gmra.mxu0 %v879
      %v994 = vpop.f32.mrf.mxu0
      %v995 = vadd.f32 0.0, %v994
      %996 = vmatmul.f32.gmra.mxu0 %v882
      %v997 = vpop.f32.mrf.mxu0
      %v998 = vadd.f32 0.0, %v997
      %999 = vmatmul.f32.gmra.mxu0 %v885
      %v1000 = vpop.f32.mrf.mxu0
      %v1001 = vadd.f32 0.0, %v1000
      %1002 = vmatmul.f32.gmra.mxu0 %v888
      %v1003 = vpop.f32.mrf.mxu0
      %v1004 = vadd.f32 0.0, %v1003
      %1005 = vmatmul.f32.gmra.mxu0 %v891
      %v1006 = vpop.f32.mrf.mxu0
      %v1007 = vadd.f32 0.0, %v1006
      %1008 = vmatmul.f32.gmra.mxu0 %v894
      %v1009 = vpop.f32.mrf.mxu0
      %v1010 = vadd.f32 0.0, %v1009
      %1011 = vmatmul.f32.gmra.mxu0 %v897
      %v1012 = vpop.f32.mrf.mxu0
      %v1013 = vadd.f32 0.0, %v1012
      %1014 = vmatmul.f32.gmra.mxu0 %v900
      %v1015 = vpop.f32.mrf.mxu0
      %v1016 = vadd.f32 0.0, %v1015
      %1017 = vmatmul.f32.gmra.mxu0 %v903
      %v1018 = vpop.f32.mrf.mxu0
      %v1019 = vadd.f32 0.0, %v1018
      %1020 = vmatmul.f32.gmra.mxu0 %v906
      %v1021 = vpop.f32.mrf.mxu0
      %v1022 = vadd.f32 0.0, %v1021
      %1023 = vmatmul.f32.gmra.mxu0 %v909
      %v1024 = vpop.f32.mrf.mxu0
      %v1025 = vadd.f32 0.0, %v1024
      %1026 = vdwg.mxu0
      %v1027 = vadd.f32 %v781, %v932
      %v1028 = vadd.f32 %v781, %v935
      %v1029 = vadd.f32 %v781, %v938
      %v1030 = vadd.f32 %v781, %v941
      %v1031 = vadd.f32 %v781, %v944
      %v1032 = vadd.f32 %v781, %v947
      %v1033 = vadd.f32 %v781, %v950
      %v1034 = vadd.f32 %v781, %v953
      %v1035 = vadd.f32 %v781, %v956
      %v1036 = vadd.f32 %v781, %v959
      %v1037 = vadd.f32 %v781, %v962
      %v1038 = vadd.f32 %v781, %v965
      %v1039 = vadd.f32 %v781, %v968
      %v1040 = vadd.f32 %v781, %v971
      %v1041 = vadd.f32 %v781, %v974
      %v1042 = vadd.f32 %v781, %v977
      %v1043 = vadd.f32 %v781, %v980
      %v1044 = vadd.f32 %v781, %v983
      %v1045 = vadd.f32 %v781, %v986
      %v1046 = vadd.f32 %v781, %v989
      %v1047 = vadd.f32 %v781, %v992
      %v1048 = vadd.f32 %v781, %v995
      %v1049 = vadd.f32 %v781, %v998
      %v1050 = vadd.f32 %v781, %v1001
      %v1051 = vadd.f32 %v781, %v1004
      %v1052 = vadd.f32 %v781, %v1007
      %v1053 = vadd.f32 %v781, %v1010
      %v1054 = vadd.f32 %v781, %v1013
      %v1055 = vadd.f32 %v781, %v1016
      %v1056 = vadd.f32 %v781, %v1019
      %v1057 = vadd.f32 %v781, %v1022
      %v1058 = vadd.f32 %v781, %v1025
      %v1059 = vld [vmem:[#allocation2 + $0x1] sm:$0xff]
      %v1060 = vld [vmem:[#allocation2 + $0x9] sm:$0xff]
      %v1061 = vld [vmem:[#allocation2 + $0x19] sm:$0xff]
      %v1062 = vld [vmem:[#allocation2 + $0x21] sm:$0xff]
      %v1063 = vld [vmem:[#allocation2 + $0x31] sm:$0xff]
      %v1064 = vld [vmem:[#allocation2 + $0x39] sm:$0xff]
      %v1065 = vld [vmem:[#allocation2 + $0x49] sm:$0xff]
      %v1066 = vld [vmem:[#allocation2 + $0x51] sm:$0xff]
      %v1067 = vld [vmem:[#allocation2 + $0x61] sm:$0xff]
      %v1068 = vld [vmem:[#allocation2 + $0x69] sm:$0xff]
      %v1069 = vld [vmem:[#allocation2 + $0x79] sm:$0xff]
      %v1070 = vld [vmem:[#allocation2 + $0x81] sm:$0xff]
      %v1071 = vld [vmem:[#allocation2 + $0x91] sm:$0xff]
      %v1072 = vld [vmem:[#allocation2 + $0x99] sm:$0xff]
      %v1073 = vld [vmem:[#allocation2 + $0xa9] sm:$0xff]
      %v1074 = vld [vmem:[#allocation2 + $0xb1] sm:$0xff]
      %v1075 = vld [vmem:[#allocation2 + $0xc1] sm:$0xff]
      %v1076 = vld [vmem:[#allocation2 + $0xc9] sm:$0xff]
      %v1077 = vld [vmem:[#allocation2 + $0xd9] sm:$0xff]
      %v1078 = vld [vmem:[#allocation2 + $0xe1] sm:$0xff]
      %v1079 = vld [vmem:[#allocation2 + $0xf1] sm:$0xff]
      %v1080 = vld [vmem:[#allocation2 + $0xf9] sm:$0xff]
      %v1081 = vld [vmem:[#allocation2 + $0x109] sm:$0xff]
      %v1082 = vld [vmem:[#allocation2 + $0x111] sm:$0xff]
      %v1083 = vld [vmem:[#allocation2 + $0x121] sm:$0xff]
      %v1084 = vld [vmem:[#allocation2 + $0x129] sm:$0xff]
      %v1085 = vld [vmem:[#allocation2 + $0x139] sm:$0xff]
      %v1086 = vld [vmem:[#allocation2 + $0x141] sm:$0xff]
      %v1087 = vld [vmem:[#allocation2 + $0x151] sm:$0xff]
      %v1088 = vld [vmem:[#allocation2 + $0x159] sm:$0xff]
      %v1089 = vld [vmem:[#allocation2 + $0x169] sm:$0xff]
      %v1090 = vld [vmem:[#allocation2 + $0x171] sm:$0xff]
      %s1091 = scalar_lea.vmem %s2, 4
      %v1092 = vld [vmem:[%s1091] sm:$0xf]
      %v1094 = vsel %vm381, %v1059, 0
      %v1097 = vsel %vm381, %v1060, 0
      %v1100 = vsel %vm381, %v1061, 0
      %v1103 = vsel %vm381, %v1062, 0
      %v1106 = vsel %vm381, %v1063, 0
      %v1109 = vsel %vm381, %v1064, 0
      %v1112 = vsel %vm381, %v1065, 0
      %v1115 = vsel %vm381, %v1066, 0
      %v1118 = vsel %vm381, %v1067, 0
      %v1121 = vsel %vm381, %v1068, 0
      %v1124 = vsel %vm381, %v1069, 0
      %v1127 = vsel %vm381, %v1070, 0
      %v1130 = vsel %vm381, %v1071, 0
      %v1133 = vsel %vm381, %v1072, 0
      %v1136 = vsel %vm381, %v1073, 0
      %v1139 = vsel %vm381, %v1074, 0
      %v1142 = vsel %vm381, %v1075, 0
      %v1145 = vsel %vm381, %v1076, 0
      %v1148 = vsel %vm381, %v1077, 0
      %v1151 = vsel %vm381, %v1078, 0
      %v1154 = vsel %vm381, %v1079, 0
      %v1157 = vsel %vm381, %v1080, 0
      %v1160 = vsel %vm381, %v1081, 0
      %v1163 = vsel %vm381, %v1082, 0
      %v1166 = vsel %vm381, %v1083, 0
      %v1169 = vsel %vm381, %v1084, 0
      %v1172 = vsel %vm381, %v1085, 0
      %v1175 = vsel %vm381, %v1086, 0
      %v1178 = vsel %vm381, %v1087, 0
      %v1181 = vsel %vm381, %v1088, 0
      %v1184 = vsel %vm381, %v1089, 0
      %v1187 = vsel %vm381, %v1090, 0
      %v1190 = vsel %vm478, %v1092, 0
      %1192 = vmatpush.msra.mxu0 0.0
      %1193 = vmatpush.msra.mxu0 0.0
      %1194 = vmatpush.msra.mxu0 0.0
      %1195 = vmatpush.msra.mxu0 0.0
      %1196 = vmatpush.msra.mxu0 0.0
      %1197 = vmatpush.msra.mxu0 0.0
      %1198 = vmatpush.msra.mxu0 0.0
      %1199 = vmatpush.msra.mxu0 0.0
      %1200 = vmatpush.msra.mxu0 0.0
      %1201 = vmatpush.msra.mxu0 0.0
      %1202 = vmatpush.msra.mxu0 0.0
      %1203 = vmatpush.msra.mxu0 0.0
      %1204 = vmatpush.msra.mxu0 0.0
      %1205 = vmatpush.msra.mxu0 0.0
      %1206 = vmatpush.msra.mxu0 0.0
      %1207 = vmatpush.msra.mxu0 %v1190
      %1208 = vmatmul.f32.gmra.mxu0 %v1094
      %v1209 = vpop.f32.mrf.mxu0
      %v1210 = vadd.f32 0.0, %v1209
      %1211 = vmatmul.f32.gmra.mxu0 %v1097
      %v1212 = vpop.f32.mrf.mxu0
      %v1213 = vadd.f32 0.0, %v1212
      %1214 = vmatmul.f32.gmra.mxu0 %v1100
      %v1215 = vpop.f32.mrf.mxu0
      %v1216 = vadd.f32 0.0, %v1215
      %1217 = vmatmul.f32.gmra.mxu0 %v1103
      %v1218 = vpop.f32.mrf.mxu0
      %v1219 = vadd.f32 0.0, %v1218
      %1220 = vmatmul.f32.gmra.mxu0 %v1106
      %v1221 = vpop.f32.mrf.mxu0
      %v1222 = vadd.f32 0.0, %v1221
      %1223 = vmatmul.f32.gmra.mxu0 %v1109
      %v1224 = vpop.f32.mrf.mxu0
      %v1225 = vadd.f32 0.0, %v1224
      %1226 = vmatmul.f32.gmra.mxu0 %v1112
      %v1227 = vpop.f32.mrf.mxu0
      %v1228 = vadd.f32 0.0, %v1227
      %1229 = vmatmul.f32.gmra.mxu0 %v1115
      %v1230 = vpop.f32.mrf.mxu0
      %v1231 = vadd.f32 0.0, %v1230
      %1232 = vmatmul.f32.gmra.mxu0 %v1118
      %v1233 = vpop.f32.mrf.mxu0
      %v1234 = vadd.f32 0.0, %v1233
      %1235 = vmatmul.f32.gmra.mxu0 %v1121
      %v1236 = vpop.f32.mrf.mxu0
      %v1237 = vadd.f32 0.0, %v1236
      %1238 = vmatmul.f32.gmra.mxu0 %v1124
      %v1239 = vpop.f32.mrf.mxu0
      %v1240 = vadd.f32 0.0, %v1239
      %1241 = vmatmul.f32.gmra.mxu0 %v1127
      %v1242 = vpop.f32.mrf.mxu0
      %v1243 = vadd.f32 0.0, %v1242
      %1244 = vmatmul.f32.gmra.mxu0 %v1130
      %v1245 = vpop.f32.mrf.mxu0
      %v1246 = vadd.f32 0.0, %v1245
      %1247 = vmatmul.f32.gmra.mxu0 %v1133
      %v1248 = vpop.f32.mrf.mxu0
      %v1249 = vadd.f32 0.0, %v1248
      %1250 = vmatmul.f32.gmra.mxu0 %v1136
      %v1251 = vpop.f32.mrf.mxu0
      %v1252 = vadd.f32 0.0, %v1251
      %1253 = vmatmul.f32.gmra.mxu0 %v1139
      %v1254 = vpop.f32.mrf.mxu0
      %v1255 = vadd.f32 0.0, %v1254
      %1256 = vmatmul.f32.gmra.mxu0 %v1142
      %v1257 = vpop.f32.mrf.mxu0
      %v1258 = vadd.f32 0.0, %v1257
      %1259 = vmatmul.f32.gmra.mxu0 %v1145
      %v1260 = vpop.f32.mrf.mxu0
      %v1261 = vadd.f32 0.0, %v1260
      %1262 = vmatmul.f32.gmra.mxu0 %v1148
      %v1263 = vpop.f32.mrf.mxu0
      %v1264 = vadd.f32 0.0, %v1263
      %1265 = vmatmul.f32.gmra.mxu0 %v1151
      %v1266 = vpop.f32.mrf.mxu0
      %v1267 = vadd.f32 0.0, %v1266
      %1268 = vmatmul.f32.gmra.mxu0 %v1154
      %v1269 = vpop.f32.mrf.mxu0
      %v1270 = vadd.f32 0.0, %v1269
      %1271 = vmatmul.f32.gmra.mxu0 %v1157
      %v1272 = vpop.f32.mrf.mxu0
      %v1273 = vadd.f32 0.0, %v1272
      %1274 = vmatmul.f32.gmra.mxu0 %v1160
      %v1275 = vpop.f32.mrf.mxu0
      %v1276 = vadd.f32 0.0, %v1275
      %1277 = vmatmul.f32.gmra.mxu0 %v1163
      %v1278 = vpop.f32.mrf.mxu0
      %v1279 = vadd.f32 0.0, %v1278
      %1280 = vmatmul.f32.gmra.mxu0 %v1166
      %v1281 = vpop.f32.mrf.mxu0
      %v1282 = vadd.f32 0.0, %v1281
      %1283 = vmatmul.f32.gmra.mxu0 %v1169
      %v1284 = vpop.f32.mrf.mxu0
      %v1285 = vadd.f32 0.0, %v1284
      %1286 = vmatmul.f32.gmra.mxu0 %v1172
      %v1287 = vpop.f32.mrf.mxu0
      %v1288 = vadd.f32 0.0, %v1287
      %1289 = vmatmul.f32.gmra.mxu0 %v1175
      %v1290 = vpop.f32.mrf.mxu0
      %v1291 = vadd.f32 0.0, %v1290
      %1292 = vmatmul.f32.gmra.mxu0 %v1178
      %v1293 = vpop.f32.mrf.mxu0
      %v1294 = vadd.f32 0.0, %v1293
      %1295 = vmatmul.f32.gmra.mxu0 %v1181
      %v1296 = vpop.f32.mrf.mxu0
      %v1297 = vadd.f32 0.0, %v1296
      %1298 = vmatmul.f32.gmra.mxu0 %v1184
      %v1299 = vpop.f32.mrf.mxu0
      %v1300 = vadd.f32 0.0, %v1299
      %1301 = vmatmul.f32.gmra.mxu0 %v1187
      %v1302 = vpop.f32.mrf.mxu0
      %v1303 = vadd.f32 0.0, %v1302
      %1304 = vdwg.mxu0
      %v1305 = vadd.f32 %v1027, %v1210
      %v1306 = vadd.f32 %v1028, %v1213
      %v1307 = vadd.f32 %v1029, %v1216
      %v1308 = vadd.f32 %v1030, %v1219
      %v1309 = vadd.f32 %v1031, %v1222
      %v1310 = vadd.f32 %v1032, %v1225
      %v1311 = vadd.f32 %v1033, %v1228
      %v1312 = vadd.f32 %v1034, %v1231
      %v1313 = vadd.f32 %v1035, %v1234
      %v1314 = vadd.f32 %v1036, %v1237
      %v1315 = vadd.f32 %v1037, %v1240
      %v1316 = vadd.f32 %v1038, %v1243
      %v1317 = vadd.f32 %v1039, %v1246
      %v1318 = vadd.f32 %v1040, %v1249
      %v1319 = vadd.f32 %v1041, %v1252
      %v1320 = vadd.f32 %v1042, %v1255
      %v1321 = vadd.f32 %v1043, %v1258
      %v1322 = vadd.f32 %v1044, %v1261
      %v1323 = vadd.f32 %v1045, %v1264
      %v1324 = vadd.f32 %v1046, %v1267
      %v1325 = vadd.f32 %v1047, %v1270
      %v1326 = vadd.f32 %v1048, %v1273
      %v1327 = vadd.f32 %v1049, %v1276
      %v1328 = vadd.f32 %v1050, %v1279
      %v1329 = vadd.f32 %v1051, %v1282
      %v1330 = vadd.f32 %v1052, %v1285
      %v1331 = vadd.f32 %v1053, %v1288
      %v1332 = vadd.f32 %v1054, %v1291
      %v1333 = vadd.f32 %v1055, %v1294
      %v1334 = vadd.f32 %v1056, %v1297
      %v1335 = vadd.f32 %v1057, %v1300
      %v1336 = vadd.f32 %v1058, %v1303
      %v1337 = vld [vmem:[#allocation2 + $0x2] sm:$0xff]
      %v1338 = vld [vmem:[#allocation2 + $0xa] sm:$0xff]
      %v1339 = vld [vmem:[#allocation2 + $0x1a] sm:$0xff]
      %v1340 = vld [vmem:[#allocation2 + $0x22] sm:$0xff]
      %v1341 = vld [vmem:[#allocation2 + $0x32] sm:$0xff]
      %v1342 = vld [vmem:[#allocation2 + $0x3a] sm:$0xff]
      %v1343 = vld [vmem:[#allocation2 + $0x4a] sm:$0xff]
      %v1344 = vld [vmem:[#allocation2 + $0x52] sm:$0xff]
      %v1345 = vld [vmem:[#allocation2 + $0x62] sm:$0xff]
      %v1346 = vld [vmem:[#allocation2 + $0x6a] sm:$0xff]
      %v1347 = vld [vmem:[#allocation2 + $0x7a] sm:$0xff]
      %v1348 = vld [vmem:[#allocation2 + $0x82] sm:$0xff]
      %v1349 = vld [vmem:[#allocation2 + $0x92] sm:$0xff]
      %v1350 = vld [vmem:[#allocation2 + $0x9a] sm:$0xff]
      %v1351 = vld [vmem:[#allocation2 + $0xaa] sm:$0xff]
      %v1352 = vld [vmem:[#allocation2 + $0xb2] sm:$0xff]
      %v1353 = vld [vmem:[#allocation2 + $0xc2] sm:$0xff]
      %v1354 = vld [vmem:[#allocation2 + $0xca] sm:$0xff]
      %v1355 = vld [vmem:[#allocation2 + $0xda] sm:$0xff]
      %v1356 = vld [vmem:[#allocation2 + $0xe2] sm:$0xff]
      %v1357 = vld [vmem:[#allocation2 + $0xf2] sm:$0xff]
      %v1358 = vld [vmem:[#allocation2 + $0xfa] sm:$0xff]
      %v1359 = vld [vmem:[#allocation2 + $0x10a] sm:$0xff]
      %v1360 = vld [vmem:[#allocation2 + $0x112] sm:$0xff]
      %v1361 = vld [vmem:[#allocation2 + $0x122] sm:$0xff]
      %v1362 = vld [vmem:[#allocation2 + $0x12a] sm:$0xff]
      %v1363 = vld [vmem:[#allocation2 + $0x13a] sm:$0xff]
      %v1364 = vld [vmem:[#allocation2 + $0x142] sm:$0xff]
      %v1365 = vld [vmem:[#allocation2 + $0x152] sm:$0xff]
      %v1366 = vld [vmem:[#allocation2 + $0x15a] sm:$0xff]
      %v1367 = vld [vmem:[#allocation2 + $0x16a] sm:$0xff]
      %v1368 = vld [vmem:[#allocation2 + $0x172] sm:$0xff]
      %s1369 = scalar_lea.vmem %s2, 8
      %v1370 = vld [vmem:[%s1369] sm:$0xf]
      %v1372 = vsel %vm381, %v1337, 0
      %v1375 = vsel %vm381, %v1338, 0
      %v1378 = vsel %vm381, %v1339, 0
      %v1381 = vsel %vm381, %v1340, 0
      %v1384 = vsel %vm381, %v1341, 0
      %v1387 = vsel %vm381, %v1342, 0
      %v1390 = vsel %vm381, %v1343, 0
      %v1393 = vsel %vm381, %v1344, 0
      %v1396 = vsel %vm381, %v1345, 0
      %v1399 = vsel %vm381, %v1346, 0
      %v1402 = vsel %vm381, %v1347, 0
      %v1405 = vsel %vm381, %v1348, 0
      %v1408 = vsel %vm381, %v1349, 0
      %v1411 = vsel %vm381, %v1350, 0
      %v1414 = vsel %vm381, %v1351, 0
      %v1417 = vsel %vm381, %v1352, 0
      %v1420 = vsel %vm381, %v1353, 0
      %v1423 = vsel %vm381, %v1354, 0
      %v1426 = vsel %vm381, %v1355, 0
      %v1429 = vsel %vm381, %v1356, 0
      %v1432 = vsel %vm381, %v1357, 0
      %v1435 = vsel %vm381, %v1358, 0
      %v1438 = vsel %vm381, %v1359, 0
      %v1441 = vsel %vm381, %v1360, 0
      %v1444 = vsel %vm381, %v1361, 0
      %v1447 = vsel %vm381, %v1362, 0
      %v1450 = vsel %vm381, %v1363, 0
      %v1453 = vsel %vm381, %v1364, 0
      %v1456 = vsel %vm381, %v1365, 0
      %v1459 = vsel %vm381, %v1366, 0
      %v1462 = vsel %vm381, %v1367, 0
      %v1465 = vsel %vm381, %v1368, 0
      %v1468 = vsel %vm478, %v1370, 0
      %1470 = vmatpush.msra.mxu0 0.0
      %1471 = vmatpush.msra.mxu0 0.0
      %1472 = vmatpush.msra.mxu0 0.0
      %1473 = vmatpush.msra.mxu0 0.0
      %1474 = vmatpush.msra.mxu0 0.0
      %1475 = vmatpush.msra.mxu0 0.0
      %1476 = vmatpush.msra.mxu0 0.0
      %1477 = vmatpush.msra.mxu0 0.0
      %1478 = vmatpush.msra.mxu0 0.0
      %1479 = vmatpush.msra.mxu0 0.0
      %1480 = vmatpush.msra.mxu0 0.0
      %1481 = vmatpush.msra.mxu0 0.0
      %1482 = vmatpush.msra.mxu0 0.0
      %1483 = vmatpush.msra.mxu0 0.0
      %1484 = vmatpush.msra.mxu0 0.0
      %1485 = vmatpush.msra.mxu0 %v1468
      %1486 = vmatmul.f32.gmra.mxu0 %v1372
      %v1487 = vpop.f32.mrf.mxu0
      %v1488 = vadd.f32 0.0, %v1487
      %1489 = vmatmul.f32.gmra.mxu0 %v1375
      %v1490 = vpop.f32.mrf.mxu0
      %v1491 = vadd.f32 0.0, %v1490
      %1492 = vmatmul.f32.gmra.mxu0 %v1378
      %v1493 = vpop.f32.mrf.mxu0
      %v1494 = vadd.f32 0.0, %v1493
      %1495 = vmatmul.f32.gmra.mxu0 %v1381
      %v1496 = vpop.f32.mrf.mxu0
      %v1497 = vadd.f32 0.0, %v1496
      %1498 = vmatmul.f32.gmra.mxu0 %v1384
      %v1499 = vpop.f32.mrf.mxu0
      %v1500 = vadd.f32 0.0, %v1499
      %1501 = vmatmul.f32.gmra.mxu0 %v1387
      %v1502 = vpop.f32.mrf.mxu0
      %v1503 = vadd.f32 0.0, %v1502
      %1504 = vmatmul.f32.gmra.mxu0 %v1390
      %v1505 = vpop.f32.mrf.mxu0
      %v1506 = vadd.f32 0.0, %v1505
      %1507 = vmatmul.f32.gmra.mxu0 %v1393
      %v1508 = vpop.f32.mrf.mxu0
      %v1509 = vadd.f32 0.0, %v1508
      %1510 = vmatmul.f32.gmra.mxu0 %v1396
      %v1511 = vpop.f32.mrf.mxu0
      %v1512 = vadd.f32 0.0, %v1511
      %1513 = vmatmul.f32.gmra.mxu0 %v1399
      %v1514 = vpop.f32.mrf.mxu0
      %v1515 = vadd.f32 0.0, %v1514
      %1516 = vmatmul.f32.gmra.mxu0 %v1402
      %v1517 = vpop.f32.mrf.mxu0
      %v1518 = vadd.f32 0.0, %v1517
      %1519 = vmatmul.f32.gmra.mxu0 %v1405
      %v1520 = vpop.f32.mrf.mxu0
      %v1521 = vadd.f32 0.0, %v1520
      %1522 = vmatmul.f32.gmra.mxu0 %v1408
      %v1523 = vpop.f32.mrf.mxu0
      %v1524 = vadd.f32 0.0, %v1523
      %1525 = vmatmul.f32.gmra.mxu0 %v1411
      %v1526 = vpop.f32.mrf.mxu0
      %v1527 = vadd.f32 0.0, %v1526
      %1528 = vmatmul.f32.gmra.mxu0 %v1414
      %v1529 = vpop.f32.mrf.mxu0
      %v1530 = vadd.f32 0.0, %v1529
      %1531 = vmatmul.f32.gmra.mxu0 %v1417
      %v1532 = vpop.f32.mrf.mxu0
      %v1533 = vadd.f32 0.0, %v1532
      %1534 = vmatmul.f32.gmra.mxu0 %v1420
      %v1535 = vpop.f32.mrf.mxu0
      %v1536 = vadd.f32 0.0, %v1535
      %1537 = vmatmul.f32.gmra.mxu0 %v1423
      %v1538 = vpop.f32.mrf.mxu0
      %v1539 = vadd.f32 0.0, %v1538
      %1540 = vmatmul.f32.gmra.mxu0 %v1426
      %v1541 = vpop.f32.mrf.mxu0
      %v1542 = vadd.f32 0.0, %v1541
      %1543 = vmatmul.f32.gmra.mxu0 %v1429
      %v1544 = vpop.f32.mrf.mxu0
      %v1545 = vadd.f32 0.0, %v1544
      %1546 = vmatmul.f32.gmra.mxu0 %v1432
      %v1547 = vpop.f32.mrf.mxu0
      %v1548 = vadd.f32 0.0, %v1547
      %1549 = vmatmul.f32.gmra.mxu0 %v1435
      %v1550 = vpop.f32.mrf.mxu0
      %v1551 = vadd.f32 0.0, %v1550
      %1552 = vmatmul.f32.gmra.mxu0 %v1438
      %v1553 = vpop.f32.mrf.mxu0
      %v1554 = vadd.f32 0.0, %v1553
      %1555 = vmatmul.f32.gmra.mxu0 %v1441
      %v1556 = vpop.f32.mrf.mxu0
      %v1557 = vadd.f32 0.0, %v1556
      %1558 = vmatmul.f32.gmra.mxu0 %v1444
      %v1559 = vpop.f32.mrf.mxu0
      %v1560 = vadd.f32 0.0, %v1559
      %1561 = vmatmul.f32.gmra.mxu0 %v1447
      %v1562 = vpop.f32.mrf.mxu0
      %v1563 = vadd.f32 0.0, %v1562
      %1564 = vmatmul.f32.gmra.mxu0 %v1450
      %v1565 = vpop.f32.mrf.mxu0
      %v1566 = vadd.f32 0.0, %v1565
      %1567 = vmatmul.f32.gmra.mxu0 %v1453
      %v1568 = vpop.f32.mrf.mxu0
      %v1569 = vadd.f32 0.0, %v1568
      %1570 = vmatmul.f32.gmra.mxu0 %v1456
      %v1571 = vpop.f32.mrf.mxu0
      %v1572 = vadd.f32 0.0, %v1571
      %1573 = vmatmul.f32.gmra.mxu0 %v1459
      %v1574 = vpop.f32.mrf.mxu0
      %v1575 = vadd.f32 0.0, %v1574
      %1576 = vmatmul.f32.gmra.mxu0 %v1462
      %v1577 = vpop.f32.mrf.mxu0
      %v1578 = vadd.f32 0.0, %v1577
      %1579 = vmatmul.f32.gmra.mxu0 %v1465
      %v1580 = vpop.f32.mrf.mxu0
      %v1581 = vadd.f32 0.0, %v1580
      %1582 = vdwg.mxu0
      %v1583 = vadd.f32 %v1305, %v1488
      %v1584 = vadd.f32 %v1306, %v1491
      %v1585 = vadd.f32 %v1307, %v1494
      %v1586 = vadd.f32 %v1308, %v1497
      %v1587 = vadd.f32 %v1309, %v1500
      %v1588 = vadd.f32 %v1310, %v1503
      %v1589 = vadd.f32 %v1311, %v1506
      %v1590 = vadd.f32 %v1312, %v1509
      %v1591 = vadd.f32 %v1313, %v1512
      %v1592 = vadd.f32 %v1314, %v1515
      %v1593 = vadd.f32 %v1315, %v1518
      %v1594 = vadd.f32 %v1316, %v1521
      %v1595 = vadd.f32 %v1317, %v1524
      %v1596 = vadd.f32 %v1318, %v1527
      %v1597 = vadd.f32 %v1319, %v1530
      %v1598 = vadd.f32 %v1320, %v1533
      %v1599 = vadd.f32 %v1321, %v1536
      %v1600 = vadd.f32 %v1322, %v1539
      %v1601 = vadd.f32 %v1323, %v1542
      %v1602 = vadd.f32 %v1324, %v1545
      %v1603 = vadd.f32 %v1325, %v1548
      %v1604 = vadd.f32 %v1326, %v1551
      %v1605 = vadd.f32 %v1327, %v1554
      %v1606 = vadd.f32 %v1328, %v1557
      %v1607 = vadd.f32 %v1329, %v1560
      %v1608 = vadd.f32 %v1330, %v1563
      %v1609 = vadd.f32 %v1331, %v1566
      %v1610 = vadd.f32 %v1332, %v1569
      %v1611 = vadd.f32 %v1333, %v1572
      %v1612 = vadd.f32 %v1334, %v1575
      %v1613 = vadd.f32 %v1335, %v1578
      %v1614 = vadd.f32 %v1336, %v1581
      %v1615 = vld [vmem:[%s746] sm:$0xff]
      %v1616 = vld [vmem:[%s746 + $0x8] sm:$0xff]
      %v1617 = vld [vmem:[%s746 + $0x18] sm:$0xff]
      %v1618 = vld [vmem:[%s746 + $0x20] sm:$0xff]
      %v1619 = vld [vmem:[%s746 + $0x30] sm:$0xff]
      %v1620 = vld [vmem:[%s746 + $0x38] sm:$0xff]
      %v1621 = vld [vmem:[%s746 + $0x48] sm:$0xff]
      %v1622 = vld [vmem:[%s746 + $0x50] sm:$0xff]
      %v1623 = vld [vmem:[%s746 + $0x60] sm:$0xff]
      %v1624 = vld [vmem:[%s746 + $0x68] sm:$0xff]
      %v1625 = vld [vmem:[%s746 + $0x78] sm:$0xff]
      %v1626 = vld [vmem:[%s746 + $0x80] sm:$0xff]
      %v1627 = vld [vmem:[%s746 + $0x90] sm:$0xff]
      %v1628 = vld [vmem:[%s746 + $0x98] sm:$0xff]
      %v1629 = vld [vmem:[%s746 + $0xa8] sm:$0xff]
      %v1630 = vld [vmem:[%s746 + $0xb0] sm:$0xff]
      %v1631 = vld [vmem:[%s746 + $0xc0] sm:$0xff]
      %v1632 = vld [vmem:[%s746 + $0xc8] sm:$0xff]
      %v1633 = vld [vmem:[%s746 + $0xd8] sm:$0xff]
      %v1634 = vld [vmem:[%s746 + $0xe0] sm:$0xff]
      %v1635 = vld [vmem:[%s746 + $0xf0] sm:$0xff]
      %v1636 = vld [vmem:[%s746 + $0xf8] sm:$0xff]
      %v1637 = vld [vmem:[%s746 + $0x108] sm:$0xff]
      %v1638 = vld [vmem:[%s746 + $0x110] sm:$0xff]
      %v1639 = vld [vmem:[%s746 + $0x120] sm:$0xff]
      %v1640 = vld [vmem:[%s746 + $0x128] sm:$0xff]
      %v1641 = vld [vmem:[%s746 + $0x138] sm:$0xff]
      %v1642 = vld [vmem:[%s746 + $0x140] sm:$0xff]
      %v1643 = vld [vmem:[%s746 + $0x150] sm:$0xff]
      %v1644 = vld [vmem:[%s746 + $0x158] sm:$0xff]
      %v1645 = vld [vmem:[%s746 + $0x168] sm:$0xff]
      %v1646 = vld [vmem:[%s746 + $0x170] sm:$0xff]
      %s1647 = scalar_lea.vmem %s2, 12
      %v1648 = vld [vmem:[%s1647] sm:$0xf]
      %v1650 = vsel %vm381, %v1615, 0
      %v1653 = vsel %vm381, %v1616, 0
      %v1656 = vsel %vm381, %v1617, 0
      %v1659 = vsel %vm381, %v1618, 0
      %v1662 = vsel %vm381, %v1619, 0
      %v1665 = vsel %vm381, %v1620, 0
      %v1668 = vsel %vm381, %v1621, 0
      %v1671 = vsel %vm381, %v1622, 0
      %v1674 = vsel %vm381, %v1623, 0
      %v1677 = vsel %vm381, %v1624, 0
      %v1680 = vsel %vm381, %v1625, 0
      %v1683 = vsel %vm381, %v1626, 0
      %v1686 = vsel %vm381, %v1627, 0
      %v1689 = vsel %vm381, %v1628, 0
      %v1692 = vsel %vm381, %v1629, 0
      %v1695 = vsel %vm381, %v1630, 0
      %v1698 = vsel %vm381, %v1631, 0
      %v1701 = vsel %vm381, %v1632, 0
      %v1704 = vsel %vm381, %v1633, 0
      %v1707 = vsel %vm381, %v1634, 0
      %v1710 = vsel %vm381, %v1635, 0
      %v1713 = vsel %vm381, %v1636, 0
      %v1716 = vsel %vm381, %v1637, 0
      %v1719 = vsel %vm381, %v1638, 0
      %v1722 = vsel %vm381, %v1639, 0
      %v1725 = vsel %vm381, %v1640, 0
      %v1728 = vsel %vm381, %v1641, 0
      %v1731 = vsel %vm381, %v1642, 0
      %v1734 = vsel %vm381, %v1643, 0
      %v1737 = vsel %vm381, %v1644, 0
      %v1740 = vsel %vm381, %v1645, 0
      %v1743 = vsel %vm381, %v1646, 0
      %v1746 = vsel %vm478, %v1648, 0
      %1748 = vmatpush.msra.mxu0 0.0
      %1749 = vmatpush.msra.mxu0 0.0
      %1750 = vmatpush.msra.mxu0 0.0
      %1751 = vmatpush.msra.mxu0 0.0
      %1752 = vmatpush.msra.mxu0 0.0
      %1753 = vmatpush.msra.mxu0 0.0
      %1754 = vmatpush.msra.mxu0 0.0
      %1755 = vmatpush.msra.mxu0 0.0
      %1756 = vmatpush.msra.mxu0 0.0
      %1757 = vmatpush.msra.mxu0 0.0
      %1758 = vmatpush.msra.mxu0 0.0
      %1759 = vmatpush.msra.mxu0 0.0
      %1760 = vmatpush.msra.mxu0 0.0
      %1761 = vmatpush.msra.mxu0 0.0
      %1762 = vmatpush.msra.mxu0 0.0
      %1763 = vmatpush.msra.mxu0 %v1746
      %1764 = vmatmul.f32.gmra.mxu0 %v1650
      %v1765 = vpop.f32.mrf.mxu0
      %v1766 = vadd.f32 0.0, %v1765
      %1767 = vmatmul.f32.gmra.mxu0 %v1653
      %v1768 = vpop.f32.mrf.mxu0
      %v1769 = vadd.f32 0.0, %v1768
      %1770 = vmatmul.f32.gmra.mxu0 %v1656
      %v1771 = vpop.f32.mrf.mxu0
      %v1772 = vadd.f32 0.0, %v1771
      %1773 = vmatmul.f32.gmra.mxu0 %v1659
      %v1774 = vpop.f32.mrf.mxu0
      %v1775 = vadd.f32 0.0, %v1774
      %1776 = vmatmul.f32.gmra.mxu0 %v1662
      %v1777 = vpop.f32.mrf.mxu0
      %v1778 = vadd.f32 0.0, %v1777
      %1779 = vmatmul.f32.gmra.mxu0 %v1665
      %v1780 = vpop.f32.mrf.mxu0
      %v1781 = vadd.f32 0.0, %v1780
      %1782 = vmatmul.f32.gmra.mxu0 %v1668
      %v1783 = vpop.f32.mrf.mxu0
      %v1784 = vadd.f32 0.0, %v1783
      %1785 = vmatmul.f32.gmra.mxu0 %v1671
      %v1786 = vpop.f32.mrf.mxu0
      %v1787 = vadd.f32 0.0, %v1786
      %1788 = vmatmul.f32.gmra.mxu0 %v1674
      %v1789 = vpop.f32.mrf.mxu0
      %v1790 = vadd.f32 0.0, %v1789
      %1791 = vmatmul.f32.gmra.mxu0 %v1677
      %v1792 = vpop.f32.mrf.mxu0
      %v1793 = vadd.f32 0.0, %v1792
      %1794 = vmatmul.f32.gmra.mxu0 %v1680
      %v1795 = vpop.f32.mrf.mxu0
      %v1796 = vadd.f32 0.0, %v1795
      %1797 = vmatmul.f32.gmra.mxu0 %v1683
      %v1798 = vpop.f32.mrf.mxu0
      %v1799 = vadd.f32 0.0, %v1798
      %1800 = vmatmul.f32.gmra.mxu0 %v1686
      %v1801 = vpop.f32.mrf.mxu0
      %v1802 = vadd.f32 0.0, %v1801
      %1803 = vmatmul.f32.gmra.mxu0 %v1689
      %v1804 = vpop.f32.mrf.mxu0
      %v1805 = vadd.f32 0.0, %v1804
      %1806 = vmatmul.f32.gmra.mxu0 %v1692
      %v1807 = vpop.f32.mrf.mxu0
      %v1808 = vadd.f32 0.0, %v1807
      %1809 = vmatmul.f32.gmra.mxu0 %v1695
      %v1810 = vpop.f32.mrf.mxu0
      %v1811 = vadd.f32 0.0, %v1810
      %1812 = vmatmul.f32.gmra.mxu0 %v1698
      %v1813 = vpop.f32.mrf.mxu0
      %v1814 = vadd.f32 0.0, %v1813
      %1815 = vmatmul.f32.gmra.mxu0 %v1701
      %v1816 = vpop.f32.mrf.mxu0
      %v1817 = vadd.f32 0.0, %v1816
      %1818 = vmatmul.f32.gmra.mxu0 %v1704
      %v1819 = vpop.f32.mrf.mxu0
      %v1820 = vadd.f32 0.0, %v1819
      %1821 = vmatmul.f32.gmra.mxu0 %v1707
      %v1822 = vpop.f32.mrf.mxu0
      %v1823 = vadd.f32 0.0, %v1822
      %1824 = vmatmul.f32.gmra.mxu0 %v1710
      %v1825 = vpop.f32.mrf.mxu0
      %v1826 = vadd.f32 0.0, %v1825
      %1827 = vmatmul.f32.gmra.mxu0 %v1713
      %v1828 = vpop.f32.mrf.mxu0
      %v1829 = vadd.f32 0.0, %v1828
      %1830 = vmatmul.f32.gmra.mxu0 %v1716
      %v1831 = vpop.f32.mrf.mxu0
      %v1832 = vadd.f32 0.0, %v1831
      %1833 = vmatmul.f32.gmra.mxu0 %v1719
      %v1834 = vpop.f32.mrf.mxu0
      %v1835 = vadd.f32 0.0, %v1834
      %1836 = vmatmul.f32.gmra.mxu0 %v1722
      %v1837 = vpop.f32.mrf.mxu0
      %v1838 = vadd.f32 0.0, %v1837
      %1839 = vmatmul.f32.gmra.mxu0 %v1725
      %v1840 = vpop.f32.mrf.mxu0
      %v1841 = vadd.f32 0.0, %v1840
      %1842 = vmatmul.f32.gmra.mxu0 %v1728
      %v1843 = vpop.f32.mrf.mxu0
      %v1844 = vadd.f32 0.0, %v1843
      %1845 = vmatmul.f32.gmra.mxu0 %v1731
      %v1846 = vpop.f32.mrf.mxu0
      %v1847 = vadd.f32 0.0, %v1846
      %1848 = vmatmul.f32.gmra.mxu0 %v1734
      %v1849 = vpop.f32.mrf.mxu0
      %v1850 = vadd.f32 0.0, %v1849
      %1851 = vmatmul.f32.gmra.mxu0 %v1737
      %v1852 = vpop.f32.mrf.mxu0
      %v1853 = vadd.f32 0.0, %v1852
      %1854 = vmatmul.f32.gmra.mxu0 %v1740
      %v1855 = vpop.f32.mrf.mxu0
      %v1856 = vadd.f32 0.0, %v1855
      %1857 = vmatmul.f32.gmra.mxu0 %v1743
      %v1858 = vpop.f32.mrf.mxu0
      %v1859 = vadd.f32 0.0, %v1858
      %1860 = vdwg.mxu0
      %v1861 = vadd.f32 %v1583, %v1766
      %v1862 = vadd.f32 %v1584, %v1769
      %v1863 = vadd.f32 %v1585, %v1772
      %v1864 = vadd.f32 %v1586, %v1775
      %v1865 = vadd.f32 %v1587, %v1778
      %v1866 = vadd.f32 %v1588, %v1781
      %v1867 = vadd.f32 %v1589, %v1784
      %v1868 = vadd.f32 %v1590, %v1787
      %v1869 = vadd.f32 %v1591, %v1790
      %v1870 = vadd.f32 %v1592, %v1793
      %v1871 = vadd.f32 %v1593, %v1796
      %v1872 = vadd.f32 %v1594, %v1799
      %v1873 = vadd.f32 %v1595, %v1802
      %v1874 = vadd.f32 %v1596, %v1805
      %v1875 = vadd.f32 %v1597, %v1808
      %v1876 = vadd.f32 %v1598, %v1811
      %v1877 = vadd.f32 %v1599, %v1814
      %v1878 = vadd.f32 %v1600, %v1817
      %v1879 = vadd.f32 %v1601, %v1820
      %v1880 = vadd.f32 %v1602, %v1823
      %v1881 = vadd.f32 %v1603, %v1826
      %v1882 = vadd.f32 %v1604, %v1829
      %v1883 = vadd.f32 %v1605, %v1832
      %v1884 = vadd.f32 %v1606, %v1835
      %v1885 = vadd.f32 %v1607, %v1838
      %v1886 = vadd.f32 %v1608, %v1841
      %v1887 = vadd.f32 %v1609, %v1844
      %v1888 = vadd.f32 %v1610, %v1847
      %v1889 = vadd.f32 %v1611, %v1850
      %v1890 = vadd.f32 %v1612, %v1853
      %v1891 = vadd.f32 %v1613, %v1856
      %v1892 = vadd.f32 %v1614, %v1859
      %v1893 = vld [vmem:[%s746 + $0x1] sm:$0xff]
      %v1894 = vld [vmem:[%s746 + $0x9] sm:$0xff]
      %v1895 = vld [vmem:[%s746 + $0x19] sm:$0xff]
      %v1896 = vld [vmem:[%s746 + $0x21] sm:$0xff]
      %v1897 = vld [vmem:[%s746 + $0x31] sm:$0xff]
      %v1898 = vld [vmem:[%s746 + $0x39] sm:$0xff]
      %v1899 = vld [vmem:[%s746 + $0x49] sm:$0xff]
      %v1900 = vld [vmem:[%s746 + $0x51] sm:$0xff]
      %v1901 = vld [vmem:[%s746 + $0x61] sm:$0xff]
      %v1902 = vld [vmem:[%s746 + $0x69] sm:$0xff]
      %v1903 = vld [vmem:[%s746 + $0x79] sm:$0xff]
      %v1904 = vld [vmem:[%s746 + $0x81] sm:$0xff]
      %v1905 = vld [vmem:[%s746 + $0x91] sm:$0xff]
      %v1906 = vld [vmem:[%s746 + $0x99] sm:$0xff]
      %v1907 = vld [vmem:[%s746 + $0xa9] sm:$0xff]
      %v1908 = vld [vmem:[%s746 + $0xb1] sm:$0xff]
      %v1909 = vld [vmem:[%s746 + $0xc1] sm:$0xff]
      %v1910 = vld [vmem:[%s746 + $0xc9] sm:$0xff]
      %v1911 = vld [vmem:[%s746 + $0xd9] sm:$0xff]
      %v1912 = vld [vmem:[%s746 + $0xe1] sm:$0xff]
      %v1913 = vld [vmem:[%s746 + $0xf1] sm:$0xff]
      %v1914 = vld [vmem:[%s746 + $0xf9] sm:$0xff]
      %v1915 = vld [vmem:[%s746 + $0x109] sm:$0xff]
      %v1916 = vld [vmem:[%s746 + $0x111] sm:$0xff]
      %v1917 = vld [vmem:[%s746 + $0x121] sm:$0xff]
      %v1918 = vld [vmem:[%s746 + $0x129] sm:$0xff]
      %v1919 = vld [vmem:[%s746 + $0x139] sm:$0xff]
      %v1920 = vld [vmem:[%s746 + $0x141] sm:$0xff]
      %v1921 = vld [vmem:[%s746 + $0x151] sm:$0xff]
      %v1922 = vld [vmem:[%s746 + $0x159] sm:$0xff]
      %v1923 = vld [vmem:[%s746 + $0x169] sm:$0xff]
      %v1924 = vld [vmem:[%s746 + $0x171] sm:$0xff]
      %s1925 = scalar_lea.vmem %s2, 16
      %v1926 = vld [vmem:[%s1925] sm:$0xf]
      %v1928 = vsel %vm381, %v1893, 0
      %v1931 = vsel %vm381, %v1894, 0
      %v1934 = vsel %vm381, %v1895, 0
      %v1937 = vsel %vm381, %v1896, 0
      %v1940 = vsel %vm381, %v1897, 0
      %v1943 = vsel %vm381, %v1898, 0
      %v1946 = vsel %vm381, %v1899, 0
      %v1949 = vsel %vm381, %v1900, 0
      %v1952 = vsel %vm381, %v1901, 0
      %v1955 = vsel %vm381, %v1902, 0
      %v1958 = vsel %vm381, %v1903, 0
      %v1961 = vsel %vm381, %v1904, 0
      %v1964 = vsel %vm381, %v1905, 0
      %v1967 = vsel %vm381, %v1906, 0
      %v1970 = vsel %vm381, %v1907, 0
      %v1973 = vsel %vm381, %v1908, 0
      %v1976 = vsel %vm381, %v1909, 0
      %v1979 = vsel %vm381, %v1910, 0
      %v1982 = vsel %vm381, %v1911, 0
      %v1985 = vsel %vm381, %v1912, 0
      %v1988 = vsel %vm381, %v1913, 0
      %v1991 = vsel %vm381, %v1914, 0
      %v1994 = vsel %vm381, %v1915, 0
      %v1997 = vsel %vm381, %v1916, 0
      %v2000 = vsel %vm381, %v1917, 0
      %v2003 = vsel %vm381, %v1918, 0
      %v2006 = vsel %vm381, %v1919, 0
      %v2009 = vsel %vm381, %v1920, 0
      %v2012 = vsel %vm381, %v1921, 0
      %v2015 = vsel %vm381, %v1922, 0
      %v2018 = vsel %vm381, %v1923, 0
      %v2021 = vsel %vm381, %v1924, 0
      %v2024 = vsel %vm478, %v1926, 0
      %2026 = vmatpush.msra.mxu0 0.0
      %2027 = vmatpush.msra.mxu0 0.0
      %2028 = vmatpush.msra.mxu0 0.0
      %2029 = vmatpush.msra.mxu0 0.0
      %2030 = vmatpush.msra.mxu0 0.0
      %2031 = vmatpush.msra.mxu0 0.0
      %2032 = vmatpush.msra.mxu0 0.0
      %2033 = vmatpush.msra.mxu0 0.0
      %2034 = vmatpush.msra.mxu0 0.0
      %2035 = vmatpush.msra.mxu0 0.0
      %2036 = vmatpush.msra.mxu0 0.0
      %2037 = vmatpush.msra.mxu0 0.0
      %2038 = vmatpush.msra.mxu0 0.0
      %2039 = vmatpush.msra.mxu0 0.0
      %2040 = vmatpush.msra.mxu0 0.0
      %2041 = vmatpush.msra.mxu0 %v2024
      %2042 = vmatmul.f32.gmra.mxu0 %v1928
      %v2043 = vpop.f32.mrf.mxu0
      %v2044 = vadd.f32 0.0, %v2043
      %2045 = vmatmul.f32.gmra.mxu0 %v1931
      %v2046 = vpop.f32.mrf.mxu0
      %v2047 = vadd.f32 0.0, %v2046
      %2048 = vmatmul.f32.gmra.mxu0 %v1934
      %v2049 = vpop.f32.mrf.mxu0
      %v2050 = vadd.f32 0.0, %v2049
      %2051 = vmatmul.f32.gmra.mxu0 %v1937
      %v2052 = vpop.f32.mrf.mxu0
      %v2053 = vadd.f32 0.0, %v2052
      %2054 = vmatmul.f32.gmra.mxu0 %v1940
      %v2055 = vpop.f32.mrf.mxu0
      %v2056 = vadd.f32 0.0, %v2055
      %2057 = vmatmul.f32.gmra.mxu0 %v1943
      %v2058 = vpop.f32.mrf.mxu0
      %v2059 = vadd.f32 0.0, %v2058
      %2060 = vmatmul.f32.gmra.mxu0 %v1946
      %v2061 = vpop.f32.mrf.mxu0
      %v2062 = vadd.f32 0.0, %v2061
      %2063 = vmatmul.f32.gmra.mxu0 %v1949
      %v2064 = vpop.f32.mrf.mxu0
      %v2065 = vadd.f32 0.0, %v2064
      %2066 = vmatmul.f32.gmra.mxu0 %v1952
      %v2067 = vpop.f32.mrf.mxu0
      %v2068 = vadd.f32 0.0, %v2067
      %2069 = vmatmul.f32.gmra.mxu0 %v1955
      %v2070 = vpop.f32.mrf.mxu0
      %v2071 = vadd.f32 0.0, %v2070
      %2072 = vmatmul.f32.gmra.mxu0 %v1958
      %v2073 = vpop.f32.mrf.mxu0
      %v2074 = vadd.f32 0.0, %v2073
      %2075 = vmatmul.f32.gmra.mxu0 %v1961
      %v2076 = vpop.f32.mrf.mxu0
      %v2077 = vadd.f32 0.0, %v2076
      %2078 = vmatmul.f32.gmra.mxu0 %v1964
      %v2079 = vpop.f32.mrf.mxu0
      %v2080 = vadd.f32 0.0, %v2079
      %2081 = vmatmul.f32.gmra.mxu0 %v1967
      %v2082 = vpop.f32.mrf.mxu0
      %v2083 = vadd.f32 0.0, %v2082
      %2084 = vmatmul.f32.gmra.mxu0 %v1970
      %v2085 = vpop.f32.mrf.mxu0
      %v2086 = vadd.f32 0.0, %v2085
      %2087 = vmatmul.f32.gmra.mxu0 %v1973
      %v2088 = vpop.f32.mrf.mxu0
      %v2089 = vadd.f32 0.0, %v2088
      %2090 = vmatmul.f32.gmra.mxu0 %v1976
      %v2091 = vpop.f32.mrf.mxu0
      %v2092 = vadd.f32 0.0, %v2091
      %2093 = vmatmul.f32.gmra.mxu0 %v1979
      %v2094 = vpop.f32.mrf.mxu0
      %v2095 = vadd.f32 0.0, %v2094
      %2096 = vmatmul.f32.gmra.mxu0 %v1982
      %v2097 = vpop.f32.mrf.mxu0
      %v2098 = vadd.f32 0.0, %v2097
      %2099 = vmatmul.f32.gmra.mxu0 %v1985
      %v2100 = vpop.f32.mrf.mxu0
      %v2101 = vadd.f32 0.0, %v2100
      %2102 = vmatmul.f32.gmra.mxu0 %v1988
      %v2103 = vpop.f32.mrf.mxu0
      %v2104 = vadd.f32 0.0, %v2103
      %2105 = vmatmul.f32.gmra.mxu0 %v1991
      %v2106 = vpop.f32.mrf.mxu0
      %v2107 = vadd.f32 0.0, %v2106
      %2108 = vmatmul.f32.gmra.mxu0 %v1994
      %v2109 = vpop.f32.mrf.mxu0
      %v2110 = vadd.f32 0.0, %v2109
      %2111 = vmatmul.f32.gmra.mxu0 %v1997
      %v2112 = vpop.f32.mrf.mxu0
      %v2113 = vadd.f32 0.0, %v2112
      %2114 = vmatmul.f32.gmra.mxu0 %v2000
      %v2115 = vpop.f32.mrf.mxu0
      %v2116 = vadd.f32 0.0, %v2115
      %2117 = vmatmul.f32.gmra.mxu0 %v2003
      %v2118 = vpop.f32.mrf.mxu0
      %v2119 = vadd.f32 0.0, %v2118
      %2120 = vmatmul.f32.gmra.mxu0 %v2006
      %v2121 = vpop.f32.mrf.mxu0
      %v2122 = vadd.f32 0.0, %v2121
      %2123 = vmatmul.f32.gmra.mxu0 %v2009
      %v2124 = vpop.f32.mrf.mxu0
      %v2125 = vadd.f32 0.0, %v2124
      %2126 = vmatmul.f32.gmra.mxu0 %v2012
      %v2127 = vpop.f32.mrf.mxu0
      %v2128 = vadd.f32 0.0, %v2127
      %2129 = vmatmul.f32.gmra.mxu0 %v2015
      %v2130 = vpop.f32.mrf.mxu0
      %v2131 = vadd.f32 0.0, %v2130
      %2132 = vmatmul.f32.gmra.mxu0 %v2018
      %v2133 = vpop.f32.mrf.mxu0
      %v2134 = vadd.f32 0.0, %v2133
      %2135 = vmatmul.f32.gmra.mxu0 %v2021
      %v2136 = vpop.f32.mrf.mxu0
      %v2137 = vadd.f32 0.0, %v2136
      %2138 = vdwg.mxu0
      %v2139 = vadd.f32 %v1861, %v2044
      %v2140 = vadd.f32 %v1862, %v2047
      %v2141 = vadd.f32 %v1863, %v2050
      %v2142 = vadd.f32 %v1864, %v2053
      %v2143 = vadd.f32 %v1865, %v2056
      %v2144 = vadd.f32 %v1866, %v2059
      %v2145 = vadd.f32 %v1867, %v2062
      %v2146 = vadd.f32 %v1868, %v2065
      %v2147 = vadd.f32 %v1869, %v2068
      %v2148 = vadd.f32 %v1870, %v2071
      %v2149 = vadd.f32 %v1871, %v2074
      %v2150 = vadd.f32 %v1872, %v2077
      %v2151 = vadd.f32 %v1873, %v2080
      %v2152 = vadd.f32 %v1874, %v2083
      %v2153 = vadd.f32 %v1875, %v2086
      %v2154 = vadd.f32 %v1876, %v2089
      %v2155 = vadd.f32 %v1877, %v2092
      %v2156 = vadd.f32 %v1878, %v2095
      %v2157 = vadd.f32 %v1879, %v2098
      %v2158 = vadd.f32 %v1880, %v2101
      %v2159 = vadd.f32 %v1881, %v2104
      %v2160 = vadd.f32 %v1882, %v2107
      %v2161 = vadd.f32 %v1883, %v2110
      %v2162 = vadd.f32 %v1884, %v2113
      %v2163 = vadd.f32 %v1885, %v2116
      %v2164 = vadd.f32 %v1886, %v2119
      %v2165 = vadd.f32 %v1887, %v2122
      %v2166 = vadd.f32 %v1888, %v2125
      %v2167 = vadd.f32 %v1889, %v2128
      %v2168 = vadd.f32 %v1890, %v2131
      %v2169 = vadd.f32 %v1891, %v2134
      %v2170 = vadd.f32 %v1892, %v2137
      %v2171 = vld [vmem:[%s746 + $0x2] sm:$0xff]
      %v2172 = vld [vmem:[%s746 + $0xa] sm:$0xff]
      %v2173 = vld [vmem:[%s746 + $0x1a] sm:$0xff]
      %v2174 = vld [vmem:[%s746 + $0x22] sm:$0xff]
      %v2175 = vld [vmem:[%s746 + $0x32] sm:$0xff]
      %v2176 = vld [vmem:[%s746 + $0x3a] sm:$0xff]
      %v2177 = vld [vmem:[%s746 + $0x4a] sm:$0xff]
      %v2178 = vld [vmem:[%s746 + $0x52] sm:$0xff]
      %v2179 = vld [vmem:[%s746 + $0x62] sm:$0xff]
      %v2180 = vld [vmem:[%s746 + $0x6a] sm:$0xff]
      %v2181 = vld [vmem:[%s746 + $0x7a] sm:$0xff]
      %v2182 = vld [vmem:[%s746 + $0x82] sm:$0xff]
      %v2183 = vld [vmem:[%s746 + $0x92] sm:$0xff]
      %v2184 = vld [vmem:[%s746 + $0x9a] sm:$0xff]
      %v2185 = vld [vmem:[%s746 + $0xaa] sm:$0xff]
      %v2186 = vld [vmem:[%s746 + $0xb2] sm:$0xff]
      %v2187 = vld [vmem:[%s746 + $0xc2] sm:$0xff]
      %v2188 = vld [vmem:[%s746 + $0xca] sm:$0xff]
      %v2189 = vld [vmem:[%s746 + $0xda] sm:$0xff]
      %v2190 = vld [vmem:[%s746 + $0xe2] sm:$0xff]
      %v2191 = vld [vmem:[%s746 + $0xf2] sm:$0xff]
      %v2192 = vld [vmem:[%s746 + $0xfa] sm:$0xff]
      %v2193 = vld [vmem:[%s746 + $0x10a] sm:$0xff]
      %v2194 = vld [vmem:[%s746 + $0x112] sm:$0xff]
      %v2195 = vld [vmem:[%s746 + $0x122] sm:$0xff]
      %v2196 = vld [vmem:[%s746 + $0x12a] sm:$0xff]
      %v2197 = vld [vmem:[%s746 + $0x13a] sm:$0xff]
      %v2198 = vld [vmem:[%s746 + $0x142] sm:$0xff]
      %v2199 = vld [vmem:[%s746 + $0x152] sm:$0xff]
      %v2200 = vld [vmem:[%s746 + $0x15a] sm:$0xff]
      %v2201 = vld [vmem:[%s746 + $0x16a] sm:$0xff]
      %v2202 = vld [vmem:[%s746 + $0x172] sm:$0xff]
      %s2203 = scalar_lea.vmem %s2, 20
      %v2204 = vld [vmem:[%s2203] sm:$0xf]
      %v2206 = vsel %vm381, %v2171, 0
      %v2209 = vsel %vm381, %v2172, 0
      %v2212 = vsel %vm381, %v2173, 0
      %v2215 = vsel %vm381, %v2174, 0
      %v2218 = vsel %vm381, %v2175, 0
      %v2221 = vsel %vm381, %v2176, 0
      %v2224 = vsel %vm381, %v2177, 0
      %v2227 = vsel %vm381, %v2178, 0
      %v2230 = vsel %vm381, %v2179, 0
      %v2233 = vsel %vm381, %v2180, 0
      %v2236 = vsel %vm381, %v2181, 0
      %v2239 = vsel %vm381, %v2182, 0
      %v2242 = vsel %vm381, %v2183, 0
      %v2245 = vsel %vm381, %v2184, 0
      %v2248 = vsel %vm381, %v2185, 0
      %v2251 = vsel %vm381, %v2186, 0
      %v2254 = vsel %vm381, %v2187, 0
      %v2257 = vsel %vm381, %v2188, 0
      %v2260 = vsel %vm381, %v2189, 0
      %v2263 = vsel %vm381, %v2190, 0
      %v2266 = vsel %vm381, %v2191, 0
      %v2269 = vsel %vm381, %v2192, 0
      %v2272 = vsel %vm381, %v2193, 0
      %v2275 = vsel %vm381, %v2194, 0
      %v2278 = vsel %vm381, %v2195, 0
      %v2281 = vsel %vm381, %v2196, 0
      %v2284 = vsel %vm381, %v2197, 0
      %v2287 = vsel %vm381, %v2198, 0
      %v2290 = vsel %vm381, %v2199, 0
      %v2293 = vsel %vm381, %v2200, 0
      %v2296 = vsel %vm381, %v2201, 0
      %v2299 = vsel %vm381, %v2202, 0
      %v2302 = vsel %vm478, %v2204, 0
      %2304 = vmatpush.msra.mxu0 0.0
      %2305 = vmatpush.msra.mxu0 0.0
      %2306 = vmatpush.msra.mxu0 0.0
      %2307 = vmatpush.msra.mxu0 0.0
      %2308 = vmatpush.msra.mxu0 0.0
      %2309 = vmatpush.msra.mxu0 0.0
      %2310 = vmatpush.msra.mxu0 0.0
      %2311 = vmatpush.msra.mxu0 0.0
      %2312 = vmatpush.msra.mxu0 0.0
      %2313 = vmatpush.msra.mxu0 0.0
      %2314 = vmatpush.msra.mxu0 0.0
      %2315 = vmatpush.msra.mxu0 0.0
      %2316 = vmatpush.msra.mxu0 0.0
      %2317 = vmatpush.msra.mxu0 0.0
      %2318 = vmatpush.msra.mxu0 0.0
      %2319 = vmatpush.msra.mxu0 %v2302
      %2320 = vmatmul.f32.gmra.mxu0 %v2206
      %v2321 = vpop.f32.mrf.mxu0
      %v2322 = vadd.f32 0.0, %v2321
      %2323 = vmatmul.f32.gmra.mxu0 %v2209
      %v2324 = vpop.f32.mrf.mxu0
      %v2325 = vadd.f32 0.0, %v2324
      %2326 = vmatmul.f32.gmra.mxu0 %v2212
      %v2327 = vpop.f32.mrf.mxu0
      %v2328 = vadd.f32 0.0, %v2327
      %2329 = vmatmul.f32.gmra.mxu0 %v2215
      %v2330 = vpop.f32.mrf.mxu0
      %v2331 = vadd.f32 0.0, %v2330
      %2332 = vmatmul.f32.gmra.mxu0 %v2218
      %v2333 = vpop.f32.mrf.mxu0
      %v2334 = vadd.f32 0.0, %v2333
      %2335 = vmatmul.f32.gmra.mxu0 %v2221
      %v2336 = vpop.f32.mrf.mxu0
      %v2337 = vadd.f32 0.0, %v2336
      %2338 = vmatmul.f32.gmra.mxu0 %v2224
      %v2339 = vpop.f32.mrf.mxu0
      %v2340 = vadd.f32 0.0, %v2339
      %2341 = vmatmul.f32.gmra.mxu0 %v2227
      %v2342 = vpop.f32.mrf.mxu0
      %v2343 = vadd.f32 0.0, %v2342
      %2344 = vmatmul.f32.gmra.mxu0 %v2230
      %v2345 = vpop.f32.mrf.mxu0
      %v2346 = vadd.f32 0.0, %v2345
      %2347 = vmatmul.f32.gmra.mxu0 %v2233
      %v2348 = vpop.f32.mrf.mxu0
      %v2349 = vadd.f32 0.0, %v2348
      %2350 = vmatmul.f32.gmra.mxu0 %v2236
      %v2351 = vpop.f32.mrf.mxu0
      %v2352 = vadd.f32 0.0, %v2351
      %2353 = vmatmul.f32.gmra.mxu0 %v2239
      %v2354 = vpop.f32.mrf.mxu0
      %v2355 = vadd.f32 0.0, %v2354
      %2356 = vmatmul.f32.gmra.mxu0 %v2242
      %v2357 = vpop.f32.mrf.mxu0
      %v2358 = vadd.f32 0.0, %v2357
      %2359 = vmatmul.f32.gmra.mxu0 %v2245
      %v2360 = vpop.f32.mrf.mxu0
      %v2361 = vadd.f32 0.0, %v2360
      %2362 = vmatmul.f32.gmra.mxu0 %v2248
      %v2363 = vpop.f32.mrf.mxu0
      %v2364 = vadd.f32 0.0, %v2363
      %2365 = vmatmul.f32.gmra.mxu0 %v2251
      %v2366 = vpop.f32.mrf.mxu0
      %v2367 = vadd.f32 0.0, %v2366
      %2368 = vmatmul.f32.gmra.mxu0 %v2254
      %v2369 = vpop.f32.mrf.mxu0
      %v2370 = vadd.f32 0.0, %v2369
      %2371 = vmatmul.f32.gmra.mxu0 %v2257
      %v2372 = vpop.f32.mrf.mxu0
      %v2373 = vadd.f32 0.0, %v2372
      %2374 = vmatmul.f32.gmra.mxu0 %v2260
      %v2375 = vpop.f32.mrf.mxu0
      %v2376 = vadd.f32 0.0, %v2375
      %2377 = vmatmul.f32.gmra.mxu0 %v2263
      %v2378 = vpop.f32.mrf.mxu0
      %v2379 = vadd.f32 0.0, %v2378
      %2380 = vmatmul.f32.gmra.mxu0 %v2266
      %v2381 = vpop.f32.mrf.mxu0
      %v2382 = vadd.f32 0.0, %v2381
      %2383 = vmatmul.f32.gmra.mxu0 %v2269
      %v2384 = vpop.f32.mrf.mxu0
      %v2385 = vadd.f32 0.0, %v2384
      %2386 = vmatmul.f32.gmra.mxu0 %v2272
      %v2387 = vpop.f32.mrf.mxu0
      %v2388 = vadd.f32 0.0, %v2387
      %2389 = vmatmul.f32.gmra.mxu0 %v2275
      %v2390 = vpop.f32.mrf.mxu0
      %v2391 = vadd.f32 0.0, %v2390
      %2392 = vmatmul.f32.gmra.mxu0 %v2278
      %v2393 = vpop.f32.mrf.mxu0
      %v2394 = vadd.f32 0.0, %v2393
      %2395 = vmatmul.f32.gmra.mxu0 %v2281
      %v2396 = vpop.f32.mrf.mxu0
      %v2397 = vadd.f32 0.0, %v2396
      %2398 = vmatmul.f32.gmra.mxu0 %v2284
      %v2399 = vpop.f32.mrf.mxu0
      %v2400 = vadd.f32 0.0, %v2399
      %2401 = vmatmul.f32.gmra.mxu0 %v2287
      %v2402 = vpop.f32.mrf.mxu0
      %v2403 = vadd.f32 0.0, %v2402
      %2404 = vmatmul.f32.gmra.mxu0 %v2290
      %v2405 = vpop.f32.mrf.mxu0
      %v2406 = vadd.f32 0.0, %v2405
      %2407 = vmatmul.f32.gmra.mxu0 %v2293
      %v2408 = vpop.f32.mrf.mxu0
      %v2409 = vadd.f32 0.0, %v2408
      %2410 = vmatmul.f32.gmra.mxu0 %v2296
      %v2411 = vpop.f32.mrf.mxu0
      %v2412 = vadd.f32 0.0, %v2411
      %2413 = vmatmul.f32.gmra.mxu0 %v2299
      %v2414 = vpop.f32.mrf.mxu0
      %v2415 = vadd.f32 0.0, %v2414
      %2416 = vdwg.mxu0
      %v2417 = vadd.f32 %v2139, %v2322
      %v2418 = vadd.f32 %v2140, %v2325
      %v2419 = vadd.f32 %v2141, %v2328
      %v2420 = vadd.f32 %v2142, %v2331
      %v2421 = vadd.f32 %v2143, %v2334
      %v2422 = vadd.f32 %v2144, %v2337
      %v2423 = vadd.f32 %v2145, %v2340
      %v2424 = vadd.f32 %v2146, %v2343
      %v2425 = vadd.f32 %v2147, %v2346
      %v2426 = vadd.f32 %v2148, %v2349
      %v2427 = vadd.f32 %v2149, %v2352
      %v2428 = vadd.f32 %v2150, %v2355
      %v2429 = vadd.f32 %v2151, %v2358
      %v2430 = vadd.f32 %v2152, %v2361
      %v2431 = vadd.f32 %v2153, %v2364
      %v2432 = vadd.f32 %v2154, %v2367
      %v2433 = vadd.f32 %v2155, %v2370
      %v2434 = vadd.f32 %v2156, %v2373
      %v2435 = vadd.f32 %v2157, %v2376
      %v2436 = vadd.f32 %v2158, %v2379
      %v2437 = vadd.f32 %v2159, %v2382
      %v2438 = vadd.f32 %v2160, %v2385
      %v2439 = vadd.f32 %v2161, %v2388
      %v2440 = vadd.f32 %v2162, %v2391
      %v2441 = vadd.f32 %v2163, %v2394
      %v2442 = vadd.f32 %v2164, %v2397
      %v2443 = vadd.f32 %v2165, %v2400
      %v2444 = vadd.f32 %v2166, %v2403
      %v2445 = vadd.f32 %v2167, %v2406
      %v2446 = vadd.f32 %v2168, %v2409
      %v2447 = vadd.f32 %v2169, %v2412
      %v2448 = vadd.f32 %v2170, %v2415
      %s2449 = scalar_lea.vmem [#allocation2], 48
      %v2450 = vld [vmem:[%s2449] sm:$0xff]
      %v2451 = vld [vmem:[%s2449 + $0x8] sm:$0xff]
      %v2452 = vld [vmem:[%s2449 + $0x18] sm:$0xff]
      %v2453 = vld [vmem:[%s2449 + $0x20] sm:$0xff]
      %v2454 = vld [vmem:[%s2449 + $0x30] sm:$0xff]
      %v2455 = vld [vmem:[%s2449 + $0x38] sm:$0xff]
      %v2456 = vld [vmem:[%s2449 + $0x48] sm:$0xff]
      %v2457 = vld [vmem:[%s2449 + $0x50] sm:$0xff]
      %v2458 = vld [vmem:[%s2449 + $0x60] sm:$0xff]
      %v2459 = vld [vmem:[%s2449 + $0x68] sm:$0xff]
      %v2460 = vld [vmem:[%s2449 + $0x78] sm:$0xff]
      %v2461 = vld [vmem:[%s2449 + $0x80] sm:$0xff]
      %v2462 = vld [vmem:[%s2449 + $0x90] sm:$0xff]
      %v2463 = vld [vmem:[%s2449 + $0x98] sm:$0xff]
      %v2464 = vld [vmem:[%s2449 + $0xa8] sm:$0xff]
      %v2465 = vld [vmem:[%s2449 + $0xb0] sm:$0xff]
      %v2466 = vld [vmem:[%s2449 + $0xc0] sm:$0xff]
      %v2467 = vld [vmem:[%s2449 + $0xc8] sm:$0xff]
      %v2468 = vld [vmem:[%s2449 + $0xd8] sm:$0xff]
      %v2469 = vld [vmem:[%s2449 + $0xe0] sm:$0xff]
      %v2470 = vld [vmem:[%s2449 + $0xf0] sm:$0xff]
      %v2471 = vld [vmem:[%s2449 + $0xf8] sm:$0xff]
      %v2472 = vld [vmem:[%s2449 + $0x108] sm:$0xff]
      %v2473 = vld [vmem:[%s2449 + $0x110] sm:$0xff]
      %v2474 = vld [vmem:[%s2449 + $0x120] sm:$0xff]
      %v2475 = vld [vmem:[%s2449 + $0x128] sm:$0xff]
      %v2476 = vld [vmem:[%s2449 + $0x138] sm:$0xff]
      %v2477 = vld [vmem:[%s2449 + $0x140] sm:$0xff]
      %v2478 = vld [vmem:[%s2449 + $0x150] sm:$0xff]
      %v2479 = vld [vmem:[%s2449 + $0x158] sm:$0xff]
      %v2480 = vld [vmem:[%s2449 + $0x168] sm:$0xff]
      %v2481 = vld [vmem:[%s2449 + $0x170] sm:$0xff]
      %s2482 = scalar_lea.vmem %s2, 24
      %v2483 = vld [vmem:[%s2482] sm:$0xf]
      %v2485 = vsel %vm381, %v2450, 0
      %v2488 = vsel %vm381, %v2451, 0
      %v2491 = vsel %vm381, %v2452, 0
      %v2494 = vsel %vm381, %v2453, 0
      %v2497 = vsel %vm381, %v2454, 0
      %v2500 = vsel %vm381, %v2455, 0
      %v2503 = vsel %vm381, %v2456, 0
      %v2506 = vsel %vm381, %v2457, 0
      %v2509 = vsel %vm381, %v2458, 0
      %v2512 = vsel %vm381, %v2459, 0
      %v2515 = vsel %vm381, %v2460, 0
      %v2518 = vsel %vm381, %v2461, 0
      %v2521 = vsel %vm381, %v2462, 0
      %v2524 = vsel %vm381, %v2463, 0
      %v2527 = vsel %vm381, %v2464, 0
      %v2530 = vsel %vm381, %v2465, 0
      %v2533 = vsel %vm381, %v2466, 0
      %v2536 = vsel %vm381, %v2467, 0
      %v2539 = vsel %vm381, %v2468, 0
      %v2542 = vsel %vm381, %v2469, 0
      %v2545 = vsel %vm381, %v2470, 0
      %v2548 = vsel %vm381, %v2471, 0
      %v2551 = vsel %vm381, %v2472, 0
      %v2554 = vsel %vm381, %v2473, 0
      %v2557 = vsel %vm381, %v2474, 0
      %v2560 = vsel %vm381, %v2475, 0
      %v2563 = vsel %vm381, %v2476, 0
      %v2566 = vsel %vm381, %v2477, 0
      %v2569 = vsel %vm381, %v2478, 0
      %v2572 = vsel %vm381, %v2479, 0
      %v2575 = vsel %vm381, %v2480, 0
      %v2578 = vsel %vm381, %v2481, 0
      %v2581 = vsel %vm478, %v2483, 0
      %2583 = vmatpush.msra.mxu0 0.0
      %2584 = vmatpush.msra.mxu0 0.0
      %2585 = vmatpush.msra.mxu0 0.0
      %2586 = vmatpush.msra.mxu0 0.0
      %2587 = vmatpush.msra.mxu0 0.0
      %2588 = vmatpush.msra.mxu0 0.0
      %2589 = vmatpush.msra.mxu0 0.0
      %2590 = vmatpush.msra.mxu0 0.0
      %2591 = vmatpush.msra.mxu0 0.0
      %2592 = vmatpush.msra.mxu0 0.0
      %2593 = vmatpush.msra.mxu0 0.0
      %2594 = vmatpush.msra.mxu0 0.0
      %2595 = vmatpush.msra.mxu0 0.0
      %2596 = vmatpush.msra.mxu0 0.0
      %2597 = vmatpush.msra.mxu0 0.0
      %2598 = vmatpush.msra.mxu0 %v2581
      %2599 = vmatmul.f32.gmra.mxu0 %v2485
      %v2600 = vpop.f32.mrf.mxu0
      %v2601 = vadd.f32 0.0, %v2600
      %2602 = vmatmul.f32.gmra.mxu0 %v2488
      %v2603 = vpop.f32.mrf.mxu0
      %v2604 = vadd.f32 0.0, %v2603
      %2605 = vmatmul.f32.gmra.mxu0 %v2491
      %v2606 = vpop.f32.mrf.mxu0
      %v2607 = vadd.f32 0.0, %v2606
      %2608 = vmatmul.f32.gmra.mxu0 %v2494
      %v2609 = vpop.f32.mrf.mxu0
      %v2610 = vadd.f32 0.0, %v2609
      %2611 = vmatmul.f32.gmra.mxu0 %v2497
      %v2612 = vpop.f32.mrf.mxu0
      %v2613 = vadd.f32 0.0, %v2612
      %2614 = vmatmul.f32.gmra.mxu0 %v2500
      %v2615 = vpop.f32.mrf.mxu0
      %v2616 = vadd.f32 0.0, %v2615
      %2617 = vmatmul.f32.gmra.mxu0 %v2503
      %v2618 = vpop.f32.mrf.mxu0
      %v2619 = vadd.f32 0.0, %v2618
      %2620 = vmatmul.f32.gmra.mxu0 %v2506
      %v2621 = vpop.f32.mrf.mxu0
      %v2622 = vadd.f32 0.0, %v2621
      %2623 = vmatmul.f32.gmra.mxu0 %v2509
      %v2624 = vpop.f32.mrf.mxu0
      %v2625 = vadd.f32 0.0, %v2624
      %2626 = vmatmul.f32.gmra.mxu0 %v2512
      %v2627 = vpop.f32.mrf.mxu0
      %v2628 = vadd.f32 0.0, %v2627
      %2629 = vmatmul.f32.gmra.mxu0 %v2515
      %v2630 = vpop.f32.mrf.mxu0
      %v2631 = vadd.f32 0.0, %v2630
      %2632 = vmatmul.f32.gmra.mxu0 %v2518
      %v2633 = vpop.f32.mrf.mxu0
      %v2634 = vadd.f32 0.0, %v2633
      %2635 = vmatmul.f32.gmra.mxu0 %v2521
      %v2636 = vpop.f32.mrf.mxu0
      %v2637 = vadd.f32 0.0, %v2636
      %2638 = vmatmul.f32.gmra.mxu0 %v2524
      %v2639 = vpop.f32.mrf.mxu0
      %v2640 = vadd.f32 0.0, %v2639
      %2641 = vmatmul.f32.gmra.mxu0 %v2527
      %v2642 = vpop.f32.mrf.mxu0
      %v2643 = vadd.f32 0.0, %v2642
      %2644 = vmatmul.f32.gmra.mxu0 %v2530
      %v2645 = vpop.f32.mrf.mxu0
      %v2646 = vadd.f32 0.0, %v2645
      %2647 = vmatmul.f32.gmra.mxu0 %v2533
      %v2648 = vpop.f32.mrf.mxu0
      %v2649 = vadd.f32 0.0, %v2648
      %2650 = vmatmul.f32.gmra.mxu0 %v2536
      %v2651 = vpop.f32.mrf.mxu0
      %v2652 = vadd.f32 0.0, %v2651
      %2653 = vmatmul.f32.gmra.mxu0 %v2539
      %v2654 = vpop.f32.mrf.mxu0
      %v2655 = vadd.f32 0.0, %v2654
      %2656 = vmatmul.f32.gmra.mxu0 %v2542
      %v2657 = vpop.f32.mrf.mxu0
      %v2658 = vadd.f32 0.0, %v2657
      %2659 = vmatmul.f32.gmra.mxu0 %v2545
      %v2660 = vpop.f32.mrf.mxu0
      %v2661 = vadd.f32 0.0, %v2660
      %2662 = vmatmul.f32.gmra.mxu0 %v2548
      %v2663 = vpop.f32.mrf.mxu0
      %v2664 = vadd.f32 0.0, %v2663
      %2665 = vmatmul.f32.gmra.mxu0 %v2551
      %v2666 = vpop.f32.mrf.mxu0
      %v2667 = vadd.f32 0.0, %v2666
      %2668 = vmatmul.f32.gmra.mxu0 %v2554
      %v2669 = vpop.f32.mrf.mxu0
      %v2670 = vadd.f32 0.0, %v2669
      %2671 = vmatmul.f32.gmra.mxu0 %v2557
      %v2672 = vpop.f32.mrf.mxu0
      %v2673 = vadd.f32 0.0, %v2672
      %2674 = vmatmul.f32.gmra.mxu0 %v2560
      %v2675 = vpop.f32.mrf.mxu0
      %v2676 = vadd.f32 0.0, %v2675
      %2677 = vmatmul.f32.gmra.mxu0 %v2563
      %v2678 = vpop.f32.mrf.mxu0
      %v2679 = vadd.f32 0.0, %v2678
      %2680 = vmatmul.f32.gmra.mxu0 %v2566
      %v2681 = vpop.f32.mrf.mxu0
      %v2682 = vadd.f32 0.0, %v2681
      %2683 = vmatmul.f32.gmra.mxu0 %v2569
      %v2684 = vpop.f32.mrf.mxu0
      %v2685 = vadd.f32 0.0, %v2684
      %2686 = vmatmul.f32.gmra.mxu0 %v2572
      %v2687 = vpop.f32.mrf.mxu0
      %v2688 = vadd.f32 0.0, %v2687
      %2689 = vmatmul.f32.gmra.mxu0 %v2575
      %v2690 = vpop.f32.mrf.mxu0
      %v2691 = vadd.f32 0.0, %v2690
      %2692 = vmatmul.f32.gmra.mxu0 %v2578
      %v2693 = vpop.f32.mrf.mxu0
      %v2694 = vadd.f32 0.0, %v2693
      %2695 = vdwg.mxu0
      %v2696 = vadd.f32 %v2417, %v2601
      %v2697 = vadd.f32 %v2418, %v2604
      %v2698 = vadd.f32 %v2419, %v2607
      %v2699 = vadd.f32 %v2420, %v2610
      %v2700 = vadd.f32 %v2421, %v2613
      %v2701 = vadd.f32 %v2422, %v2616
      %v2702 = vadd.f32 %v2423, %v2619
      %v2703 = vadd.f32 %v2424, %v2622
      %v2704 = vadd.f32 %v2425, %v2625
      %v2705 = vadd.f32 %v2426, %v2628
      %v2706 = vadd.f32 %v2427, %v2631
      %v2707 = vadd.f32 %v2428, %v2634
      %v2708 = vadd.f32 %v2429, %v2637
      %v2709 = vadd.f32 %v2430, %v2640
      %v2710 = vadd.f32 %v2431, %v2643
      %v2711 = vadd.f32 %v2432, %v2646
      %v2712 = vadd.f32 %v2433, %v2649
      %v2713 = vadd.f32 %v2434, %v2652
      %v2714 = vadd.f32 %v2435, %v2655
      %v2715 = vadd.f32 %v2436, %v2658
      %v2716 = vadd.f32 %v2437, %v2661
      %v2717 = vadd.f32 %v2438, %v2664
      %v2718 = vadd.f32 %v2439, %v2667
      %v2719 = vadd.f32 %v2440, %v2670
      %v2720 = vadd.f32 %v2441, %v2673
      %v2721 = vadd.f32 %v2442, %v2676
      %v2722 = vadd.f32 %v2443, %v2679
      %v2723 = vadd.f32 %v2444, %v2682
      %v2724 = vadd.f32 %v2445, %v2685
      %v2725 = vadd.f32 %v2446, %v2688
      %v2726 = vadd.f32 %v2447, %v2691
      %v2727 = vadd.f32 %v2448, %v2694
      %v2728 = vld [vmem:[%s2449 + $0x1] sm:$0xff]
      %v2729 = vld [vmem:[%s2449 + $0x9] sm:$0xff]
      %v2730 = vld [vmem:[%s2449 + $0x19] sm:$0xff]
      %v2731 = vld [vmem:[%s2449 + $0x21] sm:$0xff]
      %v2732 = vld [vmem:[%s2449 + $0x31] sm:$0xff]
      %v2733 = vld [vmem:[%s2449 + $0x39] sm:$0xff]
      %v2734 = vld [vmem:[%s2449 + $0x49] sm:$0xff]
      %v2735 = vld [vmem:[%s2449 + $0x51] sm:$0xff]
      %v2736 = vld [vmem:[%s2449 + $0x61] sm:$0xff]
      %v2737 = vld [vmem:[%s2449 + $0x69] sm:$0xff]
      %v2738 = vld [vmem:[%s2449 + $0x79] sm:$0xff]
      %v2739 = vld [vmem:[%s2449 + $0x81] sm:$0xff]
      %v2740 = vld [vmem:[%s2449 + $0x91] sm:$0xff]
      %v2741 = vld [vmem:[%s2449 + $0x99] sm:$0xff]
      %v2742 = vld [vmem:[%s2449 + $0xa9] sm:$0xff]
      %v2743 = vld [vmem:[%s2449 + $0xb1] sm:$0xff]
      %v2744 = vld [vmem:[%s2449 + $0xc1] sm:$0xff]
      %v2745 = vld [vmem:[%s2449 + $0xc9] sm:$0xff]
      %v2746 = vld [vmem:[%s2449 + $0xd9] sm:$0xff]
      %v2747 = vld [vmem:[%s2449 + $0xe1] sm:$0xff]
      %v2748 = vld [vmem:[%s2449 + $0xf1] sm:$0xff]
      %v2749 = vld [vmem:[%s2449 + $0xf9] sm:$0xff]
      %v2750 = vld [vmem:[%s2449 + $0x109] sm:$0xff]
      %v2751 = vld [vmem:[%s2449 + $0x111] sm:$0xff]
      %v2752 = vld [vmem:[%s2449 + $0x121] sm:$0xff]
      %v2753 = vld [vmem:[%s2449 + $0x129] sm:$0xff]
      %v2754 = vld [vmem:[%s2449 + $0x139] sm:$0xff]
      %v2755 = vld [vmem:[%s2449 + $0x141] sm:$0xff]
      %v2756 = vld [vmem:[%s2449 + $0x151] sm:$0xff]
      %v2757 = vld [vmem:[%s2449 + $0x159] sm:$0xff]
      %v2758 = vld [vmem:[%s2449 + $0x169] sm:$0xff]
      %v2759 = vld [vmem:[%s2449 + $0x171] sm:$0xff]
      %s2760 = scalar_lea.vmem %s2, 28
      %v2761 = vld [vmem:[%s2760] sm:$0xf]
      %v2763 = vsel %vm381, %v2728, 0
      %v2766 = vsel %vm381, %v2729, 0
      %v2769 = vsel %vm381, %v2730, 0
      %v2772 = vsel %vm381, %v2731, 0
      %v2775 = vsel %vm381, %v2732, 0
      %v2778 = vsel %vm381, %v2733, 0
      %v2781 = vsel %vm381, %v2734, 0
      %v2784 = vsel %vm381, %v2735, 0
      %v2787 = vsel %vm381, %v2736, 0
      %v2790 = vsel %vm381, %v2737, 0
      %v2793 = vsel %vm381, %v2738, 0
      %v2796 = vsel %vm381, %v2739, 0
      %v2799 = vsel %vm381, %v2740, 0
      %v2802 = vsel %vm381, %v2741, 0
      %v2805 = vsel %vm381, %v2742, 0
      %v2808 = vsel %vm381, %v2743, 0
      %v2811 = vsel %vm381, %v2744, 0
      %v2814 = vsel %vm381, %v2745, 0
      %v2817 = vsel %vm381, %v2746, 0
      %v2820 = vsel %vm381, %v2747, 0
      %v2823 = vsel %vm381, %v2748, 0
      %v2826 = vsel %vm381, %v2749, 0
      %v2829 = vsel %vm381, %v2750, 0
      %v2832 = vsel %vm381, %v2751, 0
      %v2835 = vsel %vm381, %v2752, 0
      %v2838 = vsel %vm381, %v2753, 0
      %v2841 = vsel %vm381, %v2754, 0
      %v2844 = vsel %vm381, %v2755, 0
      %v2847 = vsel %vm381, %v2756, 0
      %v2850 = vsel %vm381, %v2757, 0
      %v2853 = vsel %vm381, %v2758, 0
      %v2856 = vsel %vm381, %v2759, 0
      %v2859 = vsel %vm478, %v2761, 0
      %2861 = vmatpush.msra.mxu0 0.0
      %2862 = vmatpush.msra.mxu0 0.0
      %2863 = vmatpush.msra.mxu0 0.0
      %2864 = vmatpush.msra.mxu0 0.0
      %2865 = vmatpush.msra.mxu0 0.0
      %2866 = vmatpush.msra.mxu0 0.0
      %2867 = vmatpush.msra.mxu0 0.0
      %2868 = vmatpush.msra.mxu0 0.0
      %2869 = vmatpush.msra.mxu0 0.0
      %2870 = vmatpush.msra.mxu0 0.0
      %2871 = vmatpush.msra.mxu0 0.0
      %2872 = vmatpush.msra.mxu0 0.0
      %2873 = vmatpush.msra.mxu0 0.0
      %2874 = vmatpush.msra.mxu0 0.0
      %2875 = vmatpush.msra.mxu0 0.0
      %2876 = vmatpush.msra.mxu0 %v2859
      %2877 = vmatmul.f32.gmra.mxu0 %v2763
      %v2878 = vpop.f32.mrf.mxu0
      %v2879 = vadd.f32 0.0, %v2878
      %2880 = vmatmul.f32.gmra.mxu0 %v2766
      %v2881 = vpop.f32.mrf.mxu0
      %v2882 = vadd.f32 0.0, %v2881
      %2883 = vmatmul.f32.gmra.mxu0 %v2769
      %v2884 = vpop.f32.mrf.mxu0
      %v2885 = vadd.f32 0.0, %v2884
      %2886 = vmatmul.f32.gmra.mxu0 %v2772
      %v2887 = vpop.f32.mrf.mxu0
      %v2888 = vadd.f32 0.0, %v2887
      %2889 = vmatmul.f32.gmra.mxu0 %v2775
      %v2890 = vpop.f32.mrf.mxu0
      %v2891 = vadd.f32 0.0, %v2890
      %2892 = vmatmul.f32.gmra.mxu0 %v2778
      %v2893 = vpop.f32.mrf.mxu0
      %v2894 = vadd.f32 0.0, %v2893
      %2895 = vmatmul.f32.gmra.mxu0 %v2781
      %v2896 = vpop.f32.mrf.mxu0
      %v2897 = vadd.f32 0.0, %v2896
      %2898 = vmatmul.f32.gmra.mxu0 %v2784
      %v2899 = vpop.f32.mrf.mxu0
      %v2900 = vadd.f32 0.0, %v2899
      %2901 = vmatmul.f32.gmra.mxu0 %v2787
      %v2902 = vpop.f32.mrf.mxu0
      %v2903 = vadd.f32 0.0, %v2902
      %2904 = vmatmul.f32.gmra.mxu0 %v2790
      %v2905 = vpop.f32.mrf.mxu0
      %v2906 = vadd.f32 0.0, %v2905
      %2907 = vmatmul.f32.gmra.mxu0 %v2793
      %v2908 = vpop.f32.mrf.mxu0
      %v2909 = vadd.f32 0.0, %v2908
      %2910 = vmatmul.f32.gmra.mxu0 %v2796
      %v2911 = vpop.f32.mrf.mxu0
      %v2912 = vadd.f32 0.0, %v2911
      %2913 = vmatmul.f32.gmra.mxu0 %v2799
      %v2914 = vpop.f32.mrf.mxu0
      %v2915 = vadd.f32 0.0, %v2914
      %2916 = vmatmul.f32.gmra.mxu0 %v2802
      %v2917 = vpop.f32.mrf.mxu0
      %v2918 = vadd.f32 0.0, %v2917
      %2919 = vmatmul.f32.gmra.mxu0 %v2805
      %v2920 = vpop.f32.mrf.mxu0
      %v2921 = vadd.f32 0.0, %v2920
      %2922 = vmatmul.f32.gmra.mxu0 %v2808
      %v2923 = vpop.f32.mrf.mxu0
      %v2924 = vadd.f32 0.0, %v2923
      %2925 = vmatmul.f32.gmra.mxu0 %v2811
      %v2926 = vpop.f32.mrf.mxu0
      %v2927 = vadd.f32 0.0, %v2926
      %2928 = vmatmul.f32.gmra.mxu0 %v2814
      %v2929 = vpop.f32.mrf.mxu0
      %v2930 = vadd.f32 0.0, %v2929
      %2931 = vmatmul.f32.gmra.mxu0 %v2817
      %v2932 = vpop.f32.mrf.mxu0
      %v2933 = vadd.f32 0.0, %v2932
      %2934 = vmatmul.f32.gmra.mxu0 %v2820
      %v2935 = vpop.f32.mrf.mxu0
      %v2936 = vadd.f32 0.0, %v2935
      %2937 = vmatmul.f32.gmra.mxu0 %v2823
      %v2938 = vpop.f32.mrf.mxu0
      %v2939 = vadd.f32 0.0, %v2938
      %2940 = vmatmul.f32.gmra.mxu0 %v2826
      %v2941 = vpop.f32.mrf.mxu0
      %v2942 = vadd.f32 0.0, %v2941
      %2943 = vmatmul.f32.gmra.mxu0 %v2829
      %v2944 = vpop.f32.mrf.mxu0
      %v2945 = vadd.f32 0.0, %v2944
      %2946 = vmatmul.f32.gmra.mxu0 %v2832
      %v2947 = vpop.f32.mrf.mxu0
      %v2948 = vadd.f32 0.0, %v2947
      %2949 = vmatmul.f32.gmra.mxu0 %v2835
      %v2950 = vpop.f32.mrf.mxu0
      %v2951 = vadd.f32 0.0, %v2950
      %2952 = vmatmul.f32.gmra.mxu0 %v2838
      %v2953 = vpop.f32.mrf.mxu0
      %v2954 = vadd.f32 0.0, %v2953
      %2955 = vmatmul.f32.gmra.mxu0 %v2841
      %v2956 = vpop.f32.mrf.mxu0
      %v2957 = vadd.f32 0.0, %v2956
      %2958 = vmatmul.f32.gmra.mxu0 %v2844
      %v2959 = vpop.f32.mrf.mxu0
      %v2960 = vadd.f32 0.0, %v2959
      %2961 = vmatmul.f32.gmra.mxu0 %v2847
      %v2962 = vpop.f32.mrf.mxu0
      %v2963 = vadd.f32 0.0, %v2962
      %2964 = vmatmul.f32.gmra.mxu0 %v2850
      %v2965 = vpop.f32.mrf.mxu0
      %v2966 = vadd.f32 0.0, %v2965
      %2967 = vmatmul.f32.gmra.mxu0 %v2853
      %v2968 = vpop.f32.mrf.mxu0
      %v2969 = vadd.f32 0.0, %v2968
      %2970 = vmatmul.f32.gmra.mxu0 %v2856
      %v2971 = vpop.f32.mrf.mxu0
      %v2972 = vadd.f32 0.0, %v2971
      %2973 = vdwg.mxu0
      %v2974 = vadd.f32 %v2696, %v2879
      %v2975 = vadd.f32 %v2697, %v2882
      %v2976 = vadd.f32 %v2698, %v2885
      %v2977 = vadd.f32 %v2699, %v2888
      %v2978 = vadd.f32 %v2700, %v2891
      %v2979 = vadd.f32 %v2701, %v2894
      %v2980 = vadd.f32 %v2702, %v2897
      %v2981 = vadd.f32 %v2703, %v2900
      %v2982 = vadd.f32 %v2704, %v2903
      %v2983 = vadd.f32 %v2705, %v2906
      %v2984 = vadd.f32 %v2706, %v2909
      %v2985 = vadd.f32 %v2707, %v2912
      %v2986 = vadd.f32 %v2708, %v2915
      %v2987 = vadd.f32 %v2709, %v2918
      %v2988 = vadd.f32 %v2710, %v2921
      %v2989 = vadd.f32 %v2711, %v2924
      %v2990 = vadd.f32 %v2712, %v2927
      %v2991 = vadd.f32 %v2713, %v2930
      %v2992 = vadd.f32 %v2714, %v2933
      %v2993 = vadd.f32 %v2715, %v2936
      %v2994 = vadd.f32 %v2716, %v2939
      %v2995 = vadd.f32 %v2717, %v2942
      %v2996 = vadd.f32 %v2718, %v2945
      %v2997 = vadd.f32 %v2719, %v2948
      %v2998 = vadd.f32 %v2720, %v2951
      %v2999 = vadd.f32 %v2721, %v2954
      %v3000 = vadd.f32 %v2722, %v2957
      %v3001 = vadd.f32 %v2723, %v2960
      %v3002 = vadd.f32 %v2724, %v2963
      %v3003 = vadd.f32 %v2725, %v2966
      %v3004 = vadd.f32 %v2726, %v2969
      %v3005 = vadd.f32 %v2727, %v2972
      %v3006 = vld [vmem:[%s2449 + $0x2] sm:$0xff]
      %v3007 = vld [vmem:[%s2449 + $0xa] sm:$0xff]
      %v3008 = vld [vmem:[%s2449 + $0x1a] sm:$0xff]
      %v3009 = vld [vmem:[%s2449 + $0x22] sm:$0xff]
      %v3010 = vld [vmem:[%s2449 + $0x32] sm:$0xff]
      %v3011 = vld [vmem:[%s2449 + $0x3a] sm:$0xff]
      %v3012 = vld [vmem:[%s2449 + $0x4a] sm:$0xff]
      %v3013 = vld [vmem:[%s2449 + $0x52] sm:$0xff]
      %v3014 = vld [vmem:[%s2449 + $0x62] sm:$0xff]
      %v3015 = vld [vmem:[%s2449 + $0x6a] sm:$0xff]
      %v3016 = vld [vmem:[%s2449 + $0x7a] sm:$0xff]
      %v3017 = vld [vmem:[%s2449 + $0x82] sm:$0xff]
      %v3018 = vld [vmem:[%s2449 + $0x92] sm:$0xff]
      %v3019 = vld [vmem:[%s2449 + $0x9a] sm:$0xff]
      %v3020 = vld [vmem:[%s2449 + $0xaa] sm:$0xff]
      %v3021 = vld [vmem:[%s2449 + $0xb2] sm:$0xff]
      %v3022 = vld [vmem:[%s2449 + $0xc2] sm:$0xff]
      %v3023 = vld [vmem:[%s2449 + $0xca] sm:$0xff]
      %v3024 = vld [vmem:[%s2449 + $0xda] sm:$0xff]
      %v3025 = vld [vmem:[%s2449 + $0xe2] sm:$0xff]
      %v3026 = vld [vmem:[%s2449 + $0xf2] sm:$0xff]
      %v3027 = vld [vmem:[%s2449 + $0xfa] sm:$0xff]
      %v3028 = vld [vmem:[%s2449 + $0x10a] sm:$0xff]
      %v3029 = vld [vmem:[%s2449 + $0x112] sm:$0xff]
      %v3030 = vld [vmem:[%s2449 + $0x122] sm:$0xff]
      %v3031 = vld [vmem:[%s2449 + $0x12a] sm:$0xff]
      %v3032 = vld [vmem:[%s2449 + $0x13a] sm:$0xff]
      %v3033 = vld [vmem:[%s2449 + $0x142] sm:$0xff]
      %v3034 = vld [vmem:[%s2449 + $0x152] sm:$0xff]
      %v3035 = vld [vmem:[%s2449 + $0x15a] sm:$0xff]
      %v3036 = vld [vmem:[%s2449 + $0x16a] sm:$0xff]
      %v3037 = vld [vmem:[%s2449 + $0x172] sm:$0xff]
      %s3038 = scalar_lea.vmem %s2, 32
      %v3039 = vld [vmem:[%s3038] sm:$0xf]
      %v3041 = vsel %vm381, %v3006, 0
      %v3044 = vsel %vm381, %v3007, 0
      %v3047 = vsel %vm381, %v3008, 0
      %v3050 = vsel %vm381, %v3009, 0
      %v3053 = vsel %vm381, %v3010, 0
      %v3056 = vsel %vm381, %v3011, 0
      %v3059 = vsel %vm381, %v3012, 0
      %v3062 = vsel %vm381, %v3013, 0
      %v3065 = vsel %vm381, %v3014, 0
      %v3068 = vsel %vm381, %v3015, 0
      %v3071 = vsel %vm381, %v3016, 0
      %v3074 = vsel %vm381, %v3017, 0
      %v3077 = vsel %vm381, %v3018, 0
      %v3080 = vsel %vm381, %v3019, 0
      %v3083 = vsel %vm381, %v3020, 0
      %v3086 = vsel %vm381, %v3021, 0
      %v3089 = vsel %vm381, %v3022, 0
      %v3092 = vsel %vm381, %v3023, 0
      %v3095 = vsel %vm381, %v3024, 0
      %v3098 = vsel %vm381, %v3025, 0
      %v3101 = vsel %vm381, %v3026, 0
      %v3104 = vsel %vm381, %v3027, 0
      %v3107 = vsel %vm381, %v3028, 0
      %v3110 = vsel %vm381, %v3029, 0
      %v3113 = vsel %vm381, %v3030, 0
      %v3116 = vsel %vm381, %v3031, 0
      %v3119 = vsel %vm381, %v3032, 0
      %v3122 = vsel %vm381, %v3033, 0
      %v3125 = vsel %vm381, %v3034, 0
      %v3128 = vsel %vm381, %v3035, 0
      %v3131 = vsel %vm381, %v3036, 0
      %v3134 = vsel %vm381, %v3037, 0
      %v3137 = vsel %vm478, %v3039, 0
      %3139 = vmatpush.msra.mxu0 0.0
      %3140 = vmatpush.msra.mxu0 0.0
      %3141 = vmatpush.msra.mxu0 0.0
      %3142 = vmatpush.msra.mxu0 0.0
      %3143 = vmatpush.msra.mxu0 0.0
      %3144 = vmatpush.msra.mxu0 0.0
      %3145 = vmatpush.msra.mxu0 0.0
      %3146 = vmatpush.msra.mxu0 0.0
      %3147 = vmatpush.msra.mxu0 0.0
      %3148 = vmatpush.msra.mxu0 0.0
      %3149 = vmatpush.msra.mxu0 0.0
      %3150 = vmatpush.msra.mxu0 0.0
      %3151 = vmatpush.msra.mxu0 0.0
      %3152 = vmatpush.msra.mxu0 0.0
      %3153 = vmatpush.msra.mxu0 0.0
      %3154 = vmatpush.msra.mxu0 %v3137
      %3155 = vmatmul.f32.gmra.mxu0 %v3041
      %v3156 = vpop.f32.mrf.mxu0
      %v3157 = vadd.f32 0.0, %v3156
      %3158 = vmatmul.f32.gmra.mxu0 %v3044
      %v3159 = vpop.f32.mrf.mxu0
      %v3160 = vadd.f32 0.0, %v3159
      %3161 = vmatmul.f32.gmra.mxu0 %v3047
      %v3162 = vpop.f32.mrf.mxu0
      %v3163 = vadd.f32 0.0, %v3162
      %3164 = vmatmul.f32.gmra.mxu0 %v3050
      %v3165 = vpop.f32.mrf.mxu0
      %v3166 = vadd.f32 0.0, %v3165
      %3167 = vmatmul.f32.gmra.mxu0 %v3053
      %v3168 = vpop.f32.mrf.mxu0
      %v3169 = vadd.f32 0.0, %v3168
      %3170 = vmatmul.f32.gmra.mxu0 %v3056
      %v3171 = vpop.f32.mrf.mxu0
      %v3172 = vadd.f32 0.0, %v3171
      %3173 = vmatmul.f32.gmra.mxu0 %v3059
      %v3174 = vpop.f32.mrf.mxu0
      %v3175 = vadd.f32 0.0, %v3174
      %3176 = vmatmul.f32.gmra.mxu0 %v3062
      %v3177 = vpop.f32.mrf.mxu0
      %v3178 = vadd.f32 0.0, %v3177
      %3179 = vmatmul.f32.gmra.mxu0 %v3065
      %v3180 = vpop.f32.mrf.mxu0
      %v3181 = vadd.f32 0.0, %v3180
      %3182 = vmatmul.f32.gmra.mxu0 %v3068
      %v3183 = vpop.f32.mrf.mxu0
      %v3184 = vadd.f32 0.0, %v3183
      %3185 = vmatmul.f32.gmra.mxu0 %v3071
      %v3186 = vpop.f32.mrf.mxu0
      %v3187 = vadd.f32 0.0, %v3186
      %3188 = vmatmul.f32.gmra.mxu0 %v3074
      %v3189 = vpop.f32.mrf.mxu0
      %v3190 = vadd.f32 0.0, %v3189
      %3191 = vmatmul.f32.gmra.mxu0 %v3077
      %v3192 = vpop.f32.mrf.mxu0
      %v3193 = vadd.f32 0.0, %v3192
      %3194 = vmatmul.f32.gmra.mxu0 %v3080
      %v3195 = vpop.f32.mrf.mxu0
      %v3196 = vadd.f32 0.0, %v3195
      %3197 = vmatmul.f32.gmra.mxu0 %v3083
      %v3198 = vpop.f32.mrf.mxu0
      %v3199 = vadd.f32 0.0, %v3198
      %3200 = vmatmul.f32.gmra.mxu0 %v3086
      %v3201 = vpop.f32.mrf.mxu0
      %v3202 = vadd.f32 0.0, %v3201
      %3203 = vmatmul.f32.gmra.mxu0 %v3089
      %v3204 = vpop.f32.mrf.mxu0
      %v3205 = vadd.f32 0.0, %v3204
      %3206 = vmatmul.f32.gmra.mxu0 %v3092
      %v3207 = vpop.f32.mrf.mxu0
      %v3208 = vadd.f32 0.0, %v3207
      %3209 = vmatmul.f32.gmra.mxu0 %v3095
      %v3210 = vpop.f32.mrf.mxu0
      %v3211 = vadd.f32 0.0, %v3210
      %3212 = vmatmul.f32.gmra.mxu0 %v3098
      %v3213 = vpop.f32.mrf.mxu0
      %v3214 = vadd.f32 0.0, %v3213
      %3215 = vmatmul.f32.gmra.mxu0 %v3101
      %v3216 = vpop.f32.mrf.mxu0
      %v3217 = vadd.f32 0.0, %v3216
      %3218 = vmatmul.f32.gmra.mxu0 %v3104
      %v3219 = vpop.f32.mrf.mxu0
      %v3220 = vadd.f32 0.0, %v3219
      %3221 = vmatmul.f32.gmra.mxu0 %v3107
      %v3222 = vpop.f32.mrf.mxu0
      %v3223 = vadd.f32 0.0, %v3222
      %3224 = vmatmul.f32.gmra.mxu0 %v3110
      %v3225 = vpop.f32.mrf.mxu0
      %v3226 = vadd.f32 0.0, %v3225
      %3227 = vmatmul.f32.gmra.mxu0 %v3113
      %v3228 = vpop.f32.mrf.mxu0
      %v3229 = vadd.f32 0.0, %v3228
      %3230 = vmatmul.f32.gmra.mxu0 %v3116
      %v3231 = vpop.f32.mrf.mxu0
      %v3232 = vadd.f32 0.0, %v3231
      %3233 = vmatmul.f32.gmra.mxu0 %v3119
      %v3234 = vpop.f32.mrf.mxu0
      %v3235 = vadd.f32 0.0, %v3234
      %3236 = vmatmul.f32.gmra.mxu0 %v3122
      %v3237 = vpop.f32.mrf.mxu0
      %v3238 = vadd.f32 0.0, %v3237
      %3239 = vmatmul.f32.gmra.mxu0 %v3125
      %v3240 = vpop.f32.mrf.mxu0
      %v3241 = vadd.f32 0.0, %v3240
      %3242 = vmatmul.f32.gmra.mxu0 %v3128
      %v3243 = vpop.f32.mrf.mxu0
      %v3244 = vadd.f32 0.0, %v3243
      %3245 = vmatmul.f32.gmra.mxu0 %v3131
      %v3246 = vpop.f32.mrf.mxu0
      %v3247 = vadd.f32 0.0, %v3246
      %3248 = vmatmul.f32.gmra.mxu0 %v3134
      %v3249 = vpop.f32.mrf.mxu0
      %v3250 = vadd.f32 0.0, %v3249
      %3251 = vdwg.mxu0
      %v3252 = vadd.f32 %v2974, %v3157
      %v3253 = vadd.f32 %v2975, %v3160
      %v3254 = vadd.f32 %v2976, %v3163
      %v3255 = vadd.f32 %v2977, %v3166
      %v3256 = vadd.f32 %v2978, %v3169
      %v3257 = vadd.f32 %v2979, %v3172
      %v3258 = vadd.f32 %v2980, %v3175
      %v3259 = vadd.f32 %v2981, %v3178
      %v3260 = vadd.f32 %v2982, %v3181
      %v3261 = vadd.f32 %v2983, %v3184
      %v3262 = vadd.f32 %v2984, %v3187
      %v3263 = vadd.f32 %v2985, %v3190
      %v3264 = vadd.f32 %v2986, %v3193
      %v3265 = vadd.f32 %v2987, %v3196
      %v3266 = vadd.f32 %v2988, %v3199
      %v3267 = vadd.f32 %v2989, %v3202
      %v3268 = vadd.f32 %v2990, %v3205
      %v3269 = vadd.f32 %v2991, %v3208
      %v3270 = vadd.f32 %v2992, %v3211
      %v3271 = vadd.f32 %v2993, %v3214
      %v3272 = vadd.f32 %v2994, %v3217
      %v3273 = vadd.f32 %v2995, %v3220
      %v3274 = vadd.f32 %v2996, %v3223
      %v3275 = vadd.f32 %v2997, %v3226
      %v3276 = vadd.f32 %v2998, %v3229
      %v3277 = vadd.f32 %v2999, %v3232
      %v3278 = vadd.f32 %v3000, %v3235
      %v3279 = vadd.f32 %v3001, %v3238
      %v3280 = vadd.f32 %v3002, %v3241
      %v3281 = vadd.f32 %v3003, %v3244
      %v3282 = vadd.f32 %v3004, %v3247
      %v3283 = vadd.f32 %v3005, %v3250
      %vm3284 = vcmp.ge.f32.partialorder %v3252, 0.0
      %vm3285 = vcmp.ge.f32.partialorder %v3253, 0.0
      %vm3286 = vcmp.ge.f32.partialorder %v3254, 0.0
      %vm3287 = vcmp.ge.f32.partialorder %v3255, 0.0
      %vm3288 = vcmp.ge.f32.partialorder %v3256, 0.0
      %vm3289 = vcmp.ge.f32.partialorder %v3257, 0.0
      %vm3290 = vcmp.ge.f32.partialorder %v3258, 0.0
      %vm3291 = vcmp.ge.f32.partialorder %v3259, 0.0
      %vm3292 = vcmp.ge.f32.partialorder %v3260, 0.0
      %vm3293 = vcmp.ge.f32.partialorder %v3261, 0.0
      %vm3294 = vcmp.ge.f32.partialorder %v3262, 0.0
      %vm3295 = vcmp.ge.f32.partialorder %v3263, 0.0
      %vm3296 = vcmp.ge.f32.partialorder %v3264, 0.0
      %vm3297 = vcmp.ge.f32.partialorder %v3265, 0.0
      %vm3298 = vcmp.ge.f32.partialorder %v3266, 0.0
      %vm3299 = vcmp.ge.f32.partialorder %v3267, 0.0
      %vm3300 = vcmp.ge.f32.partialorder %v3268, 0.0
      %vm3301 = vcmp.ge.f32.partialorder %v3269, 0.0
      %vm3302 = vcmp.ge.f32.partialorder %v3270, 0.0
      %vm3303 = vcmp.ge.f32.partialorder %v3271, 0.0
      %vm3304 = vcmp.ge.f32.partialorder %v3272, 0.0
      %vm3305 = vcmp.ge.f32.partialorder %v3273, 0.0
      %vm3306 = vcmp.ge.f32.partialorder %v3274, 0.0
      %vm3307 = vcmp.ge.f32.partialorder %v3275, 0.0
      %vm3308 = vcmp.ge.f32.partialorder %v3276, 0.0
      %vm3309 = vcmp.ge.f32.partialorder %v3277, 0.0
      %vm3310 = vcmp.ge.f32.partialorder %v3278, 0.0
      %vm3311 = vcmp.ge.f32.partialorder %v3279, 0.0
      %vm3312 = vcmp.ge.f32.partialorder %v3280, 0.0
      %vm3313 = vcmp.ge.f32.partialorder %v3281, 0.0
      %vm3314 = vcmp.ge.f32.partialorder %v3282, 0.0
      %vm3315 = vcmp.ge.f32.partialorder %v3283, 0.0
      %v3316 = vmul.f32 %v3252, 0.01
      %v3317 = vmul.f32 %v3253, 0.01
      %v3318 = vmul.f32 %v3254, 0.01
      %v3319 = vmul.f32 %v3255, 0.01
      %v3320 = vmul.f32 %v3256, 0.01
      %v3321 = vmul.f32 %v3257, 0.01
      %v3322 = vmul.f32 %v3258, 0.01
      %v3323 = vmul.f32 %v3259, 0.01
      %v3324 = vmul.f32 %v3260, 0.01
      %v3325 = vmul.f32 %v3261, 0.01
      %v3326 = vmul.f32 %v3262, 0.01
      %v3327 = vmul.f32 %v3263, 0.01
      %v3328 = vmul.f32 %v3264, 0.01
      %v3329 = vmul.f32 %v3265, 0.01
      %v3330 = vmul.f32 %v3266, 0.01
      %v3331 = vmul.f32 %v3267, 0.01
      %v3332 = vmul.f32 %v3268, 0.01
      %v3333 = vmul.f32 %v3269, 0.01
      %v3334 = vmul.f32 %v3270, 0.01
      %v3335 = vmul.f32 %v3271, 0.01
      %v3336 = vmul.f32 %v3272, 0.01
      %v3337 = vmul.f32 %v3273, 0.01
      %v3338 = vmul.f32 %v3274, 0.01
      %v3339 = vmul.f32 %v3275, 0.01
      %v3340 = vmul.f32 %v3276, 0.01
      %v3341 = vmul.f32 %v3277, 0.01
      %v3342 = vmul.f32 %v3278, 0.01
      %v3343 = vmul.f32 %v3279, 0.01
      %v3344 = vmul.f32 %v3280, 0.01
      %v3345 = vmul.f32 %v3281, 0.01
      %v3346 = vmul.f32 %v3282, 0.01
      %v3347 = vmul.f32 %v3283, 0.01
      %v3348 = vsel %vm3284, %v3252, %v3316
      %v3349 = vsel %vm3285, %v3253, %v3317
      %v3350 = vsel %vm3286, %v3254, %v3318
      %v3351 = vsel %vm3287, %v3255, %v3319
      %v3352 = vsel %vm3288, %v3256, %v3320
      %v3353 = vsel %vm3289, %v3257, %v3321
      %v3354 = vsel %vm3290, %v3258, %v3322
      %v3355 = vsel %vm3291, %v3259, %v3323
      %v3356 = vsel %vm3292, %v3260, %v3324
      %v3357 = vsel %vm3293, %v3261, %v3325
      %v3358 = vsel %vm3294, %v3262, %v3326
      %v3359 = vsel %vm3295, %v3263, %v3327
      %v3360 = vsel %vm3296, %v3264, %v3328
      %v3361 = vsel %vm3297, %v3265, %v3329
      %v3362 = vsel %vm3298, %v3266, %v3330
      %v3363 = vsel %vm3299, %v3267, %v3331
      %v3364 = vsel %vm3300, %v3268, %v3332
      %v3365 = vsel %vm3301, %v3269, %v3333
      %v3366 = vsel %vm3302, %v3270, %v3334
      %v3367 = vsel %vm3303, %v3271, %v3335
      %v3368 = vsel %vm3304, %v3272, %v3336
      %v3369 = vsel %vm3305, %v3273, %v3337
      %v3370 = vsel %vm3306, %v3274, %v3338
      %v3371 = vsel %vm3307, %v3275, %v3339
      %v3372 = vsel %vm3308, %v3276, %v3340
      %v3373 = vsel %vm3309, %v3277, %v3341
      %v3374 = vsel %vm3310, %v3278, %v3342
      %v3375 = vsel %vm3311, %v3279, %v3343
      %v3376 = vsel %vm3312, %v3280, %v3344
      %v3377 = vsel %vm3313, %v3281, %v3345
      %v3378 = vsel %vm3314, %v3282, %v3346
      %v3379 = vsel %vm3315, %v3283, %v3347
      %v3380 = vld [vmem:[%s6 + $0x5] sm:$0x1]
      %v3381 = vperm.slane %v3380, 0
      %v3382 = vmul.f32 %v3348, %v3381
      %v3383 = vmul.f32 %v3349, %v3381
      %v3384 = vmul.f32 %v3350, %v3381
      %v3385 = vmul.f32 %v3351, %v3381
      %v3386 = vmul.f32 %v3352, %v3381
      %v3387 = vmul.f32 %v3353, %v3381
      %v3388 = vmul.f32 %v3354, %v3381
      %v3389 = vmul.f32 %v3355, %v3381
      %v3390 = vmul.f32 %v3356, %v3381
      %v3391 = vmul.f32 %v3357, %v3381
      %v3392 = vmul.f32 %v3358, %v3381
      %v3393 = vmul.f32 %v3359, %v3381
      %v3394 = vmul.f32 %v3360, %v3381
      %v3395 = vmul.f32 %v3361, %v3381
      %v3396 = vmul.f32 %v3362, %v3381
      %v3397 = vmul.f32 %v3363, %v3381
      %v3398 = vmul.f32 %v3364, %v3381
      %v3399 = vmul.f32 %v3365, %v3381
      %v3400 = vmul.f32 %v3366, %v3381
      %v3401 = vmul.f32 %v3367, %v3381
      %v3402 = vmul.f32 %v3368, %v3381
      %v3403 = vmul.f32 %v3369, %v3381
      %v3404 = vmul.f32 %v3370, %v3381
      %v3405 = vmul.f32 %v3371, %v3381
      %v3406 = vmul.f32 %v3372, %v3381
      %v3407 = vmul.f32 %v3373, %v3381
      %v3408 = vmul.f32 %v3374, %v3381
      %v3409 = vmul.f32 %v3375, %v3381
      %v3410 = vmul.f32 %v3376, %v3381
      %v3411 = vmul.f32 %v3377, %v3381
      %v3412 = vmul.f32 %v3378, %v3381
      %v3413 = vmul.f32 %v3379, %v3381
      %v3414 = vld [vmem:[%s6 + $0x6] sm:$0x1]
      %v3415 = vperm.slane %v3414, 0
      %v3416 = vadd.f32 %v3382, %v3415
      %v3417 = vadd.f32 %v3383, %v3415
      %v3418 = vadd.f32 %v3384, %v3415
      %v3419 = vadd.f32 %v3385, %v3415
      %v3420 = vadd.f32 %v3386, %v3415
      %v3421 = vadd.f32 %v3387, %v3415
      %v3422 = vadd.f32 %v3388, %v3415
      %v3423 = vadd.f32 %v3389, %v3415
      %v3424 = vadd.f32 %v3390, %v3415
      %v3425 = vadd.f32 %v3391, %v3415
      %v3426 = vadd.f32 %v3392, %v3415
      %v3427 = vadd.f32 %v3393, %v3415
      %v3428 = vadd.f32 %v3394, %v3415
      %v3429 = vadd.f32 %v3395, %v3415
      %v3430 = vadd.f32 %v3396, %v3415
      %v3431 = vadd.f32 %v3397, %v3415
      %v3432 = vadd.f32 %v3398, %v3415
      %v3433 = vadd.f32 %v3399, %v3415
      %v3434 = vadd.f32 %v3400, %v3415
      %v3435 = vadd.f32 %v3401, %v3415
      %v3436 = vadd.f32 %v3402, %v3415
      %v3437 = vadd.f32 %v3403, %v3415
      %v3438 = vadd.f32 %v3404, %v3415
      %v3439 = vadd.f32 %v3405, %v3415
      %v3440 = vadd.f32 %v3406, %v3415
      %v3441 = vadd.f32 %v3407, %v3415
      %v3442 = vadd.f32 %v3408, %v3415
      %v3443 = vadd.f32 %v3409, %v3415
      %v3444 = vadd.f32 %v3410, %v3415
      %v3445 = vadd.f32 %v3411, %v3415
      %v3446 = vadd.f32 %v3412, %v3415
      %v3447 = vadd.f32 %v3413, %v3415
      %vm3448 = vcmask 261120
      %3449 = vst.msk [vmem:[#allocation3] sm:$0xff] %vm3448, 0.0
      %3450 = vst.msk [vmem:[#allocation3 + $0x8] sm:$0xff] %vm3448, 0.0
      %vm3451 = vcmask 257024
      %3452 = vst.msk [vmem:[#allocation3 + $0x10] sm:$0xf] %vm3451, 0.0
      %3453 = vst.msk [vmem:[#allocation3 + $0x18] sm:$0xff] %vm3448, 0.0
      %3454 = vst.msk [vmem:[#allocation3 + $0x20] sm:$0xff] %vm3448, 0.0
      %3455 = vst.msk [vmem:[#allocation3 + $0x28] sm:$0xf] %vm3451, 0.0
      %3456 = vst.msk [vmem:[#allocation3 + $0x30] sm:$0xff] %vm3448, 0.0
      %3457 = vst.msk [vmem:[#allocation3 + $0x38] sm:$0xff] %vm3448, 0.0
      %3458 = vst.msk [vmem:[#allocation3 + $0x40] sm:$0xf] %vm3451, 0.0
      %3459 = vst.msk [vmem:[#allocation3 + $0x48] sm:$0xff] %vm3448, 0.0
      %3460 = vst.msk [vmem:[#allocation3 + $0x50] sm:$0xff] %vm3448, 0.0
      %3461 = vst.msk [vmem:[#allocation3 + $0x58] sm:$0xf] %vm3451, 0.0
      %3462 = vst.msk [vmem:[#allocation3 + $0x60] sm:$0xff] %vm3448, 0.0
      %3463 = vst.msk [vmem:[#allocation3 + $0x68] sm:$0xff] %vm3448, 0.0
      %3464 = vst.msk [vmem:[#allocation3 + $0x70] sm:$0xf] %vm3451, 0.0
      %3465 = vst.msk [vmem:[#allocation3 + $0x78] sm:$0xff] %vm3448, 0.0
      %3466 = vst.msk [vmem:[#allocation3 + $0x80] sm:$0xff] %vm3448, 0.0
      %3467 = vst.msk [vmem:[#allocation3 + $0x88] sm:$0xf] %vm3451, 0.0
      %3468 = vst.msk [vmem:[#allocation3 + $0x90] sm:$0xff] %vm3448, 0.0
      %3469 = vst.msk [vmem:[#allocation3 + $0x98] sm:$0xff] %vm3448, 0.0
      %3470 = vst.msk [vmem:[#allocation3 + $0xa0] sm:$0xf] %vm3451, 0.0
      %3471 = vst.msk [vmem:[#allocation3 + $0xa8] sm:$0xff] %vm3448, 0.0
      %3472 = vst.msk [vmem:[#allocation3 + $0xb0] sm:$0xff] %vm3448, 0.0
      %3473 = vst.msk [vmem:[#allocation3 + $0xb8] sm:$0xf] %vm3451, 0.0
      %3474 = vst.msk [vmem:[#allocation3 + $0xc0] sm:$0xff] %vm3448, 0.0
      %3475 = vst.msk [vmem:[#allocation3 + $0xc8] sm:$0xff] %vm3448, 0.0
      %3476 = vst.msk [vmem:[#allocation3 + $0xd0] sm:$0xf] %vm3451, 0.0
      %3477 = vst.msk [vmem:[#allocation3 + $0xd8] sm:$0xff] %vm3448, 0.0
      %3478 = vst.msk [vmem:[#allocation3 + $0xe0] sm:$0xff] %vm3448, 0.0
      %3479 = vst.msk [vmem:[#allocation3 + $0xe8] sm:$0xf] %vm3451, 0.0
      %3480 = vst.msk [vmem:[#allocation3 + $0xf0] sm:$0xff] %vm3448, 0.0
      %3481 = vst.msk [vmem:[#allocation3 + $0xf8] sm:$0xff] %vm3448, 0.0
      %3482 = vst.msk [vmem:[#allocation3 + $0x100] sm:$0xf] %vm3451, 0.0
      %3483 = vst.msk [vmem:[#allocation3 + $0x108] sm:$0xff] %vm3448, 0.0
      %3484 = vst.msk [vmem:[#allocation3 + $0x110] sm:$0xff] %vm3448, 0.0
      %3485 = vst.msk [vmem:[#allocation3 + $0x118] sm:$0xf] %vm3451, 0.0
      %3486 = vst.msk [vmem:[#allocation3 + $0x120] sm:$0xff] %vm3448, 0.0
      %3487 = vst.msk [vmem:[#allocation3 + $0x128] sm:$0xff] %vm3448, 0.0
      %3488 = vst.msk [vmem:[#allocation3 + $0x130] sm:$0xf] %vm3451, 0.0
      %3489 = vst.msk [vmem:[#allocation3 + $0x138] sm:$0xff] %vm3448, 0.0
      %3490 = vst.msk [vmem:[#allocation3 + $0x140] sm:$0xff] %vm3448, 0.0
      %3491 = vst.msk [vmem:[#allocation3 + $0x148] sm:$0xf] %vm3451, 0.0
      %3492 = vst.msk [vmem:[#allocation3 + $0x150] sm:$0xff] %vm3448, 0.0
      %3493 = vst.msk [vmem:[#allocation3 + $0x158] sm:$0xff] %vm3448, 0.0
      %3494 = vst.msk [vmem:[#allocation3 + $0x160] sm:$0xf] %vm3451, 0.0
      %3495 = vst.msk [vmem:[#allocation3 + $0x168] sm:$0xff] %vm3448, 0.0
      %3496 = vst.msk [vmem:[#allocation3 + $0x170] sm:$0xff] %vm3448, 0.0
      %3497 = vst.msk [vmem:[#allocation3 + $0x178] sm:$0xf] %vm3451, 0.0
      %3498 = vst.msk [vmem:[#allocation3 + $0x180] sm:$0xff] %vm3448, 0.0
      %3499 = vst.msk [vmem:[#allocation3 + $0x188] sm:$0xff] %vm3448, 0.0
      %3500 = vst.msk [vmem:[#allocation3 + $0x190] sm:$0xf] %vm3451, 0.0
      %3501 = vst.msk [vmem:[#allocation3 + $0x198] sm:$0xff] %vm3448, 0.0
      %3502 = vst.msk [vmem:[#allocation3 + $0x1a0] sm:$0xff] %vm3448, 0.0
      %3503 = vst.msk [vmem:[#allocation3 + $0x1a8] sm:$0xf] %vm3451, 0.0
      %3504 = vst.msk [vmem:[#allocation3 + $0x1b0] sm:$0xff] %vm3448, 0.0
      %3505 = vst.msk [vmem:[#allocation3 + $0x1b8] sm:$0xff] %vm3448, 0.0
      %3506 = vst.msk [vmem:[#allocation3 + $0x1c0] sm:$0xf] %vm3451, 0.0
      %3507 = vst.msk [vmem:[#allocation3 + $0x1c8] sm:$0xff] %vm3448, 0.0
      %3508 = vst.msk [vmem:[#allocation3 + $0x1d0] sm:$0xff] %vm3448, 0.0
      %3509 = vst.msk [vmem:[#allocation3 + $0x1d8] sm:$0xf] %vm3451, 0.0
      %s3510 = scalar_lea.vmem [#allocation3], 48
      %3511 = vst.msk [vmem:[%s3510 + $0x2] sm:$0xff] %vm3448, %v3416
      %3512 = vst.msk [vmem:[%s3510 + $0xa] sm:$0xff] %vm3448, %v3417
      %3513 = vst.msk [vmem:[%s3510 + $0x1a] sm:$0xff] %vm3448, %v3418
      %3514 = vst.msk [vmem:[%s3510 + $0x22] sm:$0xff] %vm3448, %v3419
      %3515 = vst.msk [vmem:[%s3510 + $0x32] sm:$0xff] %vm3448, %v3420
      %3516 = vst.msk [vmem:[%s3510 + $0x3a] sm:$0xff] %vm3448, %v3421
      %3517 = vst.msk [vmem:[%s3510 + $0x4a] sm:$0xff] %vm3448, %v3422
      %3518 = vst.msk [vmem:[%s3510 + $0x52] sm:$0xff] %vm3448, %v3423
      %3519 = vst.msk [vmem:[%s3510 + $0x62] sm:$0xff] %vm3448, %v3424
      %3520 = vst.msk [vmem:[%s3510 + $0x6a] sm:$0xff] %vm3448, %v3425
      %3521 = vst.msk [vmem:[%s3510 + $0x7a] sm:$0xff] %vm3448, %v3426
      %3522 = vst.msk [vmem:[%s3510 + $0x82] sm:$0xff] %vm3448, %v3427
      %3523 = vst.msk [vmem:[%s3510 + $0x92] sm:$0xff] %vm3448, %v3428
      %3524 = vst.msk [vmem:[%s3510 + $0x9a] sm:$0xff] %vm3448, %v3429
      %3525 = vst.msk [vmem:[%s3510 + $0xaa] sm:$0xff] %vm3448, %v3430
      %3526 = vst.msk [vmem:[%s3510 + $0xb2] sm:$0xff] %vm3448, %v3431
      %3527 = vst.msk [vmem:[%s3510 + $0xc2] sm:$0xff] %vm3448, %v3432
      %3528 = vst.msk [vmem:[%s3510 + $0xca] sm:$0xff] %vm3448, %v3433
      %3529 = vst.msk [vmem:[%s3510 + $0xda] sm:$0xff] %vm3448, %v3434
      %3530 = vst.msk [vmem:[%s3510 + $0xe2] sm:$0xff] %vm3448, %v3435
      %3531 = vst.msk [vmem:[%s3510 + $0xf2] sm:$0xff] %vm3448, %v3436
      %3532 = vst.msk [vmem:[%s3510 + $0xfa] sm:$0xff] %vm3448, %v3437
      %3533 = vst.msk [vmem:[%s3510 + $0x10a] sm:$0xff] %vm3448, %v3438
      %3534 = vst.msk [vmem:[%s3510 + $0x112] sm:$0xff] %vm3448, %v3439
      %3535 = vst.msk [vmem:[%s3510 + $0x122] sm:$0xff] %vm3448, %v3440
      %3536 = vst.msk [vmem:[%s3510 + $0x12a] sm:$0xff] %vm3448, %v3441
      %3537 = vst.msk [vmem:[%s3510 + $0x13a] sm:$0xff] %vm3448, %v3442
      %3538 = vst.msk [vmem:[%s3510 + $0x142] sm:$0xff] %vm3448, %v3443
      %3539 = vst.msk [vmem:[%s3510 + $0x152] sm:$0xff] %vm3448, %v3444
      %3540 = vst.msk [vmem:[%s3510 + $0x15a] sm:$0xff] %vm3448, %v3445
      %3541 = vst.msk [vmem:[%s3510 + $0x16a] sm:$0xff] %vm3448, %v3446
      %3542 = vst.msk [vmem:[%s3510 + $0x172] sm:$0xff] %vm3448, %v3447
      %v3543 = vld [vmem:[%s6 + $0x2] sm:$0x1]
      %v3544 = vperm.slane %v3543, 0
      %v3545 = vadd.f32 %v3544, 0.0
      %v3546 = vld [vmem:[#allocation3] sm:$0xff]
      %v3547 = vld [vmem:[#allocation3 + $0x8] sm:$0xff]
      %v3548 = vld [vmem:[#allocation3 + $0x18] sm:$0xff]
      %v3549 = vld [vmem:[#allocation3 + $0x20] sm:$0xff]
      %v3550 = vld [vmem:[#allocation3 + $0x30] sm:$0xff]
      %v3551 = vld [vmem:[#allocation3 + $0x38] sm:$0xff]
      %v3552 = vld [vmem:[#allocation3 + $0x48] sm:$0xff]
      %v3553 = vld [vmem:[#allocation3 + $0x50] sm:$0xff]
      %v3554 = vld [vmem:[#allocation3 + $0x60] sm:$0xff]
      %v3555 = vld [vmem:[#allocation3 + $0x68] sm:$0xff]
      %v3556 = vld [vmem:[#allocation3 + $0x78] sm:$0xff]
      %v3557 = vld [vmem:[#allocation3 + $0x80] sm:$0xff]
      %v3558 = vld [vmem:[#allocation3 + $0x90] sm:$0xff]
      %v3559 = vld [vmem:[#allocation3 + $0x98] sm:$0xff]
      %v3560 = vld [vmem:[#allocation3 + $0xa8] sm:$0xff]
      %v3561 = vld [vmem:[#allocation3 + $0xb0] sm:$0xff]
      %v3562 = vld [vmem:[#allocation3 + $0xc0] sm:$0xff]
      %v3563 = vld [vmem:[#allocation3 + $0xc8] sm:$0xff]
      %v3564 = vld [vmem:[#allocation3 + $0xd8] sm:$0xff]
      %v3565 = vld [vmem:[#allocation3 + $0xe0] sm:$0xff]
      %v3566 = vld [vmem:[#allocation3 + $0xf0] sm:$0xff]
      %v3567 = vld [vmem:[#allocation3 + $0xf8] sm:$0xff]
      %v3568 = vld [vmem:[#allocation3 + $0x108] sm:$0xff]
      %v3569 = vld [vmem:[#allocation3 + $0x110] sm:$0xff]
      %v3570 = vld [vmem:[#allocation3 + $0x120] sm:$0xff]
      %v3571 = vld [vmem:[#allocation3 + $0x128] sm:$0xff]
      %v3572 = vld [vmem:[#allocation3 + $0x138] sm:$0xff]
      %v3573 = vld [vmem:[#allocation3 + $0x140] sm:$0xff]
      %v3574 = vld [vmem:[#allocation3 + $0x150] sm:$0xff]
      %v3575 = vld [vmem:[#allocation3 + $0x158] sm:$0xff]
      %v3576 = vld [vmem:[#allocation3 + $0x168] sm:$0xff]
      %v3577 = vld [vmem:[#allocation3 + $0x170] sm:$0xff]
      %v3578 = vld [vmem:[%s3] sm:$0xff]
      %v3579 = vld [vmem:[%s3 + $0x8] sm:$0xff]
      %v3580 = vld [vmem:[%s3 + $0x10] sm:$0xff]
      %v3581 = vld [vmem:[%s3 + $0x18] sm:$0xff]
      %v3583 = vsel %vm3448, %v3546, 0
      %v3586 = vsel %vm3448, %v3547, 0
      %v3589 = vsel %vm3448, %v3548, 0
      %v3592 = vsel %vm3448, %v3549, 0
      %v3595 = vsel %vm3448, %v3550, 0
      %v3598 = vsel %vm3448, %v3551, 0
      %v3601 = vsel %vm3448, %v3552, 0
      %v3604 = vsel %vm3448, %v3553, 0
      %v3607 = vsel %vm3448, %v3554, 0
      %v3610 = vsel %vm3448, %v3555, 0
      %v3613 = vsel %vm3448, %v3556, 0
      %v3616 = vsel %vm3448, %v3557, 0
      %v3619 = vsel %vm3448, %v3558, 0
      %v3622 = vsel %vm3448, %v3559, 0
      %v3625 = vsel %vm3448, %v3560, 0
      %v3628 = vsel %vm3448, %v3561, 0
      %v3631 = vsel %vm3448, %v3562, 0
      %v3634 = vsel %vm3448, %v3563, 0
      %v3637 = vsel %vm3448, %v3564, 0
      %v3640 = vsel %vm3448, %v3565, 0
      %v3643 = vsel %vm3448, %v3566, 0
      %v3646 = vsel %vm3448, %v3567, 0
      %v3649 = vsel %vm3448, %v3568, 0
      %v3652 = vsel %vm3448, %v3569, 0
      %v3655 = vsel %vm3448, %v3570, 0
      %v3658 = vsel %vm3448, %v3571, 0
      %v3661 = vsel %vm3448, %v3572, 0
      %v3664 = vsel %vm3448, %v3573, 0
      %v3667 = vsel %vm3448, %v3574, 0
      %v3670 = vsel %vm3448, %v3575, 0
      %v3673 = vsel %vm3448, %v3576, 0
      %v3676 = vsel %vm3448, %v3577, 0
      %3678 = vmatpush.msra.mxu0 0.0
      %3679 = vmatpush.msra.mxu0 0.0
      %3680 = vmatpush.msra.mxu0 0.0
      %3681 = vmatpush.msra.mxu0 0.0
      %3682 = vmatpush.msra.mxu0 0.0
      %3683 = vmatpush.msra.mxu0 0.0
      %3684 = vmatpush.msra.mxu0 0.0
      %3685 = vmatpush.msra.mxu0 0.0
      %3686 = vmatpush.msra.mxu0 0.0
      %3687 = vmatpush.msra.mxu0 0.0
      %3688 = vmatpush.msra.mxu0 0.0
      %3689 = vmatpush.msra.mxu0 0.0
      %3690 = vmatpush.msra.mxu0 %v3581
      %3691 = vmatpush.msra.mxu0 %v3580
      %3692 = vmatpush.msra.mxu0 %v3579
      %3693 = vmatpush.msra.mxu0 %v3578
      %3694 = vmatmul.f32.gmra.mxu0 %v3583
      %v3695 = vpop.f32.mrf.mxu0
      %v3696 = vadd.f32 0.0, %v3695
      %3697 = vmatmul.f32.gmra.mxu0 %v3586
      %v3698 = vpop.f32.mrf.mxu0
      %v3699 = vadd.f32 0.0, %v3698
      %3700 = vmatmul.f32.gmra.mxu0 %v3589
      %v3701 = vpop.f32.mrf.mxu0
      %v3702 = vadd.f32 0.0, %v3701
      %3703 = vmatmul.f32.gmra.mxu0 %v3592
      %v3704 = vpop.f32.mrf.mxu0
      %v3705 = vadd.f32 0.0, %v3704
      %3706 = vmatmul.f32.gmra.mxu0 %v3595
      %v3707 = vpop.f32.mrf.mxu0
      %v3708 = vadd.f32 0.0, %v3707
      %3709 = vmatmul.f32.gmra.mxu0 %v3598
      %v3710 = vpop.f32.mrf.mxu0
      %v3711 = vadd.f32 0.0, %v3710
      %3712 = vmatmul.f32.gmra.mxu0 %v3601
      %v3713 = vpop.f32.mrf.mxu0
      %v3714 = vadd.f32 0.0, %v3713
      %3715 = vmatmul.f32.gmra.mxu0 %v3604
      %v3716 = vpop.f32.mrf.mxu0
      %v3717 = vadd.f32 0.0, %v3716
      %3718 = vmatmul.f32.gmra.mxu0 %v3607
      %v3719 = vpop.f32.mrf.mxu0
      %v3720 = vadd.f32 0.0, %v3719
      %3721 = vmatmul.f32.gmra.mxu0 %v3610
      %v3722 = vpop.f32.mrf.mxu0
      %v3723 = vadd.f32 0.0, %v3722
      %3724 = vmatmul.f32.gmra.mxu0 %v3613
      %v3725 = vpop.f32.mrf.mxu0
      %v3726 = vadd.f32 0.0, %v3725
      %3727 = vmatmul.f32.gmra.mxu0 %v3616
      %v3728 = vpop.f32.mrf.mxu0
      %v3729 = vadd.f32 0.0, %v3728
      %3730 = vmatmul.f32.gmra.mxu0 %v3619
      %v3731 = vpop.f32.mrf.mxu0
      %v3732 = vadd.f32 0.0, %v3731
      %3733 = vmatmul.f32.gmra.mxu0 %v3622
      %v3734 = vpop.f32.mrf.mxu0
      %v3735 = vadd.f32 0.0, %v3734
      %3736 = vmatmul.f32.gmra.mxu0 %v3625
      %v3737 = vpop.f32.mrf.mxu0
      %v3738 = vadd.f32 0.0, %v3737
      %3739 = vmatmul.f32.gmra.mxu0 %v3628
      %v3740 = vpop.f32.mrf.mxu0
      %v3741 = vadd.f32 0.0, %v3740
      %3742 = vmatmul.f32.gmra.mxu0 %v3631
      %v3743 = vpop.f32.mrf.mxu0
      %v3744 = vadd.f32 0.0, %v3743
      %3745 = vmatmul.f32.gmra.mxu0 %v3634
      %v3746 = vpop.f32.mrf.mxu0
      %v3747 = vadd.f32 0.0, %v3746
      %3748 = vmatmul.f32.gmra.mxu0 %v3637
      %v3749 = vpop.f32.mrf.mxu0
      %v3750 = vadd.f32 0.0, %v3749
      %3751 = vmatmul.f32.gmra.mxu0 %v3640
      %v3752 = vpop.f32.mrf.mxu0
      %v3753 = vadd.f32 0.0, %v3752
      %3754 = vmatmul.f32.gmra.mxu0 %v3643
      %v3755 = vpop.f32.mrf.mxu0
      %v3756 = vadd.f32 0.0, %v3755
      %3757 = vmatmul.f32.gmra.mxu0 %v3646
      %v3758 = vpop.f32.mrf.mxu0
      %v3759 = vadd.f32 0.0, %v3758
      %3760 = vmatmul.f32.gmra.mxu0 %v3649
      %v3761 = vpop.f32.mrf.mxu0
      %v3762 = vadd.f32 0.0, %v3761
      %3763 = vmatmul.f32.gmra.mxu0 %v3652
      %v3764 = vpop.f32.mrf.mxu0
      %v3765 = vadd.f32 0.0, %v3764
      %3766 = vmatmul.f32.gmra.mxu0 %v3655
      %v3767 = vpop.f32.mrf.mxu0
      %v3768 = vadd.f32 0.0, %v3767
      %3769 = vmatmul.f32.gmra.mxu0 %v3658
      %v3770 = vpop.f32.mrf.mxu0
      %v3771 = vadd.f32 0.0, %v3770
      %3772 = vmatmul.f32.gmra.mxu0 %v3661
      %v3773 = vpop.f32.mrf.mxu0
      %v3774 = vadd.f32 0.0, %v3773
      %3775 = vmatmul.f32.gmra.mxu0 %v3664
      %v3776 = vpop.f32.mrf.mxu0
      %v3777 = vadd.f32 0.0, %v3776
      %3778 = vmatmul.f32.gmra.mxu0 %v3667
      %v3779 = vpop.f32.mrf.mxu0
      %v3780 = vadd.f32 0.0, %v3779
      %3781 = vmatmul.f32.gmra.mxu0 %v3670
      %v3782 = vpop.f32.mrf.mxu0
      %v3783 = vadd.f32 0.0, %v3782
      %3784 = vmatmul.f32.gmra.mxu0 %v3673
      %v3785 = vpop.f32.mrf.mxu0
      %v3786 = vadd.f32 0.0, %v3785
      %3787 = vmatmul.f32.gmra.mxu0 %v3676
      %v3788 = vpop.f32.mrf.mxu0
      %v3789 = vadd.f32 0.0, %v3788
      %3790 = vdwg.mxu0
      %v3791 = vadd.f32 %v3545, %v3696
      %v3792 = vadd.f32 %v3545, %v3699
      %v3793 = vadd.f32 %v3545, %v3702
      %v3794 = vadd.f32 %v3545, %v3705
      %v3795 = vadd.f32 %v3545, %v3708
      %v3796 = vadd.f32 %v3545, %v3711
      %v3797 = vadd.f32 %v3545, %v3714
      %v3798 = vadd.f32 %v3545, %v3717
      %v3799 = vadd.f32 %v3545, %v3720
      %v3800 = vadd.f32 %v3545, %v3723
      %v3801 = vadd.f32 %v3545, %v3726
      %v3802 = vadd.f32 %v3545, %v3729
      %v3803 = vadd.f32 %v3545, %v3732
      %v3804 = vadd.f32 %v3545, %v3735
      %v3805 = vadd.f32 %v3545, %v3738
      %v3806 = vadd.f32 %v3545, %v3741
      %v3807 = vadd.f32 %v3545, %v3744
      %v3808 = vadd.f32 %v3545, %v3747
      %v3809 = vadd.f32 %v3545, %v3750
      %v3810 = vadd.f32 %v3545, %v3753
      %v3811 = vadd.f32 %v3545, %v3756
      %v3812 = vadd.f32 %v3545, %v3759
      %v3813 = vadd.f32 %v3545, %v3762
      %v3814 = vadd.f32 %v3545, %v3765
      %v3815 = vadd.f32 %v3545, %v3768
      %v3816 = vadd.f32 %v3545, %v3771
      %v3817 = vadd.f32 %v3545, %v3774
      %v3818 = vadd.f32 %v3545, %v3777
      %v3819 = vadd.f32 %v3545, %v3780
      %v3820 = vadd.f32 %v3545, %v3783
      %v3821 = vadd.f32 %v3545, %v3786
      %v3822 = vadd.f32 %v3545, %v3789
      %v3823 = vld [vmem:[#allocation3 + $0x2] sm:$0xff]
      %v3824 = vld [vmem:[#allocation3 + $0xa] sm:$0xff]
      %v3825 = vld [vmem:[#allocation3 + $0x1a] sm:$0xff]
      %v3826 = vld [vmem:[#allocation3 + $0x22] sm:$0xff]
      %v3827 = vld [vmem:[#allocation3 + $0x32] sm:$0xff]
      %v3828 = vld [vmem:[#allocation3 + $0x3a] sm:$0xff]
      %v3829 = vld [vmem:[#allocation3 + $0x4a] sm:$0xff]
      %v3830 = vld [vmem:[#allocation3 + $0x52] sm:$0xff]
      %v3831 = vld [vmem:[#allocation3 + $0x62] sm:$0xff]
      %v3832 = vld [vmem:[#allocation3 + $0x6a] sm:$0xff]
      %v3833 = vld [vmem:[#allocation3 + $0x7a] sm:$0xff]
      %v3834 = vld [vmem:[#allocation3 + $0x82] sm:$0xff]
      %v3835 = vld [vmem:[#allocation3 + $0x92] sm:$0xff]
      %v3836 = vld [vmem:[#allocation3 + $0x9a] sm:$0xff]
      %v3837 = vld [vmem:[#allocation3 + $0xaa] sm:$0xff]
      %v3838 = vld [vmem:[#allocation3 + $0xb2] sm:$0xff]
      %v3839 = vld [vmem:[#allocation3 + $0xc2] sm:$0xff]
      %v3840 = vld [vmem:[#allocation3 + $0xca] sm:$0xff]
      %v3841 = vld [vmem:[#allocation3 + $0xda] sm:$0xff]
      %v3842 = vld [vmem:[#allocation3 + $0xe2] sm:$0xff]
      %v3843 = vld [vmem:[#allocation3 + $0xf2] sm:$0xff]
      %v3844 = vld [vmem:[#allocation3 + $0xfa] sm:$0xff]
      %v3845 = vld [vmem:[#allocation3 + $0x10a] sm:$0xff]
      %v3846 = vld [vmem:[#allocation3 + $0x112] sm:$0xff]
      %v3847 = vld [vmem:[#allocation3 + $0x122] sm:$0xff]
      %v3848 = vld [vmem:[#allocation3 + $0x12a] sm:$0xff]
      %v3849 = vld [vmem:[#allocation3 + $0x13a] sm:$0xff]
      %v3850 = vld [vmem:[#allocation3 + $0x142] sm:$0xff]
      %v3851 = vld [vmem:[#allocation3 + $0x152] sm:$0xff]
      %v3852 = vld [vmem:[#allocation3 + $0x15a] sm:$0xff]
      %v3853 = vld [vmem:[#allocation3 + $0x16a] sm:$0xff]
      %v3854 = vld [vmem:[#allocation3 + $0x172] sm:$0xff]
      %s3855 = scalar_lea.vmem %s3, 32
      %v3856 = vld [vmem:[%s3855] sm:$0xff]
      %v3857 = vld [vmem:[%s3855 + $0x8] sm:$0xff]
      %v3858 = vld [vmem:[%s3855 + $0x10] sm:$0xff]
      %v3859 = vld [vmem:[%s3855 + $0x18] sm:$0xff]
      %v3861 = vsel %vm3448, %v3823, 0
      %v3864 = vsel %vm3448, %v3824, 0
      %v3867 = vsel %vm3448, %v3825, 0
      %v3870 = vsel %vm3448, %v3826, 0
      %v3873 = vsel %vm3448, %v3827, 0
      %v3876 = vsel %vm3448, %v3828, 0
      %v3879 = vsel %vm3448, %v3829, 0
      %v3882 = vsel %vm3448, %v3830, 0
      %v3885 = vsel %vm3448, %v3831, 0
      %v3888 = vsel %vm3448, %v3832, 0
      %v3891 = vsel %vm3448, %v3833, 0
      %v3894 = vsel %vm3448, %v3834, 0
      %v3897 = vsel %vm3448, %v3835, 0
      %v3900 = vsel %vm3448, %v3836, 0
      %v3903 = vsel %vm3448, %v3837, 0
      %v3906 = vsel %vm3448, %v3838, 0
      %v3909 = vsel %vm3448, %v3839, 0
      %v3912 = vsel %vm3448, %v3840, 0
      %v3915 = vsel %vm3448, %v3841, 0
      %v3918 = vsel %vm3448, %v3842, 0
      %v3921 = vsel %vm3448, %v3843, 0
      %v3924 = vsel %vm3448, %v3844, 0
      %v3927 = vsel %vm3448, %v3845, 0
      %v3930 = vsel %vm3448, %v3846, 0
      %v3933 = vsel %vm3448, %v3847, 0
      %v3936 = vsel %vm3448, %v3848, 0
      %v3939 = vsel %vm3448, %v3849, 0
      %v3942 = vsel %vm3448, %v3850, 0
      %v3945 = vsel %vm3448, %v3851, 0
      %v3948 = vsel %vm3448, %v3852, 0
      %v3951 = vsel %vm3448, %v3853, 0
      %v3954 = vsel %vm3448, %v3854, 0
      %3956 = vmatpush.msra.mxu0 0.0
      %3957 = vmatpush.msra.mxu0 0.0
      %3958 = vmatpush.msra.mxu0 0.0
      %3959 = vmatpush.msra.mxu0 0.0
      %3960 = vmatpush.msra.mxu0 0.0
      %3961 = vmatpush.msra.mxu0 0.0
      %3962 = vmatpush.msra.mxu0 0.0
      %3963 = vmatpush.msra.mxu0 0.0
      %3964 = vmatpush.msra.mxu0 0.0
      %3965 = vmatpush.msra.mxu0 0.0
      %3966 = vmatpush.msra.mxu0 0.0
      %3967 = vmatpush.msra.mxu0 0.0
      %3968 = vmatpush.msra.mxu0 %v3859
      %3969 = vmatpush.msra.mxu0 %v3858
      %3970 = vmatpush.msra.mxu0 %v3857
      %3971 = vmatpush.msra.mxu0 %v3856
      %3972 = vmatmul.f32.gmra.mxu0 %v3861
      %v3973 = vpop.f32.mrf.mxu0
      %v3974 = vadd.f32 0.0, %v3973
      %3975 = vmatmul.f32.gmra.mxu0 %v3864
      %v3976 = vpop.f32.mrf.mxu0
      %v3977 = vadd.f32 0.0, %v3976
      %3978 = vmatmul.f32.gmra.mxu0 %v3867
      %v3979 = vpop.f32.mrf.mxu0
      %v3980 = vadd.f32 0.0, %v3979
      %3981 = vmatmul.f32.gmra.mxu0 %v3870
      %v3982 = vpop.f32.mrf.mxu0
      %v3983 = vadd.f32 0.0, %v3982
      %3984 = vmatmul.f32.gmra.mxu0 %v3873
      %v3985 = vpop.f32.mrf.mxu0
      %v3986 = vadd.f32 0.0, %v3985
      %3987 = vmatmul.f32.gmra.mxu0 %v3876
      %v3988 = vpop.f32.mrf.mxu0
      %v3989 = vadd.f32 0.0, %v3988
      %3990 = vmatmul.f32.gmra.mxu0 %v3879
      %v3991 = vpop.f32.mrf.mxu0
      %v3992 = vadd.f32 0.0, %v3991
      %3993 = vmatmul.f32.gmra.mxu0 %v3882
      %v3994 = vpop.f32.mrf.mxu0
      %v3995 = vadd.f32 0.0, %v3994
      %3996 = vmatmul.f32.gmra.mxu0 %v3885
      %v3997 = vpop.f32.mrf.mxu0
      %v3998 = vadd.f32 0.0, %v3997
      %3999 = vmatmul.f32.gmra.mxu0 %v3888
      %v4000 = vpop.f32.mrf.mxu0
      %v4001 = vadd.f32 0.0, %v4000
      %4002 = vmatmul.f32.gmra.mxu0 %v3891
      %v4003 = vpop.f32.mrf.mxu0
      %v4004 = vadd.f32 0.0, %v4003
      %4005 = vmatmul.f32.gmra.mxu0 %v3894
      %v4006 = vpop.f32.mrf.mxu0
      %v4007 = vadd.f32 0.0, %v4006
      %4008 = vmatmul.f32.gmra.mxu0 %v3897
      %v4009 = vpop.f32.mrf.mxu0
      %v4010 = vadd.f32 0.0, %v4009
      %4011 = vmatmul.f32.gmra.mxu0 %v3900
      %v4012 = vpop.f32.mrf.mxu0
      %v4013 = vadd.f32 0.0, %v4012
      %4014 = vmatmul.f32.gmra.mxu0 %v3903
      %v4015 = vpop.f32.mrf.mxu0
      %v4016 = vadd.f32 0.0, %v4015
      %4017 = vmatmul.f32.gmra.mxu0 %v3906
      %v4018 = vpop.f32.mrf.mxu0
      %v4019 = vadd.f32 0.0, %v4018
      %4020 = vmatmul.f32.gmra.mxu0 %v3909
      %v4021 = vpop.f32.mrf.mxu0
      %v4022 = vadd.f32 0.0, %v4021
      %4023 = vmatmul.f32.gmra.mxu0 %v3912
      %v4024 = vpop.f32.mrf.mxu0
      %v4025 = vadd.f32 0.0, %v4024
      %4026 = vmatmul.f32.gmra.mxu0 %v3915
      %v4027 = vpop.f32.mrf.mxu0
      %v4028 = vadd.f32 0.0, %v4027
      %4029 = vmatmul.f32.gmra.mxu0 %v3918
      %v4030 = vpop.f32.mrf.mxu0
      %v4031 = vadd.f32 0.0, %v4030
      %4032 = vmatmul.f32.gmra.mxu0 %v3921
      %v4033 = vpop.f32.mrf.mxu0
      %v4034 = vadd.f32 0.0, %v4033
      %4035 = vmatmul.f32.gmra.mxu0 %v3924
      %v4036 = vpop.f32.mrf.mxu0
      %v4037 = vadd.f32 0.0, %v4036
      %4038 = vmatmul.f32.gmra.mxu0 %v3927
      %v4039 = vpop.f32.mrf.mxu0
      %v4040 = vadd.f32 0.0, %v4039
      %4041 = vmatmul.f32.gmra.mxu0 %v3930
      %v4042 = vpop.f32.mrf.mxu0
      %v4043 = vadd.f32 0.0, %v4042
      %4044 = vmatmul.f32.gmra.mxu0 %v3933
      %v4045 = vpop.f32.mrf.mxu0
      %v4046 = vadd.f32 0.0, %v4045
      %4047 = vmatmul.f32.gmra.mxu0 %v3936
      %v4048 = vpop.f32.mrf.mxu0
      %v4049 = vadd.f32 0.0, %v4048
      %4050 = vmatmul.f32.gmra.mxu0 %v3939
      %v4051 = vpop.f32.mrf.mxu0
      %v4052 = vadd.f32 0.0, %v4051
      %4053 = vmatmul.f32.gmra.mxu0 %v3942
      %v4054 = vpop.f32.mrf.mxu0
      %v4055 = vadd.f32 0.0, %v4054
      %4056 = vmatmul.f32.gmra.mxu0 %v3945
      %v4057 = vpop.f32.mrf.mxu0
      %v4058 = vadd.f32 0.0, %v4057
      %4059 = vmatmul.f32.gmra.mxu0 %v3948
      %v4060 = vpop.f32.mrf.mxu0
      %v4061 = vadd.f32 0.0, %v4060
      %4062 = vmatmul.f32.gmra.mxu0 %v3951
      %v4063 = vpop.f32.mrf.mxu0
      %v4064 = vadd.f32 0.0, %v4063
      %4065 = vmatmul.f32.gmra.mxu0 %v3954
      %v4066 = vpop.f32.mrf.mxu0
      %v4067 = vadd.f32 0.0, %v4066
      %4068 = vdwg.mxu0
      %v4069 = vadd.f32 %v3791, %v3974
      %v4070 = vadd.f32 %v3792, %v3977
      %v4071 = vadd.f32 %v3793, %v3980
      %v4072 = vadd.f32 %v3794, %v3983
      %v4073 = vadd.f32 %v3795, %v3986
      %v4074 = vadd.f32 %v3796, %v3989
      %v4075 = vadd.f32 %v3797, %v3992
      %v4076 = vadd.f32 %v3798, %v3995
      %v4077 = vadd.f32 %v3799, %v3998
      %v4078 = vadd.f32 %v3800, %v4001
      %v4079 = vadd.f32 %v3801, %v4004
      %v4080 = vadd.f32 %v3802, %v4007
      %v4081 = vadd.f32 %v3803, %v4010
      %v4082 = vadd.f32 %v3804, %v4013
      %v4083 = vadd.f32 %v3805, %v4016
      %v4084 = vadd.f32 %v3806, %v4019
      %v4085 = vadd.f32 %v3807, %v4022
      %v4086 = vadd.f32 %v3808, %v4025
      %v4087 = vadd.f32 %v3809, %v4028
      %v4088 = vadd.f32 %v3810, %v4031
      %v4089 = vadd.f32 %v3811, %v4034
      %v4090 = vadd.f32 %v3812, %v4037
      %v4091 = vadd.f32 %v3813, %v4040
      %v4092 = vadd.f32 %v3814, %v4043
      %v4093 = vadd.f32 %v3815, %v4046
      %v4094 = vadd.f32 %v3816, %v4049
      %v4095 = vadd.f32 %v3817, %v4052
      %v4096 = vadd.f32 %v3818, %v4055
      %v4097 = vadd.f32 %v3819, %v4058
      %v4098 = vadd.f32 %v3820, %v4061
      %v4099 = vadd.f32 %v3821, %v4064
      %v4100 = vadd.f32 %v3822, %v4067
      %v4101 = vld [vmem:[#allocation3 + $0x4] sm:$0xff]
      %v4102 = vld [vmem:[#allocation3 + $0xc] sm:$0xff]
      %v4103 = vld [vmem:[#allocation3 + $0x1c] sm:$0xff]
      %v4104 = vld [vmem:[#allocation3 + $0x24] sm:$0xff]
      %v4105 = vld [vmem:[#allocation3 + $0x34] sm:$0xff]
      %v4106 = vld [vmem:[#allocation3 + $0x3c] sm:$0xff]
      %v4107 = vld [vmem:[#allocation3 + $0x4c] sm:$0xff]
      %v4108 = vld [vmem:[#allocation3 + $0x54] sm:$0xff]
      %v4109 = vld [vmem:[#allocation3 + $0x64] sm:$0xff]
      %v4110 = vld [vmem:[#allocation3 + $0x6c] sm:$0xff]
      %v4111 = vld [vmem:[#allocation3 + $0x7c] sm:$0xff]
      %v4112 = vld [vmem:[#allocation3 + $0x84] sm:$0xff]
      %v4113 = vld [vmem:[#allocation3 + $0x94] sm:$0xff]
      %v4114 = vld [vmem:[#allocation3 + $0x9c] sm:$0xff]
      %v4115 = vld [vmem:[#allocation3 + $0xac] sm:$0xff]
      %v4116 = vld [vmem:[#allocation3 + $0xb4] sm:$0xff]
      %v4117 = vld [vmem:[#allocation3 + $0xc4] sm:$0xff]
      %v4118 = vld [vmem:[#allocation3 + $0xcc] sm:$0xff]
      %v4119 = vld [vmem:[#allocation3 + $0xdc] sm:$0xff]
      %v4120 = vld [vmem:[#allocation3 + $0xe4] sm:$0xff]
      %v4121 = vld [vmem:[#allocation3 + $0xf4] sm:$0xff]
      %v4122 = vld [vmem:[#allocation3 + $0xfc] sm:$0xff]
      %v4123 = vld [vmem:[#allocation3 + $0x10c] sm:$0xff]
      %v4124 = vld [vmem:[#allocation3 + $0x114] sm:$0xff]
      %v4125 = vld [vmem:[#allocation3 + $0x124] sm:$0xff]
      %v4126 = vld [vmem:[#allocation3 + $0x12c] sm:$0xff]
      %v4127 = vld [vmem:[#allocation3 + $0x13c] sm:$0xff]
      %v4128 = vld [vmem:[#allocation3 + $0x144] sm:$0xff]
      %v4129 = vld [vmem:[#allocation3 + $0x154] sm:$0xff]
      %v4130 = vld [vmem:[#allocation3 + $0x15c] sm:$0xff]
      %v4131 = vld [vmem:[#allocation3 + $0x16c] sm:$0xff]
      %v4132 = vld [vmem:[#allocation3 + $0x174] sm:$0xff]
      %s4133 = scalar_lea.vmem %s3, 64
      %v4134 = vld [vmem:[%s4133] sm:$0xff]
      %v4135 = vld [vmem:[%s4133 + $0x8] sm:$0xff]
      %v4136 = vld [vmem:[%s4133 + $0x10] sm:$0xff]
      %v4137 = vld [vmem:[%s4133 + $0x18] sm:$0xff]
      %v4139 = vsel %vm3448, %v4101, 0
      %v4142 = vsel %vm3448, %v4102, 0
      %v4145 = vsel %vm3448, %v4103, 0
      %v4148 = vsel %vm3448, %v4104, 0
      %v4151 = vsel %vm3448, %v4105, 0
      %v4154 = vsel %vm3448, %v4106, 0
      %v4157 = vsel %vm3448, %v4107, 0
      %v4160 = vsel %vm3448, %v4108, 0
      %v4163 = vsel %vm3448, %v4109, 0
      %v4166 = vsel %vm3448, %v4110, 0
      %v4169 = vsel %vm3448, %v4111, 0
      %v4172 = vsel %vm3448, %v4112, 0
      %v4175 = vsel %vm3448, %v4113, 0
      %v4178 = vsel %vm3448, %v4114, 0
      %v4181 = vsel %vm3448, %v4115, 0
      %v4184 = vsel %vm3448, %v4116, 0
      %v4187 = vsel %vm3448, %v4117, 0
      %v4190 = vsel %vm3448, %v4118, 0
      %v4193 = vsel %vm3448, %v4119, 0
      %v4196 = vsel %vm3448, %v4120, 0
      %v4199 = vsel %vm3448, %v4121, 0
      %v4202 = vsel %vm3448, %v4122, 0
      %v4205 = vsel %vm3448, %v4123, 0
      %v4208 = vsel %vm3448, %v4124, 0
      %v4211 = vsel %vm3448, %v4125, 0
      %v4214 = vsel %vm3448, %v4126, 0
      %v4217 = vsel %vm3448, %v4127, 0
      %v4220 = vsel %vm3448, %v4128, 0
      %v4223 = vsel %vm3448, %v4129, 0
      %v4226 = vsel %vm3448, %v4130, 0
      %v4229 = vsel %vm3448, %v4131, 0
      %v4232 = vsel %vm3448, %v4132, 0
      %4234 = vmatpush.msra.mxu0 0.0
      %4235 = vmatpush.msra.mxu0 0.0
      %4236 = vmatpush.msra.mxu0 0.0
      %4237 = vmatpush.msra.mxu0 0.0
      %4238 = vmatpush.msra.mxu0 0.0
      %4239 = vmatpush.msra.mxu0 0.0
      %4240 = vmatpush.msra.mxu0 0.0
      %4241 = vmatpush.msra.mxu0 0.0
      %4242 = vmatpush.msra.mxu0 0.0
      %4243 = vmatpush.msra.mxu0 0.0
      %4244 = vmatpush.msra.mxu0 0.0
      %4245 = vmatpush.msra.mxu0 0.0
      %4246 = vmatpush.msra.mxu0 %v4137
      %4247 = vmatpush.msra.mxu0 %v4136
      %4248 = vmatpush.msra.mxu0 %v4135
      %4249 = vmatpush.msra.mxu0 %v4134
      %4250 = vmatmul.f32.gmra.mxu0 %v4139
      %v4251 = vpop.f32.mrf.mxu0
      %v4252 = vadd.f32 0.0, %v4251
      %4253 = vmatmul.f32.gmra.mxu0 %v4142
      %v4254 = vpop.f32.mrf.mxu0
      %v4255 = vadd.f32 0.0, %v4254
      %4256 = vmatmul.f32.gmra.mxu0 %v4145
      %v4257 = vpop.f32.mrf.mxu0
      %v4258 = vadd.f32 0.0, %v4257
      %4259 = vmatmul.f32.gmra.mxu0 %v4148
      %v4260 = vpop.f32.mrf.mxu0
      %v4261 = vadd.f32 0.0, %v4260
      %4262 = vmatmul.f32.gmra.mxu0 %v4151
      %v4263 = vpop.f32.mrf.mxu0
      %v4264 = vadd.f32 0.0, %v4263
      %4265 = vmatmul.f32.gmra.mxu0 %v4154
      %v4266 = vpop.f32.mrf.mxu0
      %v4267 = vadd.f32 0.0, %v4266
      %4268 = vmatmul.f32.gmra.mxu0 %v4157
      %v4269 = vpop.f32.mrf.mxu0
      %v4270 = vadd.f32 0.0, %v4269
      %4271 = vmatmul.f32.gmra.mxu0 %v4160
      %v4272 = vpop.f32.mrf.mxu0
      %v4273 = vadd.f32 0.0, %v4272
      %4274 = vmatmul.f32.gmra.mxu0 %v4163
      %v4275 = vpop.f32.mrf.mxu0
      %v4276 = vadd.f32 0.0, %v4275
      %4277 = vmatmul.f32.gmra.mxu0 %v4166
      %v4278 = vpop.f32.mrf.mxu0
      %v4279 = vadd.f32 0.0, %v4278
      %4280 = vmatmul.f32.gmra.mxu0 %v4169
      %v4281 = vpop.f32.mrf.mxu0
      %v4282 = vadd.f32 0.0, %v4281
      %4283 = vmatmul.f32.gmra.mxu0 %v4172
      %v4284 = vpop.f32.mrf.mxu0
      %v4285 = vadd.f32 0.0, %v4284
      %4286 = vmatmul.f32.gmra.mxu0 %v4175
      %v4287 = vpop.f32.mrf.mxu0
      %v4288 = vadd.f32 0.0, %v4287
      %4289 = vmatmul.f32.gmra.mxu0 %v4178
      %v4290 = vpop.f32.mrf.mxu0
      %v4291 = vadd.f32 0.0, %v4290
      %4292 = vmatmul.f32.gmra.mxu0 %v4181
      %v4293 = vpop.f32.mrf.mxu0
      %v4294 = vadd.f32 0.0, %v4293
      %4295 = vmatmul.f32.gmra.mxu0 %v4184
      %v4296 = vpop.f32.mrf.mxu0
      %v4297 = vadd.f32 0.0, %v4296
      %4298 = vmatmul.f32.gmra.mxu0 %v4187
      %v4299 = vpop.f32.mrf.mxu0
      %v4300 = vadd.f32 0.0, %v4299
      %4301 = vmatmul.f32.gmra.mxu0 %v4190
      %v4302 = vpop.f32.mrf.mxu0
      %v4303 = vadd.f32 0.0, %v4302
      %4304 = vmatmul.f32.gmra.mxu0 %v4193
      %v4305 = vpop.f32.mrf.mxu0
      %v4306 = vadd.f32 0.0, %v4305
      %4307 = vmatmul.f32.gmra.mxu0 %v4196
      %v4308 = vpop.f32.mrf.mxu0
      %v4309 = vadd.f32 0.0, %v4308
      %4310 = vmatmul.f32.gmra.mxu0 %v4199
      %v4311 = vpop.f32.mrf.mxu0
      %v4312 = vadd.f32 0.0, %v4311
      %4313 = vmatmul.f32.gmra.mxu0 %v4202
      %v4314 = vpop.f32.mrf.mxu0
      %v4315 = vadd.f32 0.0, %v4314
      %4316 = vmatmul.f32.gmra.mxu0 %v4205
      %v4317 = vpop.f32.mrf.mxu0
      %v4318 = vadd.f32 0.0, %v4317
      %4319 = vmatmul.f32.gmra.mxu0 %v4208
      %v4320 = vpop.f32.mrf.mxu0
      %v4321 = vadd.f32 0.0, %v4320
      %4322 = vmatmul.f32.gmra.mxu0 %v4211
      %v4323 = vpop.f32.mrf.mxu0
      %v4324 = vadd.f32 0.0, %v4323
      %4325 = vmatmul.f32.gmra.mxu0 %v4214
      %v4326 = vpop.f32.mrf.mxu0
      %v4327 = vadd.f32 0.0, %v4326
      %4328 = vmatmul.f32.gmra.mxu0 %v4217
      %v4329 = vpop.f32.mrf.mxu0
      %v4330 = vadd.f32 0.0, %v4329
      %4331 = vmatmul.f32.gmra.mxu0 %v4220
      %v4332 = vpop.f32.mrf.mxu0
      %v4333 = vadd.f32 0.0, %v4332
      %4334 = vmatmul.f32.gmra.mxu0 %v4223
      %v4335 = vpop.f32.mrf.mxu0
      %v4336 = vadd.f32 0.0, %v4335
      %4337 = vmatmul.f32.gmra.mxu0 %v4226
      %v4338 = vpop.f32.mrf.mxu0
      %v4339 = vadd.f32 0.0, %v4338
      %4340 = vmatmul.f32.gmra.mxu0 %v4229
      %v4341 = vpop.f32.mrf.mxu0
      %v4342 = vadd.f32 0.0, %v4341
      %4343 = vmatmul.f32.gmra.mxu0 %v4232
      %v4344 = vpop.f32.mrf.mxu0
      %v4345 = vadd.f32 0.0, %v4344
      %4346 = vdwg.mxu0
      %v4347 = vadd.f32 %v4069, %v4252
      %v4348 = vadd.f32 %v4070, %v4255
      %v4349 = vadd.f32 %v4071, %v4258
      %v4350 = vadd.f32 %v4072, %v4261
      %v4351 = vadd.f32 %v4073, %v4264
      %v4352 = vadd.f32 %v4074, %v4267
      %v4353 = vadd.f32 %v4075, %v4270
      %v4354 = vadd.f32 %v4076, %v4273
      %v4355 = vadd.f32 %v4077, %v4276
      %v4356 = vadd.f32 %v4078, %v4279
      %v4357 = vadd.f32 %v4079, %v4282
      %v4358 = vadd.f32 %v4080, %v4285
      %v4359 = vadd.f32 %v4081, %v4288
      %v4360 = vadd.f32 %v4082, %v4291
      %v4361 = vadd.f32 %v4083, %v4294
      %v4362 = vadd.f32 %v4084, %v4297
      %v4363 = vadd.f32 %v4085, %v4300
      %v4364 = vadd.f32 %v4086, %v4303
      %v4365 = vadd.f32 %v4087, %v4306
      %v4366 = vadd.f32 %v4088, %v4309
      %v4367 = vadd.f32 %v4089, %v4312
      %v4368 = vadd.f32 %v4090, %v4315
      %v4369 = vadd.f32 %v4091, %v4318
      %v4370 = vadd.f32 %v4092, %v4321
      %v4371 = vadd.f32 %v4093, %v4324
      %v4372 = vadd.f32 %v4094, %v4327
      %v4373 = vadd.f32 %v4095, %v4330
      %v4374 = vadd.f32 %v4096, %v4333
      %v4375 = vadd.f32 %v4097, %v4336
      %v4376 = vadd.f32 %v4098, %v4339
      %v4377 = vadd.f32 %v4099, %v4342
      %v4378 = vadd.f32 %v4100, %v4345
      %v4379 = vld [vmem:[%s3510] sm:$0xff]
      %v4380 = vld [vmem:[%s3510 + $0x8] sm:$0xff]
      %v4381 = vld [vmem:[%s3510 + $0x18] sm:$0xff]
      %v4382 = vld [vmem:[%s3510 + $0x20] sm:$0xff]
      %v4383 = vld [vmem:[%s3510 + $0x30] sm:$0xff]
      %v4384 = vld [vmem:[%s3510 + $0x38] sm:$0xff]
      %v4385 = vld [vmem:[%s3510 + $0x48] sm:$0xff]
      %v4386 = vld [vmem:[%s3510 + $0x50] sm:$0xff]
      %v4387 = vld [vmem:[%s3510 + $0x60] sm:$0xff]
      %v4388 = vld [vmem:[%s3510 + $0x68] sm:$0xff]
      %v4389 = vld [vmem:[%s3510 + $0x78] sm:$0xff]
      %v4390 = vld [vmem:[%s3510 + $0x80] sm:$0xff]
      %v4391 = vld [vmem:[%s3510 + $0x90] sm:$0xff]
      %v4392 = vld [vmem:[%s3510 + $0x98] sm:$0xff]
      %v4393 = vld [vmem:[%s3510 + $0xa8] sm:$0xff]
      %v4394 = vld [vmem:[%s3510 + $0xb0] sm:$0xff]
      %v4395 = vld [vmem:[%s3510 + $0xc0] sm:$0xff]
      %v4396 = vld [vmem:[%s3510 + $0xc8] sm:$0xff]
      %v4397 = vld [vmem:[%s3510 + $0xd8] sm:$0xff]
      %v4398 = vld [vmem:[%s3510 + $0xe0] sm:$0xff]
      %v4399 = vld [vmem:[%s3510 + $0xf0] sm:$0xff]
      %v4400 = vld [vmem:[%s3510 + $0xf8] sm:$0xff]
      %v4401 = vld [vmem:[%s3510 + $0x108] sm:$0xff]
      %v4402 = vld [vmem:[%s3510 + $0x110] sm:$0xff]
      %v4403 = vld [vmem:[%s3510 + $0x120] sm:$0xff]
      %v4404 = vld [vmem:[%s3510 + $0x128] sm:$0xff]
      %v4405 = vld [vmem:[%s3510 + $0x138] sm:$0xff]
      %v4406 = vld [vmem:[%s3510 + $0x140] sm:$0xff]
      %v4407 = vld [vmem:[%s3510 + $0x150] sm:$0xff]
      %v4408 = vld [vmem:[%s3510 + $0x158] sm:$0xff]
      %v4409 = vld [vmem:[%s3510 + $0x168] sm:$0xff]
      %v4410 = vld [vmem:[%s3510 + $0x170] sm:$0xff]
      %s4411 = scalar_lea.vmem %s3, 96
      %v4412 = vld [vmem:[%s4411] sm:$0xff]
      %v4413 = vld [vmem:[%s4411 + $0x8] sm:$0xff]
      %v4414 = vld [vmem:[%s4411 + $0x10] sm:$0xff]
      %v4415 = vld [vmem:[%s4411 + $0x18] sm:$0xff]
      %v4417 = vsel %vm3448, %v4379, 0
      %v4420 = vsel %vm3448, %v4380, 0
      %v4423 = vsel %vm3448, %v4381, 0
      %v4426 = vsel %vm3448, %v4382, 0
      %v4429 = vsel %vm3448, %v4383, 0
      %v4432 = vsel %vm3448, %v4384, 0
      %v4435 = vsel %vm3448, %v4385, 0
      %v4438 = vsel %vm3448, %v4386, 0
      %v4441 = vsel %vm3448, %v4387, 0
      %v4444 = vsel %vm3448, %v4388, 0
      %v4447 = vsel %vm3448, %v4389, 0
      %v4450 = vsel %vm3448, %v4390, 0
      %v4453 = vsel %vm3448, %v4391, 0
      %v4456 = vsel %vm3448, %v4392, 0
      %v4459 = vsel %vm3448, %v4393, 0
      %v4462 = vsel %vm3448, %v4394, 0
      %v4465 = vsel %vm3448, %v4395, 0
      %v4468 = vsel %vm3448, %v4396, 0
      %v4471 = vsel %vm3448, %v4397, 0
      %v4474 = vsel %vm3448, %v4398, 0
      %v4477 = vsel %vm3448, %v4399, 0
      %v4480 = vsel %vm3448, %v4400, 0
      %v4483 = vsel %vm3448, %v4401, 0
      %v4486 = vsel %vm3448, %v4402, 0
      %v4489 = vsel %vm3448, %v4403, 0
      %v4492 = vsel %vm3448, %v4404, 0
      %v4495 = vsel %vm3448, %v4405, 0
      %v4498 = vsel %vm3448, %v4406, 0
      %v4501 = vsel %vm3448, %v4407, 0
      %v4504 = vsel %vm3448, %v4408, 0
      %v4507 = vsel %vm3448, %v4409, 0
      %v4510 = vsel %vm3448, %v4410, 0
      %4512 = vmatpush.msra.mxu0 0.0
      %4513 = vmatpush.msra.mxu0 0.0
      %4514 = vmatpush.msra.mxu0 0.0
      %4515 = vmatpush.msra.mxu0 0.0
      %4516 = vmatpush.msra.mxu0 0.0
      %4517 = vmatpush.msra.mxu0 0.0
      %4518 = vmatpush.msra.mxu0 0.0
      %4519 = vmatpush.msra.mxu0 0.0
      %4520 = vmatpush.msra.mxu0 0.0
      %4521 = vmatpush.msra.mxu0 0.0
      %4522 = vmatpush.msra.mxu0 0.0
      %4523 = vmatpush.msra.mxu0 0.0
      %4524 = vmatpush.msra.mxu0 %v4415
      %4525 = vmatpush.msra.mxu0 %v4414
      %4526 = vmatpush.msra.mxu0 %v4413
      %4527 = vmatpush.msra.mxu0 %v4412
      %4528 = vmatmul.f32.gmra.mxu0 %v4417
      %v4529 = vpop.f32.mrf.mxu0
      %v4530 = vadd.f32 0.0, %v4529
      %4531 = vmatmul.f32.gmra.mxu0 %v4420
      %v4532 = vpop.f32.mrf.mxu0
      %v4533 = vadd.f32 0.0, %v4532
      %4534 = vmatmul.f32.gmra.mxu0 %v4423
      %v4535 = vpop.f32.mrf.mxu0
      %v4536 = vadd.f32 0.0, %v4535
      %4537 = vmatmul.f32.gmra.mxu0 %v4426
      %v4538 = vpop.f32.mrf.mxu0
      %v4539 = vadd.f32 0.0, %v4538
      %4540 = vmatmul.f32.gmra.mxu0 %v4429
      %v4541 = vpop.f32.mrf.mxu0
      %v4542 = vadd.f32 0.0, %v4541
      %4543 = vmatmul.f32.gmra.mxu0 %v4432
      %v4544 = vpop.f32.mrf.mxu0
      %v4545 = vadd.f32 0.0, %v4544
      %4546 = vmatmul.f32.gmra.mxu0 %v4435
      %v4547 = vpop.f32.mrf.mxu0
      %v4548 = vadd.f32 0.0, %v4547
      %4549 = vmatmul.f32.gmra.mxu0 %v4438
      %v4550 = vpop.f32.mrf.mxu0
      %v4551 = vadd.f32 0.0, %v4550
      %4552 = vmatmul.f32.gmra.mxu0 %v4441
      %v4553 = vpop.f32.mrf.mxu0
      %v4554 = vadd.f32 0.0, %v4553
      %4555 = vmatmul.f32.gmra.mxu0 %v4444
      %v4556 = vpop.f32.mrf.mxu0
      %v4557 = vadd.f32 0.0, %v4556
      %4558 = vmatmul.f32.gmra.mxu0 %v4447
      %v4559 = vpop.f32.mrf.mxu0
      %v4560 = vadd.f32 0.0, %v4559
      %4561 = vmatmul.f32.gmra.mxu0 %v4450
      %v4562 = vpop.f32.mrf.mxu0
      %v4563 = vadd.f32 0.0, %v4562
      %4564 = vmatmul.f32.gmra.mxu0 %v4453
      %v4565 = vpop.f32.mrf.mxu0
      %v4566 = vadd.f32 0.0, %v4565
      %4567 = vmatmul.f32.gmra.mxu0 %v4456
      %v4568 = vpop.f32.mrf.mxu0
      %v4569 = vadd.f32 0.0, %v4568
      %4570 = vmatmul.f32.gmra.mxu0 %v4459
      %v4571 = vpop.f32.mrf.mxu0
      %v4572 = vadd.f32 0.0, %v4571
      %4573 = vmatmul.f32.gmra.mxu0 %v4462
      %v4574 = vpop.f32.mrf.mxu0
      %v4575 = vadd.f32 0.0, %v4574
      %4576 = vmatmul.f32.gmra.mxu0 %v4465
      %v4577 = vpop.f32.mrf.mxu0
      %v4578 = vadd.f32 0.0, %v4577
      %4579 = vmatmul.f32.gmra.mxu0 %v4468
      %v4580 = vpop.f32.mrf.mxu0
      %v4581 = vadd.f32 0.0, %v4580
      %4582 = vmatmul.f32.gmra.mxu0 %v4471
      %v4583 = vpop.f32.mrf.mxu0
      %v4584 = vadd.f32 0.0, %v4583
      %4585 = vmatmul.f32.gmra.mxu0 %v4474
      %v4586 = vpop.f32.mrf.mxu0
      %v4587 = vadd.f32 0.0, %v4586
      %4588 = vmatmul.f32.gmra.mxu0 %v4477
      %v4589 = vpop.f32.mrf.mxu0
      %v4590 = vadd.f32 0.0, %v4589
      %4591 = vmatmul.f32.gmra.mxu0 %v4480
      %v4592 = vpop.f32.mrf.mxu0
      %v4593 = vadd.f32 0.0, %v4592
      %4594 = vmatmul.f32.gmra.mxu0 %v4483
      %v4595 = vpop.f32.mrf.mxu0
      %v4596 = vadd.f32 0.0, %v4595
      %4597 = vmatmul.f32.gmra.mxu0 %v4486
      %v4598 = vpop.f32.mrf.mxu0
      %v4599 = vadd.f32 0.0, %v4598
      %4600 = vmatmul.f32.gmra.mxu0 %v4489
      %v4601 = vpop.f32.mrf.mxu0
      %v4602 = vadd.f32 0.0, %v4601
      %4603 = vmatmul.f32.gmra.mxu0 %v4492
      %v4604 = vpop.f32.mrf.mxu0
      %v4605 = vadd.f32 0.0, %v4604
      %4606 = vmatmul.f32.gmra.mxu0 %v4495
      %v4607 = vpop.f32.mrf.mxu0
      %v4608 = vadd.f32 0.0, %v4607
      %4609 = vmatmul.f32.gmra.mxu0 %v4498
      %v4610 = vpop.f32.mrf.mxu0
      %v4611 = vadd.f32 0.0, %v4610
      %4612 = vmatmul.f32.gmra.mxu0 %v4501
      %v4613 = vpop.f32.mrf.mxu0
      %v4614 = vadd.f32 0.0, %v4613
      %4615 = vmatmul.f32.gmra.mxu0 %v4504
      %v4616 = vpop.f32.mrf.mxu0
      %v4617 = vadd.f32 0.0, %v4616
      %4618 = vmatmul.f32.gmra.mxu0 %v4507
      %v4619 = vpop.f32.mrf.mxu0
      %v4620 = vadd.f32 0.0, %v4619
      %4621 = vmatmul.f32.gmra.mxu0 %v4510
      %v4622 = vpop.f32.mrf.mxu0
      %v4623 = vadd.f32 0.0, %v4622
      %4624 = vdwg.mxu0
      %v4625 = vadd.f32 %v4347, %v4530
      %v4626 = vadd.f32 %v4348, %v4533
      %v4627 = vadd.f32 %v4349, %v4536
      %v4628 = vadd.f32 %v4350, %v4539
      %v4629 = vadd.f32 %v4351, %v4542
      %v4630 = vadd.f32 %v4352, %v4545
      %v4631 = vadd.f32 %v4353, %v4548
      %v4632 = vadd.f32 %v4354, %v4551
      %v4633 = vadd.f32 %v4355, %v4554
      %v4634 = vadd.f32 %v4356, %v4557
      %v4635 = vadd.f32 %v4357, %v4560
      %v4636 = vadd.f32 %v4358, %v4563
      %v4637 = vadd.f32 %v4359, %v4566
      %v4638 = vadd.f32 %v4360, %v4569
      %v4639 = vadd.f32 %v4361, %v4572
      %v4640 = vadd.f32 %v4362, %v4575
      %v4641 = vadd.f32 %v4363, %v4578
      %v4642 = vadd.f32 %v4364, %v4581
      %v4643 = vadd.f32 %v4365, %v4584
      %v4644 = vadd.f32 %v4366, %v4587
      %v4645 = vadd.f32 %v4367, %v4590
      %v4646 = vadd.f32 %v4368, %v4593
      %v4647 = vadd.f32 %v4369, %v4596
      %v4648 = vadd.f32 %v4370, %v4599
      %v4649 = vadd.f32 %v4371, %v4602
      %v4650 = vadd.f32 %v4372, %v4605
      %v4651 = vadd.f32 %v4373, %v4608
      %v4652 = vadd.f32 %v4374, %v4611
      %v4653 = vadd.f32 %v4375, %v4614
      %v4654 = vadd.f32 %v4376, %v4617
      %v4655 = vadd.f32 %v4377, %v4620
      %v4656 = vadd.f32 %v4378, %v4623
      %v4657 = vld [vmem:[%s3510 + $0x2] sm:$0xff]
      %v4658 = vld [vmem:[%s3510 + $0xa] sm:$0xff]
      %v4659 = vld [vmem:[%s3510 + $0x1a] sm:$0xff]
      %v4660 = vld [vmem:[%s3510 + $0x22] sm:$0xff]
      %v4661 = vld [vmem:[%s3510 + $0x32] sm:$0xff]
      %v4662 = vld [vmem:[%s3510 + $0x3a] sm:$0xff]
      %v4663 = vld [vmem:[%s3510 + $0x4a] sm:$0xff]
      %v4664 = vld [vmem:[%s3510 + $0x52] sm:$0xff]
      %v4665 = vld [vmem:[%s3510 + $0x62] sm:$0xff]
      %v4666 = vld [vmem:[%s3510 + $0x6a] sm:$0xff]
      %v4667 = vld [vmem:[%s3510 + $0x7a] sm:$0xff]
      %v4668 = vld [vmem:[%s3510 + $0x82] sm:$0xff]
      %v4669 = vld [vmem:[%s3510 + $0x92] sm:$0xff]
      %v4670 = vld [vmem:[%s3510 + $0x9a] sm:$0xff]
      %v4671 = vld [vmem:[%s3510 + $0xaa] sm:$0xff]
      %v4672 = vld [vmem:[%s3510 + $0xb2] sm:$0xff]
      %v4673 = vld [vmem:[%s3510 + $0xc2] sm:$0xff]
      %v4674 = vld [vmem:[%s3510 + $0xca] sm:$0xff]
      %v4675 = vld [vmem:[%s3510 + $0xda] sm:$0xff]
      %v4676 = vld [vmem:[%s3510 + $0xe2] sm:$0xff]
      %v4677 = vld [vmem:[%s3510 + $0xf2] sm:$0xff]
      %v4678 = vld [vmem:[%s3510 + $0xfa] sm:$0xff]
      %v4679 = vld [vmem:[%s3510 + $0x10a] sm:$0xff]
      %v4680 = vld [vmem:[%s3510 + $0x112] sm:$0xff]
      %v4681 = vld [vmem:[%s3510 + $0x122] sm:$0xff]
      %v4682 = vld [vmem:[%s3510 + $0x12a] sm:$0xff]
      %v4683 = vld [vmem:[%s3510 + $0x13a] sm:$0xff]
      %v4684 = vld [vmem:[%s3510 + $0x142] sm:$0xff]
      %v4685 = vld [vmem:[%s3510 + $0x152] sm:$0xff]
      %v4686 = vld [vmem:[%s3510 + $0x15a] sm:$0xff]
      %v4687 = vld [vmem:[%s3510 + $0x16a] sm:$0xff]
      %v4688 = vld [vmem:[%s3510 + $0x172] sm:$0xff]
      %s4689 = scalar_lea.vmem %s3, 128
      %v4690 = vld [vmem:[%s4689] sm:$0xff]
      %v4691 = vld [vmem:[%s4689 + $0x8] sm:$0xff]
      %v4692 = vld [vmem:[%s4689 + $0x10] sm:$0xff]
      %v4693 = vld [vmem:[%s4689 + $0x18] sm:$0xff]
      %v4695 = vsel %vm3448, %v4657, 0
      %v4698 = vsel %vm3448, %v4658, 0
      %v4701 = vsel %vm3448, %v4659, 0
      %v4704 = vsel %vm3448, %v4660, 0
      %v4707 = vsel %vm3448, %v4661, 0
      %v4710 = vsel %vm3448, %v4662, 0
      %v4713 = vsel %vm3448, %v4663, 0
      %v4716 = vsel %vm3448, %v4664, 0
      %v4719 = vsel %vm3448, %v4665, 0
      %v4722 = vsel %vm3448, %v4666, 0
      %v4725 = vsel %vm3448, %v4667, 0
      %v4728 = vsel %vm3448, %v4668, 0
      %v4731 = vsel %vm3448, %v4669, 0
      %v4734 = vsel %vm3448, %v4670, 0
      %v4737 = vsel %vm3448, %v4671, 0
      %v4740 = vsel %vm3448, %v4672, 0
      %v4743 = vsel %vm3448, %v4673, 0
      %v4746 = vsel %vm3448, %v4674, 0
      %v4749 = vsel %vm3448, %v4675, 0
      %v4752 = vsel %vm3448, %v4676, 0
      %v4755 = vsel %vm3448, %v4677, 0
      %v4758 = vsel %vm3448, %v4678, 0
      %v4761 = vsel %vm3448, %v4679, 0
      %v4764 = vsel %vm3448, %v4680, 0
      %v4767 = vsel %vm3448, %v4681, 0
      %v4770 = vsel %vm3448, %v4682, 0
      %v4773 = vsel %vm3448, %v4683, 0
      %v4776 = vsel %vm3448, %v4684, 0
      %v4779 = vsel %vm3448, %v4685, 0
      %v4782 = vsel %vm3448, %v4686, 0
      %v4785 = vsel %vm3448, %v4687, 0
      %v4788 = vsel %vm3448, %v4688, 0
      %4790 = vmatpush.msra.mxu0 0.0
      %4791 = vmatpush.msra.mxu0 0.0
      %4792 = vmatpush.msra.mxu0 0.0
      %4793 = vmatpush.msra.mxu0 0.0
      %4794 = vmatpush.msra.mxu0 0.0
      %4795 = vmatpush.msra.mxu0 0.0
      %4796 = vmatpush.msra.mxu0 0.0
      %4797 = vmatpush.msra.mxu0 0.0
      %4798 = vmatpush.msra.mxu0 0.0
      %4799 = vmatpush.msra.mxu0 0.0
      %4800 = vmatpush.msra.mxu0 0.0
      %4801 = vmatpush.msra.mxu0 0.0
      %4802 = vmatpush.msra.mxu0 %v4693
      %4803 = vmatpush.msra.mxu0 %v4692
      %4804 = vmatpush.msra.mxu0 %v4691
      %4805 = vmatpush.msra.mxu0 %v4690
      %4806 = vmatmul.f32.gmra.mxu0 %v4695
      %v4807 = vpop.f32.mrf.mxu0
      %v4808 = vadd.f32 0.0, %v4807
      %4809 = vmatmul.f32.gmra.mxu0 %v4698
      %v4810 = vpop.f32.mrf.mxu0
      %v4811 = vadd.f32 0.0, %v4810
      %4812 = vmatmul.f32.gmra.mxu0 %v4701
      %v4813 = vpop.f32.mrf.mxu0
      %v4814 = vadd.f32 0.0, %v4813
      %4815 = vmatmul.f32.gmra.mxu0 %v4704
      %v4816 = vpop.f32.mrf.mxu0
      %v4817 = vadd.f32 0.0, %v4816
      %4818 = vmatmul.f32.gmra.mxu0 %v4707
      %v4819 = vpop.f32.mrf.mxu0
      %v4820 = vadd.f32 0.0, %v4819
      %4821 = vmatmul.f32.gmra.mxu0 %v4710
      %v4822 = vpop.f32.mrf.mxu0
      %v4823 = vadd.f32 0.0, %v4822
      %4824 = vmatmul.f32.gmra.mxu0 %v4713
      %v4825 = vpop.f32.mrf.mxu0
      %v4826 = vadd.f32 0.0, %v4825
      %4827 = vmatmul.f32.gmra.mxu0 %v4716
      %v4828 = vpop.f32.mrf.mxu0
      %v4829 = vadd.f32 0.0, %v4828
      %4830 = vmatmul.f32.gmra.mxu0 %v4719
      %v4831 = vpop.f32.mrf.mxu0
      %v4832 = vadd.f32 0.0, %v4831
      %4833 = vmatmul.f32.gmra.mxu0 %v4722
      %v4834 = vpop.f32.mrf.mxu0
      %v4835 = vadd.f32 0.0, %v4834
      %4836 = vmatmul.f32.gmra.mxu0 %v4725
      %v4837 = vpop.f32.mrf.mxu0
      %v4838 = vadd.f32 0.0, %v4837
      %4839 = vmatmul.f32.gmra.mxu0 %v4728
      %v4840 = vpop.f32.mrf.mxu0
      %v4841 = vadd.f32 0.0, %v4840
      %4842 = vmatmul.f32.gmra.mxu0 %v4731
      %v4843 = vpop.f32.mrf.mxu0
      %v4844 = vadd.f32 0.0, %v4843
      %4845 = vmatmul.f32.gmra.mxu0 %v4734
      %v4846 = vpop.f32.mrf.mxu0
      %v4847 = vadd.f32 0.0, %v4846
      %4848 = vmatmul.f32.gmra.mxu0 %v4737
      %v4849 = vpop.f32.mrf.mxu0
      %v4850 = vadd.f32 0.0, %v4849
      %4851 = vmatmul.f32.gmra.mxu0 %v4740
      %v4852 = vpop.f32.mrf.mxu0
      %v4853 = vadd.f32 0.0, %v4852
      %4854 = vmatmul.f32.gmra.mxu0 %v4743
      %v4855 = vpop.f32.mrf.mxu0
      %v4856 = vadd.f32 0.0, %v4855
      %4857 = vmatmul.f32.gmra.mxu0 %v4746
      %v4858 = vpop.f32.mrf.mxu0
      %v4859 = vadd.f32 0.0, %v4858
      %4860 = vmatmul.f32.gmra.mxu0 %v4749
      %v4861 = vpop.f32.mrf.mxu0
      %v4862 = vadd.f32 0.0, %v4861
      %4863 = vmatmul.f32.gmra.mxu0 %v4752
      %v4864 = vpop.f32.mrf.mxu0
      %v4865 = vadd.f32 0.0, %v4864
      %4866 = vmatmul.f32.gmra.mxu0 %v4755
      %v4867 = vpop.f32.mrf.mxu0
      %v4868 = vadd.f32 0.0, %v4867
      %4869 = vmatmul.f32.gmra.mxu0 %v4758
      %v4870 = vpop.f32.mrf.mxu0
      %v4871 = vadd.f32 0.0, %v4870
      %4872 = vmatmul.f32.gmra.mxu0 %v4761
      %v4873 = vpop.f32.mrf.mxu0
      %v4874 = vadd.f32 0.0, %v4873
      %4875 = vmatmul.f32.gmra.mxu0 %v4764
      %v4876 = vpop.f32.mrf.mxu0
      %v4877 = vadd.f32 0.0, %v4876
      %4878 = vmatmul.f32.gmra.mxu0 %v4767
      %v4879 = vpop.f32.mrf.mxu0
      %v4880 = vadd.f32 0.0, %v4879
      %4881 = vmatmul.f32.gmra.mxu0 %v4770
      %v4882 = vpop.f32.mrf.mxu0
      %v4883 = vadd.f32 0.0, %v4882
      %4884 = vmatmul.f32.gmra.mxu0 %v4773
      %v4885 = vpop.f32.mrf.mxu0
      %v4886 = vadd.f32 0.0, %v4885
      %4887 = vmatmul.f32.gmra.mxu0 %v4776
      %v4888 = vpop.f32.mrf.mxu0
      %v4889 = vadd.f32 0.0, %v4888
      %4890 = vmatmul.f32.gmra.mxu0 %v4779
      %v4891 = vpop.f32.mrf.mxu0
      %v4892 = vadd.f32 0.0, %v4891
      %4893 = vmatmul.f32.gmra.mxu0 %v4782
      %v4894 = vpop.f32.mrf.mxu0
      %v4895 = vadd.f32 0.0, %v4894
      %4896 = vmatmul.f32.gmra.mxu0 %v4785
      %v4897 = vpop.f32.mrf.mxu0
      %v4898 = vadd.f32 0.0, %v4897
      %4899 = vmatmul.f32.gmra.mxu0 %v4788
      %v4900 = vpop.f32.mrf.mxu0
      %v4901 = vadd.f32 0.0, %v4900
      %4902 = vdwg.mxu0
      %v4903 = vadd.f32 %v4625, %v4808
      %v4904 = vadd.f32 %v4626, %v4811
      %v4905 = vadd.f32 %v4627, %v4814
      %v4906 = vadd.f32 %v4628, %v4817
      %v4907 = vadd.f32 %v4629, %v4820
      %v4908 = vadd.f32 %v4630, %v4823
      %v4909 = vadd.f32 %v4631, %v4826
      %v4910 = vadd.f32 %v4632, %v4829
      %v4911 = vadd.f32 %v4633, %v4832
      %v4912 = vadd.f32 %v4634, %v4835
      %v4913 = vadd.f32 %v4635, %v4838
      %v4914 = vadd.f32 %v4636, %v4841
      %v4915 = vadd.f32 %v4637, %v4844
      %v4916 = vadd.f32 %v4638, %v4847
      %v4917 = vadd.f32 %v4639, %v4850
      %v4918 = vadd.f32 %v4640, %v4853
      %v4919 = vadd.f32 %v4641, %v4856
      %v4920 = vadd.f32 %v4642, %v4859
      %v4921 = vadd.f32 %v4643, %v4862
      %v4922 = vadd.f32 %v4644, %v4865
      %v4923 = vadd.f32 %v4645, %v4868
      %v4924 = vadd.f32 %v4646, %v4871
      %v4925 = vadd.f32 %v4647, %v4874
      %v4926 = vadd.f32 %v4648, %v4877
      %v4927 = vadd.f32 %v4649, %v4880
      %v4928 = vadd.f32 %v4650, %v4883
      %v4929 = vadd.f32 %v4651, %v4886
      %v4930 = vadd.f32 %v4652, %v4889
      %v4931 = vadd.f32 %v4653, %v4892
      %v4932 = vadd.f32 %v4654, %v4895
      %v4933 = vadd.f32 %v4655, %v4898
      %v4934 = vadd.f32 %v4656, %v4901
      %v4935 = vld [vmem:[%s3510 + $0x4] sm:$0xff]
      %v4936 = vld [vmem:[%s3510 + $0xc] sm:$0xff]
      %v4937 = vld [vmem:[%s3510 + $0x1c] sm:$0xff]
      %v4938 = vld [vmem:[%s3510 + $0x24] sm:$0xff]
      %v4939 = vld [vmem:[%s3510 + $0x34] sm:$0xff]
      %v4940 = vld [vmem:[%s3510 + $0x3c] sm:$0xff]
      %v4941 = vld [vmem:[%s3510 + $0x4c] sm:$0xff]
      %v4942 = vld [vmem:[%s3510 + $0x54] sm:$0xff]
      %v4943 = vld [vmem:[%s3510 + $0x64] sm:$0xff]
      %v4944 = vld [vmem:[%s3510 + $0x6c] sm:$0xff]
      %v4945 = vld [vmem:[%s3510 + $0x7c] sm:$0xff]
      %v4946 = vld [vmem:[%s3510 + $0x84] sm:$0xff]
      %v4947 = vld [vmem:[%s3510 + $0x94] sm:$0xff]
      %v4948 = vld [vmem:[%s3510 + $0x9c] sm:$0xff]
      %v4949 = vld [vmem:[%s3510 + $0xac] sm:$0xff]
      %v4950 = vld [vmem:[%s3510 + $0xb4] sm:$0xff]
      %v4951 = vld [vmem:[%s3510 + $0xc4] sm:$0xff]
      %v4952 = vld [vmem:[%s3510 + $0xcc] sm:$0xff]
      %v4953 = vld [vmem:[%s3510 + $0xdc] sm:$0xff]
      %v4954 = vld [vmem:[%s3510 + $0xe4] sm:$0xff]
      %v4955 = vld [vmem:[%s3510 + $0xf4] sm:$0xff]
      %v4956 = vld [vmem:[%s3510 + $0xfc] sm:$0xff]
      %v4957 = vld [vmem:[%s3510 + $0x10c] sm:$0xff]
      %v4958 = vld [vmem:[%s3510 + $0x114] sm:$0xff]
      %v4959 = vld [vmem:[%s3510 + $0x124] sm:$0xff]
      %v4960 = vld [vmem:[%s3510 + $0x12c] sm:$0xff]
      %v4961 = vld [vmem:[%s3510 + $0x13c] sm:$0xff]
      %v4962 = vld [vmem:[%s3510 + $0x144] sm:$0xff]
      %v4963 = vld [vmem:[%s3510 + $0x154] sm:$0xff]
      %v4964 = vld [vmem:[%s3510 + $0x15c] sm:$0xff]
      %v4965 = vld [vmem:[%s3510 + $0x16c] sm:$0xff]
      %v4966 = vld [vmem:[%s3510 + $0x174] sm:$0xff]
      %s4967 = scalar_lea.vmem %s3, 160
      %v4968 = vld [vmem:[%s4967] sm:$0xff]
      %v4969 = vld [vmem:[%s4967 + $0x8] sm:$0xff]
      %v4970 = vld [vmem:[%s4967 + $0x10] sm:$0xff]
      %v4971 = vld [vmem:[%s4967 + $0x18] sm:$0xff]
      %v4973 = vsel %vm3448, %v4935, 0
      %v4976 = vsel %vm3448, %v4936, 0
      %v4979 = vsel %vm3448, %v4937, 0
      %v4982 = vsel %vm3448, %v4938, 0
      %v4985 = vsel %vm3448, %v4939, 0
      %v4988 = vsel %vm3448, %v4940, 0
      %v4991 = vsel %vm3448, %v4941, 0
      %v4994 = vsel %vm3448, %v4942, 0
      %v4997 = vsel %vm3448, %v4943, 0
      %v5000 = vsel %vm3448, %v4944, 0
      %v5003 = vsel %vm3448, %v4945, 0
      %v5006 = vsel %vm3448, %v4946, 0
      %v5009 = vsel %vm3448, %v4947, 0
      %v5012 = vsel %vm3448, %v4948, 0
      %v5015 = vsel %vm3448, %v4949, 0
      %v5018 = vsel %vm3448, %v4950, 0
      %v5021 = vsel %vm3448, %v4951, 0
      %v5024 = vsel %vm3448, %v4952, 0
      %v5027 = vsel %vm3448, %v4953, 0
      %v5030 = vsel %vm3448, %v4954, 0
      %v5033 = vsel %vm3448, %v4955, 0
      %v5036 = vsel %vm3448, %v4956, 0
      %v5039 = vsel %vm3448, %v4957, 0
      %v5042 = vsel %vm3448, %v4958, 0
      %v5045 = vsel %vm3448, %v4959, 0
      %v5048 = vsel %vm3448, %v4960, 0
      %v5051 = vsel %vm3448, %v4961, 0
      %v5054 = vsel %vm3448, %v4962, 0
      %v5057 = vsel %vm3448, %v4963, 0
      %v5060 = vsel %vm3448, %v4964, 0
      %v5063 = vsel %vm3448, %v4965, 0
      %v5066 = vsel %vm3448, %v4966, 0
      %5068 = vmatpush.msra.mxu0 0.0
      %5069 = vmatpush.msra.mxu0 0.0
      %5070 = vmatpush.msra.mxu0 0.0
      %5071 = vmatpush.msra.mxu0 0.0
      %5072 = vmatpush.msra.mxu0 0.0
      %5073 = vmatpush.msra.mxu0 0.0
      %5074 = vmatpush.msra.mxu0 0.0
      %5075 = vmatpush.msra.mxu0 0.0
      %5076 = vmatpush.msra.mxu0 0.0
      %5077 = vmatpush.msra.mxu0 0.0
      %5078 = vmatpush.msra.mxu0 0.0
      %5079 = vmatpush.msra.mxu0 0.0
      %5080 = vmatpush.msra.mxu0 %v4971
      %5081 = vmatpush.msra.mxu0 %v4970
      %5082 = vmatpush.msra.mxu0 %v4969
      %5083 = vmatpush.msra.mxu0 %v4968
      %5084 = vmatmul.f32.gmra.mxu0 %v4973
      %v5085 = vpop.f32.mrf.mxu0
      %v5086 = vadd.f32 0.0, %v5085
      %5087 = vmatmul.f32.gmra.mxu0 %v4976
      %v5088 = vpop.f32.mrf.mxu0
      %v5089 = vadd.f32 0.0, %v5088
      %5090 = vmatmul.f32.gmra.mxu0 %v4979
      %v5091 = vpop.f32.mrf.mxu0
      %v5092 = vadd.f32 0.0, %v5091
      %5093 = vmatmul.f32.gmra.mxu0 %v4982
      %v5094 = vpop.f32.mrf.mxu0
      %v5095 = vadd.f32 0.0, %v5094
      %5096 = vmatmul.f32.gmra.mxu0 %v4985
      %v5097 = vpop.f32.mrf.mxu0
      %v5098 = vadd.f32 0.0, %v5097
      %5099 = vmatmul.f32.gmra.mxu0 %v4988
      %v5100 = vpop.f32.mrf.mxu0
      %v5101 = vadd.f32 0.0, %v5100
      %5102 = vmatmul.f32.gmra.mxu0 %v4991
      %v5103 = vpop.f32.mrf.mxu0
      %v5104 = vadd.f32 0.0, %v5103
      %5105 = vmatmul.f32.gmra.mxu0 %v4994
      %v5106 = vpop.f32.mrf.mxu0
      %v5107 = vadd.f32 0.0, %v5106
      %5108 = vmatmul.f32.gmra.mxu0 %v4997
      %v5109 = vpop.f32.mrf.mxu0
      %v5110 = vadd.f32 0.0, %v5109
      %5111 = vmatmul.f32.gmra.mxu0 %v5000
      %v5112 = vpop.f32.mrf.mxu0
      %v5113 = vadd.f32 0.0, %v5112
      %5114 = vmatmul.f32.gmra.mxu0 %v5003
      %v5115 = vpop.f32.mrf.mxu0
      %v5116 = vadd.f32 0.0, %v5115
      %5117 = vmatmul.f32.gmra.mxu0 %v5006
      %v5118 = vpop.f32.mrf.mxu0
      %v5119 = vadd.f32 0.0, %v5118
      %5120 = vmatmul.f32.gmra.mxu0 %v5009
      %v5121 = vpop.f32.mrf.mxu0
      %v5122 = vadd.f32 0.0, %v5121
      %5123 = vmatmul.f32.gmra.mxu0 %v5012
      %v5124 = vpop.f32.mrf.mxu0
      %v5125 = vadd.f32 0.0, %v5124
      %5126 = vmatmul.f32.gmra.mxu0 %v5015
      %v5127 = vpop.f32.mrf.mxu0
      %v5128 = vadd.f32 0.0, %v5127
      %5129 = vmatmul.f32.gmra.mxu0 %v5018
      %v5130 = vpop.f32.mrf.mxu0
      %v5131 = vadd.f32 0.0, %v5130
      %5132 = vmatmul.f32.gmra.mxu0 %v5021
      %v5133 = vpop.f32.mrf.mxu0
      %v5134 = vadd.f32 0.0, %v5133
      %5135 = vmatmul.f32.gmra.mxu0 %v5024
      %v5136 = vpop.f32.mrf.mxu0
      %v5137 = vadd.f32 0.0, %v5136
      %5138 = vmatmul.f32.gmra.mxu0 %v5027
      %v5139 = vpop.f32.mrf.mxu0
      %v5140 = vadd.f32 0.0, %v5139
      %5141 = vmatmul.f32.gmra.mxu0 %v5030
      %v5142 = vpop.f32.mrf.mxu0
      %v5143 = vadd.f32 0.0, %v5142
      %5144 = vmatmul.f32.gmra.mxu0 %v5033
      %v5145 = vpop.f32.mrf.mxu0
      %v5146 = vadd.f32 0.0, %v5145
      %5147 = vmatmul.f32.gmra.mxu0 %v5036
      %v5148 = vpop.f32.mrf.mxu0
      %v5149 = vadd.f32 0.0, %v5148
      %5150 = vmatmul.f32.gmra.mxu0 %v5039
      %v5151 = vpop.f32.mrf.mxu0
      %v5152 = vadd.f32 0.0, %v5151
      %5153 = vmatmul.f32.gmra.mxu0 %v5042
      %v5154 = vpop.f32.mrf.mxu0
      %v5155 = vadd.f32 0.0, %v5154
      %5156 = vmatmul.f32.gmra.mxu0 %v5045
      %v5157 = vpop.f32.mrf.mxu0
      %v5158 = vadd.f32 0.0, %v5157
      %5159 = vmatmul.f32.gmra.mxu0 %v5048
      %v5160 = vpop.f32.mrf.mxu0
      %v5161 = vadd.f32 0.0, %v5160
      %5162 = vmatmul.f32.gmra.mxu0 %v5051
      %v5163 = vpop.f32.mrf.mxu0
      %v5164 = vadd.f32 0.0, %v5163
      %5165 = vmatmul.f32.gmra.mxu0 %v5054
      %v5166 = vpop.f32.mrf.mxu0
      %v5167 = vadd.f32 0.0, %v5166
      %5168 = vmatmul.f32.gmra.mxu0 %v5057
      %v5169 = vpop.f32.mrf.mxu0
      %v5170 = vadd.f32 0.0, %v5169
      %5171 = vmatmul.f32.gmra.mxu0 %v5060
      %v5172 = vpop.f32.mrf.mxu0
      %v5173 = vadd.f32 0.0, %v5172
      %5174 = vmatmul.f32.gmra.mxu0 %v5063
      %v5175 = vpop.f32.mrf.mxu0
      %v5176 = vadd.f32 0.0, %v5175
      %5177 = vmatmul.f32.gmra.mxu0 %v5066
      %v5178 = vpop.f32.mrf.mxu0
      %v5179 = vadd.f32 0.0, %v5178
      %5180 = vdwg.mxu0
      %v5181 = vadd.f32 %v4903, %v5086
      %v5182 = vadd.f32 %v4904, %v5089
      %v5183 = vadd.f32 %v4905, %v5092
      %v5184 = vadd.f32 %v4906, %v5095
      %v5185 = vadd.f32 %v4907, %v5098
      %v5186 = vadd.f32 %v4908, %v5101
      %v5187 = vadd.f32 %v4909, %v5104
      %v5188 = vadd.f32 %v4910, %v5107
      %v5189 = vadd.f32 %v4911, %v5110
      %v5190 = vadd.f32 %v4912, %v5113
      %v5191 = vadd.f32 %v4913, %v5116
      %v5192 = vadd.f32 %v4914, %v5119
      %v5193 = vadd.f32 %v4915, %v5122
      %v5194 = vadd.f32 %v4916, %v5125
      %v5195 = vadd.f32 %v4917, %v5128
      %v5196 = vadd.f32 %v4918, %v5131
      %v5197 = vadd.f32 %v4919, %v5134
      %v5198 = vadd.f32 %v4920, %v5137
      %v5199 = vadd.f32 %v4921, %v5140
      %v5200 = vadd.f32 %v4922, %v5143
      %v5201 = vadd.f32 %v4923, %v5146
      %v5202 = vadd.f32 %v4924, %v5149
      %v5203 = vadd.f32 %v4925, %v5152
      %v5204 = vadd.f32 %v4926, %v5155
      %v5205 = vadd.f32 %v4927, %v5158
      %v5206 = vadd.f32 %v4928, %v5161
      %v5207 = vadd.f32 %v4929, %v5164
      %v5208 = vadd.f32 %v4930, %v5167
      %v5209 = vadd.f32 %v4931, %v5170
      %v5210 = vadd.f32 %v4932, %v5173
      %v5211 = vadd.f32 %v4933, %v5176
      %v5212 = vadd.f32 %v4934, %v5179
      %s5213 = scalar_lea.vmem [#allocation3], 96
      %v5214 = vld [vmem:[%s5213] sm:$0xff]
      %v5215 = vld [vmem:[%s5213 + $0x8] sm:$0xff]
      %v5216 = vld [vmem:[%s5213 + $0x18] sm:$0xff]
      %v5217 = vld [vmem:[%s5213 + $0x20] sm:$0xff]
      %v5218 = vld [vmem:[%s5213 + $0x30] sm:$0xff]
      %v5219 = vld [vmem:[%s5213 + $0x38] sm:$0xff]
      %v5220 = vld [vmem:[%s5213 + $0x48] sm:$0xff]
      %v5221 = vld [vmem:[%s5213 + $0x50] sm:$0xff]
      %v5222 = vld [vmem:[%s5213 + $0x60] sm:$0xff]
      %v5223 = vld [vmem:[%s5213 + $0x68] sm:$0xff]
      %v5224 = vld [vmem:[%s5213 + $0x78] sm:$0xff]
      %v5225 = vld [vmem:[%s5213 + $0x80] sm:$0xff]
      %v5226 = vld [vmem:[%s5213 + $0x90] sm:$0xff]
      %v5227 = vld [vmem:[%s5213 + $0x98] sm:$0xff]
      %v5228 = vld [vmem:[%s5213 + $0xa8] sm:$0xff]
      %v5229 = vld [vmem:[%s5213 + $0xb0] sm:$0xff]
      %v5230 = vld [vmem:[%s5213 + $0xc0] sm:$0xff]
      %v5231 = vld [vmem:[%s5213 + $0xc8] sm:$0xff]
      %v5232 = vld [vmem:[%s5213 + $0xd8] sm:$0xff]
      %v5233 = vld [vmem:[%s5213 + $0xe0] sm:$0xff]
      %v5234 = vld [vmem:[%s5213 + $0xf0] sm:$0xff]
      %v5235 = vld [vmem:[%s5213 + $0xf8] sm:$0xff]
      %v5236 = vld [vmem:[%s5213 + $0x108] sm:$0xff]
      %v5237 = vld [vmem:[%s5213 + $0x110] sm:$0xff]
      %v5238 = vld [vmem:[%s5213 + $0x120] sm:$0xff]
      %v5239 = vld [vmem:[%s5213 + $0x128] sm:$0xff]
      %v5240 = vld [vmem:[%s5213 + $0x138] sm:$0xff]
      %v5241 = vld [vmem:[%s5213 + $0x140] sm:$0xff]
      %v5242 = vld [vmem:[%s5213 + $0x150] sm:$0xff]
      %v5243 = vld [vmem:[%s5213 + $0x158] sm:$0xff]
      %v5244 = vld [vmem:[%s5213 + $0x168] sm:$0xff]
      %v5245 = vld [vmem:[%s5213 + $0x170] sm:$0xff]
      %s5246 = scalar_lea.vmem %s3, 192
      %v5247 = vld [vmem:[%s5246] sm:$0xff]
      %v5248 = vld [vmem:[%s5246 + $0x8] sm:$0xff]
      %v5249 = vld [vmem:[%s5246 + $0x10] sm:$0xff]
      %v5250 = vld [vmem:[%s5246 + $0x18] sm:$0xff]
      %v5252 = vsel %vm3448, %v5214, 0
      %v5255 = vsel %vm3448, %v5215, 0
      %v5258 = vsel %vm3448, %v5216, 0
      %v5261 = vsel %vm3448, %v5217, 0
      %v5264 = vsel %vm3448, %v5218, 0
      %v5267 = vsel %vm3448, %v5219, 0
      %v5270 = vsel %vm3448, %v5220, 0
      %v5273 = vsel %vm3448, %v5221, 0
      %v5276 = vsel %vm3448, %v5222, 0
      %v5279 = vsel %vm3448, %v5223, 0
      %v5282 = vsel %vm3448, %v5224, 0
      %v5285 = vsel %vm3448, %v5225, 0
      %v5288 = vsel %vm3448, %v5226, 0
      %v5291 = vsel %vm3448, %v5227, 0
      %v5294 = vsel %vm3448, %v5228, 0
      %v5297 = vsel %vm3448, %v5229, 0
      %v5300 = vsel %vm3448, %v5230, 0
      %v5303 = vsel %vm3448, %v5231, 0
      %v5306 = vsel %vm3448, %v5232, 0
      %v5309 = vsel %vm3448, %v5233, 0
      %v5312 = vsel %vm3448, %v5234, 0
      %v5315 = vsel %vm3448, %v5235, 0
      %v5318 = vsel %vm3448, %v5236, 0
      %v5321 = vsel %vm3448, %v5237, 0
      %v5324 = vsel %vm3448, %v5238, 0
      %v5327 = vsel %vm3448, %v5239, 0
      %v5330 = vsel %vm3448, %v5240, 0
      %v5333 = vsel %vm3448, %v5241, 0
      %v5336 = vsel %vm3448, %v5242, 0
      %v5339 = vsel %vm3448, %v5243, 0
      %v5342 = vsel %vm3448, %v5244, 0
      %v5345 = vsel %vm3448, %v5245, 0
      %5347 = vmatpush.msra.mxu0 0.0
      %5348 = vmatpush.msra.mxu0 0.0
      %5349 = vmatpush.msra.mxu0 0.0
      %5350 = vmatpush.msra.mxu0 0.0
      %5351 = vmatpush.msra.mxu0 0.0
      %5352 = vmatpush.msra.mxu0 0.0
      %5353 = vmatpush.msra.mxu0 0.0
      %5354 = vmatpush.msra.mxu0 0.0
      %5355 = vmatpush.msra.mxu0 0.0
      %5356 = vmatpush.msra.mxu0 0.0
      %5357 = vmatpush.msra.mxu0 0.0
      %5358 = vmatpush.msra.mxu0 0.0
      %5359 = vmatpush.msra.mxu0 %v5250
      %5360 = vmatpush.msra.mxu0 %v5249
      %5361 = vmatpush.msra.mxu0 %v5248
      %5362 = vmatpush.msra.mxu0 %v5247
      %5363 = vmatmul.f32.gmra.mxu0 %v5252
      %v5364 = vpop.f32.mrf.mxu0
      %v5365 = vadd.f32 0.0, %v5364
      %5366 = vmatmul.f32.gmra.mxu0 %v5255
      %v5367 = vpop.f32.mrf.mxu0
      %v5368 = vadd.f32 0.0, %v5367
      %5369 = vmatmul.f32.gmra.mxu0 %v5258
      %v5370 = vpop.f32.mrf.mxu0
      %v5371 = vadd.f32 0.0, %v5370
      %5372 = vmatmul.f32.gmra.mxu0 %v5261
      %v5373 = vpop.f32.mrf.mxu0
      %v5374 = vadd.f32 0.0, %v5373
      %5375 = vmatmul.f32.gmra.mxu0 %v5264
      %v5376 = vpop.f32.mrf.mxu0
      %v5377 = vadd.f32 0.0, %v5376
      %5378 = vmatmul.f32.gmra.mxu0 %v5267
      %v5379 = vpop.f32.mrf.mxu0
      %v5380 = vadd.f32 0.0, %v5379
      %5381 = vmatmul.f32.gmra.mxu0 %v5270
      %v5382 = vpop.f32.mrf.mxu0
      %v5383 = vadd.f32 0.0, %v5382
      %5384 = vmatmul.f32.gmra.mxu0 %v5273
      %v5385 = vpop.f32.mrf.mxu0
      %v5386 = vadd.f32 0.0, %v5385
      %5387 = vmatmul.f32.gmra.mxu0 %v5276
      %v5388 = vpop.f32.mrf.mxu0
      %v5389 = vadd.f32 0.0, %v5388
      %5390 = vmatmul.f32.gmra.mxu0 %v5279
      %v5391 = vpop.f32.mrf.mxu0
      %v5392 = vadd.f32 0.0, %v5391
      %5393 = vmatmul.f32.gmra.mxu0 %v5282
      %v5394 = vpop.f32.mrf.mxu0
      %v5395 = vadd.f32 0.0, %v5394
      %5396 = vmatmul.f32.gmra.mxu0 %v5285
      %v5397 = vpop.f32.mrf.mxu0
      %v5398 = vadd.f32 0.0, %v5397
      %5399 = vmatmul.f32.gmra.mxu0 %v5288
      %v5400 = vpop.f32.mrf.mxu0
      %v5401 = vadd.f32 0.0, %v5400
      %5402 = vmatmul.f32.gmra.mxu0 %v5291
      %v5403 = vpop.f32.mrf.mxu0
      %v5404 = vadd.f32 0.0, %v5403
      %5405 = vmatmul.f32.gmra.mxu0 %v5294
      %v5406 = vpop.f32.mrf.mxu0
      %v5407 = vadd.f32 0.0, %v5406
      %5408 = vmatmul.f32.gmra.mxu0 %v5297
      %v5409 = vpop.f32.mrf.mxu0
      %v5410 = vadd.f32 0.0, %v5409
      %5411 = vmatmul.f32.gmra.mxu0 %v5300
      %v5412 = vpop.f32.mrf.mxu0
      %v5413 = vadd.f32 0.0, %v5412
      %5414 = vmatmul.f32.gmra.mxu0 %v5303
      %v5415 = vpop.f32.mrf.mxu0
      %v5416 = vadd.f32 0.0, %v5415
      %5417 = vmatmul.f32.gmra.mxu0 %v5306
      %v5418 = vpop.f32.mrf.mxu0
      %v5419 = vadd.f32 0.0, %v5418
      %5420 = vmatmul.f32.gmra.mxu0 %v5309
      %v5421 = vpop.f32.mrf.mxu0
      %v5422 = vadd.f32 0.0, %v5421
      %5423 = vmatmul.f32.gmra.mxu0 %v5312
      %v5424 = vpop.f32.mrf.mxu0
      %v5425 = vadd.f32 0.0, %v5424
      %5426 = vmatmul.f32.gmra.mxu0 %v5315
      %v5427 = vpop.f32.mrf.mxu0
      %v5428 = vadd.f32 0.0, %v5427
      %5429 = vmatmul.f32.gmra.mxu0 %v5318
      %v5430 = vpop.f32.mrf.mxu0
      %v5431 = vadd.f32 0.0, %v5430
      %5432 = vmatmul.f32.gmra.mxu0 %v5321
      %v5433 = vpop.f32.mrf.mxu0
      %v5434 = vadd.f32 0.0, %v5433
      %5435 = vmatmul.f32.gmra.mxu0 %v5324
      %v5436 = vpop.f32.mrf.mxu0
      %v5437 = vadd.f32 0.0, %v5436
      %5438 = vmatmul.f32.gmra.mxu0 %v5327
      %v5439 = vpop.f32.mrf.mxu0
      %v5440 = vadd.f32 0.0, %v5439
      %5441 = vmatmul.f32.gmra.mxu0 %v5330
      %v5442 = vpop.f32.mrf.mxu0
      %v5443 = vadd.f32 0.0, %v5442
      %5444 = vmatmul.f32.gmra.mxu0 %v5333
      %v5445 = vpop.f32.mrf.mxu0
      %v5446 = vadd.f32 0.0, %v5445
      %5447 = vmatmul.f32.gmra.mxu0 %v5336
      %v5448 = vpop.f32.mrf.mxu0
      %v5449 = vadd.f32 0.0, %v5448
      %5450 = vmatmul.f32.gmra.mxu0 %v5339
      %v5451 = vpop.f32.mrf.mxu0
      %v5452 = vadd.f32 0.0, %v5451
      %5453 = vmatmul.f32.gmra.mxu0 %v5342
      %v5454 = vpop.f32.mrf.mxu0
      %v5455 = vadd.f32 0.0, %v5454
      %5456 = vmatmul.f32.gmra.mxu0 %v5345
      %v5457 = vpop.f32.mrf.mxu0
      %v5458 = vadd.f32 0.0, %v5457
      %5459 = vdwg.mxu0
      %v5460 = vadd.f32 %v5181, %v5365
      %v5461 = vadd.f32 %v5182, %v5368
      %v5462 = vadd.f32 %v5183, %v5371
      %v5463 = vadd.f32 %v5184, %v5374
      %v5464 = vadd.f32 %v5185, %v5377
      %v5465 = vadd.f32 %v5186, %v5380
      %v5466 = vadd.f32 %v5187, %v5383
      %v5467 = vadd.f32 %v5188, %v5386
      %v5468 = vadd.f32 %v5189, %v5389
      %v5469 = vadd.f32 %v5190, %v5392
      %v5470 = vadd.f32 %v5191, %v5395
      %v5471 = vadd.f32 %v5192, %v5398
      %v5472 = vadd.f32 %v5193, %v5401
      %v5473 = vadd.f32 %v5194, %v5404
      %v5474 = vadd.f32 %v5195, %v5407
      %v5475 = vadd.f32 %v5196, %v5410
      %v5476 = vadd.f32 %v5197, %v5413
      %v5477 = vadd.f32 %v5198, %v5416
      %v5478 = vadd.f32 %v5199, %v5419
      %v5479 = vadd.f32 %v5200, %v5422
      %v5480 = vadd.f32 %v5201, %v5425
      %v5481 = vadd.f32 %v5202, %v5428
      %v5482 = vadd.f32 %v5203, %v5431
      %v5483 = vadd.f32 %v5204, %v5434
      %v5484 = vadd.f32 %v5205, %v5437
      %v5485 = vadd.f32 %v5206, %v5440
      %v5486 = vadd.f32 %v5207, %v5443
      %v5487 = vadd.f32 %v5208, %v5446
      %v5488 = vadd.f32 %v5209, %v5449
      %v5489 = vadd.f32 %v5210, %v5452
      %v5490 = vadd.f32 %v5211, %v5455
      %v5491 = vadd.f32 %v5212, %v5458
      %v5492 = vld [vmem:[%s5213 + $0x2] sm:$0xff]
      %v5493 = vld [vmem:[%s5213 + $0xa] sm:$0xff]
      %v5494 = vld [vmem:[%s5213 + $0x1a] sm:$0xff]
      %v5495 = vld [vmem:[%s5213 + $0x22] sm:$0xff]
      %v5496 = vld [vmem:[%s5213 + $0x32] sm:$0xff]
      %v5497 = vld [vmem:[%s5213 + $0x3a] sm:$0xff]
      %v5498 = vld [vmem:[%s5213 + $0x4a] sm:$0xff]
      %v5499 = vld [vmem:[%s5213 + $0x52] sm:$0xff]
      %v5500 = vld [vmem:[%s5213 + $0x62] sm:$0xff]
      %v5501 = vld [vmem:[%s5213 + $0x6a] sm:$0xff]
      %v5502 = vld [vmem:[%s5213 + $0x7a] sm:$0xff]
      %v5503 = vld [vmem:[%s5213 + $0x82] sm:$0xff]
      %v5504 = vld [vmem:[%s5213 + $0x92] sm:$0xff]
      %v5505 = vld [vmem:[%s5213 + $0x9a] sm:$0xff]
      %v5506 = vld [vmem:[%s5213 + $0xaa] sm:$0xff]
      %v5507 = vld [vmem:[%s5213 + $0xb2] sm:$0xff]
      %v5508 = vld [vmem:[%s5213 + $0xc2] sm:$0xff]
      %v5509 = vld [vmem:[%s5213 + $0xca] sm:$0xff]
      %v5510 = vld [vmem:[%s5213 + $0xda] sm:$0xff]
      %v5511 = vld [vmem:[%s5213 + $0xe2] sm:$0xff]
      %v5512 = vld [vmem:[%s5213 + $0xf2] sm:$0xff]
      %v5513 = vld [vmem:[%s5213 + $0xfa] sm:$0xff]
      %v5514 = vld [vmem:[%s5213 + $0x10a] sm:$0xff]
      %v5515 = vld [vmem:[%s5213 + $0x112] sm:$0xff]
      %v5516 = vld [vmem:[%s5213 + $0x122] sm:$0xff]
      %v5517 = vld [vmem:[%s5213 + $0x12a] sm:$0xff]
      %v5518 = vld [vmem:[%s5213 + $0x13a] sm:$0xff]
      %v5519 = vld [vmem:[%s5213 + $0x142] sm:$0xff]
      %v5520 = vld [vmem:[%s5213 + $0x152] sm:$0xff]
      %v5521 = vld [vmem:[%s5213 + $0x15a] sm:$0xff]
      %v5522 = vld [vmem:[%s5213 + $0x16a] sm:$0xff]
      %v5523 = vld [vmem:[%s5213 + $0x172] sm:$0xff]
      %s5524 = scalar_lea.vmem %s3, 224
      %v5525 = vld [vmem:[%s5524] sm:$0xff]
      %v5526 = vld [vmem:[%s5524 + $0x8] sm:$0xff]
      %v5527 = vld [vmem:[%s5524 + $0x10] sm:$0xff]
      %v5528 = vld [vmem:[%s5524 + $0x18] sm:$0xff]
      %v5530 = vsel %vm3448, %v5492, 0
      %v5533 = vsel %vm3448, %v5493, 0
      %v5536 = vsel %vm3448, %v5494, 0
      %v5539 = vsel %vm3448, %v5495, 0
      %v5542 = vsel %vm3448, %v5496, 0
      %v5545 = vsel %vm3448, %v5497, 0
      %v5548 = vsel %vm3448, %v5498, 0
      %v5551 = vsel %vm3448, %v5499, 0
      %v5554 = vsel %vm3448, %v5500, 0
      %v5557 = vsel %vm3448, %v5501, 0
      %v5560 = vsel %vm3448, %v5502, 0
      %v5563 = vsel %vm3448, %v5503, 0
      %v5566 = vsel %vm3448, %v5504, 0
      %v5569 = vsel %vm3448, %v5505, 0
      %v5572 = vsel %vm3448, %v5506, 0
      %v5575 = vsel %vm3448, %v5507, 0
      %v5578 = vsel %vm3448, %v5508, 0
      %v5581 = vsel %vm3448, %v5509, 0
      %v5584 = vsel %vm3448, %v5510, 0
      %v5587 = vsel %vm3448, %v5511, 0
      %v5590 = vsel %vm3448, %v5512, 0
      %v5593 = vsel %vm3448, %v5513, 0
      %v5596 = vsel %vm3448, %v5514, 0
      %v5599 = vsel %vm3448, %v5515, 0
      %v5602 = vsel %vm3448, %v5516, 0
      %v5605 = vsel %vm3448, %v5517, 0
      %v5608 = vsel %vm3448, %v5518, 0
      %v5611 = vsel %vm3448, %v5519, 0
      %v5614 = vsel %vm3448, %v5520, 0
      %v5617 = vsel %vm3448, %v5521, 0
      %v5620 = vsel %vm3448, %v5522, 0
      %v5623 = vsel %vm3448, %v5523, 0
      %5625 = vmatpush.msra.mxu0 0.0
      %5626 = vmatpush.msra.mxu0 0.0
      %5627 = vmatpush.msra.mxu0 0.0
      %5628 = vmatpush.msra.mxu0 0.0
      %5629 = vmatpush.msra.mxu0 0.0
      %5630 = vmatpush.msra.mxu0 0.0
      %5631 = vmatpush.msra.mxu0 0.0
      %5632 = vmatpush.msra.mxu0 0.0
      %5633 = vmatpush.msra.mxu0 0.0
      %5634 = vmatpush.msra.mxu0 0.0
      %5635 = vmatpush.msra.mxu0 0.0
      %5636 = vmatpush.msra.mxu0 0.0
      %5637 = vmatpush.msra.mxu0 %v5528
      %5638 = vmatpush.msra.mxu0 %v5527
      %5639 = vmatpush.msra.mxu0 %v5526
      %5640 = vmatpush.msra.mxu0 %v5525
      %5641 = vmatmul.f32.gmra.mxu0 %v5530
      %v5642 = vpop.f32.mrf.mxu0
      %v5643 = vadd.f32 0.0, %v5642
      %5644 = vmatmul.f32.gmra.mxu0 %v5533
      %v5645 = vpop.f32.mrf.mxu0
      %v5646 = vadd.f32 0.0, %v5645
      %5647 = vmatmul.f32.gmra.mxu0 %v5536
      %v5648 = vpop.f32.mrf.mxu0
      %v5649 = vadd.f32 0.0, %v5648
      %5650 = vmatmul.f32.gmra.mxu0 %v5539
      %v5651 = vpop.f32.mrf.mxu0
      %v5652 = vadd.f32 0.0, %v5651
      %5653 = vmatmul.f32.gmra.mxu0 %v5542
      %v5654 = vpop.f32.mrf.mxu0
      %v5655 = vadd.f32 0.0, %v5654
      %5656 = vmatmul.f32.gmra.mxu0 %v5545
      %v5657 = vpop.f32.mrf.mxu0
      %v5658 = vadd.f32 0.0, %v5657
      %5659 = vmatmul.f32.gmra.mxu0 %v5548
      %v5660 = vpop.f32.mrf.mxu0
      %v5661 = vadd.f32 0.0, %v5660
      %5662 = vmatmul.f32.gmra.mxu0 %v5551
      %v5663 = vpop.f32.mrf.mxu0
      %v5664 = vadd.f32 0.0, %v5663
      %5665 = vmatmul.f32.gmra.mxu0 %v5554
      %v5666 = vpop.f32.mrf.mxu0
      %v5667 = vadd.f32 0.0, %v5666
      %5668 = vmatmul.f32.gmra.mxu0 %v5557
      %v5669 = vpop.f32.mrf.mxu0
      %v5670 = vadd.f32 0.0, %v5669
      %5671 = vmatmul.f32.gmra.mxu0 %v5560
      %v5672 = vpop.f32.mrf.mxu0
      %v5673 = vadd.f32 0.0, %v5672
      %5674 = vmatmul.f32.gmra.mxu0 %v5563
      %v5675 = vpop.f32.mrf.mxu0
      %v5676 = vadd.f32 0.0, %v5675
      %5677 = vmatmul.f32.gmra.mxu0 %v5566
      %v5678 = vpop.f32.mrf.mxu0
      %v5679 = vadd.f32 0.0, %v5678
      %5680 = vmatmul.f32.gmra.mxu0 %v5569
      %v5681 = vpop.f32.mrf.mxu0
      %v5682 = vadd.f32 0.0, %v5681
      %5683 = vmatmul.f32.gmra.mxu0 %v5572
      %v5684 = vpop.f32.mrf.mxu0
      %v5685 = vadd.f32 0.0, %v5684
      %5686 = vmatmul.f32.gmra.mxu0 %v5575
      %v5687 = vpop.f32.mrf.mxu0
      %v5688 = vadd.f32 0.0, %v5687
      %5689 = vmatmul.f32.gmra.mxu0 %v5578
      %v5690 = vpop.f32.mrf.mxu0
      %v5691 = vadd.f32 0.0, %v5690
      %5692 = vmatmul.f32.gmra.mxu0 %v5581
      %v5693 = vpop.f32.mrf.mxu0
      %v5694 = vadd.f32 0.0, %v5693
      %5695 = vmatmul.f32.gmra.mxu0 %v5584
      %v5696 = vpop.f32.mrf.mxu0
      %v5697 = vadd.f32 0.0, %v5696
      %5698 = vmatmul.f32.gmra.mxu0 %v5587
      %v5699 = vpop.f32.mrf.mxu0
      %v5700 = vadd.f32 0.0, %v5699
      %5701 = vmatmul.f32.gmra.mxu0 %v5590
      %v5702 = vpop.f32.mrf.mxu0
      %v5703 = vadd.f32 0.0, %v5702
      %5704 = vmatmul.f32.gmra.mxu0 %v5593
      %v5705 = vpop.f32.mrf.mxu0
      %v5706 = vadd.f32 0.0, %v5705
      %5707 = vmatmul.f32.gmra.mxu0 %v5596
      %v5708 = vpop.f32.mrf.mxu0
      %v5709 = vadd.f32 0.0, %v5708
      %5710 = vmatmul.f32.gmra.mxu0 %v5599
      %v5711 = vpop.f32.mrf.mxu0
      %v5712 = vadd.f32 0.0, %v5711
      %5713 = vmatmul.f32.gmra.mxu0 %v5602
      %v5714 = vpop.f32.mrf.mxu0
      %v5715 = vadd.f32 0.0, %v5714
      %5716 = vmatmul.f32.gmra.mxu0 %v5605
      %v5717 = vpop.f32.mrf.mxu0
      %v5718 = vadd.f32 0.0, %v5717
      %5719 = vmatmul.f32.gmra.mxu0 %v5608
      %v5720 = vpop.f32.mrf.mxu0
      %v5721 = vadd.f32 0.0, %v5720
      %5722 = vmatmul.f32.gmra.mxu0 %v5611
      %v5723 = vpop.f32.mrf.mxu0
      %v5724 = vadd.f32 0.0, %v5723
      %5725 = vmatmul.f32.gmra.mxu0 %v5614
      %v5726 = vpop.f32.mrf.mxu0
      %v5727 = vadd.f32 0.0, %v5726
      %5728 = vmatmul.f32.gmra.mxu0 %v5617
      %v5729 = vpop.f32.mrf.mxu0
      %v5730 = vadd.f32 0.0, %v5729
      %5731 = vmatmul.f32.gmra.mxu0 %v5620
      %v5732 = vpop.f32.mrf.mxu0
      %v5733 = vadd.f32 0.0, %v5732
      %5734 = vmatmul.f32.gmra.mxu0 %v5623
      %v5735 = vpop.f32.mrf.mxu0
      %v5736 = vadd.f32 0.0, %v5735
      %5737 = vdwg.mxu0
      %v5738 = vadd.f32 %v5460, %v5643
      %v5739 = vadd.f32 %v5461, %v5646
      %v5740 = vadd.f32 %v5462, %v5649
      %v5741 = vadd.f32 %v5463, %v5652
      %v5742 = vadd.f32 %v5464, %v5655
      %v5743 = vadd.f32 %v5465, %v5658
      %v5744 = vadd.f32 %v5466, %v5661
      %v5745 = vadd.f32 %v5467, %v5664
      %v5746 = vadd.f32 %v5468, %v5667
      %v5747 = vadd.f32 %v5469, %v5670
      %v5748 = vadd.f32 %v5470, %v5673
      %v5749 = vadd.f32 %v5471, %v5676
      %v5750 = vadd.f32 %v5472, %v5679
      %v5751 = vadd.f32 %v5473, %v5682
      %v5752 = vadd.f32 %v5474, %v5685
      %v5753 = vadd.f32 %v5475, %v5688
      %v5754 = vadd.f32 %v5476, %v5691
      %v5755 = vadd.f32 %v5477, %v5694
      %v5756 = vadd.f32 %v5478, %v5697
      %v5757 = vadd.f32 %v5479, %v5700
      %v5758 = vadd.f32 %v5480, %v5703
      %v5759 = vadd.f32 %v5481, %v5706
      %v5760 = vadd.f32 %v5482, %v5709
      %v5761 = vadd.f32 %v5483, %v5712
      %v5762 = vadd.f32 %v5484, %v5715
      %v5763 = vadd.f32 %v5485, %v5718
      %v5764 = vadd.f32 %v5486, %v5721
      %v5765 = vadd.f32 %v5487, %v5724
      %v5766 = vadd.f32 %v5488, %v5727
      %v5767 = vadd.f32 %v5489, %v5730
      %v5768 = vadd.f32 %v5490, %v5733
      %v5769 = vadd.f32 %v5491, %v5736
      %v5770 = vld [vmem:[%s5213 + $0x4] sm:$0xff]
      %v5771 = vld [vmem:[%s5213 + $0xc] sm:$0xff]
      %v5772 = vld [vmem:[%s5213 + $0x1c] sm:$0xff]
      %v5773 = vld [vmem:[%s5213 + $0x24] sm:$0xff]
      %v5774 = vld [vmem:[%s5213 + $0x34] sm:$0xff]
      %v5775 = vld [vmem:[%s5213 + $0x3c] sm:$0xff]
      %v5776 = vld [vmem:[%s5213 + $0x4c] sm:$0xff]
      %v5777 = vld [vmem:[%s5213 + $0x54] sm:$0xff]
      %v5778 = vld [vmem:[%s5213 + $0x64] sm:$0xff]
      %v5779 = vld [vmem:[%s5213 + $0x6c] sm:$0xff]
      %v5780 = vld [vmem:[%s5213 + $0x7c] sm:$0xff]
      %v5781 = vld [vmem:[%s5213 + $0x84] sm:$0xff]
      %v5782 = vld [vmem:[%s5213 + $0x94] sm:$0xff]
      %v5783 = vld [vmem:[%s5213 + $0x9c] sm:$0xff]
      %v5784 = vld [vmem:[%s5213 + $0xac] sm:$0xff]
      %v5785 = vld [vmem:[%s5213 + $0xb4] sm:$0xff]
      %v5786 = vld [vmem:[%s5213 + $0xc4] sm:$0xff]
      %v5787 = vld [vmem:[%s5213 + $0xcc] sm:$0xff]
      %v5788 = vld [vmem:[%s5213 + $0xdc] sm:$0xff]
      %v5789 = vld [vmem:[%s5213 + $0xe4] sm:$0xff]
      %v5790 = vld [vmem:[%s5213 + $0xf4] sm:$0xff]
      %v5791 = vld [vmem:[%s5213 + $0xfc] sm:$0xff]
      %v5792 = vld [vmem:[%s5213 + $0x10c] sm:$0xff]
      %v5793 = vld [vmem:[%s5213 + $0x114] sm:$0xff]
      %v5794 = vld [vmem:[%s5213 + $0x124] sm:$0xff]
      %v5795 = vld [vmem:[%s5213 + $0x12c] sm:$0xff]
      %v5796 = vld [vmem:[%s5213 + $0x13c] sm:$0xff]
      %v5797 = vld [vmem:[%s5213 + $0x144] sm:$0xff]
      %v5798 = vld [vmem:[%s5213 + $0x154] sm:$0xff]
      %v5799 = vld [vmem:[%s5213 + $0x15c] sm:$0xff]
      %v5800 = vld [vmem:[%s5213 + $0x16c] sm:$0xff]
      %v5801 = vld [vmem:[%s5213 + $0x174] sm:$0xff]
      %s5802 = scalar_lea.vmem %s3, 256
      %v5803 = vld [vmem:[%s5802] sm:$0xff]
      %v5804 = vld [vmem:[%s5802 + $0x8] sm:$0xff]
      %v5805 = vld [vmem:[%s5802 + $0x10] sm:$0xff]
      %v5806 = vld [vmem:[%s5802 + $0x18] sm:$0xff]
      %v5808 = vsel %vm3448, %v5770, 0
      %v5811 = vsel %vm3448, %v5771, 0
      %v5814 = vsel %vm3448, %v5772, 0
      %v5817 = vsel %vm3448, %v5773, 0
      %v5820 = vsel %vm3448, %v5774, 0
      %v5823 = vsel %vm3448, %v5775, 0
      %v5826 = vsel %vm3448, %v5776, 0
      %v5829 = vsel %vm3448, %v5777, 0
      %v5832 = vsel %vm3448, %v5778, 0
      %v5835 = vsel %vm3448, %v5779, 0
      %v5838 = vsel %vm3448, %v5780, 0
      %v5841 = vsel %vm3448, %v5781, 0
      %v5844 = vsel %vm3448, %v5782, 0
      %v5847 = vsel %vm3448, %v5783, 0
      %v5850 = vsel %vm3448, %v5784, 0
      %v5853 = vsel %vm3448, %v5785, 0
      %v5856 = vsel %vm3448, %v5786, 0
      %v5859 = vsel %vm3448, %v5787, 0
      %v5862 = vsel %vm3448, %v5788, 0
      %v5865 = vsel %vm3448, %v5789, 0
      %v5868 = vsel %vm3448, %v5790, 0
      %v5871 = vsel %vm3448, %v5791, 0
      %v5874 = vsel %vm3448, %v5792, 0
      %v5877 = vsel %vm3448, %v5793, 0
      %v5880 = vsel %vm3448, %v5794, 0
      %v5883 = vsel %vm3448, %v5795, 0
      %v5886 = vsel %vm3448, %v5796, 0
      %v5889 = vsel %vm3448, %v5797, 0
      %v5892 = vsel %vm3448, %v5798, 0
      %v5895 = vsel %vm3448, %v5799, 0
      %v5898 = vsel %vm3448, %v5800, 0
      %v5901 = vsel %vm3448, %v5801, 0
      %5903 = vmatpush.msra.mxu0 0.0
      %5904 = vmatpush.msra.mxu0 0.0
      %5905 = vmatpush.msra.mxu0 0.0
      %5906 = vmatpush.msra.mxu0 0.0
      %5907 = vmatpush.msra.mxu0 0.0
      %5908 = vmatpush.msra.mxu0 0.0
      %5909 = vmatpush.msra.mxu0 0.0
      %5910 = vmatpush.msra.mxu0 0.0
      %5911 = vmatpush.msra.mxu0 0.0
      %5912 = vmatpush.msra.mxu0 0.0
      %5913 = vmatpush.msra.mxu0 0.0
      %5914 = vmatpush.msra.mxu0 0.0
      %5915 = vmatpush.msra.mxu0 %v5806
      %5916 = vmatpush.msra.mxu0 %v5805
      %5917 = vmatpush.msra.mxu0 %v5804
      %5918 = vmatpush.msra.mxu0 %v5803
      %5919 = vmatmul.f32.gmra.mxu0 %v5808
      %v5920 = vpop.f32.mrf.mxu0
      %v5921 = vadd.f32 0.0, %v5920
      %5922 = vmatmul.f32.gmra.mxu0 %v5811
      %v5923 = vpop.f32.mrf.mxu0
      %v5924 = vadd.f32 0.0, %v5923
      %5925 = vmatmul.f32.gmra.mxu0 %v5814
      %v5926 = vpop.f32.mrf.mxu0
      %v5927 = vadd.f32 0.0, %v5926
      %5928 = vmatmul.f32.gmra.mxu0 %v5817
      %v5929 = vpop.f32.mrf.mxu0
      %v5930 = vadd.f32 0.0, %v5929
      %5931 = vmatmul.f32.gmra.mxu0 %v5820
      %v5932 = vpop.f32.mrf.mxu0
      %v5933 = vadd.f32 0.0, %v5932
      %5934 = vmatmul.f32.gmra.mxu0 %v5823
      %v5935 = vpop.f32.mrf.mxu0
      %v5936 = vadd.f32 0.0, %v5935
      %5937 = vmatmul.f32.gmra.mxu0 %v5826
      %v5938 = vpop.f32.mrf.mxu0
      %v5939 = vadd.f32 0.0, %v5938
      %5940 = vmatmul.f32.gmra.mxu0 %v5829
      %v5941 = vpop.f32.mrf.mxu0
      %v5942 = vadd.f32 0.0, %v5941
      %5943 = vmatmul.f32.gmra.mxu0 %v5832
      %v5944 = vpop.f32.mrf.mxu0
      %v5945 = vadd.f32 0.0, %v5944
      %5946 = vmatmul.f32.gmra.mxu0 %v5835
      %v5947 = vpop.f32.mrf.mxu0
      %v5948 = vadd.f32 0.0, %v5947
      %5949 = vmatmul.f32.gmra.mxu0 %v5838
      %v5950 = vpop.f32.mrf.mxu0
      %v5951 = vadd.f32 0.0, %v5950
      %5952 = vmatmul.f32.gmra.mxu0 %v5841
      %v5953 = vpop.f32.mrf.mxu0
      %v5954 = vadd.f32 0.0, %v5953
      %5955 = vmatmul.f32.gmra.mxu0 %v5844
      %v5956 = vpop.f32.mrf.mxu0
      %v5957 = vadd.f32 0.0, %v5956
      %5958 = vmatmul.f32.gmra.mxu0 %v5847
      %v5959 = vpop.f32.mrf.mxu0
      %v5960 = vadd.f32 0.0, %v5959
      %5961 = vmatmul.f32.gmra.mxu0 %v5850
      %v5962 = vpop.f32.mrf.mxu0
      %v5963 = vadd.f32 0.0, %v5962
      %5964 = vmatmul.f32.gmra.mxu0 %v5853
      %v5965 = vpop.f32.mrf.mxu0
      %v5966 = vadd.f32 0.0, %v5965
      %5967 = vmatmul.f32.gmra.mxu0 %v5856
      %v5968 = vpop.f32.mrf.mxu0
      %v5969 = vadd.f32 0.0, %v5968
      %5970 = vmatmul.f32.gmra.mxu0 %v5859
      %v5971 = vpop.f32.mrf.mxu0
      %v5972 = vadd.f32 0.0, %v5971
      %5973 = vmatmul.f32.gmra.mxu0 %v5862
      %v5974 = vpop.f32.mrf.mxu0
      %v5975 = vadd.f32 0.0, %v5974
      %5976 = vmatmul.f32.gmra.mxu0 %v5865
      %v5977 = vpop.f32.mrf.mxu0
      %v5978 = vadd.f32 0.0, %v5977
      %5979 = vmatmul.f32.gmra.mxu0 %v5868
      %v5980 = vpop.f32.mrf.mxu0
      %v5981 = vadd.f32 0.0, %v5980
      %5982 = vmatmul.f32.gmra.mxu0 %v5871
      %v5983 = vpop.f32.mrf.mxu0
      %v5984 = vadd.f32 0.0, %v5983
      %5985 = vmatmul.f32.gmra.mxu0 %v5874
      %v5986 = vpop.f32.mrf.mxu0
      %v5987 = vadd.f32 0.0, %v5986
      %5988 = vmatmul.f32.gmra.mxu0 %v5877
      %v5989 = vpop.f32.mrf.mxu0
      %v5990 = vadd.f32 0.0, %v5989
      %5991 = vmatmul.f32.gmra.mxu0 %v5880
      %v5992 = vpop.f32.mrf.mxu0
      %v5993 = vadd.f32 0.0, %v5992
      %5994 = vmatmul.f32.gmra.mxu0 %v5883
      %v5995 = vpop.f32.mrf.mxu0
      %v5996 = vadd.f32 0.0, %v5995
      %5997 = vmatmul.f32.gmra.mxu0 %v5886
      %v5998 = vpop.f32.mrf.mxu0
      %v5999 = vadd.f32 0.0, %v5998
      %6000 = vmatmul.f32.gmra.mxu0 %v5889
      %v6001 = vpop.f32.mrf.mxu0
      %v6002 = vadd.f32 0.0, %v6001
      %6003 = vmatmul.f32.gmra.mxu0 %v5892
      %v6004 = vpop.f32.mrf.mxu0
      %v6005 = vadd.f32 0.0, %v6004
      %6006 = vmatmul.f32.gmra.mxu0 %v5895
      %v6007 = vpop.f32.mrf.mxu0
      %v6008 = vadd.f32 0.0, %v6007
      %6009 = vmatmul.f32.gmra.mxu0 %v5898
      %v6010 = vpop.f32.mrf.mxu0
      %v6011 = vadd.f32 0.0, %v6010
      %6012 = vmatmul.f32.gmra.mxu0 %v5901
      %v6013 = vpop.f32.mrf.mxu0
      %v6014 = vadd.f32 0.0, %v6013
      %6015 = vdwg.mxu0
      %v6016 = vadd.f32 %v5738, %v5921
      %v6017 = vadd.f32 %v5739, %v5924
      %v6018 = vadd.f32 %v5740, %v5927
      %v6019 = vadd.f32 %v5741, %v5930
      %v6020 = vadd.f32 %v5742, %v5933
      %v6021 = vadd.f32 %v5743, %v5936
      %v6022 = vadd.f32 %v5744, %v5939
      %v6023 = vadd.f32 %v5745, %v5942
      %v6024 = vadd.f32 %v5746, %v5945
      %v6025 = vadd.f32 %v5747, %v5948
      %v6026 = vadd.f32 %v5748, %v5951
      %v6027 = vadd.f32 %v5749, %v5954
      %v6028 = vadd.f32 %v5750, %v5957
      %v6029 = vadd.f32 %v5751, %v5960
      %v6030 = vadd.f32 %v5752, %v5963
      %v6031 = vadd.f32 %v5753, %v5966
      %v6032 = vadd.f32 %v5754, %v5969
      %v6033 = vadd.f32 %v5755, %v5972
      %v6034 = vadd.f32 %v5756, %v5975
      %v6035 = vadd.f32 %v5757, %v5978
      %v6036 = vadd.f32 %v5758, %v5981
      %v6037 = vadd.f32 %v5759, %v5984
      %v6038 = vadd.f32 %v5760, %v5987
      %v6039 = vadd.f32 %v5761, %v5990
      %v6040 = vadd.f32 %v5762, %v5993
      %v6041 = vadd.f32 %v5763, %v5996
      %v6042 = vadd.f32 %v5764, %v5999
      %v6043 = vadd.f32 %v5765, %v6002
      %v6044 = vadd.f32 %v5766, %v6005
      %v6045 = vadd.f32 %v5767, %v6008
      %v6046 = vadd.f32 %v5768, %v6011
      %v6047 = vadd.f32 %v5769, %v6014
      %vm6048 = vcmp.ge.f32.partialorder %v6016, 0.0
      %vm6049 = vcmp.ge.f32.partialorder %v6017, 0.0
      %vm6050 = vcmp.ge.f32.partialorder %v6018, 0.0
      %vm6051 = vcmp.ge.f32.partialorder %v6019, 0.0
      %vm6052 = vcmp.ge.f32.partialorder %v6020, 0.0
      %vm6053 = vcmp.ge.f32.partialorder %v6021, 0.0
      %vm6054 = vcmp.ge.f32.partialorder %v6022, 0.0
      %vm6055 = vcmp.ge.f32.partialorder %v6023, 0.0
      %vm6056 = vcmp.ge.f32.partialorder %v6024, 0.0
      %vm6057 = vcmp.ge.f32.partialorder %v6025, 0.0
      %vm6058 = vcmp.ge.f32.partialorder %v6026, 0.0
      %vm6059 = vcmp.ge.f32.partialorder %v6027, 0.0
      %vm6060 = vcmp.ge.f32.partialorder %v6028, 0.0
      %vm6061 = vcmp.ge.f32.partialorder %v6029, 0.0
      %vm6062 = vcmp.ge.f32.partialorder %v6030, 0.0
      %vm6063 = vcmp.ge.f32.partialorder %v6031, 0.0
      %vm6064 = vcmp.ge.f32.partialorder %v6032, 0.0
      %vm6065 = vcmp.ge.f32.partialorder %v6033, 0.0
      %vm6066 = vcmp.ge.f32.partialorder %v6034, 0.0
      %vm6067 = vcmp.ge.f32.partialorder %v6035, 0.0
      %vm6068 = vcmp.ge.f32.partialorder %v6036, 0.0
      %vm6069 = vcmp.ge.f32.partialorder %v6037, 0.0
      %vm6070 = vcmp.ge.f32.partialorder %v6038, 0.0
      %vm6071 = vcmp.ge.f32.partialorder %v6039, 0.0
      %vm6072 = vcmp.ge.f32.partialorder %v6040, 0.0
      %vm6073 = vcmp.ge.f32.partialorder %v6041, 0.0
      %vm6074 = vcmp.ge.f32.partialorder %v6042, 0.0
      %vm6075 = vcmp.ge.f32.partialorder %v6043, 0.0
      %vm6076 = vcmp.ge.f32.partialorder %v6044, 0.0
      %vm6077 = vcmp.ge.f32.partialorder %v6045, 0.0
      %vm6078 = vcmp.ge.f32.partialorder %v6046, 0.0
      %vm6079 = vcmp.ge.f32.partialorder %v6047, 0.0
      %v6080 = vmul.f32 %v6016, 0.01
      %v6081 = vmul.f32 %v6017, 0.01
      %v6082 = vmul.f32 %v6018, 0.01
      %v6083 = vmul.f32 %v6019, 0.01
      %v6084 = vmul.f32 %v6020, 0.01
      %v6085 = vmul.f32 %v6021, 0.01
      %v6086 = vmul.f32 %v6022, 0.01
      %v6087 = vmul.f32 %v6023, 0.01
      %v6088 = vmul.f32 %v6024, 0.01
      %v6089 = vmul.f32 %v6025, 0.01
      %v6090 = vmul.f32 %v6026, 0.01
      %v6091 = vmul.f32 %v6027, 0.01
      %v6092 = vmul.f32 %v6028, 0.01
      %v6093 = vmul.f32 %v6029, 0.01
      %v6094 = vmul.f32 %v6030, 0.01
      %v6095 = vmul.f32 %v6031, 0.01
      %v6096 = vmul.f32 %v6032, 0.01
      %v6097 = vmul.f32 %v6033, 0.01
      %v6098 = vmul.f32 %v6034, 0.01
      %v6099 = vmul.f32 %v6035, 0.01
      %v6100 = vmul.f32 %v6036, 0.01
      %v6101 = vmul.f32 %v6037, 0.01
      %v6102 = vmul.f32 %v6038, 0.01
      %v6103 = vmul.f32 %v6039, 0.01
      %v6104 = vmul.f32 %v6040, 0.01
      %v6105 = vmul.f32 %v6041, 0.01
      %v6106 = vmul.f32 %v6042, 0.01
      %v6107 = vmul.f32 %v6043, 0.01
      %v6108 = vmul.f32 %v6044, 0.01
      %v6109 = vmul.f32 %v6045, 0.01
      %v6110 = vmul.f32 %v6046, 0.01
      %v6111 = vmul.f32 %v6047, 0.01
      %v6112 = vsel %vm6048, %v6016, %v6080
      %v6113 = vsel %vm6049, %v6017, %v6081
      %v6114 = vsel %vm6050, %v6018, %v6082
      %v6115 = vsel %vm6051, %v6019, %v6083
      %v6116 = vsel %vm6052, %v6020, %v6084
      %v6117 = vsel %vm6053, %v6021, %v6085
      %v6118 = vsel %vm6054, %v6022, %v6086
      %v6119 = vsel %vm6055, %v6023, %v6087
      %v6120 = vsel %vm6056, %v6024, %v6088
      %v6121 = vsel %vm6057, %v6025, %v6089
      %v6122 = vsel %vm6058, %v6026, %v6090
      %v6123 = vsel %vm6059, %v6027, %v6091
      %v6124 = vsel %vm6060, %v6028, %v6092
      %v6125 = vsel %vm6061, %v6029, %v6093
      %v6126 = vsel %vm6062, %v6030, %v6094
      %v6127 = vsel %vm6063, %v6031, %v6095
      %v6128 = vsel %vm6064, %v6032, %v6096
      %v6129 = vsel %vm6065, %v6033, %v6097
      %v6130 = vsel %vm6066, %v6034, %v6098
      %v6131 = vsel %vm6067, %v6035, %v6099
      %v6132 = vsel %vm6068, %v6036, %v6100
      %v6133 = vsel %vm6069, %v6037, %v6101
      %v6134 = vsel %vm6070, %v6038, %v6102
      %v6135 = vsel %vm6071, %v6039, %v6103
      %v6136 = vsel %vm6072, %v6040, %v6104
      %v6137 = vsel %vm6073, %v6041, %v6105
      %v6138 = vsel %vm6074, %v6042, %v6106
      %v6139 = vsel %vm6075, %v6043, %v6107
      %v6140 = vsel %vm6076, %v6044, %v6108
      %v6141 = vsel %vm6077, %v6045, %v6109
      %v6142 = vsel %vm6078, %v6046, %v6110
      %v6143 = vsel %vm6079, %v6047, %v6111
      %v6144 = vld [vmem:[%s6 + $0x7] sm:$0x1]
      %v6145 = vperm.slane %v6144, 0
      %v6146 = vmul.f32 %v6112, %v6145
      %v6147 = vmul.f32 %v6113, %v6145
      %v6148 = vmul.f32 %v6114, %v6145
      %v6149 = vmul.f32 %v6115, %v6145
      %v6150 = vmul.f32 %v6116, %v6145
      %v6151 = vmul.f32 %v6117, %v6145
      %v6152 = vmul.f32 %v6118, %v6145
      %v6153 = vmul.f32 %v6119, %v6145
      %v6154 = vmul.f32 %v6120, %v6145
      %v6155 = vmul.f32 %v6121, %v6145
      %v6156 = vmul.f32 %v6122, %v6145
      %v6157 = vmul.f32 %v6123, %v6145
      %v6158 = vmul.f32 %v6124, %v6145
      %v6159 = vmul.f32 %v6125, %v6145
      %v6160 = vmul.f32 %v6126, %v6145
      %v6161 = vmul.f32 %v6127, %v6145
      %v6162 = vmul.f32 %v6128, %v6145
      %v6163 = vmul.f32 %v6129, %v6145
      %v6164 = vmul.f32 %v6130, %v6145
      %v6165 = vmul.f32 %v6131, %v6145
      %v6166 = vmul.f32 %v6132, %v6145
      %v6167 = vmul.f32 %v6133, %v6145
      %v6168 = vmul.f32 %v6134, %v6145
      %v6169 = vmul.f32 %v6135, %v6145
      %v6170 = vmul.f32 %v6136, %v6145
      %v6171 = vmul.f32 %v6137, %v6145
      %v6172 = vmul.f32 %v6138, %v6145
      %v6173 = vmul.f32 %v6139, %v6145
      %v6174 = vmul.f32 %v6140, %v6145
      %v6175 = vmul.f32 %v6141, %v6145
      %v6176 = vmul.f32 %v6142, %v6145
      %v6177 = vmul.f32 %v6143, %v6145
      %v6178 = vld [vmem:[%s6 + $0x8] sm:$0x1]
      %v6179 = vperm.slane %v6178, 0
      %v6180 = vadd.f32 %v6146, %v6179
      %v6181 = vadd.f32 %v6147, %v6179
      %v6182 = vadd.f32 %v6148, %v6179
      %v6183 = vadd.f32 %v6149, %v6179
      %v6184 = vadd.f32 %v6150, %v6179
      %v6185 = vadd.f32 %v6151, %v6179
      %v6186 = vadd.f32 %v6152, %v6179
      %v6187 = vadd.f32 %v6153, %v6179
      %v6188 = vadd.f32 %v6154, %v6179
      %v6189 = vadd.f32 %v6155, %v6179
      %v6190 = vadd.f32 %v6156, %v6179
      %v6191 = vadd.f32 %v6157, %v6179
      %v6192 = vadd.f32 %v6158, %v6179
      %v6193 = vadd.f32 %v6159, %v6179
      %v6194 = vadd.f32 %v6160, %v6179
      %v6195 = vadd.f32 %v6161, %v6179
      %v6196 = vadd.f32 %v6162, %v6179
      %v6197 = vadd.f32 %v6163, %v6179
      %v6198 = vadd.f32 %v6164, %v6179
      %v6199 = vadd.f32 %v6165, %v6179
      %v6200 = vadd.f32 %v6166, %v6179
      %v6201 = vadd.f32 %v6167, %v6179
      %v6202 = vadd.f32 %v6168, %v6179
      %v6203 = vadd.f32 %v6169, %v6179
      %v6204 = vadd.f32 %v6170, %v6179
      %v6205 = vadd.f32 %v6171, %v6179
      %v6206 = vadd.f32 %v6172, %v6179
      %v6207 = vadd.f32 %v6173, %v6179
      %v6208 = vadd.f32 %v6174, %v6179
      %v6209 = vadd.f32 %v6175, %v6179
      %v6210 = vadd.f32 %v6176, %v6179
      %v6211 = vadd.f32 %v6177, %v6179
      %6212 = vst.msk [vmem:[#allocation4] sm:$0xff] %vm3448, 0.0
      %6213 = vst.msk [vmem:[#allocation4 + $0x8] sm:$0xff] %vm3448, 0.0
      %vm6214 = vcmask 254976
      %6215 = vst.msk [vmem:[#allocation4 + $0x10] sm:$0x3] %vm6214, 0.0
      %6216 = vst.msk [vmem:[#allocation4 + $0x18] sm:$0xff] %vm3448, 0.0
      %6217 = vst.msk [vmem:[#allocation4 + $0x20] sm:$0xff] %vm3448, 0.0
      %6218 = vst.msk [vmem:[#allocation4 + $0x28] sm:$0x3] %vm6214, 0.0
      %6219 = vst.msk [vmem:[#allocation4 + $0x30] sm:$0xff] %vm3448, 0.0
      %6220 = vst.msk [vmem:[#allocation4 + $0x38] sm:$0xff] %vm3448, 0.0
      %6221 = vst.msk [vmem:[#allocation4 + $0x40] sm:$0x3] %vm6214, 0.0
      %6222 = vst.msk [vmem:[#allocation4 + $0x48] sm:$0xff] %vm3448, 0.0
      %6223 = vst.msk [vmem:[#allocation4 + $0x50] sm:$0xff] %vm3448, 0.0
      %6224 = vst.msk [vmem:[#allocation4 + $0x58] sm:$0x3] %vm6214, 0.0
      %6225 = vst.msk [vmem:[#allocation4 + $0x60] sm:$0xff] %vm3448, 0.0
      %6226 = vst.msk [vmem:[#allocation4 + $0x68] sm:$0xff] %vm3448, 0.0
      %6227 = vst.msk [vmem:[#allocation4 + $0x70] sm:$0x3] %vm6214, 0.0
      %6228 = vst.msk [vmem:[#allocation4 + $0x78] sm:$0xff] %vm3448, 0.0
      %6229 = vst.msk [vmem:[#allocation4 + $0x80] sm:$0xff] %vm3448, 0.0
      %6230 = vst.msk [vmem:[#allocation4 + $0x88] sm:$0x3] %vm6214, 0.0
      %6231 = vst.msk [vmem:[#allocation4 + $0x90] sm:$0xff] %vm3448, 0.0
      %6232 = vst.msk [vmem:[#allocation4 + $0x98] sm:$0xff] %vm3448, 0.0
      %6233 = vst.msk [vmem:[#allocation4 + $0xa0] sm:$0x3] %vm6214, 0.0
      %6234 = vst.msk [vmem:[#allocation4 + $0xa8] sm:$0xff] %vm3448, 0.0
      %6235 = vst.msk [vmem:[#allocation4 + $0xb0] sm:$0xff] %vm3448, 0.0
      %6236 = vst.msk [vmem:[#allocation4 + $0xb8] sm:$0x3] %vm6214, 0.0
      %6237 = vst.msk [vmem:[#allocation4 + $0xc0] sm:$0xff] %vm3448, 0.0
      %6238 = vst.msk [vmem:[#allocation4 + $0xc8] sm:$0xff] %vm3448, 0.0
      %6239 = vst.msk [vmem:[#allocation4 + $0xd0] sm:$0x3] %vm6214, 0.0
      %6240 = vst.msk [vmem:[#allocation4 + $0xd8] sm:$0xff] %vm3448, 0.0
      %6241 = vst.msk [vmem:[#allocation4 + $0xe0] sm:$0xff] %vm3448, 0.0
      %6242 = vst.msk [vmem:[#allocation4 + $0xe8] sm:$0x3] %vm6214, 0.0
      %6243 = vst.msk [vmem:[#allocation4 + $0xf0] sm:$0xff] %vm3448, 0.0
      %6244 = vst.msk [vmem:[#allocation4 + $0xf8] sm:$0xff] %vm3448, 0.0
      %6245 = vst.msk [vmem:[#allocation4 + $0x100] sm:$0x3] %vm6214, 0.0
      %6246 = vst.msk [vmem:[#allocation4 + $0x108] sm:$0xff] %vm3448, 0.0
      %6247 = vst.msk [vmem:[#allocation4 + $0x110] sm:$0xff] %vm3448, 0.0
      %6248 = vst.msk [vmem:[#allocation4 + $0x118] sm:$0x3] %vm6214, 0.0
      %6249 = vst.msk [vmem:[#allocation4 + $0x120] sm:$0xff] %vm3448, 0.0
      %6250 = vst.msk [vmem:[#allocation4 + $0x128] sm:$0xff] %vm3448, 0.0
      %6251 = vst.msk [vmem:[#allocation4 + $0x130] sm:$0x3] %vm6214, 0.0
      %6252 = vst.msk [vmem:[#allocation4 + $0x138] sm:$0xff] %vm3448, 0.0
      %6253 = vst.msk [vmem:[#allocation4 + $0x140] sm:$0xff] %vm3448, 0.0
      %6254 = vst.msk [vmem:[#allocation4 + $0x148] sm:$0x3] %vm6214, 0.0
      %6255 = vst.msk [vmem:[#allocation4 + $0x150] sm:$0xff] %vm3448, 0.0
      %6256 = vst.msk [vmem:[#allocation4 + $0x158] sm:$0xff] %vm3448, 0.0
      %6257 = vst.msk [vmem:[#allocation4 + $0x160] sm:$0x3] %vm6214, 0.0
      %6258 = vst.msk [vmem:[#allocation4 + $0x168] sm:$0xff] %vm3448, 0.0
      %6259 = vst.msk [vmem:[#allocation4 + $0x170] sm:$0xff] %vm3448, 0.0
      %6260 = vst.msk [vmem:[#allocation4 + $0x178] sm:$0x3] %vm6214, 0.0
      %6261 = vst.msk [vmem:[#allocation4 + $0x180] sm:$0xff] %vm3448, 0.0
      %6262 = vst.msk [vmem:[#allocation4 + $0x188] sm:$0xff] %vm3448, 0.0
      %6263 = vst.msk [vmem:[#allocation4 + $0x190] sm:$0x3] %vm6214, 0.0
      %6264 = vst.msk [vmem:[#allocation4 + $0x198] sm:$0xff] %vm3448, 0.0
      %6265 = vst.msk [vmem:[#allocation4 + $0x1a0] sm:$0xff] %vm3448, 0.0
      %6266 = vst.msk [vmem:[#allocation4 + $0x1a8] sm:$0x3] %vm6214, 0.0
      %s6267 = scalar_lea.vmem [#allocation4], 24
      %6268 = vst.msk [vmem:[%s6267 + $0x1] sm:$0xff] %vm3448, %v6180
      %6269 = vst.msk [vmem:[%s6267 + $0x9] sm:$0xff] %vm3448, %v6181
      %6270 = vst.msk [vmem:[%s6267 + $0x19] sm:$0xff] %vm3448, %v6182
      %6271 = vst.msk [vmem:[%s6267 + $0x21] sm:$0xff] %vm3448, %v6183
      %6272 = vst.msk [vmem:[%s6267 + $0x31] sm:$0xff] %vm3448, %v6184
      %6273 = vst.msk [vmem:[%s6267 + $0x39] sm:$0xff] %vm3448, %v6185
      %6274 = vst.msk [vmem:[%s6267 + $0x49] sm:$0xff] %vm3448, %v6186
      %6275 = vst.msk [vmem:[%s6267 + $0x51] sm:$0xff] %vm3448, %v6187
      %6276 = vst.msk [vmem:[%s6267 + $0x61] sm:$0xff] %vm3448, %v6188
      %6277 = vst.msk [vmem:[%s6267 + $0x69] sm:$0xff] %vm3448, %v6189
      %6278 = vst.msk [vmem:[%s6267 + $0x79] sm:$0xff] %vm3448, %v6190
      %6279 = vst.msk [vmem:[%s6267 + $0x81] sm:$0xff] %vm3448, %v6191
      %6280 = vst.msk [vmem:[%s6267 + $0x91] sm:$0xff] %vm3448, %v6192
      %6281 = vst.msk [vmem:[%s6267 + $0x99] sm:$0xff] %vm3448, %v6193
      %6282 = vst.msk [vmem:[%s6267 + $0xa9] sm:$0xff] %vm3448, %v6194
      %6283 = vst.msk [vmem:[%s6267 + $0xb1] sm:$0xff] %vm3448, %v6195
      %6284 = vst.msk [vmem:[%s6267 + $0xc1] sm:$0xff] %vm3448, %v6196
      %6285 = vst.msk [vmem:[%s6267 + $0xc9] sm:$0xff] %vm3448, %v6197
      %6286 = vst.msk [vmem:[%s6267 + $0xd9] sm:$0xff] %vm3448, %v6198
      %6287 = vst.msk [vmem:[%s6267 + $0xe1] sm:$0xff] %vm3448, %v6199
      %6288 = vst.msk [vmem:[%s6267 + $0xf1] sm:$0xff] %vm3448, %v6200
      %6289 = vst.msk [vmem:[%s6267 + $0xf9] sm:$0xff] %vm3448, %v6201
      %6290 = vst.msk [vmem:[%s6267 + $0x109] sm:$0xff] %vm3448, %v6202
      %6291 = vst.msk [vmem:[%s6267 + $0x111] sm:$0xff] %vm3448, %v6203
      %6292 = vst.msk [vmem:[%s6267 + $0x121] sm:$0xff] %vm3448, %v6204
      %6293 = vst.msk [vmem:[%s6267 + $0x129] sm:$0xff] %vm3448, %v6205
      %6294 = vst.msk [vmem:[%s6267 + $0x139] sm:$0xff] %vm3448, %v6206
      %6295 = vst.msk [vmem:[%s6267 + $0x141] sm:$0xff] %vm3448, %v6207
      %6296 = vst.msk [vmem:[%s6267 + $0x151] sm:$0xff] %vm3448, %v6208
      %6297 = vst.msk [vmem:[%s6267 + $0x159] sm:$0xff] %vm3448, %v6209
      %6298 = vst.msk [vmem:[%s6267 + $0x169] sm:$0xff] %vm3448, %v6210
      %6299 = vst.msk [vmem:[%s6267 + $0x171] sm:$0xff] %vm3448, %v6211
      %v6300 = vld [vmem:[%s6 + $0x3] sm:$0x1]
      %v6301 = vperm.slane %v6300, 0
      %v6302 = vadd.f32 %v6301, 0.0
      %v6303 = vld [vmem:[#allocation4] sm:$0xff]
      %v6304 = vld [vmem:[#allocation4 + $0x8] sm:$0xff]
      %v6305 = vld [vmem:[#allocation4 + $0x18] sm:$0xff]
      %v6306 = vld [vmem:[#allocation4 + $0x20] sm:$0xff]
      %v6307 = vld [vmem:[#allocation4 + $0x30] sm:$0xff]
      %v6308 = vld [vmem:[#allocation4 + $0x38] sm:$0xff]
      %v6309 = vld [vmem:[#allocation4 + $0x48] sm:$0xff]
      %v6310 = vld [vmem:[#allocation4 + $0x50] sm:$0xff]
      %v6311 = vld [vmem:[#allocation4 + $0x60] sm:$0xff]
      %v6312 = vld [vmem:[#allocation4 + $0x68] sm:$0xff]
      %v6313 = vld [vmem:[#allocation4 + $0x78] sm:$0xff]
      %v6314 = vld [vmem:[#allocation4 + $0x80] sm:$0xff]
      %v6315 = vld [vmem:[#allocation4 + $0x90] sm:$0xff]
      %v6316 = vld [vmem:[#allocation4 + $0x98] sm:$0xff]
      %v6317 = vld [vmem:[#allocation4 + $0xa8] sm:$0xff]
      %v6318 = vld [vmem:[#allocation4 + $0xb0] sm:$0xff]
      %v6319 = vld [vmem:[#allocation4 + $0xc0] sm:$0xff]
      %v6320 = vld [vmem:[#allocation4 + $0xc8] sm:$0xff]
      %v6321 = vld [vmem:[#allocation4 + $0xd8] sm:$0xff]
      %v6322 = vld [vmem:[#allocation4 + $0xe0] sm:$0xff]
      %v6323 = vld [vmem:[#allocation4 + $0xf0] sm:$0xff]
      %v6324 = vld [vmem:[#allocation4 + $0xf8] sm:$0xff]
      %v6325 = vld [vmem:[#allocation4 + $0x108] sm:$0xff]
      %v6326 = vld [vmem:[#allocation4 + $0x110] sm:$0xff]
      %v6327 = vld [vmem:[#allocation4 + $0x120] sm:$0xff]
      %v6328 = vld [vmem:[#allocation4 + $0x128] sm:$0xff]
      %v6329 = vld [vmem:[#allocation4 + $0x138] sm:$0xff]
      %v6330 = vld [vmem:[#allocation4 + $0x140] sm:$0xff]
      %v6331 = vld [vmem:[#allocation4 + $0x150] sm:$0xff]
      %v6332 = vld [vmem:[#allocation4 + $0x158] sm:$0xff]
      %v6333 = vld [vmem:[#allocation4 + $0x168] sm:$0xff]
      %v6334 = vld [vmem:[#allocation4 + $0x170] sm:$0xff]
      %v6335 = vld [vmem:[%s4] sm:$0xff]
      %v6336 = vld [vmem:[%s4 + $0x8] sm:$0xff]
      %v6337 = vld [vmem:[%s4 + $0x10] sm:$0xff]
      %v6338 = vld [vmem:[%s4 + $0x18] sm:$0xff]
      %v6340 = vsel %vm3448, %v6303, 0
      %v6343 = vsel %vm3448, %v6304, 0
      %v6346 = vsel %vm3448, %v6305, 0
      %v6349 = vsel %vm3448, %v6306, 0
      %v6352 = vsel %vm3448, %v6307, 0
      %v6355 = vsel %vm3448, %v6308, 0
      %v6358 = vsel %vm3448, %v6309, 0
      %v6361 = vsel %vm3448, %v6310, 0
      %v6364 = vsel %vm3448, %v6311, 0
      %v6367 = vsel %vm3448, %v6312, 0
      %v6370 = vsel %vm3448, %v6313, 0
      %v6373 = vsel %vm3448, %v6314, 0
      %v6376 = vsel %vm3448, %v6315, 0
      %v6379 = vsel %vm3448, %v6316, 0
      %v6382 = vsel %vm3448, %v6317, 0
      %v6385 = vsel %vm3448, %v6318, 0
      %v6388 = vsel %vm3448, %v6319, 0
      %v6391 = vsel %vm3448, %v6320, 0
      %v6394 = vsel %vm3448, %v6321, 0
      %v6397 = vsel %vm3448, %v6322, 0
      %v6400 = vsel %vm3448, %v6323, 0
      %v6403 = vsel %vm3448, %v6324, 0
      %v6406 = vsel %vm3448, %v6325, 0
      %v6409 = vsel %vm3448, %v6326, 0
      %v6412 = vsel %vm3448, %v6327, 0
      %v6415 = vsel %vm3448, %v6328, 0
      %v6418 = vsel %vm3448, %v6329, 0
      %v6421 = vsel %vm3448, %v6330, 0
      %v6424 = vsel %vm3448, %v6331, 0
      %v6427 = vsel %vm3448, %v6332, 0
      %v6430 = vsel %vm3448, %v6333, 0
      %v6433 = vsel %vm3448, %v6334, 0
      %6435 = vmatpush.msra.mxu0 0.0
      %6436 = vmatpush.msra.mxu0 0.0
      %6437 = vmatpush.msra.mxu0 0.0
      %6438 = vmatpush.msra.mxu0 0.0
      %6439 = vmatpush.msra.mxu0 0.0
      %6440 = vmatpush.msra.mxu0 0.0
      %6441 = vmatpush.msra.mxu0 0.0
      %6442 = vmatpush.msra.mxu0 0.0
      %6443 = vmatpush.msra.mxu0 0.0
      %6444 = vmatpush.msra.mxu0 0.0
      %6445 = vmatpush.msra.mxu0 0.0
      %6446 = vmatpush.msra.mxu0 0.0
      %6447 = vmatpush.msra.mxu0 %v6338
      %6448 = vmatpush.msra.mxu0 %v6337
      %6449 = vmatpush.msra.mxu0 %v6336
      %6450 = vmatpush.msra.mxu0 %v6335
      %6451 = vmatmul.f32.gmra.mxu0 %v6340
      %v6452 = vpop.f32.mrf.mxu0
      %v6453 = vadd.f32 0.0, %v6452
      %6454 = vmatmul.f32.gmra.mxu0 %v6343
      %v6455 = vpop.f32.mrf.mxu0
      %v6456 = vadd.f32 0.0, %v6455
      %6457 = vmatmul.f32.gmra.mxu0 %v6346
      %v6458 = vpop.f32.mrf.mxu0
      %v6459 = vadd.f32 0.0, %v6458
      %6460 = vmatmul.f32.gmra.mxu0 %v6349
      %v6461 = vpop.f32.mrf.mxu0
      %v6462 = vadd.f32 0.0, %v6461
      %6463 = vmatmul.f32.gmra.mxu0 %v6352
      %v6464 = vpop.f32.mrf.mxu0
      %v6465 = vadd.f32 0.0, %v6464
      %6466 = vmatmul.f32.gmra.mxu0 %v6355
      %v6467 = vpop.f32.mrf.mxu0
      %v6468 = vadd.f32 0.0, %v6467
      %6469 = vmatmul.f32.gmra.mxu0 %v6358
      %v6470 = vpop.f32.mrf.mxu0
      %v6471 = vadd.f32 0.0, %v6470
      %6472 = vmatmul.f32.gmra.mxu0 %v6361
      %v6473 = vpop.f32.mrf.mxu0
      %v6474 = vadd.f32 0.0, %v6473
      %6475 = vmatmul.f32.gmra.mxu0 %v6364
      %v6476 = vpop.f32.mrf.mxu0
      %v6477 = vadd.f32 0.0, %v6476
      %6478 = vmatmul.f32.gmra.mxu0 %v6367
      %v6479 = vpop.f32.mrf.mxu0
      %v6480 = vadd.f32 0.0, %v6479
      %6481 = vmatmul.f32.gmra.mxu0 %v6370
      %v6482 = vpop.f32.mrf.mxu0
      %v6483 = vadd.f32 0.0, %v6482
      %6484 = vmatmul.f32.gmra.mxu0 %v6373
      %v6485 = vpop.f32.mrf.mxu0
      %v6486 = vadd.f32 0.0, %v6485
      %6487 = vmatmul.f32.gmra.mxu0 %v6376
      %v6488 = vpop.f32.mrf.mxu0
      %v6489 = vadd.f32 0.0, %v6488
      %6490 = vmatmul.f32.gmra.mxu0 %v6379
      %v6491 = vpop.f32.mrf.mxu0
      %v6492 = vadd.f32 0.0, %v6491
      %6493 = vmatmul.f32.gmra.mxu0 %v6382
      %v6494 = vpop.f32.mrf.mxu0
      %v6495 = vadd.f32 0.0, %v6494
      %6496 = vmatmul.f32.gmra.mxu0 %v6385
      %v6497 = vpop.f32.mrf.mxu0
      %v6498 = vadd.f32 0.0, %v6497
      %6499 = vmatmul.f32.gmra.mxu0 %v6388
      %v6500 = vpop.f32.mrf.mxu0
      %v6501 = vadd.f32 0.0, %v6500
      %6502 = vmatmul.f32.gmra.mxu0 %v6391
      %v6503 = vpop.f32.mrf.mxu0
      %v6504 = vadd.f32 0.0, %v6503
      %6505 = vmatmul.f32.gmra.mxu0 %v6394
      %v6506 = vpop.f32.mrf.mxu0
      %v6507 = vadd.f32 0.0, %v6506
      %6508 = vmatmul.f32.gmra.mxu0 %v6397
      %v6509 = vpop.f32.mrf.mxu0
      %v6510 = vadd.f32 0.0, %v6509
      %6511 = vmatmul.f32.gmra.mxu0 %v6400
      %v6512 = vpop.f32.mrf.mxu0
      %v6513 = vadd.f32 0.0, %v6512
      %6514 = vmatmul.f32.gmra.mxu0 %v6403
      %v6515 = vpop.f32.mrf.mxu0
      %v6516 = vadd.f32 0.0, %v6515
      %6517 = vmatmul.f32.gmra.mxu0 %v6406
      %v6518 = vpop.f32.mrf.mxu0
      %v6519 = vadd.f32 0.0, %v6518
      %6520 = vmatmul.f32.gmra.mxu0 %v6409
      %v6521 = vpop.f32.mrf.mxu0
      %v6522 = vadd.f32 0.0, %v6521
      %6523 = vmatmul.f32.gmra.mxu0 %v6412
      %v6524 = vpop.f32.mrf.mxu0
      %v6525 = vadd.f32 0.0, %v6524
      %6526 = vmatmul.f32.gmra.mxu0 %v6415
      %v6527 = vpop.f32.mrf.mxu0
      %v6528 = vadd.f32 0.0, %v6527
      %6529 = vmatmul.f32.gmra.mxu0 %v6418
      %v6530 = vpop.f32.mrf.mxu0
      %v6531 = vadd.f32 0.0, %v6530
      %6532 = vmatmul.f32.gmra.mxu0 %v6421
      %v6533 = vpop.f32.mrf.mxu0
      %v6534 = vadd.f32 0.0, %v6533
      %6535 = vmatmul.f32.gmra.mxu0 %v6424
      %v6536 = vpop.f32.mrf.mxu0
      %v6537 = vadd.f32 0.0, %v6536
      %6538 = vmatmul.f32.gmra.mxu0 %v6427
      %v6539 = vpop.f32.mrf.mxu0
      %v6540 = vadd.f32 0.0, %v6539
      %6541 = vmatmul.f32.gmra.mxu0 %v6430
      %v6542 = vpop.f32.mrf.mxu0
      %v6543 = vadd.f32 0.0, %v6542
      %6544 = vmatmul.f32.gmra.mxu0 %v6433
      %v6545 = vpop.f32.mrf.mxu0
      %v6546 = vadd.f32 0.0, %v6545
      %6547 = vdwg.mxu0
      %v6548 = vadd.f32 %v6302, %v6453
      %v6549 = vadd.f32 %v6302, %v6456
      %v6550 = vadd.f32 %v6302, %v6459
      %v6551 = vadd.f32 %v6302, %v6462
      %v6552 = vadd.f32 %v6302, %v6465
      %v6553 = vadd.f32 %v6302, %v6468
      %v6554 = vadd.f32 %v6302, %v6471
      %v6555 = vadd.f32 %v6302, %v6474
      %v6556 = vadd.f32 %v6302, %v6477
      %v6557 = vadd.f32 %v6302, %v6480
      %v6558 = vadd.f32 %v6302, %v6483
      %v6559 = vadd.f32 %v6302, %v6486
      %v6560 = vadd.f32 %v6302, %v6489
      %v6561 = vadd.f32 %v6302, %v6492
      %v6562 = vadd.f32 %v6302, %v6495
      %v6563 = vadd.f32 %v6302, %v6498
      %v6564 = vadd.f32 %v6302, %v6501
      %v6565 = vadd.f32 %v6302, %v6504
      %v6566 = vadd.f32 %v6302, %v6507
      %v6567 = vadd.f32 %v6302, %v6510
      %v6568 = vadd.f32 %v6302, %v6513
      %v6569 = vadd.f32 %v6302, %v6516
      %v6570 = vadd.f32 %v6302, %v6519
      %v6571 = vadd.f32 %v6302, %v6522
      %v6572 = vadd.f32 %v6302, %v6525
      %v6573 = vadd.f32 %v6302, %v6528
      %v6574 = vadd.f32 %v6302, %v6531
      %v6575 = vadd.f32 %v6302, %v6534
      %v6576 = vadd.f32 %v6302, %v6537
      %v6577 = vadd.f32 %v6302, %v6540
      %v6578 = vadd.f32 %v6302, %v6543
      %v6579 = vadd.f32 %v6302, %v6546
      %v6580 = vld [vmem:[#allocation4 + $0x2] sm:$0xff]
      %v6581 = vld [vmem:[#allocation4 + $0xa] sm:$0xff]
      %v6582 = vld [vmem:[#allocation4 + $0x1a] sm:$0xff]
      %v6583 = vld [vmem:[#allocation4 + $0x22] sm:$0xff]
      %v6584 = vld [vmem:[#allocation4 + $0x32] sm:$0xff]
      %v6585 = vld [vmem:[#allocation4 + $0x3a] sm:$0xff]
      %v6586 = vld [vmem:[#allocation4 + $0x4a] sm:$0xff]
      %v6587 = vld [vmem:[#allocation4 + $0x52] sm:$0xff]
      %v6588 = vld [vmem:[#allocation4 + $0x62] sm:$0xff]
      %v6589 = vld [vmem:[#allocation4 + $0x6a] sm:$0xff]
      %v6590 = vld [vmem:[#allocation4 + $0x7a] sm:$0xff]
      %v6591 = vld [vmem:[#allocation4 + $0x82] sm:$0xff]
      %v6592 = vld [vmem:[#allocation4 + $0x92] sm:$0xff]
      %v6593 = vld [vmem:[#allocation4 + $0x9a] sm:$0xff]
      %v6594 = vld [vmem:[#allocation4 + $0xaa] sm:$0xff]
      %v6595 = vld [vmem:[#allocation4 + $0xb2] sm:$0xff]
      %v6596 = vld [vmem:[#allocation4 + $0xc2] sm:$0xff]
      %v6597 = vld [vmem:[#allocation4 + $0xca] sm:$0xff]
      %v6598 = vld [vmem:[#allocation4 + $0xda] sm:$0xff]
      %v6599 = vld [vmem:[#allocation4 + $0xe2] sm:$0xff]
      %v6600 = vld [vmem:[#allocation4 + $0xf2] sm:$0xff]
      %v6601 = vld [vmem:[#allocation4 + $0xfa] sm:$0xff]
      %v6602 = vld [vmem:[#allocation4 + $0x10a] sm:$0xff]
      %v6603 = vld [vmem:[#allocation4 + $0x112] sm:$0xff]
      %v6604 = vld [vmem:[#allocation4 + $0x122] sm:$0xff]
      %v6605 = vld [vmem:[#allocation4 + $0x12a] sm:$0xff]
      %v6606 = vld [vmem:[#allocation4 + $0x13a] sm:$0xff]
      %v6607 = vld [vmem:[#allocation4 + $0x142] sm:$0xff]
      %v6608 = vld [vmem:[#allocation4 + $0x152] sm:$0xff]
      %v6609 = vld [vmem:[#allocation4 + $0x15a] sm:$0xff]
      %v6610 = vld [vmem:[#allocation4 + $0x16a] sm:$0xff]
      %v6611 = vld [vmem:[#allocation4 + $0x172] sm:$0xff]
      %s6612 = scalar_lea.vmem %s4, 32
      %v6613 = vld [vmem:[%s6612] sm:$0xff]
      %v6614 = vld [vmem:[%s6612 + $0x8] sm:$0xff]
      %v6615 = vld [vmem:[%s6612 + $0x10] sm:$0xff]
      %v6616 = vld [vmem:[%s6612 + $0x18] sm:$0xff]
      %v6618 = vsel %vm3448, %v6580, 0
      %v6621 = vsel %vm3448, %v6581, 0
      %v6624 = vsel %vm3448, %v6582, 0
      %v6627 = vsel %vm3448, %v6583, 0
      %v6630 = vsel %vm3448, %v6584, 0
      %v6633 = vsel %vm3448, %v6585, 0
      %v6636 = vsel %vm3448, %v6586, 0
      %v6639 = vsel %vm3448, %v6587, 0
      %v6642 = vsel %vm3448, %v6588, 0
      %v6645 = vsel %vm3448, %v6589, 0
      %v6648 = vsel %vm3448, %v6590, 0
      %v6651 = vsel %vm3448, %v6591, 0
      %v6654 = vsel %vm3448, %v6592, 0
      %v6657 = vsel %vm3448, %v6593, 0
      %v6660 = vsel %vm3448, %v6594, 0
      %v6663 = vsel %vm3448, %v6595, 0
      %v6666 = vsel %vm3448, %v6596, 0
      %v6669 = vsel %vm3448, %v6597, 0
      %v6672 = vsel %vm3448, %v6598, 0
      %v6675 = vsel %vm3448, %v6599, 0
      %v6678 = vsel %vm3448, %v6600, 0
      %v6681 = vsel %vm3448, %v6601, 0
      %v6684 = vsel %vm3448, %v6602, 0
      %v6687 = vsel %vm3448, %v6603, 0
      %v6690 = vsel %vm3448, %v6604, 0
      %v6693 = vsel %vm3448, %v6605, 0
      %v6696 = vsel %vm3448, %v6606, 0
      %v6699 = vsel %vm3448, %v6607, 0
      %v6702 = vsel %vm3448, %v6608, 0
      %v6705 = vsel %vm3448, %v6609, 0
      %v6708 = vsel %vm3448, %v6610, 0
      %v6711 = vsel %vm3448, %v6611, 0
      %6713 = vmatpush.msra.mxu0 0.0
      %6714 = vmatpush.msra.mxu0 0.0
      %6715 = vmatpush.msra.mxu0 0.0
      %6716 = vmatpush.msra.mxu0 0.0
      %6717 = vmatpush.msra.mxu0 0.0
      %6718 = vmatpush.msra.mxu0 0.0
      %6719 = vmatpush.msra.mxu0 0.0
      %6720 = vmatpush.msra.mxu0 0.0
      %6721 = vmatpush.msra.mxu0 0.0
      %6722 = vmatpush.msra.mxu0 0.0
      %6723 = vmatpush.msra.mxu0 0.0
      %6724 = vmatpush.msra.mxu0 0.0
      %6725 = vmatpush.msra.mxu0 %v6616
      %6726 = vmatpush.msra.mxu0 %v6615
      %6727 = vmatpush.msra.mxu0 %v6614
      %6728 = vmatpush.msra.mxu0 %v6613
      %6729 = vmatmul.f32.gmra.mxu0 %v6618
      %v6730 = vpop.f32.mrf.mxu0
      %v6731 = vadd.f32 0.0, %v6730
      %6732 = vmatmul.f32.gmra.mxu0 %v6621
      %v6733 = vpop.f32.mrf.mxu0
      %v6734 = vadd.f32 0.0, %v6733
      %6735 = vmatmul.f32.gmra.mxu0 %v6624
      %v6736 = vpop.f32.mrf.mxu0
      %v6737 = vadd.f32 0.0, %v6736
      %6738 = vmatmul.f32.gmra.mxu0 %v6627
      %v6739 = vpop.f32.mrf.mxu0
      %v6740 = vadd.f32 0.0, %v6739
      %6741 = vmatmul.f32.gmra.mxu0 %v6630
      %v6742 = vpop.f32.mrf.mxu0
      %v6743 = vadd.f32 0.0, %v6742
      %6744 = vmatmul.f32.gmra.mxu0 %v6633
      %v6745 = vpop.f32.mrf.mxu0
      %v6746 = vadd.f32 0.0, %v6745
      %6747 = vmatmul.f32.gmra.mxu0 %v6636
      %v6748 = vpop.f32.mrf.mxu0
      %v6749 = vadd.f32 0.0, %v6748
      %6750 = vmatmul.f32.gmra.mxu0 %v6639
      %v6751 = vpop.f32.mrf.mxu0
      %v6752 = vadd.f32 0.0, %v6751
      %6753 = vmatmul.f32.gmra.mxu0 %v6642
      %v6754 = vpop.f32.mrf.mxu0
      %v6755 = vadd.f32 0.0, %v6754
      %6756 = vmatmul.f32.gmra.mxu0 %v6645
      %v6757 = vpop.f32.mrf.mxu0
      %v6758 = vadd.f32 0.0, %v6757
      %6759 = vmatmul.f32.gmra.mxu0 %v6648
      %v6760 = vpop.f32.mrf.mxu0
      %v6761 = vadd.f32 0.0, %v6760
      %6762 = vmatmul.f32.gmra.mxu0 %v6651
      %v6763 = vpop.f32.mrf.mxu0
      %v6764 = vadd.f32 0.0, %v6763
      %6765 = vmatmul.f32.gmra.mxu0 %v6654
      %v6766 = vpop.f32.mrf.mxu0
      %v6767 = vadd.f32 0.0, %v6766
      %6768 = vmatmul.f32.gmra.mxu0 %v6657
      %v6769 = vpop.f32.mrf.mxu0
      %v6770 = vadd.f32 0.0, %v6769
      %6771 = vmatmul.f32.gmra.mxu0 %v6660
      %v6772 = vpop.f32.mrf.mxu0
      %v6773 = vadd.f32 0.0, %v6772
      %6774 = vmatmul.f32.gmra.mxu0 %v6663
      %v6775 = vpop.f32.mrf.mxu0
      %v6776 = vadd.f32 0.0, %v6775
      %6777 = vmatmul.f32.gmra.mxu0 %v6666
      %v6778 = vpop.f32.mrf.mxu0
      %v6779 = vadd.f32 0.0, %v6778
      %6780 = vmatmul.f32.gmra.mxu0 %v6669
      %v6781 = vpop.f32.mrf.mxu0
      %v6782 = vadd.f32 0.0, %v6781
      %6783 = vmatmul.f32.gmra.mxu0 %v6672
      %v6784 = vpop.f32.mrf.mxu0
      %v6785 = vadd.f32 0.0, %v6784
      %6786 = vmatmul.f32.gmra.mxu0 %v6675
      %v6787 = vpop.f32.mrf.mxu0
      %v6788 = vadd.f32 0.0, %v6787
      %6789 = vmatmul.f32.gmra.mxu0 %v6678
      %v6790 = vpop.f32.mrf.mxu0
      %v6791 = vadd.f32 0.0, %v6790
      %6792 = vmatmul.f32.gmra.mxu0 %v6681
      %v6793 = vpop.f32.mrf.mxu0
      %v6794 = vadd.f32 0.0, %v6793
      %6795 = vmatmul.f32.gmra.mxu0 %v6684
      %v6796 = vpop.f32.mrf.mxu0
      %v6797 = vadd.f32 0.0, %v6796
      %6798 = vmatmul.f32.gmra.mxu0 %v6687
      %v6799 = vpop.f32.mrf.mxu0
      %v6800 = vadd.f32 0.0, %v6799
      %6801 = vmatmul.f32.gmra.mxu0 %v6690
      %v6802 = vpop.f32.mrf.mxu0
      %v6803 = vadd.f32 0.0, %v6802
      %6804 = vmatmul.f32.gmra.mxu0 %v6693
      %v6805 = vpop.f32.mrf.mxu0
      %v6806 = vadd.f32 0.0, %v6805
      %6807 = vmatmul.f32.gmra.mxu0 %v6696
      %v6808 = vpop.f32.mrf.mxu0
      %v6809 = vadd.f32 0.0, %v6808
      %6810 = vmatmul.f32.gmra.mxu0 %v6699
      %v6811 = vpop.f32.mrf.mxu0
      %v6812 = vadd.f32 0.0, %v6811
      %6813 = vmatmul.f32.gmra.mxu0 %v6702
      %v6814 = vpop.f32.mrf.mxu0
      %v6815 = vadd.f32 0.0, %v6814
      %6816 = vmatmul.f32.gmra.mxu0 %v6705
      %v6817 = vpop.f32.mrf.mxu0
      %v6818 = vadd.f32 0.0, %v6817
      %6819 = vmatmul.f32.gmra.mxu0 %v6708
      %v6820 = vpop.f32.mrf.mxu0
      %v6821 = vadd.f32 0.0, %v6820
      %6822 = vmatmul.f32.gmra.mxu0 %v6711
      %v6823 = vpop.f32.mrf.mxu0
      %v6824 = vadd.f32 0.0, %v6823
      %6825 = vdwg.mxu0
      %v6826 = vadd.f32 %v6548, %v6731
      %v6827 = vadd.f32 %v6549, %v6734
      %v6828 = vadd.f32 %v6550, %v6737
      %v6829 = vadd.f32 %v6551, %v6740
      %v6830 = vadd.f32 %v6552, %v6743
      %v6831 = vadd.f32 %v6553, %v6746
      %v6832 = vadd.f32 %v6554, %v6749
      %v6833 = vadd.f32 %v6555, %v6752
      %v6834 = vadd.f32 %v6556, %v6755
      %v6835 = vadd.f32 %v6557, %v6758
      %v6836 = vadd.f32 %v6558, %v6761
      %v6837 = vadd.f32 %v6559, %v6764
      %v6838 = vadd.f32 %v6560, %v6767
      %v6839 = vadd.f32 %v6561, %v6770
      %v6840 = vadd.f32 %v6562, %v6773
      %v6841 = vadd.f32 %v6563, %v6776
      %v6842 = vadd.f32 %v6564, %v6779
      %v6843 = vadd.f32 %v6565, %v6782
      %v6844 = vadd.f32 %v6566, %v6785
      %v6845 = vadd.f32 %v6567, %v6788
      %v6846 = vadd.f32 %v6568, %v6791
      %v6847 = vadd.f32 %v6569, %v6794
      %v6848 = vadd.f32 %v6570, %v6797
      %v6849 = vadd.f32 %v6571, %v6800
      %v6850 = vadd.f32 %v6572, %v6803
      %v6851 = vadd.f32 %v6573, %v6806
      %v6852 = vadd.f32 %v6574, %v6809
      %v6853 = vadd.f32 %v6575, %v6812
      %v6854 = vadd.f32 %v6576, %v6815
      %v6855 = vadd.f32 %v6577, %v6818
      %v6856 = vadd.f32 %v6578, %v6821
      %v6857 = vadd.f32 %v6579, %v6824
      %s6858 = scalar_lea.vmem [#allocation4], 48
      %v6859 = vld [vmem:[%s6858] sm:$0xff]
      %v6860 = vld [vmem:[%s6858 + $0x8] sm:$0xff]
      %v6861 = vld [vmem:[%s6858 + $0x18] sm:$0xff]
      %v6862 = vld [vmem:[%s6858 + $0x20] sm:$0xff]
      %v6863 = vld [vmem:[%s6858 + $0x30] sm:$0xff]
      %v6864 = vld [vmem:[%s6858 + $0x38] sm:$0xff]
      %v6865 = vld [vmem:[%s6858 + $0x48] sm:$0xff]
      %v6866 = vld [vmem:[%s6858 + $0x50] sm:$0xff]
      %v6867 = vld [vmem:[%s6858 + $0x60] sm:$0xff]
      %v6868 = vld [vmem:[%s6858 + $0x68] sm:$0xff]
      %v6869 = vld [vmem:[%s6858 + $0x78] sm:$0xff]
      %v6870 = vld [vmem:[%s6858 + $0x80] sm:$0xff]
      %v6871 = vld [vmem:[%s6858 + $0x90] sm:$0xff]
      %v6872 = vld [vmem:[%s6858 + $0x98] sm:$0xff]
      %v6873 = vld [vmem:[%s6858 + $0xa8] sm:$0xff]
      %v6874 = vld [vmem:[%s6858 + $0xb0] sm:$0xff]
      %v6875 = vld [vmem:[%s6858 + $0xc0] sm:$0xff]
      %v6876 = vld [vmem:[%s6858 + $0xc8] sm:$0xff]
      %v6877 = vld [vmem:[%s6858 + $0xd8] sm:$0xff]
      %v6878 = vld [vmem:[%s6858 + $0xe0] sm:$0xff]
      %v6879 = vld [vmem:[%s6858 + $0xf0] sm:$0xff]
      %v6880 = vld [vmem:[%s6858 + $0xf8] sm:$0xff]
      %v6881 = vld [vmem:[%s6858 + $0x108] sm:$0xff]
      %v6882 = vld [vmem:[%s6858 + $0x110] sm:$0xff]
      %v6883 = vld [vmem:[%s6858 + $0x120] sm:$0xff]
      %v6884 = vld [vmem:[%s6858 + $0x128] sm:$0xff]
      %v6885 = vld [vmem:[%s6858 + $0x138] sm:$0xff]
      %v6886 = vld [vmem:[%s6858 + $0x140] sm:$0xff]
      %v6887 = vld [vmem:[%s6858 + $0x150] sm:$0xff]
      %v6888 = vld [vmem:[%s6858 + $0x158] sm:$0xff]
      %v6889 = vld [vmem:[%s6858 + $0x168] sm:$0xff]
      %v6890 = vld [vmem:[%s6858 + $0x170] sm:$0xff]
      %s6891 = scalar_lea.vmem %s4, 64
      %v6892 = vld [vmem:[%s6891] sm:$0xff]
      %v6893 = vld [vmem:[%s6891 + $0x8] sm:$0xff]
      %v6894 = vld [vmem:[%s6891 + $0x10] sm:$0xff]
      %v6895 = vld [vmem:[%s6891 + $0x18] sm:$0xff]
      %v6897 = vsel %vm3448, %v6859, 0
      %v6900 = vsel %vm3448, %v6860, 0
      %v6903 = vsel %vm3448, %v6861, 0
      %v6906 = vsel %vm3448, %v6862, 0
      %v6909 = vsel %vm3448, %v6863, 0
      %v6912 = vsel %vm3448, %v6864, 0
      %v6915 = vsel %vm3448, %v6865, 0
      %v6918 = vsel %vm3448, %v6866, 0
      %v6921 = vsel %vm3448, %v6867, 0
      %v6924 = vsel %vm3448, %v6868, 0
      %v6927 = vsel %vm3448, %v6869, 0
      %v6930 = vsel %vm3448, %v6870, 0
      %v6933 = vsel %vm3448, %v6871, 0
      %v6936 = vsel %vm3448, %v6872, 0
      %v6939 = vsel %vm3448, %v6873, 0
      %v6942 = vsel %vm3448, %v6874, 0
      %v6945 = vsel %vm3448, %v6875, 0
      %v6948 = vsel %vm3448, %v6876, 0
      %v6951 = vsel %vm3448, %v6877, 0
      %v6954 = vsel %vm3448, %v6878, 0
      %v6957 = vsel %vm3448, %v6879, 0
      %v6960 = vsel %vm3448, %v6880, 0
      %v6963 = vsel %vm3448, %v6881, 0
      %v6966 = vsel %vm3448, %v6882, 0
      %v6969 = vsel %vm3448, %v6883, 0
      %v6972 = vsel %vm3448, %v6884, 0
      %v6975 = vsel %vm3448, %v6885, 0
      %v6978 = vsel %vm3448, %v6886, 0
      %v6981 = vsel %vm3448, %v6887, 0
      %v6984 = vsel %vm3448, %v6888, 0
      %v6987 = vsel %vm3448, %v6889, 0
      %v6990 = vsel %vm3448, %v6890, 0
      %6992 = vmatpush.msra.mxu0 0.0
      %6993 = vmatpush.msra.mxu0 0.0
      %6994 = vmatpush.msra.mxu0 0.0
      %6995 = vmatpush.msra.mxu0 0.0
      %6996 = vmatpush.msra.mxu0 0.0
      %6997 = vmatpush.msra.mxu0 0.0
      %6998 = vmatpush.msra.mxu0 0.0
      %6999 = vmatpush.msra.mxu0 0.0
      %7000 = vmatpush.msra.mxu0 0.0
      %7001 = vmatpush.msra.mxu0 0.0
      %7002 = vmatpush.msra.mxu0 0.0
      %7003 = vmatpush.msra.mxu0 0.0
      %7004 = vmatpush.msra.mxu0 %v6895
      %7005 = vmatpush.msra.mxu0 %v6894
      %7006 = vmatpush.msra.mxu0 %v6893
      %7007 = vmatpush.msra.mxu0 %v6892
      %7008 = vmatmul.f32.gmra.mxu0 %v6897
      %v7009 = vpop.f32.mrf.mxu0
      %v7010 = vadd.f32 0.0, %v7009
      %7011 = vmatmul.f32.gmra.mxu0 %v6900
      %v7012 = vpop.f32.mrf.mxu0
      %v7013 = vadd.f32 0.0, %v7012
      %7014 = vmatmul.f32.gmra.mxu0 %v6903
      %v7015 = vpop.f32.mrf.mxu0
      %v7016 = vadd.f32 0.0, %v7015
      %7017 = vmatmul.f32.gmra.mxu0 %v6906
      %v7018 = vpop.f32.mrf.mxu0
      %v7019 = vadd.f32 0.0, %v7018
      %7020 = vmatmul.f32.gmra.mxu0 %v6909
      %v7021 = vpop.f32.mrf.mxu0
      %v7022 = vadd.f32 0.0, %v7021
      %7023 = vmatmul.f32.gmra.mxu0 %v6912
      %v7024 = vpop.f32.mrf.mxu0
      %v7025 = vadd.f32 0.0, %v7024
      %7026 = vmatmul.f32.gmra.mxu0 %v6915
      %v7027 = vpop.f32.mrf.mxu0
      %v7028 = vadd.f32 0.0, %v7027
      %7029 = vmatmul.f32.gmra.mxu0 %v6918
      %v7030 = vpop.f32.mrf.mxu0
      %v7031 = vadd.f32 0.0, %v7030
      %7032 = vmatmul.f32.gmra.mxu0 %v6921
      %v7033 = vpop.f32.mrf.mxu0
      %v7034 = vadd.f32 0.0, %v7033
      %7035 = vmatmul.f32.gmra.mxu0 %v6924
      %v7036 = vpop.f32.mrf.mxu0
      %v7037 = vadd.f32 0.0, %v7036
      %7038 = vmatmul.f32.gmra.mxu0 %v6927
      %v7039 = vpop.f32.mrf.mxu0
      %v7040 = vadd.f32 0.0, %v7039
      %7041 = vmatmul.f32.gmra.mxu0 %v6930
      %v7042 = vpop.f32.mrf.mxu0
      %v7043 = vadd.f32 0.0, %v7042
      %7044 = vmatmul.f32.gmra.mxu0 %v6933
      %v7045 = vpop.f32.mrf.mxu0
      %v7046 = vadd.f32 0.0, %v7045
      %7047 = vmatmul.f32.gmra.mxu0 %v6936
      %v7048 = vpop.f32.mrf.mxu0
      %v7049 = vadd.f32 0.0, %v7048
      %7050 = vmatmul.f32.gmra.mxu0 %v6939
      %v7051 = vpop.f32.mrf.mxu0
      %v7052 = vadd.f32 0.0, %v7051
      %7053 = vmatmul.f32.gmra.mxu0 %v6942
      %v7054 = vpop.f32.mrf.mxu0
      %v7055 = vadd.f32 0.0, %v7054
      %7056 = vmatmul.f32.gmra.mxu0 %v6945
      %v7057 = vpop.f32.mrf.mxu0
      %v7058 = vadd.f32 0.0, %v7057
      %7059 = vmatmul.f32.gmra.mxu0 %v6948
      %v7060 = vpop.f32.mrf.mxu0
      %v7061 = vadd.f32 0.0, %v7060
      %7062 = vmatmul.f32.gmra.mxu0 %v6951
      %v7063 = vpop.f32.mrf.mxu0
      %v7064 = vadd.f32 0.0, %v7063
      %7065 = vmatmul.f32.gmra.mxu0 %v6954
      %v7066 = vpop.f32.mrf.mxu0
      %v7067 = vadd.f32 0.0, %v7066
      %7068 = vmatmul.f32.gmra.mxu0 %v6957
      %v7069 = vpop.f32.mrf.mxu0
      %v7070 = vadd.f32 0.0, %v7069
      %7071 = vmatmul.f32.gmra.mxu0 %v6960
      %v7072 = vpop.f32.mrf.mxu0
      %v7073 = vadd.f32 0.0, %v7072
      %7074 = vmatmul.f32.gmra.mxu0 %v6963
      %v7075 = vpop.f32.mrf.mxu0
      %v7076 = vadd.f32 0.0, %v7075
      %7077 = vmatmul.f32.gmra.mxu0 %v6966
      %v7078 = vpop.f32.mrf.mxu0
      %v7079 = vadd.f32 0.0, %v7078
      %7080 = vmatmul.f32.gmra.mxu0 %v6969
      %v7081 = vpop.f32.mrf.mxu0
      %v7082 = vadd.f32 0.0, %v7081
      %7083 = vmatmul.f32.gmra.mxu0 %v6972
      %v7084 = vpop.f32.mrf.mxu0
      %v7085 = vadd.f32 0.0, %v7084
      %7086 = vmatmul.f32.gmra.mxu0 %v6975
      %v7087 = vpop.f32.mrf.mxu0
      %v7088 = vadd.f32 0.0, %v7087
      %7089 = vmatmul.f32.gmra.mxu0 %v6978
      %v7090 = vpop.f32.mrf.mxu0
      %v7091 = vadd.f32 0.0, %v7090
      %7092 = vmatmul.f32.gmra.mxu0 %v6981
      %v7093 = vpop.f32.mrf.mxu0
      %v7094 = vadd.f32 0.0, %v7093
      %7095 = vmatmul.f32.gmra.mxu0 %v6984
      %v7096 = vpop.f32.mrf.mxu0
      %v7097 = vadd.f32 0.0, %v7096
      %7098 = vmatmul.f32.gmra.mxu0 %v6987
      %v7099 = vpop.f32.mrf.mxu0
      %v7100 = vadd.f32 0.0, %v7099
      %7101 = vmatmul.f32.gmra.mxu0 %v6990
      %v7102 = vpop.f32.mrf.mxu0
      %v7103 = vadd.f32 0.0, %v7102
      %7104 = vdwg.mxu0
      %v7105 = vadd.f32 %v6826, %v7010
      %v7106 = vadd.f32 %v6827, %v7013
      %v7107 = vadd.f32 %v6828, %v7016
      %v7108 = vadd.f32 %v6829, %v7019
      %v7109 = vadd.f32 %v6830, %v7022
      %v7110 = vadd.f32 %v6831, %v7025
      %v7111 = vadd.f32 %v6832, %v7028
      %v7112 = vadd.f32 %v6833, %v7031
      %v7113 = vadd.f32 %v6834, %v7034
      %v7114 = vadd.f32 %v6835, %v7037
      %v7115 = vadd.f32 %v6836, %v7040
      %v7116 = vadd.f32 %v6837, %v7043
      %v7117 = vadd.f32 %v6838, %v7046
      %v7118 = vadd.f32 %v6839, %v7049
      %v7119 = vadd.f32 %v6840, %v7052
      %v7120 = vadd.f32 %v6841, %v7055
      %v7121 = vadd.f32 %v6842, %v7058
      %v7122 = vadd.f32 %v6843, %v7061
      %v7123 = vadd.f32 %v6844, %v7064
      %v7124 = vadd.f32 %v6845, %v7067
      %v7125 = vadd.f32 %v6846, %v7070
      %v7126 = vadd.f32 %v6847, %v7073
      %v7127 = vadd.f32 %v6848, %v7076
      %v7128 = vadd.f32 %v6849, %v7079
      %v7129 = vadd.f32 %v6850, %v7082
      %v7130 = vadd.f32 %v6851, %v7085
      %v7131 = vadd.f32 %v6852, %v7088
      %v7132 = vadd.f32 %v6853, %v7091
      %v7133 = vadd.f32 %v6854, %v7094
      %v7134 = vadd.f32 %v6855, %v7097
      %v7135 = vadd.f32 %v6856, %v7100
      %v7136 = vadd.f32 %v6857, %v7103
      %v7137 = vld [vmem:[%s6858 + $0x2] sm:$0xff]
      %v7138 = vld [vmem:[%s6858 + $0xa] sm:$0xff]
      %v7139 = vld [vmem:[%s6858 + $0x1a] sm:$0xff]
      %v7140 = vld [vmem:[%s6858 + $0x22] sm:$0xff]
      %v7141 = vld [vmem:[%s6858 + $0x32] sm:$0xff]
      %v7142 = vld [vmem:[%s6858 + $0x3a] sm:$0xff]
      %v7143 = vld [vmem:[%s6858 + $0x4a] sm:$0xff]
      %v7144 = vld [vmem:[%s6858 + $0x52] sm:$0xff]
      %v7145 = vld [vmem:[%s6858 + $0x62] sm:$0xff]
      %v7146 = vld [vmem:[%s6858 + $0x6a] sm:$0xff]
      %v7147 = vld [vmem:[%s6858 + $0x7a] sm:$0xff]
      %v7148 = vld [vmem:[%s6858 + $0x82] sm:$0xff]
      %v7149 = vld [vmem:[%s6858 + $0x92] sm:$0xff]
      %v7150 = vld [vmem:[%s6858 + $0x9a] sm:$0xff]
      %v7151 = vld [vmem:[%s6858 + $0xaa] sm:$0xff]
      %v7152 = vld [vmem:[%s6858 + $0xb2] sm:$0xff]
      %v7153 = vld [vmem:[%s6858 + $0xc2] sm:$0xff]
      %v7154 = vld [vmem:[%s6858 + $0xca] sm:$0xff]
      %v7155 = vld [vmem:[%s6858 + $0xda] sm:$0xff]
      %v7156 = vld [vmem:[%s6858 + $0xe2] sm:$0xff]
      %v7157 = vld [vmem:[%s6858 + $0xf2] sm:$0xff]
      %v7158 = vld [vmem:[%s6858 + $0xfa] sm:$0xff]
      %v7159 = vld [vmem:[%s6858 + $0x10a] sm:$0xff]
      %v7160 = vld [vmem:[%s6858 + $0x112] sm:$0xff]
      %v7161 = vld [vmem:[%s6858 + $0x122] sm:$0xff]
      %v7162 = vld [vmem:[%s6858 + $0x12a] sm:$0xff]
      %v7163 = vld [vmem:[%s6858 + $0x13a] sm:$0xff]
      %v7164 = vld [vmem:[%s6858 + $0x142] sm:$0xff]
      %v7165 = vld [vmem:[%s6858 + $0x152] sm:$0xff]
      %v7166 = vld [vmem:[%s6858 + $0x15a] sm:$0xff]
      %v7167 = vld [vmem:[%s6858 + $0x16a] sm:$0xff]
      %v7168 = vld [vmem:[%s6858 + $0x172] sm:$0xff]
      %s7169 = scalar_lea.vmem %s4, 96
      %v7170 = vld [vmem:[%s7169] sm:$0xff]
      %v7171 = vld [vmem:[%s7169 + $0x8] sm:$0xff]
      %v7172 = vld [vmem:[%s7169 + $0x10] sm:$0xff]
      %v7173 = vld [vmem:[%s7169 + $0x18] sm:$0xff]
      %v7175 = vsel %vm3448, %v7137, 0
      %v7178 = vsel %vm3448, %v7138, 0
      %v7181 = vsel %vm3448, %v7139, 0
      %v7184 = vsel %vm3448, %v7140, 0
      %v7187 = vsel %vm3448, %v7141, 0
      %v7190 = vsel %vm3448, %v7142, 0
      %v7193 = vsel %vm3448, %v7143, 0
      %v7196 = vsel %vm3448, %v7144, 0
      %v7199 = vsel %vm3448, %v7145, 0
      %v7202 = vsel %vm3448, %v7146, 0
      %v7205 = vsel %vm3448, %v7147, 0
      %v7208 = vsel %vm3448, %v7148, 0
      %v7211 = vsel %vm3448, %v7149, 0
      %v7214 = vsel %vm3448, %v7150, 0
      %v7217 = vsel %vm3448, %v7151, 0
      %v7220 = vsel %vm3448, %v7152, 0
      %v7223 = vsel %vm3448, %v7153, 0
      %v7226 = vsel %vm3448, %v7154, 0
      %v7229 = vsel %vm3448, %v7155, 0
      %v7232 = vsel %vm3448, %v7156, 0
      %v7235 = vsel %vm3448, %v7157, 0
      %v7238 = vsel %vm3448, %v7158, 0
      %v7241 = vsel %vm3448, %v7159, 0
      %v7244 = vsel %vm3448, %v7160, 0
      %v7247 = vsel %vm3448, %v7161, 0
      %v7250 = vsel %vm3448, %v7162, 0
      %v7253 = vsel %vm3448, %v7163, 0
      %v7256 = vsel %vm3448, %v7164, 0
      %v7259 = vsel %vm3448, %v7165, 0
      %v7262 = vsel %vm3448, %v7166, 0
      %v7265 = vsel %vm3448, %v7167, 0
      %v7268 = vsel %vm3448, %v7168, 0
      %7270 = vmatpush.msra.mxu0 0.0
      %7271 = vmatpush.msra.mxu0 0.0
      %7272 = vmatpush.msra.mxu0 0.0
      %7273 = vmatpush.msra.mxu0 0.0
      %7274 = vmatpush.msra.mxu0 0.0
      %7275 = vmatpush.msra.mxu0 0.0
      %7276 = vmatpush.msra.mxu0 0.0
      %7277 = vmatpush.msra.mxu0 0.0
      %7278 = vmatpush.msra.mxu0 0.0
      %7279 = vmatpush.msra.mxu0 0.0
      %7280 = vmatpush.msra.mxu0 0.0
      %7281 = vmatpush.msra.mxu0 0.0
      %7282 = vmatpush.msra.mxu0 %v7173
      %7283 = vmatpush.msra.mxu0 %v7172
      %7284 = vmatpush.msra.mxu0 %v7171
      %7285 = vmatpush.msra.mxu0 %v7170
      %7286 = vmatmul.f32.gmra.mxu0 %v7175
      %v7287 = vpop.f32.mrf.mxu0
      %v7288 = vadd.f32 0.0, %v7287
      %7289 = vmatmul.f32.gmra.mxu0 %v7178
      %v7290 = vpop.f32.mrf.mxu0
      %v7291 = vadd.f32 0.0, %v7290
      %7292 = vmatmul.f32.gmra.mxu0 %v7181
      %v7293 = vpop.f32.mrf.mxu0
      %v7294 = vadd.f32 0.0, %v7293
      %7295 = vmatmul.f32.gmra.mxu0 %v7184
      %v7296 = vpop.f32.mrf.mxu0
      %v7297 = vadd.f32 0.0, %v7296
      %7298 = vmatmul.f32.gmra.mxu0 %v7187
      %v7299 = vpop.f32.mrf.mxu0
      %v7300 = vadd.f32 0.0, %v7299
      %7301 = vmatmul.f32.gmra.mxu0 %v7190
      %v7302 = vpop.f32.mrf.mxu0
      %v7303 = vadd.f32 0.0, %v7302
      %7304 = vmatmul.f32.gmra.mxu0 %v7193
      %v7305 = vpop.f32.mrf.mxu0
      %v7306 = vadd.f32 0.0, %v7305
      %7307 = vmatmul.f32.gmra.mxu0 %v7196
      %v7308 = vpop.f32.mrf.mxu0
      %v7309 = vadd.f32 0.0, %v7308
      %7310 = vmatmul.f32.gmra.mxu0 %v7199
      %v7311 = vpop.f32.mrf.mxu0
      %v7312 = vadd.f32 0.0, %v7311
      %7313 = vmatmul.f32.gmra.mxu0 %v7202
      %v7314 = vpop.f32.mrf.mxu0
      %v7315 = vadd.f32 0.0, %v7314
      %7316 = vmatmul.f32.gmra.mxu0 %v7205
      %v7317 = vpop.f32.mrf.mxu0
      %v7318 = vadd.f32 0.0, %v7317
      %7319 = vmatmul.f32.gmra.mxu0 %v7208
      %v7320 = vpop.f32.mrf.mxu0
      %v7321 = vadd.f32 0.0, %v7320
      %7322 = vmatmul.f32.gmra.mxu0 %v7211
      %v7323 = vpop.f32.mrf.mxu0
      %v7324 = vadd.f32 0.0, %v7323
      %7325 = vmatmul.f32.gmra.mxu0 %v7214
      %v7326 = vpop.f32.mrf.mxu0
      %v7327 = vadd.f32 0.0, %v7326
      %7328 = vmatmul.f32.gmra.mxu0 %v7217
      %v7329 = vpop.f32.mrf.mxu0
      %v7330 = vadd.f32 0.0, %v7329
      %7331 = vmatmul.f32.gmra.mxu0 %v7220
      %v7332 = vpop.f32.mrf.mxu0
      %v7333 = vadd.f32 0.0, %v7332
      %7334 = vmatmul.f32.gmra.mxu0 %v7223
      %v7335 = vpop.f32.mrf.mxu0
      %v7336 = vadd.f32 0.0, %v7335
      %7337 = vmatmul.f32.gmra.mxu0 %v7226
      %v7338 = vpop.f32.mrf.mxu0
      %v7339 = vadd.f32 0.0, %v7338
      %7340 = vmatmul.f32.gmra.mxu0 %v7229
      %v7341 = vpop.f32.mrf.mxu0
      %v7342 = vadd.f32 0.0, %v7341
      %7343 = vmatmul.f32.gmra.mxu0 %v7232
      %v7344 = vpop.f32.mrf.mxu0
      %v7345 = vadd.f32 0.0, %v7344
      %7346 = vmatmul.f32.gmra.mxu0 %v7235
      %v7347 = vpop.f32.mrf.mxu0
      %v7348 = vadd.f32 0.0, %v7347
      %7349 = vmatmul.f32.gmra.mxu0 %v7238
      %v7350 = vpop.f32.mrf.mxu0
      %v7351 = vadd.f32 0.0, %v7350
      %7352 = vmatmul.f32.gmra.mxu0 %v7241
      %v7353 = vpop.f32.mrf.mxu0
      %v7354 = vadd.f32 0.0, %v7353
      %7355 = vmatmul.f32.gmra.mxu0 %v7244
      %v7356 = vpop.f32.mrf.mxu0
      %v7357 = vadd.f32 0.0, %v7356
      %7358 = vmatmul.f32.gmra.mxu0 %v7247
      %v7359 = vpop.f32.mrf.mxu0
      %v7360 = vadd.f32 0.0, %v7359
      %7361 = vmatmul.f32.gmra.mxu0 %v7250
      %v7362 = vpop.f32.mrf.mxu0
      %v7363 = vadd.f32 0.0, %v7362
      %7364 = vmatmul.f32.gmra.mxu0 %v7253
      %v7365 = vpop.f32.mrf.mxu0
      %v7366 = vadd.f32 0.0, %v7365
      %7367 = vmatmul.f32.gmra.mxu0 %v7256
      %v7368 = vpop.f32.mrf.mxu0
      %v7369 = vadd.f32 0.0, %v7368
      %7370 = vmatmul.f32.gmra.mxu0 %v7259
      %v7371 = vpop.f32.mrf.mxu0
      %v7372 = vadd.f32 0.0, %v7371
      %7373 = vmatmul.f32.gmra.mxu0 %v7262
      %v7374 = vpop.f32.mrf.mxu0
      %v7375 = vadd.f32 0.0, %v7374
      %7376 = vmatmul.f32.gmra.mxu0 %v7265
      %v7377 = vpop.f32.mrf.mxu0
      %v7378 = vadd.f32 0.0, %v7377
      %7379 = vmatmul.f32.gmra.mxu0 %v7268
      %v7380 = vpop.f32.mrf.mxu0
      %v7381 = vadd.f32 0.0, %v7380
      %7382 = vdwg.mxu0
      %v7383 = vadd.f32 %v7105, %v7288
      %v7384 = vadd.f32 %v7106, %v7291
      %v7385 = vadd.f32 %v7107, %v7294
      %v7386 = vadd.f32 %v7108, %v7297
      %v7387 = vadd.f32 %v7109, %v7300
      %v7388 = vadd.f32 %v7110, %v7303
      %v7389 = vadd.f32 %v7111, %v7306
      %v7390 = vadd.f32 %v7112, %v7309
      %v7391 = vadd.f32 %v7113, %v7312
      %v7392 = vadd.f32 %v7114, %v7315
      %v7393 = vadd.f32 %v7115, %v7318
      %v7394 = vadd.f32 %v7116, %v7321
      %v7395 = vadd.f32 %v7117, %v7324
      %v7396 = vadd.f32 %v7118, %v7327
      %v7397 = vadd.f32 %v7119, %v7330
      %v7398 = vadd.f32 %v7120, %v7333
      %v7399 = vadd.f32 %v7121, %v7336
      %v7400 = vadd.f32 %v7122, %v7339
      %v7401 = vadd.f32 %v7123, %v7342
      %v7402 = vadd.f32 %v7124, %v7345
      %v7403 = vadd.f32 %v7125, %v7348
      %v7404 = vadd.f32 %v7126, %v7351
      %v7405 = vadd.f32 %v7127, %v7354
      %v7406 = vadd.f32 %v7128, %v7357
      %v7407 = vadd.f32 %v7129, %v7360
      %v7408 = vadd.f32 %v7130, %v7363
      %v7409 = vadd.f32 %v7131, %v7366
      %v7410 = vadd.f32 %v7132, %v7369
      %v7411 = vadd.f32 %v7133, %v7372
      %v7412 = vadd.f32 %v7134, %v7375
      %v7413 = vadd.f32 %v7135, %v7378
      %v7414 = vadd.f32 %v7136, %v7381
      %vm7415 = vcmp.ge.f32.partialorder %v7383, 0.0
      %vm7416 = vcmp.ge.f32.partialorder %v7384, 0.0
      %vm7417 = vcmp.ge.f32.partialorder %v7385, 0.0
      %vm7418 = vcmp.ge.f32.partialorder %v7386, 0.0
      %vm7419 = vcmp.ge.f32.partialorder %v7387, 0.0
      %vm7420 = vcmp.ge.f32.partialorder %v7388, 0.0
      %vm7421 = vcmp.ge.f32.partialorder %v7389, 0.0
      %vm7422 = vcmp.ge.f32.partialorder %v7390, 0.0
      %vm7423 = vcmp.ge.f32.partialorder %v7391, 0.0
      %vm7424 = vcmp.ge.f32.partialorder %v7392, 0.0
      %vm7425 = vcmp.ge.f32.partialorder %v7393, 0.0
      %vm7426 = vcmp.ge.f32.partialorder %v7394, 0.0
      %vm7427 = vcmp.ge.f32.partialorder %v7395, 0.0
      %vm7428 = vcmp.ge.f32.partialorder %v7396, 0.0
      %vm7429 = vcmp.ge.f32.partialorder %v7397, 0.0
      %vm7430 = vcmp.ge.f32.partialorder %v7398, 0.0
      %vm7431 = vcmp.ge.f32.partialorder %v7399, 0.0
      %vm7432 = vcmp.ge.f32.partialorder %v7400, 0.0
      %vm7433 = vcmp.ge.f32.partialorder %v7401, 0.0
      %vm7434 = vcmp.ge.f32.partialorder %v7402, 0.0
      %vm7435 = vcmp.ge.f32.partialorder %v7403, 0.0
      %vm7436 = vcmp.ge.f32.partialorder %v7404, 0.0
      %vm7437 = vcmp.ge.f32.partialorder %v7405, 0.0
      %vm7438 = vcmp.ge.f32.partialorder %v7406, 0.0
      %vm7439 = vcmp.ge.f32.partialorder %v7407, 0.0
      %vm7440 = vcmp.ge.f32.partialorder %v7408, 0.0
      %vm7441 = vcmp.ge.f32.partialorder %v7409, 0.0
      %vm7442 = vcmp.ge.f32.partialorder %v7410, 0.0
      %vm7443 = vcmp.ge.f32.partialorder %v7411, 0.0
      %vm7444 = vcmp.ge.f32.partialorder %v7412, 0.0
      %vm7445 = vcmp.ge.f32.partialorder %v7413, 0.0
      %vm7446 = vcmp.ge.f32.partialorder %v7414, 0.0
      %v7447 = vmul.f32 %v7383, 0.01
      %v7448 = vmul.f32 %v7384, 0.01
      %v7449 = vmul.f32 %v7385, 0.01
      %v7450 = vmul.f32 %v7386, 0.01
      %v7451 = vmul.f32 %v7387, 0.01
      %v7452 = vmul.f32 %v7388, 0.01
      %v7453 = vmul.f32 %v7389, 0.01
      %v7454 = vmul.f32 %v7390, 0.01
      %v7455 = vmul.f32 %v7391, 0.01
      %v7456 = vmul.f32 %v7392, 0.01
      %v7457 = vmul.f32 %v7393, 0.01
      %v7458 = vmul.f32 %v7394, 0.01
      %v7459 = vmul.f32 %v7395, 0.01
      %v7460 = vmul.f32 %v7396, 0.01
      %v7461 = vmul.f32 %v7397, 0.01
      %v7462 = vmul.f32 %v7398, 0.01
      %v7463 = vmul.f32 %v7399, 0.01
      %v7464 = vmul.f32 %v7400, 0.01
      %v7465 = vmul.f32 %v7401, 0.01
      %v7466 = vmul.f32 %v7402, 0.01
      %v7467 = vmul.f32 %v7403, 0.01
      %v7468 = vmul.f32 %v7404, 0.01
      %v7469 = vmul.f32 %v7405, 0.01
      %v7470 = vmul.f32 %v7406, 0.01
      %v7471 = vmul.f32 %v7407, 0.01
      %v7472 = vmul.f32 %v7408, 0.01
      %v7473 = vmul.f32 %v7409, 0.01
      %v7474 = vmul.f32 %v7410, 0.01
      %v7475 = vmul.f32 %v7411, 0.01
      %v7476 = vmul.f32 %v7412, 0.01
      %v7477 = vmul.f32 %v7413, 0.01
      %v7478 = vmul.f32 %v7414, 0.01
      %v7479 = vsel %vm7415, %v7383, %v7447
      %v7480 = vsel %vm7416, %v7384, %v7448
      %v7481 = vsel %vm7417, %v7385, %v7449
      %v7482 = vsel %vm7418, %v7386, %v7450
      %v7483 = vsel %vm7419, %v7387, %v7451
      %v7484 = vsel %vm7420, %v7388, %v7452
      %v7485 = vsel %vm7421, %v7389, %v7453
      %v7486 = vsel %vm7422, %v7390, %v7454
      %v7487 = vsel %vm7423, %v7391, %v7455
      %v7488 = vsel %vm7424, %v7392, %v7456
      %v7489 = vsel %vm7425, %v7393, %v7457
      %v7490 = vsel %vm7426, %v7394, %v7458
      %v7491 = vsel %vm7427, %v7395, %v7459
      %v7492 = vsel %vm7428, %v7396, %v7460
      %v7493 = vsel %vm7429, %v7397, %v7461
      %v7494 = vsel %vm7430, %v7398, %v7462
      %v7495 = vsel %vm7431, %v7399, %v7463
      %v7496 = vsel %vm7432, %v7400, %v7464
      %v7497 = vsel %vm7433, %v7401, %v7465
      %v7498 = vsel %vm7434, %v7402, %v7466
      %v7499 = vsel %vm7435, %v7403, %v7467
      %v7500 = vsel %vm7436, %v7404, %v7468
      %v7501 = vsel %vm7437, %v7405, %v7469
      %v7502 = vsel %vm7438, %v7406, %v7470
      %v7503 = vsel %vm7439, %v7407, %v7471
      %v7504 = vsel %vm7440, %v7408, %v7472
      %v7505 = vsel %vm7441, %v7409, %v7473
      %v7506 = vsel %vm7442, %v7410, %v7474
      %v7507 = vsel %vm7443, %v7411, %v7475
      %v7508 = vsel %vm7444, %v7412, %v7476
      %v7509 = vsel %vm7445, %v7413, %v7477
      %v7510 = vsel %vm7446, %v7414, %v7478
      %v7511 = vld [vmem:[%s6 + $0x9] sm:$0x1]
      %v7512 = vperm.slane %v7511, 0
      %v7513 = vmul.f32 %v7479, %v7512
      %v7514 = vmul.f32 %v7480, %v7512
      %v7515 = vmul.f32 %v7481, %v7512
      %v7516 = vmul.f32 %v7482, %v7512
      %v7517 = vmul.f32 %v7483, %v7512
      %v7518 = vmul.f32 %v7484, %v7512
      %v7519 = vmul.f32 %v7485, %v7512
      %v7520 = vmul.f32 %v7486, %v7512
      %v7521 = vmul.f32 %v7487, %v7512
      %v7522 = vmul.f32 %v7488, %v7512
      %v7523 = vmul.f32 %v7489, %v7512
      %v7524 = vmul.f32 %v7490, %v7512
      %v7525 = vmul.f32 %v7491, %v7512
      %v7526 = vmul.f32 %v7492, %v7512
      %v7527 = vmul.f32 %v7493, %v7512
      %v7528 = vmul.f32 %v7494, %v7512
      %v7529 = vmul.f32 %v7495, %v7512
      %v7530 = vmul.f32 %v7496, %v7512
      %v7531 = vmul.f32 %v7497, %v7512
      %v7532 = vmul.f32 %v7498, %v7512
      %v7533 = vmul.f32 %v7499, %v7512
      %v7534 = vmul.f32 %v7500, %v7512
      %v7535 = vmul.f32 %v7501, %v7512
      %v7536 = vmul.f32 %v7502, %v7512
      %v7537 = vmul.f32 %v7503, %v7512
      %v7538 = vmul.f32 %v7504, %v7512
      %v7539 = vmul.f32 %v7505, %v7512
      %v7540 = vmul.f32 %v7506, %v7512
      %v7541 = vmul.f32 %v7507, %v7512
      %v7542 = vmul.f32 %v7508, %v7512
      %v7543 = vmul.f32 %v7509, %v7512
      %v7544 = vmul.f32 %v7510, %v7512
      %v7545 = vld [vmem:[%s6 + $0xa] sm:$0x1]
      %v7546 = vperm.slane %v7545, 0
      %v7547 = vadd.f32 %v7513, %v7546
      %v7548 = vadd.f32 %v7514, %v7546
      %v7549 = vadd.f32 %v7515, %v7546
      %v7550 = vadd.f32 %v7516, %v7546
      %v7551 = vadd.f32 %v7517, %v7546
      %v7552 = vadd.f32 %v7518, %v7546
      %v7553 = vadd.f32 %v7519, %v7546
      %v7554 = vadd.f32 %v7520, %v7546
      %v7555 = vadd.f32 %v7521, %v7546
      %v7556 = vadd.f32 %v7522, %v7546
      %v7557 = vadd.f32 %v7523, %v7546
      %v7558 = vadd.f32 %v7524, %v7546
      %v7559 = vadd.f32 %v7525, %v7546
      %v7560 = vadd.f32 %v7526, %v7546
      %v7561 = vadd.f32 %v7527, %v7546
      %v7562 = vadd.f32 %v7528, %v7546
      %v7563 = vadd.f32 %v7529, %v7546
      %v7564 = vadd.f32 %v7530, %v7546
      %v7565 = vadd.f32 %v7531, %v7546
      %v7566 = vadd.f32 %v7532, %v7546
      %v7567 = vadd.f32 %v7533, %v7546
      %v7568 = vadd.f32 %v7534, %v7546
      %v7569 = vadd.f32 %v7535, %v7546
      %v7570 = vadd.f32 %v7536, %v7546
      %v7571 = vadd.f32 %v7537, %v7546
      %v7572 = vadd.f32 %v7538, %v7546
      %v7573 = vadd.f32 %v7539, %v7546
      %v7574 = vadd.f32 %v7540, %v7546
      %v7575 = vadd.f32 %v7541, %v7546
      %v7576 = vadd.f32 %v7542, %v7546
      %v7577 = vadd.f32 %v7543, %v7546
      %v7578 = vadd.f32 %v7544, %v7546
      %v7579 = vld [vmem:[%s6 + $0x4] sm:$0x1]
      %v7580 = vperm.slane %v7579, 0
      %v7581 = vadd.f32 %v7580, 0.0
      %v7582 = vld [vmem:[%s5] sm:$0xff]
      %v7583 = vld [vmem:[%s5 + $0x8] sm:$0xff]
      %v7584 = vld [vmem:[%s5 + $0x10] sm:$0xff]
      %v7585 = vld [vmem:[%s5 + $0x18] sm:$0xff]
      %v7587 = vsel %vm3448, %v3416, 0
      %v7590 = vsel %vm3448, %v3417, 0
      %v7593 = vsel %vm3448, %v3418, 0
      %v7596 = vsel %vm3448, %v3419, 0
      %v7599 = vsel %vm3448, %v3420, 0
      %v7602 = vsel %vm3448, %v3421, 0
      %v7605 = vsel %vm3448, %v3422, 0
      %v7608 = vsel %vm3448, %v3423, 0
      %v7611 = vsel %vm3448, %v3424, 0
      %v7614 = vsel %vm3448, %v3425, 0
      %v7617 = vsel %vm3448, %v3426, 0
      %v7620 = vsel %vm3448, %v3427, 0
      %v7623 = vsel %vm3448, %v3428, 0
      %v7626 = vsel %vm3448, %v3429, 0
      %v7629 = vsel %vm3448, %v3430, 0
      %v7632 = vsel %vm3448, %v3431, 0
      %v7635 = vsel %vm3448, %v3432, 0
      %v7638 = vsel %vm3448, %v3433, 0
      %v7641 = vsel %vm3448, %v3434, 0
      %v7644 = vsel %vm3448, %v3435, 0
      %v7647 = vsel %vm3448, %v3436, 0
      %v7650 = vsel %vm3448, %v3437, 0
      %v7653 = vsel %vm3448, %v3438, 0
      %v7656 = vsel %vm3448, %v3439, 0
      %v7659 = vsel %vm3448, %v3440, 0
      %v7662 = vsel %vm3448, %v3441, 0
      %v7665 = vsel %vm3448, %v3442, 0
      %v7668 = vsel %vm3448, %v3443, 0
      %v7671 = vsel %vm3448, %v3444, 0
      %v7674 = vsel %vm3448, %v3445, 0
      %v7677 = vsel %vm3448, %v3446, 0
      %v7680 = vsel %vm3448, %v3447, 0
      %7682 = vmatpush.msra.mxu0 0.0
      %7683 = vmatpush.msra.mxu0 0.0
      %7684 = vmatpush.msra.mxu0 0.0
      %7685 = vmatpush.msra.mxu0 0.0
      %7686 = vmatpush.msra.mxu0 0.0
      %7687 = vmatpush.msra.mxu0 0.0
      %7688 = vmatpush.msra.mxu0 0.0
      %7689 = vmatpush.msra.mxu0 0.0
      %7690 = vmatpush.msra.mxu0 0.0
      %7691 = vmatpush.msra.mxu0 0.0
      %7692 = vmatpush.msra.mxu0 0.0
      %7693 = vmatpush.msra.mxu0 0.0
      %7694 = vmatpush.msra.mxu0 %v7585
      %7695 = vmatpush.msra.mxu0 %v7584
      %7696 = vmatpush.msra.mxu0 %v7583
      %7697 = vmatpush.msra.mxu0 %v7582
      %7698 = vmatmul.f32.gmra.mxu0 %v7587
      %v7699 = vpop.f32.mrf.mxu0
      %v7700 = vadd.f32 0.0, %v7699
      %7701 = vmatmul.f32.gmra.mxu0 %v7590
      %v7702 = vpop.f32.mrf.mxu0
      %v7703 = vadd.f32 0.0, %v7702
      %7704 = vmatmul.f32.gmra.mxu0 %v7593
      %v7705 = vpop.f32.mrf.mxu0
      %v7706 = vadd.f32 0.0, %v7705
      %7707 = vmatmul.f32.gmra.mxu0 %v7596
      %v7708 = vpop.f32.mrf.mxu0
      %v7709 = vadd.f32 0.0, %v7708
      %7710 = vmatmul.f32.gmra.mxu0 %v7599
      %v7711 = vpop.f32.mrf.mxu0
      %v7712 = vadd.f32 0.0, %v7711
      %7713 = vmatmul.f32.gmra.mxu0 %v7602
      %v7714 = vpop.f32.mrf.mxu0
      %v7715 = vadd.f32 0.0, %v7714
      %7716 = vmatmul.f32.gmra.mxu0 %v7605
      %v7717 = vpop.f32.mrf.mxu0
      %v7718 = vadd.f32 0.0, %v7717
      %7719 = vmatmul.f32.gmra.mxu0 %v7608
      %v7720 = vpop.f32.mrf.mxu0
      %v7721 = vadd.f32 0.0, %v7720
      %7722 = vmatmul.f32.gmra.mxu0 %v7611
      %v7723 = vpop.f32.mrf.mxu0
      %v7724 = vadd.f32 0.0, %v7723
      %7725 = vmatmul.f32.gmra.mxu0 %v7614
      %v7726 = vpop.f32.mrf.mxu0
      %v7727 = vadd.f32 0.0, %v7726
      %7728 = vmatmul.f32.gmra.mxu0 %v7617
      %v7729 = vpop.f32.mrf.mxu0
      %v7730 = vadd.f32 0.0, %v7729
      %7731 = vmatmul.f32.gmra.mxu0 %v7620
      %v7732 = vpop.f32.mrf.mxu0
      %v7733 = vadd.f32 0.0, %v7732
      %7734 = vmatmul.f32.gmra.mxu0 %v7623
      %v7735 = vpop.f32.mrf.mxu0
      %v7736 = vadd.f32 0.0, %v7735
      %7737 = vmatmul.f32.gmra.mxu0 %v7626
      %v7738 = vpop.f32.mrf.mxu0
      %v7739 = vadd.f32 0.0, %v7738
      %7740 = vmatmul.f32.gmra.mxu0 %v7629
      %v7741 = vpop.f32.mrf.mxu0
      %v7742 = vadd.f32 0.0, %v7741
      %7743 = vmatmul.f32.gmra.mxu0 %v7632
      %v7744 = vpop.f32.mrf.mxu0
      %v7745 = vadd.f32 0.0, %v7744
      %7746 = vmatmul.f32.gmra.mxu0 %v7635
      %v7747 = vpop.f32.mrf.mxu0
      %v7748 = vadd.f32 0.0, %v7747
      %7749 = vmatmul.f32.gmra.mxu0 %v7638
      %v7750 = vpop.f32.mrf.mxu0
      %v7751 = vadd.f32 0.0, %v7750
      %7752 = vmatmul.f32.gmra.mxu0 %v7641
      %v7753 = vpop.f32.mrf.mxu0
      %v7754 = vadd.f32 0.0, %v7753
      %7755 = vmatmul.f32.gmra.mxu0 %v7644
      %v7756 = vpop.f32.mrf.mxu0
      %v7757 = vadd.f32 0.0, %v7756
      %7758 = vmatmul.f32.gmra.mxu0 %v7647
      %v7759 = vpop.f32.mrf.mxu0
      %v7760 = vadd.f32 0.0, %v7759
      %7761 = vmatmul.f32.gmra.mxu0 %v7650
      %v7762 = vpop.f32.mrf.mxu0
      %v7763 = vadd.f32 0.0, %v7762
      %7764 = vmatmul.f32.gmra.mxu0 %v7653
      %v7765 = vpop.f32.mrf.mxu0
      %v7766 = vadd.f32 0.0, %v7765
      %7767 = vmatmul.f32.gmra.mxu0 %v7656
      %v7768 = vpop.f32.mrf.mxu0
      %v7769 = vadd.f32 0.0, %v7768
      %7770 = vmatmul.f32.gmra.mxu0 %v7659
      %v7771 = vpop.f32.mrf.mxu0
      %v7772 = vadd.f32 0.0, %v7771
      %7773 = vmatmul.f32.gmra.mxu0 %v7662
      %v7774 = vpop.f32.mrf.mxu0
      %v7775 = vadd.f32 0.0, %v7774
      %7776 = vmatmul.f32.gmra.mxu0 %v7665
      %v7777 = vpop.f32.mrf.mxu0
      %v7778 = vadd.f32 0.0, %v7777
      %7779 = vmatmul.f32.gmra.mxu0 %v7668
      %v7780 = vpop.f32.mrf.mxu0
      %v7781 = vadd.f32 0.0, %v7780
      %7782 = vmatmul.f32.gmra.mxu0 %v7671
      %v7783 = vpop.f32.mrf.mxu0
      %v7784 = vadd.f32 0.0, %v7783
      %7785 = vmatmul.f32.gmra.mxu0 %v7674
      %v7786 = vpop.f32.mrf.mxu0
      %v7787 = vadd.f32 0.0, %v7786
      %7788 = vmatmul.f32.gmra.mxu0 %v7677
      %v7789 = vpop.f32.mrf.mxu0
      %v7790 = vadd.f32 0.0, %v7789
      %7791 = vmatmul.f32.gmra.mxu0 %v7680
      %v7792 = vpop.f32.mrf.mxu0
      %v7793 = vadd.f32 0.0, %v7792
      %7794 = vdwg.mxu0
      %v7795 = vadd.f32 %v7581, %v7700
      %v7796 = vadd.f32 %v7581, %v7703
      %v7797 = vadd.f32 %v7581, %v7706
      %v7798 = vadd.f32 %v7581, %v7709
      %v7799 = vadd.f32 %v7581, %v7712
      %v7800 = vadd.f32 %v7581, %v7715
      %v7801 = vadd.f32 %v7581, %v7718
      %v7802 = vadd.f32 %v7581, %v7721
      %v7803 = vadd.f32 %v7581, %v7724
      %v7804 = vadd.f32 %v7581, %v7727
      %v7805 = vadd.f32 %v7581, %v7730
      %v7806 = vadd.f32 %v7581, %v7733
      %v7807 = vadd.f32 %v7581, %v7736
      %v7808 = vadd.f32 %v7581, %v7739
      %v7809 = vadd.f32 %v7581, %v7742
      %v7810 = vadd.f32 %v7581, %v7745
      %v7811 = vadd.f32 %v7581, %v7748
      %v7812 = vadd.f32 %v7581, %v7751
      %v7813 = vadd.f32 %v7581, %v7754
      %v7814 = vadd.f32 %v7581, %v7757
      %v7815 = vadd.f32 %v7581, %v7760
      %v7816 = vadd.f32 %v7581, %v7763
      %v7817 = vadd.f32 %v7581, %v7766
      %v7818 = vadd.f32 %v7581, %v7769
      %v7819 = vadd.f32 %v7581, %v7772
      %v7820 = vadd.f32 %v7581, %v7775
      %v7821 = vadd.f32 %v7581, %v7778
      %v7822 = vadd.f32 %v7581, %v7781
      %v7823 = vadd.f32 %v7581, %v7784
      %v7824 = vadd.f32 %v7581, %v7787
      %v7825 = vadd.f32 %v7581, %v7790
      %v7826 = vadd.f32 %v7581, %v7793
      %s7827 = scalar_lea.vmem %s5, 32
      %v7828 = vld [vmem:[%s7827] sm:$0xff]
      %v7829 = vld [vmem:[%s7827 + $0x8] sm:$0xff]
      %v7830 = vld [vmem:[%s7827 + $0x10] sm:$0xff]
      %v7831 = vld [vmem:[%s7827 + $0x18] sm:$0xff]
      %v7833 = vsel %vm3448, %v6180, 0
      %v7836 = vsel %vm3448, %v6181, 0
      %v7839 = vsel %vm3448, %v6182, 0
      %v7842 = vsel %vm3448, %v6183, 0
      %v7845 = vsel %vm3448, %v6184, 0
      %v7848 = vsel %vm3448, %v6185, 0
      %v7851 = vsel %vm3448, %v6186, 0
      %v7854 = vsel %vm3448, %v6187, 0
      %v7857 = vsel %vm3448, %v6188, 0
      %v7860 = vsel %vm3448, %v6189, 0
      %v7863 = vsel %vm3448, %v6190, 0
      %v7866 = vsel %vm3448, %v6191, 0
      %v7869 = vsel %vm3448, %v6192, 0
      %v7872 = vsel %vm3448, %v6193, 0
      %v7875 = vsel %vm3448, %v6194, 0
      %v7878 = vsel %vm3448, %v6195, 0
      %v7881 = vsel %vm3448, %v6196, 0
      %v7884 = vsel %vm3448, %v6197, 0
      %v7887 = vsel %vm3448, %v6198, 0
      %v7890 = vsel %vm3448, %v6199, 0
      %v7893 = vsel %vm3448, %v6200, 0
      %v7896 = vsel %vm3448, %v6201, 0
      %v7899 = vsel %vm3448, %v6202, 0
      %v7902 = vsel %vm3448, %v6203, 0
      %v7905 = vsel %vm3448, %v6204, 0
      %v7908 = vsel %vm3448, %v6205, 0
      %v7911 = vsel %vm3448, %v6206, 0
      %v7914 = vsel %vm3448, %v6207, 0
      %v7917 = vsel %vm3448, %v6208, 0
      %v7920 = vsel %vm3448, %v6209, 0
      %v7923 = vsel %vm3448, %v6210, 0
      %v7926 = vsel %vm3448, %v6211, 0
      %7928 = vmatpush.msra.mxu0 0.0
      %7929 = vmatpush.msra.mxu0 0.0
      %7930 = vmatpush.msra.mxu0 0.0
      %7931 = vmatpush.msra.mxu0 0.0
      %7932 = vmatpush.msra.mxu0 0.0
      %7933 = vmatpush.msra.mxu0 0.0
      %7934 = vmatpush.msra.mxu0 0.0
      %7935 = vmatpush.msra.mxu0 0.0
      %7936 = vmatpush.msra.mxu0 0.0
      %7937 = vmatpush.msra.mxu0 0.0
      %7938 = vmatpush.msra.mxu0 0.0
      %7939 = vmatpush.msra.mxu0 0.0
      %7940 = vmatpush.msra.mxu0 %v7831
      %7941 = vmatpush.msra.mxu0 %v7830
      %7942 = vmatpush.msra.mxu0 %v7829
      %7943 = vmatpush.msra.mxu0 %v7828
      %7944 = vmatmul.f32.gmra.mxu0 %v7833
      %v7945 = vpop.f32.mrf.mxu0
      %v7946 = vadd.f32 0.0, %v7945
      %7947 = vmatmul.f32.gmra.mxu0 %v7836
      %v7948 = vpop.f32.mrf.mxu0
      %v7949 = vadd.f32 0.0, %v7948
      %7950 = vmatmul.f32.gmra.mxu0 %v7839
      %v7951 = vpop.f32.mrf.mxu0
      %v7952 = vadd.f32 0.0, %v7951
      %7953 = vmatmul.f32.gmra.mxu0 %v7842
      %v7954 = vpop.f32.mrf.mxu0
      %v7955 = vadd.f32 0.0, %v7954
      %7956 = vmatmul.f32.gmra.mxu0 %v7845
      %v7957 = vpop.f32.mrf.mxu0
      %v7958 = vadd.f32 0.0, %v7957
      %7959 = vmatmul.f32.gmra.mxu0 %v7848
      %v7960 = vpop.f32.mrf.mxu0
      %v7961 = vadd.f32 0.0, %v7960
      %7962 = vmatmul.f32.gmra.mxu0 %v7851
      %v7963 = vpop.f32.mrf.mxu0
      %v7964 = vadd.f32 0.0, %v7963
      %7965 = vmatmul.f32.gmra.mxu0 %v7854
      %v7966 = vpop.f32.mrf.mxu0
      %v7967 = vadd.f32 0.0, %v7966
      %7968 = vmatmul.f32.gmra.mxu0 %v7857
      %v7969 = vpop.f32.mrf.mxu0
      %v7970 = vadd.f32 0.0, %v7969
      %7971 = vmatmul.f32.gmra.mxu0 %v7860
      %v7972 = vpop.f32.mrf.mxu0
      %v7973 = vadd.f32 0.0, %v7972
      %7974 = vmatmul.f32.gmra.mxu0 %v7863
      %v7975 = vpop.f32.mrf.mxu0
      %v7976 = vadd.f32 0.0, %v7975
      %7977 = vmatmul.f32.gmra.mxu0 %v7866
      %v7978 = vpop.f32.mrf.mxu0
      %v7979 = vadd.f32 0.0, %v7978
      %7980 = vmatmul.f32.gmra.mxu0 %v7869
      %v7981 = vpop.f32.mrf.mxu0
      %v7982 = vadd.f32 0.0, %v7981
      %7983 = vmatmul.f32.gmra.mxu0 %v7872
      %v7984 = vpop.f32.mrf.mxu0
      %v7985 = vadd.f32 0.0, %v7984
      %7986 = vmatmul.f32.gmra.mxu0 %v7875
      %v7987 = vpop.f32.mrf.mxu0
      %v7988 = vadd.f32 0.0, %v7987
      %7989 = vmatmul.f32.gmra.mxu0 %v7878
      %v7990 = vpop.f32.mrf.mxu0
      %v7991 = vadd.f32 0.0, %v7990
      %7992 = vmatmul.f32.gmra.mxu0 %v7881
      %v7993 = vpop.f32.mrf.mxu0
      %v7994 = vadd.f32 0.0, %v7993
      %7995 = vmatmul.f32.gmra.mxu0 %v7884
      %v7996 = vpop.f32.mrf.mxu0
      %v7997 = vadd.f32 0.0, %v7996
      %7998 = vmatmul.f32.gmra.mxu0 %v7887
      %v7999 = vpop.f32.mrf.mxu0
      %v8000 = vadd.f32 0.0, %v7999
      %8001 = vmatmul.f32.gmra.mxu0 %v7890
      %v8002 = vpop.f32.mrf.mxu0
      %v8003 = vadd.f32 0.0, %v8002
      %8004 = vmatmul.f32.gmra.mxu0 %v7893
      %v8005 = vpop.f32.mrf.mxu0
      %v8006 = vadd.f32 0.0, %v8005
      %8007 = vmatmul.f32.gmra.mxu0 %v7896
      %v8008 = vpop.f32.mrf.mxu0
      %v8009 = vadd.f32 0.0, %v8008
      %8010 = vmatmul.f32.gmra.mxu0 %v7899
      %v8011 = vpop.f32.mrf.mxu0
      %v8012 = vadd.f32 0.0, %v8011
      %8013 = vmatmul.f32.gmra.mxu0 %v7902
      %v8014 = vpop.f32.mrf.mxu0
      %v8015 = vadd.f32 0.0, %v8014
      %8016 = vmatmul.f32.gmra.mxu0 %v7905
      %v8017 = vpop.f32.mrf.mxu0
      %v8018 = vadd.f32 0.0, %v8017
      %8019 = vmatmul.f32.gmra.mxu0 %v7908
      %v8020 = vpop.f32.mrf.mxu0
      %v8021 = vadd.f32 0.0, %v8020
      %8022 = vmatmul.f32.gmra.mxu0 %v7911
      %v8023 = vpop.f32.mrf.mxu0
      %v8024 = vadd.f32 0.0, %v8023
      %8025 = vmatmul.f32.gmra.mxu0 %v7914
      %v8026 = vpop.f32.mrf.mxu0
      %v8027 = vadd.f32 0.0, %v8026
      %8028 = vmatmul.f32.gmra.mxu0 %v7917
      %v8029 = vpop.f32.mrf.mxu0
      %v8030 = vadd.f32 0.0, %v8029
      %8031 = vmatmul.f32.gmra.mxu0 %v7920
      %v8032 = vpop.f32.mrf.mxu0
      %v8033 = vadd.f32 0.0, %v8032
      %8034 = vmatmul.f32.gmra.mxu0 %v7923
      %v8035 = vpop.f32.mrf.mxu0
      %v8036 = vadd.f32 0.0, %v8035
      %8037 = vmatmul.f32.gmra.mxu0 %v7926
      %v8038 = vpop.f32.mrf.mxu0
      %v8039 = vadd.f32 0.0, %v8038
      %8040 = vdwg.mxu0
      %v8041 = vadd.f32 %v7795, %v7946
      %v8042 = vadd.f32 %v7796, %v7949
      %v8043 = vadd.f32 %v7797, %v7952
      %v8044 = vadd.f32 %v7798, %v7955
      %v8045 = vadd.f32 %v7799, %v7958
      %v8046 = vadd.f32 %v7800, %v7961
      %v8047 = vadd.f32 %v7801, %v7964
      %v8048 = vadd.f32 %v7802, %v7967
      %v8049 = vadd.f32 %v7803, %v7970
      %v8050 = vadd.f32 %v7804, %v7973
      %v8051 = vadd.f32 %v7805, %v7976
      %v8052 = vadd.f32 %v7806, %v7979
      %v8053 = vadd.f32 %v7807, %v7982
      %v8054 = vadd.f32 %v7808, %v7985
      %v8055 = vadd.f32 %v7809, %v7988
      %v8056 = vadd.f32 %v7810, %v7991
      %v8057 = vadd.f32 %v7811, %v7994
      %v8058 = vadd.f32 %v7812, %v7997
      %v8059 = vadd.f32 %v7813, %v8000
      %v8060 = vadd.f32 %v7814, %v8003
      %v8061 = vadd.f32 %v7815, %v8006
      %v8062 = vadd.f32 %v7816, %v8009
      %v8063 = vadd.f32 %v7817, %v8012
      %v8064 = vadd.f32 %v7818, %v8015
      %v8065 = vadd.f32 %v7819, %v8018
      %v8066 = vadd.f32 %v7820, %v8021
      %v8067 = vadd.f32 %v7821, %v8024
      %v8068 = vadd.f32 %v7822, %v8027
      %v8069 = vadd.f32 %v7823, %v8030
      %v8070 = vadd.f32 %v7824, %v8033
      %v8071 = vadd.f32 %v7825, %v8036
      %v8072 = vadd.f32 %v7826, %v8039
      %s8073 = scalar_lea.vmem %s5, 64
      %v8074 = vld [vmem:[%s8073] sm:$0xff]
      %v8075 = vld [vmem:[%s8073 + $0x8] sm:$0xff]
      %v8076 = vld [vmem:[%s8073 + $0x10] sm:$0xff]
      %v8077 = vld [vmem:[%s8073 + $0x18] sm:$0xff]
      %v8079 = vsel %vm3448, %v7547, 0
      %v8082 = vsel %vm3448, %v7548, 0
      %v8085 = vsel %vm3448, %v7549, 0
      %v8088 = vsel %vm3448, %v7550, 0
      %v8091 = vsel %vm3448, %v7551, 0
      %v8094 = vsel %vm3448, %v7552, 0
      %v8097 = vsel %vm3448, %v7553, 0
      %v8100 = vsel %vm3448, %v7554, 0
      %v8103 = vsel %vm3448, %v7555, 0
      %v8106 = vsel %vm3448, %v7556, 0
      %v8109 = vsel %vm3448, %v7557, 0
      %v8112 = vsel %vm3448, %v7558, 0
      %v8115 = vsel %vm3448, %v7559, 0
      %v8118 = vsel %vm3448, %v7560, 0
      %v8121 = vsel %vm3448, %v7561, 0
      %v8124 = vsel %vm3448, %v7562, 0
      %v8127 = vsel %vm3448, %v7563, 0
      %v8130 = vsel %vm3448, %v7564, 0
      %v8133 = vsel %vm3448, %v7565, 0
      %v8136 = vsel %vm3448, %v7566, 0
      %v8139 = vsel %vm3448, %v7567, 0
      %v8142 = vsel %vm3448, %v7568, 0
      %v8145 = vsel %vm3448, %v7569, 0
      %v8148 = vsel %vm3448, %v7570, 0
      %v8151 = vsel %vm3448, %v7571, 0
      %v8154 = vsel %vm3448, %v7572, 0
      %v8157 = vsel %vm3448, %v7573, 0
      %v8160 = vsel %vm3448, %v7574, 0
      %v8163 = vsel %vm3448, %v7575, 0
      %v8166 = vsel %vm3448, %v7576, 0
      %v8169 = vsel %vm3448, %v7577, 0
      %v8172 = vsel %vm3448, %v7578, 0
      %8174 = vmatpush.msra.mxu0 0.0
      %8175 = vmatpush.msra.mxu0 0.0
      %8176 = vmatpush.msra.mxu0 0.0
      %8177 = vmatpush.msra.mxu0 0.0
      %8178 = vmatpush.msra.mxu0 0.0
      %8179 = vmatpush.msra.mxu0 0.0
      %8180 = vmatpush.msra.mxu0 0.0
      %8181 = vmatpush.msra.mxu0 0.0
      %8182 = vmatpush.msra.mxu0 0.0
      %8183 = vmatpush.msra.mxu0 0.0
      %8184 = vmatpush.msra.mxu0 0.0
      %8185 = vmatpush.msra.mxu0 0.0
      %8186 = vmatpush.msra.mxu0 %v8077
      %8187 = vmatpush.msra.mxu0 %v8076
      %8188 = vmatpush.msra.mxu0 %v8075
      %8189 = vmatpush.msra.mxu0 %v8074
      %8190 = vmatmul.f32.gmra.mxu0 %v8079
      %v8191 = vpop.f32.mrf.mxu0
      %v8192 = vadd.f32 0.0, %v8191
      %8193 = vmatmul.f32.gmra.mxu0 %v8082
      %v8194 = vpop.f32.mrf.mxu0
      %v8195 = vadd.f32 0.0, %v8194
      %8196 = vmatmul.f32.gmra.mxu0 %v8085
      %v8197 = vpop.f32.mrf.mxu0
      %v8198 = vadd.f32 0.0, %v8197
      %8199 = vmatmul.f32.gmra.mxu0 %v8088
      %v8200 = vpop.f32.mrf.mxu0
      %v8201 = vadd.f32 0.0, %v8200
      %8202 = vmatmul.f32.gmra.mxu0 %v8091
      %v8203 = vpop.f32.mrf.mxu0
      %v8204 = vadd.f32 0.0, %v8203
      %8205 = vmatmul.f32.gmra.mxu0 %v8094
      %v8206 = vpop.f32.mrf.mxu0
      %v8207 = vadd.f32 0.0, %v8206
      %8208 = vmatmul.f32.gmra.mxu0 %v8097
      %v8209 = vpop.f32.mrf.mxu0
      %v8210 = vadd.f32 0.0, %v8209
      %8211 = vmatmul.f32.gmra.mxu0 %v8100
      %v8212 = vpop.f32.mrf.mxu0
      %v8213 = vadd.f32 0.0, %v8212
      %8214 = vmatmul.f32.gmra.mxu0 %v8103
      %v8215 = vpop.f32.mrf.mxu0
      %v8216 = vadd.f32 0.0, %v8215
      %8217 = vmatmul.f32.gmra.mxu0 %v8106
      %v8218 = vpop.f32.mrf.mxu0
      %v8219 = vadd.f32 0.0, %v8218
      %8220 = vmatmul.f32.gmra.mxu0 %v8109
      %v8221 = vpop.f32.mrf.mxu0
      %v8222 = vadd.f32 0.0, %v8221
      %8223 = vmatmul.f32.gmra.mxu0 %v8112
      %v8224 = vpop.f32.mrf.mxu0
      %v8225 = vadd.f32 0.0, %v8224
      %8226 = vmatmul.f32.gmra.mxu0 %v8115
      %v8227 = vpop.f32.mrf.mxu0
      %v8228 = vadd.f32 0.0, %v8227
      %8229 = vmatmul.f32.gmra.mxu0 %v8118
      %v8230 = vpop.f32.mrf.mxu0
      %v8231 = vadd.f32 0.0, %v8230
      %8232 = vmatmul.f32.gmra.mxu0 %v8121
      %v8233 = vpop.f32.mrf.mxu0
      %v8234 = vadd.f32 0.0, %v8233
      %8235 = vmatmul.f32.gmra.mxu0 %v8124
      %v8236 = vpop.f32.mrf.mxu0
      %v8237 = vadd.f32 0.0, %v8236
      %8238 = vmatmul.f32.gmra.mxu0 %v8127
      %v8239 = vpop.f32.mrf.mxu0
      %v8240 = vadd.f32 0.0, %v8239
      %8241 = vmatmul.f32.gmra.mxu0 %v8130
      %v8242 = vpop.f32.mrf.mxu0
      %v8243 = vadd.f32 0.0, %v8242
      %8244 = vmatmul.f32.gmra.mxu0 %v8133
      %v8245 = vpop.f32.mrf.mxu0
      %v8246 = vadd.f32 0.0, %v8245
      %8247 = vmatmul.f32.gmra.mxu0 %v8136
      %v8248 = vpop.f32.mrf.mxu0
      %v8249 = vadd.f32 0.0, %v8248
      %8250 = vmatmul.f32.gmra.mxu0 %v8139
      %v8251 = vpop.f32.mrf.mxu0
      %v8252 = vadd.f32 0.0, %v8251
      %8253 = vmatmul.f32.gmra.mxu0 %v8142
      %v8254 = vpop.f32.mrf.mxu0
      %v8255 = vadd.f32 0.0, %v8254
      %8256 = vmatmul.f32.gmra.mxu0 %v8145
      %v8257 = vpop.f32.mrf.mxu0
      %v8258 = vadd.f32 0.0, %v8257
      %8259 = vmatmul.f32.gmra.mxu0 %v8148
      %v8260 = vpop.f32.mrf.mxu0
      %v8261 = vadd.f32 0.0, %v8260
      %8262 = vmatmul.f32.gmra.mxu0 %v8151
      %v8263 = vpop.f32.mrf.mxu0
      %v8264 = vadd.f32 0.0, %v8263
      %8265 = vmatmul.f32.gmra.mxu0 %v8154
      %v8266 = vpop.f32.mrf.mxu0
      %v8267 = vadd.f32 0.0, %v8266
      %8268 = vmatmul.f32.gmra.mxu0 %v8157
      %v8269 = vpop.f32.mrf.mxu0
      %v8270 = vadd.f32 0.0, %v8269
      %8271 = vmatmul.f32.gmra.mxu0 %v8160
      %v8272 = vpop.f32.mrf.mxu0
      %v8273 = vadd.f32 0.0, %v8272
      %8274 = vmatmul.f32.gmra.mxu0 %v8163
      %v8275 = vpop.f32.mrf.mxu0
      %v8276 = vadd.f32 0.0, %v8275
      %8277 = vmatmul.f32.gmra.mxu0 %v8166
      %v8278 = vpop.f32.mrf.mxu0
      %v8279 = vadd.f32 0.0, %v8278
      %8280 = vmatmul.f32.gmra.mxu0 %v8169
      %v8281 = vpop.f32.mrf.mxu0
      %v8282 = vadd.f32 0.0, %v8281
      %8283 = vmatmul.f32.gmra.mxu0 %v8172
      %v8284 = vpop.f32.mrf.mxu0
      %v8285 = vadd.f32 0.0, %v8284
      %8286 = vdwg.mxu0
      %v8287 = vadd.f32 %v8041, %v8192
      %v8288 = vadd.f32 %v8042, %v8195
      %v8289 = vadd.f32 %v8043, %v8198
      %v8290 = vadd.f32 %v8044, %v8201
      %v8291 = vadd.f32 %v8045, %v8204
      %v8292 = vadd.f32 %v8046, %v8207
      %v8293 = vadd.f32 %v8047, %v8210
      %v8294 = vadd.f32 %v8048, %v8213
      %v8295 = vadd.f32 %v8049, %v8216
      %v8296 = vadd.f32 %v8050, %v8219
      %v8297 = vadd.f32 %v8051, %v8222
      %v8298 = vadd.f32 %v8052, %v8225
      %v8299 = vadd.f32 %v8053, %v8228
      %v8300 = vadd.f32 %v8054, %v8231
      %v8301 = vadd.f32 %v8055, %v8234
      %v8302 = vadd.f32 %v8056, %v8237
      %v8303 = vadd.f32 %v8057, %v8240
      %v8304 = vadd.f32 %v8058, %v8243
      %v8305 = vadd.f32 %v8059, %v8246
      %v8306 = vadd.f32 %v8060, %v8249
      %v8307 = vadd.f32 %v8061, %v8252
      %v8308 = vadd.f32 %v8062, %v8255
      %v8309 = vadd.f32 %v8063, %v8258
      %v8310 = vadd.f32 %v8064, %v8261
      %v8311 = vadd.f32 %v8065, %v8264
      %v8312 = vadd.f32 %v8066, %v8267
      %v8313 = vadd.f32 %v8067, %v8270
      %v8314 = vadd.f32 %v8068, %v8273
      %v8315 = vadd.f32 %v8069, %v8276
      %v8316 = vadd.f32 %v8070, %v8279
      %v8317 = vadd.f32 %v8071, %v8282
      %v8318 = vadd.f32 %v8072, %v8285
      %vm8319 = vcmp.ge.f32.partialorder %v8287, 0.0
      %vm8320 = vcmp.ge.f32.partialorder %v8288, 0.0
      %vm8321 = vcmp.ge.f32.partialorder %v8289, 0.0
      %vm8322 = vcmp.ge.f32.partialorder %v8290, 0.0
      %vm8323 = vcmp.ge.f32.partialorder %v8291, 0.0
      %vm8324 = vcmp.ge.f32.partialorder %v8292, 0.0
      %vm8325 = vcmp.ge.f32.partialorder %v8293, 0.0
      %vm8326 = vcmp.ge.f32.partialorder %v8294, 0.0
      %vm8327 = vcmp.ge.f32.partialorder %v8295, 0.0
      %vm8328 = vcmp.ge.f32.partialorder %v8296, 0.0
      %vm8329 = vcmp.ge.f32.partialorder %v8297, 0.0
      %vm8330 = vcmp.ge.f32.partialorder %v8298, 0.0
      %vm8331 = vcmp.ge.f32.partialorder %v8299, 0.0
      %vm8332 = vcmp.ge.f32.partialorder %v8300, 0.0
      %vm8333 = vcmp.ge.f32.partialorder %v8301, 0.0
      %vm8334 = vcmp.ge.f32.partialorder %v8302, 0.0
      %vm8335 = vcmp.ge.f32.partialorder %v8303, 0.0
      %vm8336 = vcmp.ge.f32.partialorder %v8304, 0.0
      %vm8337 = vcmp.ge.f32.partialorder %v8305, 0.0
      %vm8338 = vcmp.ge.f32.partialorder %v8306, 0.0
      %vm8339 = vcmp.ge.f32.partialorder %v8307, 0.0
      %vm8340 = vcmp.ge.f32.partialorder %v8308, 0.0
      %vm8341 = vcmp.ge.f32.partialorder %v8309, 0.0
      %vm8342 = vcmp.ge.f32.partialorder %v8310, 0.0
      %vm8343 = vcmp.ge.f32.partialorder %v8311, 0.0
      %vm8344 = vcmp.ge.f32.partialorder %v8312, 0.0
      %vm8345 = vcmp.ge.f32.partialorder %v8313, 0.0
      %vm8346 = vcmp.ge.f32.partialorder %v8314, 0.0
      %vm8347 = vcmp.ge.f32.partialorder %v8315, 0.0
      %vm8348 = vcmp.ge.f32.partialorder %v8316, 0.0
      %vm8349 = vcmp.ge.f32.partialorder %v8317, 0.0
      %vm8350 = vcmp.ge.f32.partialorder %v8318, 0.0
      %v8351 = vmul.f32 %v8287, 0.01
      %v8352 = vmul.f32 %v8288, 0.01
      %v8353 = vmul.f32 %v8289, 0.01
      %v8354 = vmul.f32 %v8290, 0.01
      %v8355 = vmul.f32 %v8291, 0.01
      %v8356 = vmul.f32 %v8292, 0.01
      %v8357 = vmul.f32 %v8293, 0.01
      %v8358 = vmul.f32 %v8294, 0.01
      %v8359 = vmul.f32 %v8295, 0.01
      %v8360 = vmul.f32 %v8296, 0.01
      %v8361 = vmul.f32 %v8297, 0.01
      %v8362 = vmul.f32 %v8298, 0.01
      %v8363 = vmul.f32 %v8299, 0.01
      %v8364 = vmul.f32 %v8300, 0.01
      %v8365 = vmul.f32 %v8301, 0.01
      %v8366 = vmul.f32 %v8302, 0.01
      %v8367 = vmul.f32 %v8303, 0.01
      %v8368 = vmul.f32 %v8304, 0.01
      %v8369 = vmul.f32 %v8305, 0.01
      %v8370 = vmul.f32 %v8306, 0.01
      %v8371 = vmul.f32 %v8307, 0.01
      %v8372 = vmul.f32 %v8308, 0.01
      %v8373 = vmul.f32 %v8309, 0.01
      %v8374 = vmul.f32 %v8310, 0.01
      %v8375 = vmul.f32 %v8311, 0.01
      %v8376 = vmul.f32 %v8312, 0.01
      %v8377 = vmul.f32 %v8313, 0.01
      %v8378 = vmul.f32 %v8314, 0.01
      %v8379 = vmul.f32 %v8315, 0.01
      %v8380 = vmul.f32 %v8316, 0.01
      %v8381 = vmul.f32 %v8317, 0.01
      %v8382 = vmul.f32 %v8318, 0.01
      %v8383 = vsel %vm8319, %v8287, %v8351
      %v8384 = vsel %vm8320, %v8288, %v8352
      %v8385 = vsel %vm8321, %v8289, %v8353
      %v8386 = vsel %vm8322, %v8290, %v8354
      %v8387 = vsel %vm8323, %v8291, %v8355
      %v8388 = vsel %vm8324, %v8292, %v8356
      %v8389 = vsel %vm8325, %v8293, %v8357
      %v8390 = vsel %vm8326, %v8294, %v8358
      %v8391 = vsel %vm8327, %v8295, %v8359
      %v8392 = vsel %vm8328, %v8296, %v8360
      %v8393 = vsel %vm8329, %v8297, %v8361
      %v8394 = vsel %vm8330, %v8298, %v8362
      %v8395 = vsel %vm8331, %v8299, %v8363
      %v8396 = vsel %vm8332, %v8300, %v8364
      %v8397 = vsel %vm8333, %v8301, %v8365
      %v8398 = vsel %vm8334, %v8302, %v8366
      %v8399 = vsel %vm8335, %v8303, %v8367
      %v8400 = vsel %vm8336, %v8304, %v8368
      %v8401 = vsel %vm8337, %v8305, %v8369
      %v8402 = vsel %vm8338, %v8306, %v8370
      %v8403 = vsel %vm8339, %v8307, %v8371
      %v8404 = vsel %vm8340, %v8308, %v8372
      %v8405 = vsel %vm8341, %v8309, %v8373
      %v8406 = vsel %vm8342, %v8310, %v8374
      %v8407 = vsel %vm8343, %v8311, %v8375
      %v8408 = vsel %vm8344, %v8312, %v8376
      %v8409 = vsel %vm8345, %v8313, %v8377
      %v8410 = vsel %vm8346, %v8314, %v8378
      %v8411 = vsel %vm8347, %v8315, %v8379
      %v8412 = vsel %vm8348, %v8316, %v8380
      %v8413 = vsel %vm8349, %v8317, %v8381
      %v8414 = vsel %vm8350, %v8318, %v8382
      %v8415 = vld [vmem:[%s6 + $0xb] sm:$0x1]
      %v8416 = vperm.slane %v8415, 0
      %v8417 = vmul.f32 %v8383, %v8416
      %v8418 = vmul.f32 %v8384, %v8416
      %v8419 = vmul.f32 %v8385, %v8416
      %v8420 = vmul.f32 %v8386, %v8416
      %v8421 = vmul.f32 %v8387, %v8416
      %v8422 = vmul.f32 %v8388, %v8416
      %v8423 = vmul.f32 %v8389, %v8416
      %v8424 = vmul.f32 %v8390, %v8416
      %v8425 = vmul.f32 %v8391, %v8416
      %v8426 = vmul.f32 %v8392, %v8416
      %v8427 = vmul.f32 %v8393, %v8416
      %v8428 = vmul.f32 %v8394, %v8416
      %v8429 = vmul.f32 %v8395, %v8416
      %v8430 = vmul.f32 %v8396, %v8416
      %v8431 = vmul.f32 %v8397, %v8416
      %v8432 = vmul.f32 %v8398, %v8416
      %v8433 = vmul.f32 %v8399, %v8416
      %v8434 = vmul.f32 %v8400, %v8416
      %v8435 = vmul.f32 %v8401, %v8416
      %v8436 = vmul.f32 %v8402, %v8416
      %v8437 = vmul.f32 %v8403, %v8416
      %v8438 = vmul.f32 %v8404, %v8416
      %v8439 = vmul.f32 %v8405, %v8416
      %v8440 = vmul.f32 %v8406, %v8416
      %v8441 = vmul.f32 %v8407, %v8416
      %v8442 = vmul.f32 %v8408, %v8416
      %v8443 = vmul.f32 %v8409, %v8416
      %v8444 = vmul.f32 %v8410, %v8416
      %v8445 = vmul.f32 %v8411, %v8416
      %v8446 = vmul.f32 %v8412, %v8416
      %v8447 = vmul.f32 %v8413, %v8416
      %v8448 = vmul.f32 %v8414, %v8416
      %v8449 = vld [vmem:[%s6 + $0xc] sm:$0x1]
      %v8450 = vperm.slane %v8449, 0
      %v8451 = vadd.f32 %v8417, %v8450
      %v8452 = vadd.f32 %v8418, %v8450
      %v8453 = vadd.f32 %v8419, %v8450
      %v8454 = vadd.f32 %v8420, %v8450
      %v8455 = vadd.f32 %v8421, %v8450
      %v8456 = vadd.f32 %v8422, %v8450
      %v8457 = vadd.f32 %v8423, %v8450
      %v8458 = vadd.f32 %v8424, %v8450
      %v8459 = vadd.f32 %v8425, %v8450
      %v8460 = vadd.f32 %v8426, %v8450
      %v8461 = vadd.f32 %v8427, %v8450
      %v8462 = vadd.f32 %v8428, %v8450
      %v8463 = vadd.f32 %v8429, %v8450
      %v8464 = vadd.f32 %v8430, %v8450
      %v8465 = vadd.f32 %v8431, %v8450
      %v8466 = vadd.f32 %v8432, %v8450
      %v8467 = vadd.f32 %v8433, %v8450
      %v8468 = vadd.f32 %v8434, %v8450
      %v8469 = vadd.f32 %v8435, %v8450
      %v8470 = vadd.f32 %v8436, %v8450
      %v8471 = vadd.f32 %v8437, %v8450
      %v8472 = vadd.f32 %v8438, %v8450
      %v8473 = vadd.f32 %v8439, %v8450
      %v8474 = vadd.f32 %v8440, %v8450
      %v8475 = vadd.f32 %v8441, %v8450
      %v8476 = vadd.f32 %v8442, %v8450
      %v8477 = vadd.f32 %v8443, %v8450
      %v8478 = vadd.f32 %v8444, %v8450
      %v8479 = vadd.f32 %v8445, %v8450
      %v8480 = vadd.f32 %v8446, %v8450
      %v8481 = vadd.f32 %v8447, %v8450
      %v8482 = vadd.f32 %v8448, %v8450
      %v8483 = vadd.f32 %v8451, %v659
      %v8484 = vadd.f32 %v8452, %v660
      %v8485 = vadd.f32 %v8453, %v661
      %v8486 = vadd.f32 %v8454, %v662
      %v8487 = vadd.f32 %v8455, %v663
      %v8488 = vadd.f32 %v8456, %v664
      %v8489 = vadd.f32 %v8457, %v665
      %v8490 = vadd.f32 %v8458, %v666
      %v8491 = vadd.f32 %v8459, %v667
      %v8492 = vadd.f32 %v8460, %v668
      %v8493 = vadd.f32 %v8461, %v669
      %v8494 = vadd.f32 %v8462, %v670
      %v8495 = vadd.f32 %v8463, %v671
      %v8496 = vadd.f32 %v8464, %v672
      %v8497 = vadd.f32 %v8465, %v673
      %v8498 = vadd.f32 %v8466, %v674
      %v8499 = vadd.f32 %v8467, %v675
      %v8500 = vadd.f32 %v8468, %v676
      %v8501 = vadd.f32 %v8469, %v677
      %v8502 = vadd.f32 %v8470, %v678
      %v8503 = vadd.f32 %v8471, %v679
      %v8504 = vadd.f32 %v8472, %v680
      %v8505 = vadd.f32 %v8473, %v681
      %v8506 = vadd.f32 %v8474, %v682
      %v8507 = vadd.f32 %v8475, %v683
      %v8508 = vadd.f32 %v8476, %v684
      %v8509 = vadd.f32 %v8477, %v685
      %v8510 = vadd.f32 %v8478, %v686
      %v8511 = vadd.f32 %v8479, %v687
      %v8512 = vadd.f32 %v8480, %v688
      %v8513 = vadd.f32 %v8481, %v689
      %v8514 = vadd.f32 %v8482, %v690
      %8515 = vxpose.xlu0.b32.start [1/16] %v8483, 128
      %8516 = vxpose.xlu0.b32.cont [2/16] %v8484, 128
      %8517 = vxpose.xlu0.b32.cont [3/16] %v8485, 128
      %8518 = vxpose.xlu0.b32.cont [4/16] %v8486, 128
      %8519 = vxpose.xlu0.b32.cont [5/16] %v8487, 128
      %8520 = vxpose.xlu0.b32.cont [6/16] %v8488, 128
      %8521 = vxpose.xlu0.b32.cont [7/16] %v8489, 128
      %8522 = vxpose.xlu0.b32.cont [8/16] %v8490, 128
      %8523 = vxpose.xlu0.b32.cont [9/16] %v8491, 128
      %8524 = vxpose.xlu0.b32.cont [10/16] %v8492, 128
      %8525 = vxpose.xlu0.b32.cont [11/16] %v8493, 128
      %8526 = vxpose.xlu0.b32.cont [12/16] %v8494, 128
      %8527 = vxpose.xlu0.b32.cont [13/16] %v8495, 128
      %8528 = vxpose.xlu0.b32.cont [14/16] %v8496, 128
      %8529 = vxpose.xlu0.b32.cont [15/16] %v8497, 128
      %8530 = vxpose.xlu0.b32.end [16/16] %v8498, 128
      %v8531 = vpop.trf.xlu0
      %v8532 = vpop.trf.xlu0
      %v8533 = vpop.trf.xlu0
      %v8534 = vpop.trf.xlu0
      %v8535 = vpop.trf.xlu0
      %v8536 = vpop.trf.xlu0
      %v8537 = vpop.trf.xlu0
      %v8538 = vpop.trf.xlu0
      %v8539 = vpop.trf.xlu0
      %v8540 = vpop.trf.xlu0
      %v8541 = vpop.trf.xlu0
      %v8542 = vpop.trf.xlu0
      %v8543 = vpop.trf.xlu0
      %v8544 = vpop.trf.xlu0
      %v8545 = vpop.trf.xlu0
      %v8546 = vpop.trf.xlu0
      %8547 = vxpose.xlu0.b32.start [1/16] %v8499, 128
      %8548 = vxpose.xlu0.b32.cont [2/16] %v8500, 128
      %8549 = vxpose.xlu0.b32.cont [3/16] %v8501, 128
      %8550 = vxpose.xlu0.b32.cont [4/16] %v8502, 128
      %8551 = vxpose.xlu0.b32.cont [5/16] %v8503, 128
      %8552 = vxpose.xlu0.b32.cont [6/16] %v8504, 128
      %8553 = vxpose.xlu0.b32.cont [7/16] %v8505, 128
      %8554 = vxpose.xlu0.b32.cont [8/16] %v8506, 128
      %8555 = vxpose.xlu0.b32.cont [9/16] %v8507, 128
      %8556 = vxpose.xlu0.b32.cont [10/16] %v8508, 128
      %8557 = vxpose.xlu0.b32.cont [11/16] %v8509, 128
      %8558 = vxpose.xlu0.b32.cont [12/16] %v8510, 128
      %8559 = vxpose.xlu0.b32.cont [13/16] %v8511, 128
      %8560 = vxpose.xlu0.b32.cont [14/16] %v8512, 128
      %8561 = vxpose.xlu0.b32.cont [15/16] %v8513, 128
      %8562 = vxpose.xlu0.b32.end [16/16] %v8514, 128
      %v8563 = vpop.trf.xlu0
      %v8564 = vpop.trf.xlu0
      %v8565 = vpop.trf.xlu0
      %v8566 = vpop.trf.xlu0
      %v8567 = vpop.trf.xlu0
      %v8568 = vpop.trf.xlu0
      %v8569 = vpop.trf.xlu0
      %v8570 = vpop.trf.xlu0
      %v8571 = vpop.trf.xlu0
      %v8572 = vpop.trf.xlu0
      %v8573 = vpop.trf.xlu0
      %v8574 = vpop.trf.xlu0
      %v8575 = vpop.trf.xlu0
      %v8576 = vpop.trf.xlu0
      %v8577 = vpop.trf.xlu0
      %v8578 = vpop.trf.xlu0
      %8579 = vst [vmem:[%s340] sm:$0xff] %v8531
      %8580 = vst [vmem:[%s340 + $0x8] sm:$0xff] %v8563
      %8581 = vst [vmem:[%s340 + $0x10] sm:$0xff] %v8532
      %8582 = vst [vmem:[%s340 + $0x18] sm:$0xff] %v8564
      %8583 = vst [vmem:[%s340 + $0x20] sm:$0xff] %v8533
      %8584 = vst [vmem:[%s340 + $0x28] sm:$0xff] %v8565
      %8585 = vst [vmem:[%s340 + $0x30] sm:$0xff] %v8534
      %8586 = vst [vmem:[%s340 + $0x38] sm:$0xff] %v8566
      %v8587 = vld [vmem:[%s7] sm:$0xff]
      %v8588 = vld [vmem:[%s7 + $0x8] sm:$0xff]
      %v8589 = vld [vmem:[%s7 + $0x10] sm:$0xff]
      %v8590 = vld [vmem:[%s7 + $0x18] sm:$0xff]
      %v8591 = vld [vmem:[%s7 + $0x20] sm:$0xff]
      %v8592 = vld [vmem:[%s7 + $0x28] sm:$0xff]
      %v8593 = vld [vmem:[%s7 + $0x30] sm:$0xff]
      %v8594 = vld [vmem:[%s7 + $0x38] sm:$0xff]
      %v8595 = vld [vmem:[%s7 + $0x40] sm:$0xff]
      %v8596 = vld [vmem:[%s7 + $0x48] sm:$0xff]
      %v8597 = vld [vmem:[%s7 + $0x50] sm:$0xff]
      %v8598 = vld [vmem:[%s7 + $0x58] sm:$0xff]
      %v8599 = vld [vmem:[%s7 + $0x60] sm:$0xff]
      %v8600 = vld [vmem:[%s7 + $0x68] sm:$0xff]
      %v8601 = vld [vmem:[%s7 + $0x70] sm:$0xff]
      %v8602 = vld [vmem:[%s7 + $0x78] sm:$0xff]
      %v8603 = vld [vmem:[%s7 + $0x80] sm:$0xff]
      %v8604 = vld [vmem:[%s7 + $0x88] sm:$0xff]
      %v8605 = vld [vmem:[%s7 + $0x90] sm:$0xff]
      %v8606 = vld [vmem:[%s7 + $0x98] sm:$0xff]
      %v8607 = vld [vmem:[%s7 + $0xa0] sm:$0xff]
      %v8608 = vld [vmem:[%s7 + $0xa8] sm:$0xff]
      %v8609 = vld [vmem:[%s7 + $0xb0] sm:$0xff]
      %v8610 = vld [vmem:[%s7 + $0xb8] sm:$0xff]
      %v8611 = vld [vmem:[%s7 + $0xc0] sm:$0xff]
      %v8612 = vld [vmem:[%s7 + $0xc8] sm:$0xff]
      %v8613 = vld [vmem:[%s7 + $0xd0] sm:$0xff]
      %v8614 = vld [vmem:[%s7 + $0xd8] sm:$0xff]
      %v8615 = vld [vmem:[%s7 + $0xe0] sm:$0xff]
      %v8616 = vld [vmem:[%s7 + $0xe8] sm:$0xff]
      %v8617 = vld [vmem:[%s7 + $0xf0] sm:$0xff]
      %v8618 = vld [vmem:[%s7 + $0xf8] sm:$0xff]
      %8619 = vmatpush.msra.mxu0 %v8602
      %8620 = vmatpush.msra.mxu0 %v8601
      %8621 = vmatpush.msra.mxu0 %v8600
      %8622 = vmatpush.msra.mxu0 %v8599
      %8623 = vmatpush.msra.mxu0 %v8598
      %8624 = vmatpush.msra.mxu0 %v8597
      %8625 = vmatpush.msra.mxu0 %v8596
      %8626 = vmatpush.msra.mxu0 %v8595
      %8627 = vmatpush.msra.mxu0 %v8594
      %8628 = vmatpush.msra.mxu0 %v8593
      %8629 = vmatpush.msra.mxu0 %v8592
      %8630 = vmatpush.msra.mxu0 %v8591
      %8631 = vmatpush.msra.mxu0 %v8590
      %8632 = vmatpush.msra.mxu0 %v8589
      %8633 = vmatpush.msra.mxu0 %v8588
      %8634 = vmatpush.msra.mxu0 %v8587
      %8635 = vmatmul.f32.gmra.mxu0 %v8531
      %v8636 = vpop.f32.mrf.mxu0
      %v8637 = vadd.f32 0.0, %v8636
      %8638 = vmatmul.f32.gmra.mxu0 %v8532
      %v8639 = vpop.f32.mrf.mxu0
      %v8640 = vadd.f32 0.0, %v8639
      %8641 = vmatmul.f32.gmra.mxu0 %v8533
      %v8642 = vpop.f32.mrf.mxu0
      %v8643 = vadd.f32 0.0, %v8642
      %8644 = vmatmul.f32.gmra.mxu0 %v8534
      %v8645 = vpop.f32.mrf.mxu0
      %v8646 = vadd.f32 0.0, %v8645
      %8647 = vdwg.mxu0
      %8648 = vmatpush.msra.mxu0 %v8618
      %8649 = vmatpush.msra.mxu0 %v8617
      %8650 = vmatpush.msra.mxu0 %v8616
      %8651 = vmatpush.msra.mxu0 %v8615
      %8652 = vmatpush.msra.mxu0 %v8614
      %8653 = vmatpush.msra.mxu0 %v8613
      %8654 = vmatpush.msra.mxu0 %v8612
      %8655 = vmatpush.msra.mxu0 %v8611
      %8656 = vmatpush.msra.mxu0 %v8610
      %8657 = vmatpush.msra.mxu0 %v8609
      %8658 = vmatpush.msra.mxu0 %v8608
      %8659 = vmatpush.msra.mxu0 %v8607
      %8660 = vmatpush.msra.mxu0 %v8606
      %8661 = vmatpush.msra.mxu0 %v8605
      %8662 = vmatpush.msra.mxu0 %v8604
      %8663 = vmatpush.msra.mxu0 %v8603
      %8664 = vmatmul.f32.gmra.mxu0 %v8563
      %v8665 = vpop.f32.mrf.mxu0
      %v8666 = vadd.f32 %v8637, %v8665
      %8667 = vmatmul.f32.gmra.mxu0 %v8564
      %v8668 = vpop.f32.mrf.mxu0
      %v8669 = vadd.f32 %v8640, %v8668
      %8670 = vmatmul.f32.gmra.mxu0 %v8565
      %v8671 = vpop.f32.mrf.mxu0
      %v8672 = vadd.f32 %v8643, %v8671
      %8673 = vmatmul.f32.gmra.mxu0 %v8566
      %v8674 = vpop.f32.mrf.mxu0
      %v8675 = vadd.f32 %v8646, %v8674
      %8676 = vdwg.mxu0
      %vm8677 = vcmask 523264
      %8678 = vst.msk [vmem:[%s345] sm:$0xff] %vm8677, %v8666
      %8679 = vst.msk [vmem:[%s345 + $0x8] sm:$0xff] %vm8677, %v8669
      %8680 = vst.msk [vmem:[%s345 + $0x10] sm:$0xff] %vm8677, %v8672
      %8681 = vst.msk [vmem:[%s345 + $0x18] sm:$0xff] %vm8677, %v8675
      %p8682 = scmp.lt.s32.totalorder %s21, 1
      %s8683 = scalar_select %p8682, %s21, 1
      %s8684 = smul.addr %s8683, 8
      %s8685 = smul.addr %s8684, 8
      %s8686 = scalar_lea.vmem %s8, %s8685
      %p8687 = scmp.lt.s32.totalorder %s21, 1
      %s8688 = scalar_select %p8687, %s21, 1
      %s8689 = smul.addr %s8688, 4
      %s8690 = smul.addr %s8689, 8
      %s8691 = scalar_lea.vmem %s9, %s8690
      // Predicated region
      $region53: #{resblock_forward.1} parent=51 // pred_check
        %p8692 = pneg %p212
      $region54: #{resblock_forward.1} parent=51 // pred_check_branch
        %8694 = sbr.rel (%p8692) target = $region56
      $region55: #{resblock_forward.1} parent=51 // pred_region
        _
      $region56: #{resblock_forward.1} parent=51 // pred_fallthru
        _
      // Predicated region
      $region57: #{resblock_forward.1} parent=51 // pred_check
        %p8695 = pneg %p238
      $region58: #{resblock_forward.1} parent=51 // pred_check_branch
        %8697 = sbr.rel (%p8695) target = $region60
      $region59: #{resblock_forward.1} parent=51 // pred_region
        _
      $region60: #{resblock_forward.1} parent=51 // pred_fallthru
        _
    $region52: #{resblock_forward.1} parent=5 // pred_fallthru
      _
    %p8698 = scmp.le.s32.totalorder 2, %s16
    // Predicated region
    $region61: #{resblock_forward.1} parent=5 // pred_check
      %p8699 = pneg %p8698
    $region62: #{resblock_forward.1} parent=5 // pred_check_branch
      %8701 = sbr.rel (%p8699) target = $region64
    $region63: #{resblock_forward.1} parent=5 // pred_region
      %s8702 = ssub.s32 %s16, 2
      // Predicated region
      $region65: #{resblock_forward.1} parent=63 // pred_check
        %p8703 = pneg %p218
      $region66: #{resblock_forward.1} parent=63 // pred_check_branch
        %8705 = sbr.rel (%p8703) target = $region68
      $region67: #{resblock_forward.1} parent=63 // pred_region
        %p8706 = scmp.lt.s32.totalorder %s22, 1
        %s8707 = scalar_select %p8706, %s22, 1
        %s8708 = smul.addr %s8707, 8
        %s8709 = smul.addr %s8708, 8
        %s8710 = scalar_lea.vmem %s8, %s8709
      $region68: #{resblock_forward.1} parent=63 // pred_fallthru
        _
      // Predicated region
      $region69: #{resblock_forward.1} parent=63 // pred_check
        %p8711 = pneg %p244
      $region70: #{resblock_forward.1} parent=63 // pred_check_branch
        %8713 = sbr.rel (%p8711) target = $region72
      $region71: #{resblock_forward.1} parent=63 // pred_region
        %p8714 = scmp.lt.s32.totalorder %s22, 1
        %s8715 = scalar_select %p8714, %s22, 1
        %s8716 = smul.addr %s8715, 4
        %s8717 = smul.addr %s8716, 8
        %s8718 = scalar_lea.vmem %s9, %s8717
      $region72: #{resblock_forward.1} parent=63 // pred_fallthru
        _
    $region64: #{resblock_forward.1} parent=5 // pred_fallthru
      _
  $region6: #{resblock_forward.1} parent=0 // loop_footer
    %s20 = sadd.s32 1, %s16
  $region7: #{resblock_forward.1} parent=0 // loop_footer_branch
    %15 = sbr.rel target = $region3
  $region8: #{resblock_forward.1} parent=0 // loop_exit
    _

</llo_original>
